<compile_context>
chip_gen: v7x
topology: tpu7x:2x2x1
jax: 0.10.0
libtpu: 0.0.40
codegen_flags: <defaults>
</compile_context>

<pallas_src>
import math

import jax
import jax.numpy as jnp
import numpy as np
from jax.experimental import pallas as pl
from jax.experimental.pallas import tpu as pltpu


# ------------------------------ kernel helpers ------------------------------

def _dot(a, b):
    return jnp.dot(a, b, preferred_element_type=jnp.float32)


def _dot_t(a, b):
    """a^T @ b without materializing the transpose (contract leading dims)."""
    return jax.lax.dot_general(a, b, (((0,), (0,)), ((), ())),
                               preferred_element_type=jnp.float32)


def _dot_nt(a, b):
    """a @ b^T (contract trailing dims)."""
    return jax.lax.dot_general(a, b, (((1,), (1,)), ((), ())),
                               preferred_element_type=jnp.float32)


def _softmax_rows(s):
    m = jnp.max(s, axis=-1, keepdims=True)
    e = jnp.exp(s - m)
    return e / jnp.sum(e, axis=-1, keepdims=True)


def _gcn_mean_pool(attn, xl, b_lin_row):
    """Dense GCNConv (PyG defaults) on a fully-connected graph + global mean pool.

    attn:   (N, N) edge weight of edge i->j stored at [i, j]
    xl:     (N, H) node features already passed through the (bias-free) linear
    b_lin_row: (1, H) GCNConv bias (added AFTER aggregation, as in PyG)
    """
    n = attn.shape[0]
    ones_col = jnp.ones((n, 1), jnp.float32)
    deg_col = _dot_t(attn, ones_col)                  # (N, 1): deg[j] = sum_i A[i, j]
    deg_row = jnp.sum(attn, axis=0, keepdims=True)    # (1, N): same values, row layout
    dinv_c = 1.0 / jnp.sqrt(deg_col)
    dinv_r = 1.0 / jnp.sqrt(deg_row)
    ahat = dinv_c * attn * dinv_r                     # D^-1/2 A D^-1/2
    nodes = _dot_t(ahat, xl) + b_lin_row              # out[j] = sum_i ahat[i, j] xl[i]
    return jnp.mean(nodes, axis=0, keepdims=True)     # (1, H) global mean pool


# ------------------------------- Pallas kernel -------------------------------

def _timeterm_kernel(xs_ref, xt_ref,
                     wconv_ref, bconv_ref,
                     dqf_ref, dkf_ref, dqt_ref, dkt_ref,
                     wlinf_ref, blinf_ref, wlint_ref, blint_ref,
                     wproj_ref, bproj_ref,
                     out_ref, attn_f_ref, attn_t_ref):
    Bt, W, F = xt_ref.shape

    # Fused causal dilated conv1d for the whole batch tile: a single MXU matmul
    # with M = Bt*W rows (128 when Bt*W = 128); the K taps live in the
    # contraction dim.  Rows are (sample, time), columns are output channels.
    conv_lm = _dot(xs_ref[...], wconv_ref[...]) + bconv_ref[...]     # (Bt*W, F)

    xt_all = xt_ref[...]                                             # (Bt, W, F)
    dqf, dkf = dqf_ref[...], dkf_ref[...]                            # (F,1), (1,F)
    dqt, dkt = dqt_ref[...], dkt_ref[...]                            # (W,1), (1,W)
    wlinf_t, blinf = wlinf_ref[...], blinf_ref[...]                  # (W,H), (1,H)
    wlint_t, blint = wlint_ref[...], blint_ref[...]                  # (F,H), (1,H)
    wproj_t, bproj = wproj_ref[...], bproj_ref[...]                  # (2H,O), (1,O)

    inv_sqrt_w = 1.0 / math.sqrt(W)
    inv_sqrt_f = 1.0 / math.sqrt(F)

    out_rows, attn_f_rows, attn_t_rows = [], [], []
    for b in range(Bt):
        # --- feature branch (nodes = channels, node features = time steps) ---
        xf_lm = conv_lm[b * W:(b + 1) * W, :]          # (W, F) == X_feat_b^T
        g = _dot_t(xf_lm, xf_lm)                       # (F, F) = X_feat X_feat^T
        s = (dqf * g * dkf) * inv_sqrt_w               # diag(Wq) G diag(Wk) / sqrt(W)
        attn_f = _softmax_rows(s)                      # (F, F)
        xl_f = _dot_t(xf_lm, wlinf_t)                  # (F, H)  GCN linear (no bias)
        pool_f = _gcn_mean_pool(attn_f, xl_f, blinf)   # (1, H)

        # --- time branch (nodes = time steps, node features = channels) ---
        xt_b = xt_all[b]                               # (W, F)
        gt = _dot_nt(xt_b, xt_b)                       # (W, W)
        st = (dqt * gt * dkt) * inv_sqrt_f
        attn_t = _softmax_rows(st)                     # (W, W)
        xl_t = _dot(xt_b, wlint_t)                     # (W, H)
        pool_t = _gcn_mean_pool(attn_t, xl_t, blint)   # (1, H)

        # --- concat + projection ---
        cat = jnp.concatenate([pool_f, pool_t], axis=1)          # (1, 2H)
        out_rows.append(_dot(cat, wproj_t) + bproj)              # (1, O)
        attn_f_rows.append(attn_f[None])
        attn_t_rows.append(attn_t[None])

    out_ref[...] = jnp.concatenate(out_rows, axis=0)             # (Bt, O)
    attn_f_ref[...] = jnp.concatenate(attn_f_rows, axis=0)       # (Bt, F, F)
    attn_t_ref[...] = jnp.concatenate(attn_t_rows, axis=0)       # (Bt, W, W)


# ------------------------------- Python wrapper -------------------------------

def timeterm_gcn_pallas(x_time, params, *, kernel_size, dilation, block_b=8):
    """Forward of TimeTermGCN.  x_time: (B, window_size, num_features) float32."""
    B, W, F = x_time.shape
    K, dil = kernel_size, dilation
    pad = dil * (K - 1)                      # causal: conv-then-[:, :, :-pad] keeps W
    H = params['w_lin_feat'].shape[0]
    O = params['w_proj'].shape[0]
    assert pad >= 1 and B % block_b == 0

    # Module does X_feat = reshape(X_time, (B, F, W))  (a reshape, not a transpose).
    x_feat = x_time.reshape(B, F, W)

    # Host-side layout plumbing: left-pad causally and stack the K shifted taps so
    # the conv becomes one dense matmul inside the kernel.
    xpad = jnp.pad(x_feat, ((0, 0), (0, 0), (pad, 0)))                    # (B, F, W+pad)
    taps = jnp.stack([xpad[:, :, k * dil:k * dil + W] for k in range(K)], axis=0)
    xs = jnp.transpose(taps, (1, 3, 0, 2)).reshape(B * W, K * F)          # rows=(b,t), cols=(k,f)

    # Conv weight (O=F, I=F, K) -> (K*F, F) so conv == xs @ w_fused_T + bias.
    w_fused_t = jnp.transpose(params['w_conv'], (2, 1, 0)).reshape(K * F, F)
    b_conv = params['b_conv'].reshape(1, F)

    # einsum('jj,ijk->ijk', W, X) only uses diag(W).
    dqf = jnp.diagonal(params['wq_feat']).reshape(F, 1)
    dkf = jnp.diagonal(params['wk_feat']).reshape(1, F)
    dqt = jnp.diagonal(params['wq_time']).reshape(W, 1)
    dkt = jnp.diagonal(params['wk_time']).reshape(1, W)

    wlinf_t = params['w_lin_feat'].T                                      # (W, H)
    blinf = params['b_lin_feat'].reshape(1, H)
    wlint_t = params['w_lin_time'].T                                      # (F, H)
    blint = params['b_lin_time'].reshape(1, H)
    wproj_t = params['w_proj'].T                                          # (2H, O)
    bproj = params['b_proj'].reshape(1, O)

    weights = (w_fused_t, b_conv, dqf, dkf, dqt, dkt,
               wlinf_t, blinf, wlint_t, blint, wproj_t, bproj)

    def const_spec(a):
        return pl.BlockSpec(a.shape, lambda i, _nd=a.ndim: (0,) * _nd)

    grid = (B // block_b,)
    in_specs = ([pl.BlockSpec((block_b * W, K * F), lambda i: (i, 0)),
                 pl.BlockSpec((block_b, W, F), lambda i: (i, 0, 0))]
                + [const_spec(a) for a in weights])
    out_specs = (pl.BlockSpec((block_b, O), lambda i: (i, 0)),
                 pl.BlockSpec((block_b, F, F), lambda i: (i, 0, 0)),
                 pl.BlockSpec((block_b, W, W), lambda i: (i, 0, 0)))
    out_shape = (jax.ShapeDtypeStruct((B, O), jnp.float32),
                 jax.ShapeDtypeStruct((B, F, F), jnp.float32),
                 jax.ShapeDtypeStruct((B, W, W), jnp.float32))

    out, attn_f, attn_t = pl.pallas_call(
        _timeterm_kernel,
        grid=grid,
        in_specs=in_specs,
        out_specs=out_specs,
        out_shape=out_shape,
        compiler_params=pltpu.CompilerParams(
            dimension_semantics=("parallel",)),
    )(xs, x_time, *weights)

    # The module returns the attention weights flattened via .view(B, -1).
    return out, [attn_f.reshape(B, F * F), attn_t.reshape(B, W * W)]


# --------------------------- parameter construction ---------------------------

def init_params(key, *, num_features, window_size, hidden_size, output_size,
                kernel_size):
    F, W, H, O, K = num_features, window_size, hidden_size, output_size, kernel_size
    ks = jax.random.split(key, 12)
    cb = 1.0 / math.sqrt(F * K)
    lb_f = 1.0 / math.sqrt(W)
    lb_t = 1.0 / math.sqrt(F)
    pb = 1.0 / math.sqrt(2 * H)
    return dict(
        w_conv=jax.random.uniform(ks[0], (F, F, K), jnp.float32, -cb, cb),
        b_conv=jax.random.uniform(ks[1], (F,), jnp.float32, -cb, cb),
        wq_feat=jax.random.normal(ks[2], (F, F), jnp.float32),
        wk_feat=jax.random.normal(ks[3], (F, F), jnp.float32),
        wq_time=jax.random.normal(ks[4], (W, W), jnp.float32),
        wk_time=jax.random.normal(ks[5], (W, W), jnp.float32),
        w_lin_feat=jax.random.uniform(ks[6], (H, W), jnp.float32, -lb_f, lb_f),
        b_lin_feat=jax.random.uniform(ks[7], (H,), jnp.float32, -lb_f, lb_f),
        w_lin_time=jax.random.uniform(ks[8], (H, F), jnp.float32, -lb_t, lb_t),
        b_lin_time=jax.random.uniform(ks[9], (H,), jnp.float32, -lb_t, lb_t),
        w_proj=jax.random.uniform(ks[10], (O, 2 * H), jnp.float32, -pb, pb),
        b_proj=jax.random.uniform(ks[11], (O,), jnp.float32, -pb, pb),
    )


# -------------------------- pure-JAX reference (check) -------------------------

def _ref_forward(x_time, p, *, kernel_size, dilation):
    B, W, F = x_time.shape
    K, dil = kernel_size, dilation
    pad = dil * (K - 1)
    hp = jax.lax.Precision.HIGHEST

    # DilatedCNN: conv1d(sym. padding) then [:, :, :-pad]
    x_feat = x_time.reshape(B, F, W)
    y = jax.lax.conv_general_dilated(
        x_feat, p['w_conv'], window_strides=(1,), padding=[(pad, pad)],
        rhs_dilation=(dil,), dimension_numbers=('NCH', 'OIH', 'NCH'),
        precision=hp) + p['b_conv'][None, :, None]
    x_feat = y[:, :, :-pad]

    def attn_weights(x, wq, wk, d):
        q = jnp.diagonal(wq)[None, :, None] * x
        k = jnp.diagonal(wk)[None, :, None] * x
        s = jnp.einsum('bit,bjt->bij', q, k, precision=hp) / math.sqrt(d)
        return jax.nn.softmax(s, axis=-1)

    wf = attn_weights(x_feat, p['wq_feat'], p['wk_feat'], W)   # (B, F, F)
    wt = attn_weights(x_time, p['wq_time'], p['wk_time'], F)   # (B, W, W)

    def gcn_mean_pool(x, a, w_lin, b_lin):
        deg = jnp.sum(a, axis=1)                               # col sums (targets)
        dinv = 1.0 / jnp.sqrt(deg)
        ahat = dinv[:, :, None] * a * dinv[:, None, :]
        xl = jnp.einsum('bnd,hd->bnh', x, w_lin, precision=hp)
        nodes = jnp.einsum('bij,bih->bjh', ahat, xl, precision=hp) + b_lin[None, None, :]
        return jnp.mean(nodes, axis=1)

    of = gcn_mean_pool(x_feat, wf, p['w_lin_feat'], p['b_lin_feat'])
    ot = gcn_mean_pool(x_time, wt, p['w_lin_time'], p['b_lin_time'])
    out = jnp.dot(jnp.concatenate([of, ot], axis=-1), p['w_proj'].T,
                  precision=hp) + p['b_proj'][None, :]
    return out, [wf.reshape(B, -1), wt.reshape(B, -1)]


# ------------------------------------ main ------------------------------------

if __name__ == "__main__":
    B, W, F = 16, 16, 8          # batch, window_size, num_features  (x: (B, W, F))
    H, O = 32, 8                 # hidden_size, output_size
    K, DIL = 3, 2                # kernel, dilation; padding = DIL*(K-1) = 4 (causal)

    key = jax.random.PRNGKey(0)
    k_x, k_p = jax.random.split(key)
    x_time = jax.random.normal(k_x, (B, W, F), jnp.float32)
    params = init_params(k_p, num_features=F, window_size=W, hidden_size=H,
                         output_size=O, kernel_size=K)

    out, (attn_f, attn_t) = timeterm_gcn_pallas(
        x_time, params, kernel_size=K, dilation=DIL, block_b=8)
    out = jax.block_until_ready(out)
    attn_f = jax.block_until_ready(attn_f)
    attn_t = jax.block_until_ready(attn_t)

    ref_out, (ref_f, ref_t) = _ref_forward(x_time, params,
                                           kernel_size=K, dilation=DIL)
    np.testing.assert_allclose(np.asarray(out), np.asarray(ref_out),
                               rtol=2e-4, atol=2e-4)
    np.testing.assert_allclose(np.asarray(attn_f), np.asarray(ref_f),
                               rtol=2e-4, atol=2e-4)
    np.testing.assert_allclose(np.asarray(attn_t), np.asarray(ref_t),
                               rtol=2e-4, atol=2e-4)

    # TODO(synk): torch_geometric Data/DataLoader batching has no numeric effect
    # (disjoint graphs); GCNConv + global_mean_pool are implemented as the
    # equivalent dense math on the fully-connected graph with PyG-default
    # normalization.  Training-only paths (dropout, gumbel / masked softmax) are
    # not modeled (module defaults reduce them to plain softmax / identity).
    print("KERNEL_OK")
</pallas_src>

<mosaic_0001>
module attributes {stable_mosaic.version = 11 : i64} {
  func.func @_timeterm_kernel(%arg0: i32, %arg1: memref<128x24xf32, #tpu.memory_space<vmem>>, %arg2: memref<8x16x8xf32, #tpu.memory_space<vmem>>, %arg3: memref<24x8xf32, #tpu.memory_space<vmem>>, %arg4: memref<1x8xf32, #tpu.memory_space<vmem>>, %arg5: memref<8x1xf32, #tpu.memory_space<vmem>>, %arg6: memref<1x8xf32, #tpu.memory_space<vmem>>, %arg7: memref<16x1xf32, #tpu.memory_space<vmem>>, %arg8: memref<1x16xf32, #tpu.memory_space<vmem>>, %arg9: memref<16x32xf32, #tpu.memory_space<vmem>>, %arg10: memref<1x32xf32, #tpu.memory_space<vmem>>, %arg11: memref<8x32xf32, #tpu.memory_space<vmem>>, %arg12: memref<1x32xf32, #tpu.memory_space<vmem>>, %arg13: memref<64x8xf32, #tpu.memory_space<vmem>>, %arg14: memref<1x8xf32, #tpu.memory_space<vmem>>, %arg15: memref<8x8xf32, #tpu.memory_space<vmem>>, %arg16: memref<8x8x8xf32, #tpu.memory_space<vmem>>, %arg17: memref<8x16x16xf32, #tpu.memory_space<vmem>>) attributes {dimension_semantics = [#tpu.dimension_semantics<parallel>], iteration_bounds = array<i64: 2>, scalar_prefetch = 0 : i64, scratch_operands = 0 : i64, tpu.core_type = #tpu.core_type<tc>, window_params = [{transform_indices = @transform_0, window_bounds = array<i64: 128, 24>}, {transform_indices = @transform_1, window_bounds = array<i64: 8, 16, 8>}, {pipeline_mode = #tpu.pipeline_mode<synchronous>, transform_indices = @transform_2, window_bounds = array<i64: 24, 8>}, {pipeline_mode = #tpu.pipeline_mode<synchronous>, transform_indices = @transform_3, window_bounds = array<i64: 1, 8>}, {pipeline_mode = #tpu.pipeline_mode<synchronous>, transform_indices = @transform_4, window_bounds = array<i64: 8, 1>}, {pipeline_mode = #tpu.pipeline_mode<synchronous>, transform_indices = @transform_5, window_bounds = array<i64: 1, 8>}, {pipeline_mode = #tpu.pipeline_mode<synchronous>, transform_indices = @transform_6, window_bounds = array<i64: 16, 1>}, {pipeline_mode = #tpu.pipeline_mode<synchronous>, transform_indices = @transform_7, window_bounds = array<i64: 1, 16>}, {pipeline_mode = #tpu.pipeline_mode<synchronous>, transform_indices = @transform_8, window_bounds = array<i64: 16, 32>}, {pipeline_mode = #tpu.pipeline_mode<synchronous>, transform_indices = @transform_9, window_bounds = array<i64: 1, 32>}, {pipeline_mode = #tpu.pipeline_mode<synchronous>, transform_indices = @transform_10, window_bounds = array<i64: 8, 32>}, {pipeline_mode = #tpu.pipeline_mode<synchronous>, transform_indices = @transform_11, window_bounds = array<i64: 1, 32>}, {pipeline_mode = #tpu.pipeline_mode<synchronous>, transform_indices = @transform_12, window_bounds = array<i64: 64, 8>}, {pipeline_mode = #tpu.pipeline_mode<synchronous>, transform_indices = @transform_13, window_bounds = array<i64: 1, 8>}, {transform_indices = @transform_14, window_bounds = array<i64: 8, 8>}, {transform_indices = @transform_15, window_bounds = array<i64: 8, 8, 8>}, {transform_indices = @transform_16, window_bounds = array<i64: 8, 16, 16>}]} {
    %c0 = arith.constant 0 : index
    %c0_0 = arith.constant 0 : index
    %0 = vector.load %arg1[%c0, %c0_0] : memref<128x24xf32, #tpu.memory_space<vmem>>, vector<128x24xf32>
    %c0_1 = arith.constant 0 : index
    %c0_2 = arith.constant 0 : index
    %1 = vector.load %arg3[%c0_1, %c0_2] : memref<24x8xf32, #tpu.memory_space<vmem>>, vector<24x8xf32>
    %cst = arith.constant dense<0.000000e+00> : vector<128x8xf32>
    %2 = tpu.matmul %0, %1, %cst {dimension_numbers = #tpu.dot_dimension_numbers<[1], [0], [0], [1], [0, 0, 1, 1], [], []>} : vector<128x24xf32>, vector<24x8xf32>, vector<128x8xf32> -> vector<128x8xf32>
    %c0_3 = arith.constant 0 : index
    %c0_4 = arith.constant 0 : index
    %3 = vector.load %arg4[%c0_3, %c0_4] : memref<1x8xf32, #tpu.memory_space<vmem>>, vector<1x8xf32>
    %4 = vector.broadcast %3 : vector<1x8xf32> to vector<128x8xf32>
    %5 = arith.addf %2, %4 : vector<128x8xf32>
    %c0_5 = arith.constant 0 : index
    %c0_6 = arith.constant 0 : index
    %c0_7 = arith.constant 0 : index
    %6 = vector.load %arg2[%c0_5, %c0_6, %c0_7] : memref<8x16x8xf32, #tpu.memory_space<vmem>>, vector<8x16x8xf32>
    %c0_8 = arith.constant 0 : index
    %c0_9 = arith.constant 0 : index
    %7 = vector.load %arg5[%c0_8, %c0_9] : memref<8x1xf32, #tpu.memory_space<vmem>>, vector<8x1xf32>
    %c0_10 = arith.constant 0 : index
    %c0_11 = arith.constant 0 : index
    %8 = vector.load %arg6[%c0_10, %c0_11] : memref<1x8xf32, #tpu.memory_space<vmem>>, vector<1x8xf32>
    %c0_12 = arith.constant 0 : index
    %c0_13 = arith.constant 0 : index
    %9 = vector.load %arg7[%c0_12, %c0_13] : memref<16x1xf32, #tpu.memory_space<vmem>>, vector<16x1xf32>
    %c0_14 = arith.constant 0 : index
    %c0_15 = arith.constant 0 : index
    %10 = vector.load %arg8[%c0_14, %c0_15] : memref<1x16xf32, #tpu.memory_space<vmem>>, vector<1x16xf32>
    %c0_16 = arith.constant 0 : index
    %c0_17 = arith.constant 0 : index
    %11 = vector.load %arg9[%c0_16, %c0_17] : memref<16x32xf32, #tpu.memory_space<vmem>>, vector<16x32xf32>
    %c0_18 = arith.constant 0 : index
    %c0_19 = arith.constant 0 : index
    %12 = vector.load %arg10[%c0_18, %c0_19] : memref<1x32xf32, #tpu.memory_space<vmem>>, vector<1x32xf32>
    %c0_20 = arith.constant 0 : index
    %c0_21 = arith.constant 0 : index
    %13 = vector.load %arg11[%c0_20, %c0_21] : memref<8x32xf32, #tpu.memory_space<vmem>>, vector<8x32xf32>
    %c0_22 = arith.constant 0 : index
    %c0_23 = arith.constant 0 : index
    %14 = vector.load %arg12[%c0_22, %c0_23] : memref<1x32xf32, #tpu.memory_space<vmem>>, vector<1x32xf32>
    %c0_24 = arith.constant 0 : index
    %c0_25 = arith.constant 0 : index
    %15 = vector.load %arg13[%c0_24, %c0_25] : memref<64x8xf32, #tpu.memory_space<vmem>>, vector<64x8xf32>
    %c0_26 = arith.constant 0 : index
    %c0_27 = arith.constant 0 : index
    %16 = vector.load %arg14[%c0_26, %c0_27] : memref<1x8xf32, #tpu.memory_space<vmem>>, vector<1x8xf32>
    %17 = vector.extract_strided_slice %5 {offsets = [0, 0], sizes = [16, 8], strides = [1, 1]} : vector<128x8xf32> to vector<16x8xf32>
    %cst_28 = arith.constant dense<0.000000e+00> : vector<8x8xf32>
    %18 = tpu.matmul %17, %17, %cst_28 {dimension_numbers = #tpu.dot_dimension_numbers<[0], [0], [1], [1], [0, 1, 1, 1], [], []>} : vector<16x8xf32>, vector<16x8xf32>, vector<8x8xf32> -> vector<8x8xf32>
    %19 = vector.broadcast %7 : vector<8x1xf32> to vector<8x8xf32>
    %20 = arith.mulf %19, %18 : vector<8x8xf32>
    %21 = vector.broadcast %8 : vector<1x8xf32> to vector<8x8xf32>
    %22 = arith.mulf %20, %21 : vector<8x8xf32>
    %cst_29 = arith.constant 2.500000e-01 : f32
    %23 = vector.broadcast %cst_29 : f32 to vector<8x8xf32>
    %24 = arith.mulf %22, %23 : vector<8x8xf32>
    %cst_30 = arith.constant dense<0xFF800000> : vector<8xf32>
    %25 = vector.multi_reduction <maximumf>, %24, %cst_30 [1] : vector<8x8xf32> to vector<8xf32>
    %26 = vector.shape_cast %25 : vector<8xf32> to vector<8x1xf32>
    %27 = vector.broadcast %26 : vector<8x1xf32> to vector<8x8xf32>
    %28 = arith.subf %24, %27 : vector<8x8xf32>
    %29 = math.exp %28 : vector<8x8xf32>
    %cst_31 = arith.constant dense<0.000000e+00> : vector<8xf32>
    %30 = vector.multi_reduction <add>, %29, %cst_31 [1] : vector<8x8xf32> to vector<8xf32>
    %31 = vector.shape_cast %30 : vector<8xf32> to vector<8x1xf32>
    %32 = vector.broadcast %31 : vector<8x1xf32> to vector<8x8xf32>
    %33 = arith.divf %29, %32 : vector<8x8xf32>
    %cst_32 = arith.constant dense<0.000000e+00> : vector<8x32xf32>
    %34 = tpu.matmul %17, %11, %cst_32 {dimension_numbers = #tpu.dot_dimension_numbers<[0], [0], [1], [1], [0, 1, 1, 1], [], []>} : vector<16x8xf32>, vector<16x32xf32>, vector<8x32xf32> -> vector<8x32xf32>
    %cst_33 = arith.constant 1.000000e+00 : f32
    %35 = vector.broadcast %cst_33 : f32 to vector<8x1xf32>
    %cst_34 = arith.constant dense<0.000000e+00> : vector<8x1xf32>
    %36 = tpu.matmul %33, %35, %cst_34 {dimension_numbers = #tpu.dot_dimension_numbers<[0], [0], [1], [1], [0, 1, 1, 1], [], []>} : vector<8x8xf32>, vector<8x1xf32>, vector<8x1xf32> -> vector<8x1xf32>
    %cst_35 = arith.constant dense<0.000000e+00> : vector<8xf32>
    %37 = vector.multi_reduction <add>, %33, %cst_35 [0] : vector<8x8xf32> to vector<8xf32>
    %38 = vector.shape_cast %37 : vector<8xf32> to vector<1x8xf32>
    %39 = math.sqrt %36 : vector<8x1xf32>
    %cst_36 = arith.constant 1.000000e+00 : f32
    %40 = vector.broadcast %cst_36 : f32 to vector<8x1xf32>
    %41 = arith.divf %40, %39 : vector<8x1xf32>
    %42 = math.sqrt %38 : vector<1x8xf32>
    %cst_37 = arith.constant 1.000000e+00 : f32
    %43 = vector.broadcast %cst_37 : f32 to vector<1x8xf32>
    %44 = arith.divf %43, %42 : vector<1x8xf32>
    %45 = vector.broadcast %41 : vector<8x1xf32> to vector<8x8xf32>
    %46 = arith.mulf %45, %33 : vector<8x8xf32>
    %47 = vector.broadcast %44 : vector<1x8xf32> to vector<8x8xf32>
    %48 = arith.mulf %46, %47 : vector<8x8xf32>
    %cst_38 = arith.constant dense<0.000000e+00> : vector<8x32xf32>
    %49 = tpu.matmul %48, %34, %cst_38 {dimension_numbers = #tpu.dot_dimension_numbers<[0], [0], [1], [1], [0, 1, 1, 1], [], []>} : vector<8x8xf32>, vector<8x32xf32>, vector<8x32xf32> -> vector<8x32xf32>
    %50 = vector.broadcast %12 : vector<1x32xf32> to vector<8x32xf32>
    %51 = arith.addf %49, %50 : vector<8x32xf32>
    %cst_39 = arith.constant dense<0.000000e+00> : vector<32xf32>
    %52 = vector.multi_reduction <add>, %51, %cst_39 [0] : vector<8x32xf32> to vector<32xf32>
    %53 = vector.shape_cast %52 : vector<32xf32> to vector<1x32xf32>
    %cst_40 = arith.constant 8.000000e+00 : f32
    %54 = vector.broadcast %cst_40 : f32 to vector<1x32xf32>
    %55 = arith.divf %53, %54 : vector<1x32xf32>
    %56 = vector.extract_strided_slice %6 {offsets = [0, 0, 0], sizes = [1, 16, 8], strides = [1, 1, 1]} : vector<8x16x8xf32> to vector<1x16x8xf32>
    %57 = vector.shape_cast %56 : vector<1x16x8xf32> to vector<16x8xf32>
    %cst_41 = arith.constant dense<0.000000e+00> : vector<16x16xf32>
    %58 = tpu.matmul %57, %57, %cst_41 {dimension_numbers = #tpu.dot_dimension_numbers<[1], [1], [0], [0], [0, 0, 1, 0], [], []>} : vector<16x8xf32>, vector<16x8xf32>, vector<16x16xf32> -> vector<16x16xf32>
    %59 = vector.broadcast %9 : vector<16x1xf32> to vector<16x16xf32>
    %60 = arith.mulf %59, %58 : vector<16x16xf32>
    %61 = vector.broadcast %10 : vector<1x16xf32> to vector<16x16xf32>
    %62 = arith.mulf %60, %61 : vector<16x16xf32>
    %cst_42 = arith.constant 0.353553385 : f32
    %63 = vector.broadcast %cst_42 : f32 to vector<16x16xf32>
    %64 = arith.mulf %62, %63 : vector<16x16xf32>
    %cst_43 = arith.constant dense<0xFF800000> : vector<16xf32>
    %65 = vector.multi_reduction <maximumf>, %64, %cst_43 [1] : vector<16x16xf32> to vector<16xf32>
    %66 = vector.shape_cast %65 : vector<16xf32> to vector<16x1xf32>
    %67 = vector.broadcast %66 : vector<16x1xf32> to vector<16x16xf32>
    %68 = arith.subf %64, %67 : vector<16x16xf32>
    %69 = math.exp %68 : vector<16x16xf32>
    %cst_44 = arith.constant dense<0.000000e+00> : vector<16xf32>
    %70 = vector.multi_reduction <add>, %69, %cst_44 [1] : vector<16x16xf32> to vector<16xf32>
    %71 = vector.shape_cast %70 : vector<16xf32> to vector<16x1xf32>
    %72 = vector.broadcast %71 : vector<16x1xf32> to vector<16x16xf32>
    %73 = arith.divf %69, %72 : vector<16x16xf32>
    %cst_45 = arith.constant dense<0.000000e+00> : vector<16x32xf32>
    %74 = tpu.matmul %57, %13, %cst_45 {dimension_numbers = #tpu.dot_dimension_numbers<[1], [0], [0], [1], [0, 0, 1, 1], [], []>} : vector<16x8xf32>, vector<8x32xf32>, vector<16x32xf32> -> vector<16x32xf32>
    %cst_46 = arith.constant 1.000000e+00 : f32
    %75 = vector.broadcast %cst_46 : f32 to vector<16x1xf32>
    %cst_47 = arith.constant dense<0.000000e+00> : vector<16x1xf32>
    %76 = tpu.matmul %73, %75, %cst_47 {dimension_numbers = #tpu.dot_dimension_numbers<[0], [0], [1], [1], [0, 1, 1, 1], [], []>} : vector<16x16xf32>, vector<16x1xf32>, vector<16x1xf32> -> vector<16x1xf32>
    %cst_48 = arith.constant dense<0.000000e+00> : vector<16xf32>
    %77 = vector.multi_reduction <add>, %73, %cst_48 [0] : vector<16x16xf32> to vector<16xf32>
    %78 = vector.shape_cast %77 : vector<16xf32> to vector<1x16xf32>
    %79 = math.sqrt %76 : vector<16x1xf32>
    %cst_49 = arith.constant 1.000000e+00 : f32
    %80 = vector.broadcast %cst_49 : f32 to vector<16x1xf32>
    %81 = arith.divf %80, %79 : vector<16x1xf32>
    %82 = math.sqrt %78 : vector<1x16xf32>
    %cst_50 = arith.constant 1.000000e+00 : f32
    %83 = vector.broadcast %cst_50 : f32 to vector<1x16xf32>
    %84 = arith.divf %83, %82 : vector<1x16xf32>
    %85 = vector.broadcast %81 : vector<16x1xf32> to vector<16x16xf32>
    %86 = arith.mulf %85, %73 : vector<16x16xf32>
    %87 = vector.broadcast %84 : vector<1x16xf32> to vector<16x16xf32>
    %88 = arith.mulf %86, %87 : vector<16x16xf32>
    %cst_51 = arith.constant dense<0.000000e+00> : vector<16x32xf32>
    %89 = tpu.matmul %88, %74, %cst_51 {dimension_numbers = #tpu.dot_dimension_numbers<[0], [0], [1], [1], [0, 1, 1, 1], [], []>} : vector<16x16xf32>, vector<16x32xf32>, vector<16x32xf32> -> vector<16x32xf32>
    %90 = vector.broadcast %14 : vector<1x32xf32> to vector<16x32xf32>
    %91 = arith.addf %89, %90 : vector<16x32xf32>
    %cst_52 = arith.constant dense<0.000000e+00> : vector<32xf32>
    %92 = vector.multi_reduction <add>, %91, %cst_52 [0] : vector<16x32xf32> to vector<32xf32>
    %93 = vector.shape_cast %92 : vector<32xf32> to vector<1x32xf32>
    %cst_53 = arith.constant 1.600000e+01 : f32
    %94 = vector.broadcast %cst_53 : f32 to vector<1x32xf32>
    %95 = arith.divf %93, %94 : vector<1x32xf32>
    %96 = tpu.concatenate %55, %95 in 1 : vector<1x32xf32>, vector<1x32xf32> -> vector<1x64xf32>
    %cst_54 = arith.constant dense<0.000000e+00> : vector<1x8xf32>
    %97 = tpu.matmul %96, %15, %cst_54 {dimension_numbers = #tpu.dot_dimension_numbers<[1], [0], [0], [1], [0, 0, 1, 1], [], []>} : vector<1x64xf32>, vector<64x8xf32>, vector<1x8xf32> -> vector<1x8xf32>
    %98 = arith.addf %97, %16 : vector<1x8xf32>
    %99 = vector.shape_cast %33 : vector<8x8xf32> to vector<1x8x8xf32>
    %100 = vector.shape_cast %73 : vector<16x16xf32> to vector<1x16x16xf32>
    %101 = vector.extract_strided_slice %5 {offsets = [16, 0], sizes = [16, 8], strides = [1, 1]} : vector<128x8xf32> to vector<16x8xf32>
    %cst_55 = arith.constant dense<0.000000e+00> : vector<8x8xf32>
    %102 = tpu.matmul %101, %101, %cst_55 {dimension_numbers = #tpu.dot_dimension_numbers<[0], [0], [1], [1], [0, 1, 1, 1], [], []>} : vector<16x8xf32>, vector<16x8xf32>, vector<8x8xf32> -> vector<8x8xf32>
    %103 = vector.broadcast %7 : vector<8x1xf32> to vector<8x8xf32>
    %104 = arith.mulf %103, %102 : vector<8x8xf32>
    %105 = vector.broadcast %8 : vector<1x8xf32> to vector<8x8xf32>
    %106 = arith.mulf %104, %105 : vector<8x8xf32>
    %cst_56 = arith.constant 2.500000e-01 : f32
    %107 = vector.broadcast %cst_56 : f32 to vector<8x8xf32>
    %108 = arith.mulf %106, %107 : vector<8x8xf32>
    %cst_57 = arith.constant dense<0xFF800000> : vector<8xf32>
    %109 = vector.multi_reduction <maximumf>, %108, %cst_57 [1] : vector<8x8xf32> to vector<8xf32>
    %110 = vector.shape_cast %109 : vector<8xf32> to vector<8x1xf32>
    %111 = vector.broadcast %110 : vector<8x1xf32> to vector<8x8xf32>
    %112 = arith.subf %108, %111 : vector<8x8xf32>
    %113 = math.exp %112 : vector<8x8xf32>
    %cst_58 = arith.constant dense<0.000000e+00> : vector<8xf32>
    %114 = vector.multi_reduction <add>, %113, %cst_58 [1] : vector<8x8xf32> to vector<8xf32>
    %115 = vector.shape_cast %114 : vector<8xf32> to vector<8x1xf32>
    %116 = vector.broadcast %115 : vector<8x1xf32> to vector<8x8xf32>
    %117 = arith.divf %113, %116 : vector<8x8xf32>
    %cst_59 = arith.constant dense<0.000000e+00> : vector<8x32xf32>
    %118 = tpu.matmul %101, %11, %cst_59 {dimension_numbers = #tpu.dot_dimension_numbers<[0], [0], [1], [1], [0, 1, 1, 1], [], []>} : vector<16x8xf32>, vector<16x32xf32>, vector<8x32xf32> -> vector<8x32xf32>
    %cst_60 = arith.constant 1.000000e+00 : f32
    %119 = vector.broadcast %cst_60 : f32 to vector<8x1xf32>
    %cst_61 = arith.constant dense<0.000000e+00> : vector<8x1xf32>
    %120 = tpu.matmul %117, %119, %cst_61 {dimension_numbers = #tpu.dot_dimension_numbers<[0], [0], [1], [1], [0, 1, 1, 1], [], []>} : vector<8x8xf32>, vector<8x1xf32>, vector<8x1xf32> -> vector<8x1xf32>
    %cst_62 = arith.constant dense<0.000000e+00> : vector<8xf32>
    %121 = vector.multi_reduction <add>, %117, %cst_62 [0] : vector<8x8xf32> to vector<8xf32>
    %122 = vector.shape_cast %121 : vector<8xf32> to vector<1x8xf32>
    %123 = math.sqrt %120 : vector<8x1xf32>
    %cst_63 = arith.constant 1.000000e+00 : f32
    %124 = vector.broadcast %cst_63 : f32 to vector<8x1xf32>
    %125 = arith.divf %124, %123 : vector<8x1xf32>
    %126 = math.sqrt %122 : vector<1x8xf32>
    %cst_64 = arith.constant 1.000000e+00 : f32
    %127 = vector.broadcast %cst_64 : f32 to vector<1x8xf32>
    %128 = arith.divf %127, %126 : vector<1x8xf32>
    %129 = vector.broadcast %125 : vector<8x1xf32> to vector<8x8xf32>
    %130 = arith.mulf %129, %117 : vector<8x8xf32>
    %131 = vector.broadcast %128 : vector<1x8xf32> to vector<8x8xf32>
    %132 = arith.mulf %130, %131 : vector<8x8xf32>
    %cst_65 = arith.constant dense<0.000000e+00> : vector<8x32xf32>
    %133 = tpu.matmul %132, %118, %cst_65 {dimension_numbers = #tpu.dot_dimension_numbers<[0], [0], [1], [1], [0, 1, 1, 1], [], []>} : vector<8x8xf32>, vector<8x32xf32>, vector<8x32xf32> -> vector<8x32xf32>
    %134 = vector.broadcast %12 : vector<1x32xf32> to vector<8x32xf32>
    %135 = arith.addf %133, %134 : vector<8x32xf32>
    %cst_66 = arith.constant dense<0.000000e+00> : vector<32xf32>
    %136 = vector.multi_reduction <add>, %135, %cst_66 [0] : vector<8x32xf32> to vector<32xf32>
    %137 = vector.shape_cast %136 : vector<32xf32> to vector<1x32xf32>
    %cst_67 = arith.constant 8.000000e+00 : f32
    %138 = vector.broadcast %cst_67 : f32 to vector<1x32xf32>
    %139 = arith.divf %137, %138 : vector<1x32xf32>
    %140 = vector.extract_strided_slice %6 {offsets = [1, 0, 0], sizes = [1, 16, 8], strides = [1, 1, 1]} : vector<8x16x8xf32> to vector<1x16x8xf32>
    %141 = vector.shape_cast %140 : vector<1x16x8xf32> to vector<16x8xf32>
    %cst_68 = arith.constant dense<0.000000e+00> : vector<16x16xf32>
    %142 = tpu.matmul %141, %141, %cst_68 {dimension_numbers = #tpu.dot_dimension_numbers<[1], [1], [0], [0], [0, 0, 1, 0], [], []>} : vector<16x8xf32>, vector<16x8xf32>, vector<16x16xf32> -> vector<16x16xf32>
    %143 = vector.broadcast %9 : vector<16x1xf32> to vector<16x16xf32>
    %144 = arith.mulf %143, %142 : vector<16x16xf32>
    %145 = vector.broadcast %10 : vector<1x16xf32> to vector<16x16xf32>
    %146 = arith.mulf %144, %145 : vector<16x16xf32>
    %cst_69 = arith.constant 0.353553385 : f32
    %147 = vector.broadcast %cst_69 : f32 to vector<16x16xf32>
    %148 = arith.mulf %146, %147 : vector<16x16xf32>
    %cst_70 = arith.constant dense<0xFF800000> : vector<16xf32>
    %149 = vector.multi_reduction <maximumf>, %148, %cst_70 [1] : vector<16x16xf32> to vector<16xf32>
    %150 = vector.shape_cast %149 : vector<16xf32> to vector<16x1xf32>
    %151 = vector.broadcast %150 : vector<16x1xf32> to vector<16x16xf32>
    %152 = arith.subf %148, %151 : vector<16x16xf32>
    %153 = math.exp %152 : vector<16x16xf32>
    %cst_71 = arith.constant dense<0.000000e+00> : vector<16xf32>
    %154 = vector.multi_reduction <add>, %153, %cst_71 [1] : vector<16x16xf32> to vector<16xf32>
    %155 = vector.shape_cast %154 : vector<16xf32> to vector<16x1xf32>
    %156 = vector.broadcast %155 : vector<16x1xf32> to vector<16x16xf32>
    %157 = arith.divf %153, %156 : vector<16x16xf32>
    %cst_72 = arith.constant dense<0.000000e+00> : vector<16x32xf32>
    %158 = tpu.matmul %141, %13, %cst_72 {dimension_numbers = #tpu.dot_dimension_numbers<[1], [0], [0], [1], [0, 0, 1, 1], [], []>} : vector<16x8xf32>, vector<8x32xf32>, vector<16x32xf32> -> vector<16x32xf32>
    %cst_73 = arith.constant 1.000000e+00 : f32
    %159 = vector.broadcast %cst_73 : f32 to vector<16x1xf32>
    %cst_74 = arith.constant dense<0.000000e+00> : vector<16x1xf32>
    %160 = tpu.matmul %157, %159, %cst_74 {dimension_numbers = #tpu.dot_dimension_numbers<[0], [0], [1], [1], [0, 1, 1, 1], [], []>} : vector<16x16xf32>, vector<16x1xf32>, vector<16x1xf32> -> vector<16x1xf32>
    %cst_75 = arith.constant dense<0.000000e+00> : vector<16xf32>
    %161 = vector.multi_reduction <add>, %157, %cst_75 [0] : vector<16x16xf32> to vector<16xf32>
    %162 = vector.shape_cast %161 : vector<16xf32> to vector<1x16xf32>
    %163 = math.sqrt %160 : vector<16x1xf32>
    %cst_76 = arith.constant 1.000000e+00 : f32
    %164 = vector.broadcast %cst_76 : f32 to vector<16x1xf32>
    %165 = arith.divf %164, %163 : vector<16x1xf32>
    %166 = math.sqrt %162 : vector<1x16xf32>
    %cst_77 = arith.constant 1.000000e+00 : f32
    %167 = vector.broadcast %cst_77 : f32 to vector<1x16xf32>
    %168 = arith.divf %167, %166 : vector<1x16xf32>
    %169 = vector.broadcast %165 : vector<16x1xf32> to vector<16x16xf32>
    %170 = arith.mulf %169, %157 : vector<16x16xf32>
    %171 = vector.broadcast %168 : vector<1x16xf32> to vector<16x16xf32>
    %172 = arith.mulf %170, %171 : vector<16x16xf32>
    %cst_78 = arith.constant dense<0.000000e+00> : vector<16x32xf32>
    %173 = tpu.matmul %172, %158, %cst_78 {dimension_numbers = #tpu.dot_dimension_numbers<[0], [0], [1], [1], [0, 1, 1, 1], [], []>} : vector<16x16xf32>, vector<16x32xf32>, vector<16x32xf32> -> vector<16x32xf32>
    %174 = vector.broadcast %14 : vector<1x32xf32> to vector<16x32xf32>
    %175 = arith.addf %173, %174 : vector<16x32xf32>
    %cst_79 = arith.constant dense<0.000000e+00> : vector<32xf32>
    %176 = vector.multi_reduction <add>, %175, %cst_79 [0] : vector<16x32xf32> to vector<32xf32>
    %177 = vector.shape_cast %176 : vector<32xf32> to vector<1x32xf32>
    %cst_80 = arith.constant 1.600000e+01 : f32
    %178 = vector.broadcast %cst_80 : f32 to vector<1x32xf32>
    %179 = arith.divf %177, %178 : vector<1x32xf32>
    %180 = tpu.concatenate %139, %179 in 1 : vector<1x32xf32>, vector<1x32xf32> -> vector<1x64xf32>
    %cst_81 = arith.constant dense<0.000000e+00> : vector<1x8xf32>
    %181 = tpu.matmul %180, %15, %cst_81 {dimension_numbers = #tpu.dot_dimension_numbers<[1], [0], [0], [1], [0, 0, 1, 1], [], []>} : vector<1x64xf32>, vector<64x8xf32>, vector<1x8xf32> -> vector<1x8xf32>
    %182 = arith.addf %181, %16 : vector<1x8xf32>
    %183 = vector.shape_cast %117 : vector<8x8xf32> to vector<1x8x8xf32>
    %184 = vector.shape_cast %157 : vector<16x16xf32> to vector<1x16x16xf32>
    %185 = vector.extract_strided_slice %5 {offsets = [32, 0], sizes = [16, 8], strides = [1, 1]} : vector<128x8xf32> to vector<16x8xf32>
    %cst_82 = arith.constant dense<0.000000e+00> : vector<8x8xf32>
    %186 = tpu.matmul %185, %185, %cst_82 {dimension_numbers = #tpu.dot_dimension_numbers<[0], [0], [1], [1], [0, 1, 1, 1], [], []>} : vector<16x8xf32>, vector<16x8xf32>, vector<8x8xf32> -> vector<8x8xf32>
    %187 = vector.broadcast %7 : vector<8x1xf32> to vector<8x8xf32>
    %188 = arith.mulf %187, %186 : vector<8x8xf32>
    %189 = vector.broadcast %8 : vector<1x8xf32> to vector<8x8xf32>
    %190 = arith.mulf %188, %189 : vector<8x8xf32>
    %cst_83 = arith.constant 2.500000e-01 : f32
    %191 = vector.broadcast %cst_83 : f32 to vector<8x8xf32>
    %192 = arith.mulf %190, %191 : vector<8x8xf32>
    %cst_84 = arith.constant dense<0xFF800000> : vector<8xf32>
    %193 = vector.multi_reduction <maximumf>, %192, %cst_84 [1] : vector<8x8xf32> to vector<8xf32>
    %194 = vector.shape_cast %193 : vector<8xf32> to vector<8x1xf32>
    %195 = vector.broadcast %194 : vector<8x1xf32> to vector<8x8xf32>
    %196 = arith.subf %192, %195 : vector<8x8xf32>
    %197 = math.exp %196 : vector<8x8xf32>
    %cst_85 = arith.constant dense<0.000000e+00> : vector<8xf32>
    %198 = vector.multi_reduction <add>, %197, %cst_85 [1] : vector<8x8xf32> to vector<8xf32>
    %199 = vector.shape_cast %198 : vector<8xf32> to vector<8x1xf32>
    %200 = vector.broadcast %199 : vector<8x1xf32> to vector<8x8xf32>
    %201 = arith.divf %197, %200 : vector<8x8xf32>
    %cst_86 = arith.constant dense<0.000000e+00> : vector<8x32xf32>
    %202 = tpu.matmul %185, %11, %cst_86 {dimension_numbers = #tpu.dot_dimension_numbers<[0], [0], [1], [1], [0, 1, 1, 1], [], []>} : vector<16x8xf32>, vector<16x32xf32>, vector<8x32xf32> -> vector<8x32xf32>
    %cst_87 = arith.constant 1.000000e+00 : f32
    %203 = vector.broadcast %cst_87 : f32 to vector<8x1xf32>
    %cst_88 = arith.constant dense<0.000000e+00> : vector<8x1xf32>
    %204 = tpu.matmul %201, %203, %cst_88 {dimension_numbers = #tpu.dot_dimension_numbers<[0], [0], [1], [1], [0, 1, 1, 1], [], []>} : vector<8x8xf32>, vector<8x1xf32>, vector<8x1xf32> -> vector<8x1xf32>
    %cst_89 = arith.constant dense<0.000000e+00> : vector<8xf32>
    %205 = vector.multi_reduction <add>, %201, %cst_89 [0] : vector<8x8xf32> to vector<8xf32>
    %206 = vector.shape_cast %205 : vector<8xf32> to vector<1x8xf32>
    %207 = math.sqrt %204 : vector<8x1xf32>
    %cst_90 = arith.constant 1.000000e+00 : f32
    %208 = vector.broadcast %cst_90 : f32 to vector<8x1xf32>
    %209 = arith.divf %208, %207 : vector<8x1xf32>
    %210 = math.sqrt %206 : vector<1x8xf32>
    %cst_91 = arith.constant 1.000000e+00 : f32
    %211 = vector.broadcast %cst_91 : f32 to vector<1x8xf32>
    %212 = arith.divf %211, %210 : vector<1x8xf32>
    %213 = vector.broadcast %209 : vector<8x1xf32> to vector<8x8xf32>
    %214 = arith.mulf %213, %201 : vector<8x8xf32>
    %215 = vector.broadcast %212 : vector<1x8xf32> to vector<8x8xf32>
    %216 = arith.mulf %214, %215 : vector<8x8xf32>
    %cst_92 = arith.constant dense<0.000000e+00> : vector<8x32xf32>
    %217 = tpu.matmul %216, %202, %cst_92 {dimension_numbers = #tpu.dot_dimension_numbers<[0], [0], [1], [1], [0, 1, 1, 1], [], []>} : vector<8x8xf32>, vector<8x32xf32>, vector<8x32xf32> -> vector<8x32xf32>
    %218 = vector.broadcast %12 : vector<1x32xf32> to vector<8x32xf32>
    %219 = arith.addf %217, %218 : vector<8x32xf32>
    %cst_93 = arith.constant dense<0.000000e+00> : vector<32xf32>
    %220 = vector.multi_reduction <add>, %219, %cst_93 [0] : vector<8x32xf32> to vector<32xf32>
    %221 = vector.shape_cast %220 : vector<32xf32> to vector<1x32xf32>
    %cst_94 = arith.constant 8.000000e+00 : f32
    %222 = vector.broadcast %cst_94 : f32 to vector<1x32xf32>
    %223 = arith.divf %221, %222 : vector<1x32xf32>
    %224 = vector.extract_strided_slice %6 {offsets = [2, 0, 0], sizes = [1, 16, 8], strides = [1, 1, 1]} : vector<8x16x8xf32> to vector<1x16x8xf32>
    %225 = vector.shape_cast %224 : vector<1x16x8xf32> to vector<16x8xf32>
    %cst_95 = arith.constant dense<0.000000e+00> : vector<16x16xf32>
    %226 = tpu.matmul %225, %225, %cst_95 {dimension_numbers = #tpu.dot_dimension_numbers<[1], [1], [0], [0], [0, 0, 1, 0], [], []>} : vector<16x8xf32>, vector<16x8xf32>, vector<16x16xf32> -> vector<16x16xf32>
    %227 = vector.broadcast %9 : vector<16x1xf32> to vector<16x16xf32>
    %228 = arith.mulf %227, %226 : vector<16x16xf32>
    %229 = vector.broadcast %10 : vector<1x16xf32> to vector<16x16xf32>
    %230 = arith.mulf %228, %229 : vector<16x16xf32>
    %cst_96 = arith.constant 0.353553385 : f32
    %231 = vector.broadcast %cst_96 : f32 to vector<16x16xf32>
    %232 = arith.mulf %230, %231 : vector<16x16xf32>
    %cst_97 = arith.constant dense<0xFF800000> : vector<16xf32>
    %233 = vector.multi_reduction <maximumf>, %232, %cst_97 [1] : vector<16x16xf32> to vector<16xf32>
    %234 = vector.shape_cast %233 : vector<16xf32> to vector<16x1xf32>
    %235 = vector.broadcast %234 : vector<16x1xf32> to vector<16x16xf32>
    %236 = arith.subf %232, %235 : vector<16x16xf32>
    %237 = math.exp %236 : vector<16x16xf32>
    %cst_98 = arith.constant dense<0.000000e+00> : vector<16xf32>
    %238 = vector.multi_reduction <add>, %237, %cst_98 [1] : vector<16x16xf32> to vector<16xf32>
    %239 = vector.shape_cast %238 : vector<16xf32> to vector<16x1xf32>
    %240 = vector.broadcast %239 : vector<16x1xf32> to vector<16x16xf32>
    %241 = arith.divf %237, %240 : vector<16x16xf32>
    %cst_99 = arith.constant dense<0.000000e+00> : vector<16x32xf32>
    %242 = tpu.matmul %225, %13, %cst_99 {dimension_numbers = #tpu.dot_dimension_numbers<[1], [0], [0], [1], [0, 0, 1, 1], [], []>} : vector<16x8xf32>, vector<8x32xf32>, vector<16x32xf32> -> vector<16x32xf32>
    %cst_100 = arith.constant 1.000000e+00 : f32
    %243 = vector.broadcast %cst_100 : f32 to vector<16x1xf32>
    %cst_101 = arith.constant dense<0.000000e+00> : vector<16x1xf32>
    %244 = tpu.matmul %241, %243, %cst_101 {dimension_numbers = #tpu.dot_dimension_numbers<[0], [0], [1], [1], [0, 1, 1, 1], [], []>} : vector<16x16xf32>, vector<16x1xf32>, vector<16x1xf32> -> vector<16x1xf32>
    %cst_102 = arith.constant dense<0.000000e+00> : vector<16xf32>
    %245 = vector.multi_reduction <add>, %241, %cst_102 [0] : vector<16x16xf32> to vector<16xf32>
    %246 = vector.shape_cast %245 : vector<16xf32> to vector<1x16xf32>
    %247 = math.sqrt %244 : vector<16x1xf32>
    %cst_103 = arith.constant 1.000000e+00 : f32
    %248 = vector.broadcast %cst_103 : f32 to vector<16x1xf32>
    %249 = arith.divf %248, %247 : vector<16x1xf32>
    %250 = math.sqrt %246 : vector<1x16xf32>
    %cst_104 = arith.constant 1.000000e+00 : f32
    %251 = vector.broadcast %cst_104 : f32 to vector<1x16xf32>
    %252 = arith.divf %251, %250 : vector<1x16xf32>
    %253 = vector.broadcast %249 : vector<16x1xf32> to vector<16x16xf32>
    %254 = arith.mulf %253, %241 : vector<16x16xf32>
    %255 = vector.broadcast %252 : vector<1x16xf32> to vector<16x16xf32>
    %256 = arith.mulf %254, %255 : vector<16x16xf32>
    %cst_105 = arith.constant dense<0.000000e+00> : vector<16x32xf32>
    %257 = tpu.matmul %256, %242, %cst_105 {dimension_numbers = #tpu.dot_dimension_numbers<[0], [0], [1], [1], [0, 1, 1, 1], [], []>} : vector<16x16xf32>, vector<16x32xf32>, vector<16x32xf32> -> vector<16x32xf32>
    %258 = vector.broadcast %14 : vector<1x32xf32> to vector<16x32xf32>
    %259 = arith.addf %257, %258 : vector<16x32xf32>
    %cst_106 = arith.constant dense<0.000000e+00> : vector<32xf32>
    %260 = vector.multi_reduction <add>, %259, %cst_106 [0] : vector<16x32xf32> to vector<32xf32>
    %261 = vector.shape_cast %260 : vector<32xf32> to vector<1x32xf32>
    %cst_107 = arith.constant 1.600000e+01 : f32
    %262 = vector.broadcast %cst_107 : f32 to vector<1x32xf32>
    %263 = arith.divf %261, %262 : vector<1x32xf32>
    %264 = tpu.concatenate %223, %263 in 1 : vector<1x32xf32>, vector<1x32xf32> -> vector<1x64xf32>
    %cst_108 = arith.constant dense<0.000000e+00> : vector<1x8xf32>
    %265 = tpu.matmul %264, %15, %cst_108 {dimension_numbers = #tpu.dot_dimension_numbers<[1], [0], [0], [1], [0, 0, 1, 1], [], []>} : vector<1x64xf32>, vector<64x8xf32>, vector<1x8xf32> -> vector<1x8xf32>
    %266 = arith.addf %265, %16 : vector<1x8xf32>
    %267 = vector.shape_cast %201 : vector<8x8xf32> to vector<1x8x8xf32>
    %268 = vector.shape_cast %241 : vector<16x16xf32> to vector<1x16x16xf32>
    %269 = vector.extract_strided_slice %5 {offsets = [48, 0], sizes = [16, 8], strides = [1, 1]} : vector<128x8xf32> to vector<16x8xf32>
    %cst_109 = arith.constant dense<0.000000e+00> : vector<8x8xf32>
    %270 = tpu.matmul %269, %269, %cst_109 {dimension_numbers = #tpu.dot_dimension_numbers<[0], [0], [1], [1], [0, 1, 1, 1], [], []>} : vector<16x8xf32>, vector<16x8xf32>, vector<8x8xf32> -> vector<8x8xf32>
    %271 = vector.broadcast %7 : vector<8x1xf32> to vector<8x8xf32>
    %272 = arith.mulf %271, %270 : vector<8x8xf32>
    %273 = vector.broadcast %8 : vector<1x8xf32> to vector<8x8xf32>
    %274 = arith.mulf %272, %273 : vector<8x8xf32>
    %cst_110 = arith.constant 2.500000e-01 : f32
    %275 = vector.broadcast %cst_110 : f32 to vector<8x8xf32>
    %276 = arith.mulf %274, %275 : vector<8x8xf32>
    %cst_111 = arith.constant dense<0xFF800000> : vector<8xf32>
    %277 = vector.multi_reduction <maximumf>, %276, %cst_111 [1] : vector<8x8xf32> to vector<8xf32>
    %278 = vector.shape_cast %277 : vector<8xf32> to vector<8x1xf32>
    %279 = vector.broadcast %278 : vector<8x1xf32> to vector<8x8xf32>
    %280 = arith.subf %276, %279 : vector<8x8xf32>
    %281 = math.exp %280 : vector<8x8xf32>
    %cst_112 = arith.constant dense<0.000000e+00> : vector<8xf32>
    %282 = vector.multi_reduction <add>, %281, %cst_112 [1] : vector<8x8xf32> to vector<8xf32>
    %283 = vector.shape_cast %282 : vector<8xf32> to vector<8x1xf32>
    %284 = vector.broadcast %283 : vector<8x1xf32> to vector<8x8xf32>
    %285 = arith.divf %281, %284 : vector<8x8xf32>
    %cst_113 = arith.constant dense<0.000000e+00> : vector<8x32xf32>
    %286 = tpu.matmul %269, %11, %cst_113 {dimension_numbers = #tpu.dot_dimension_numbers<[0], [0], [1], [1], [0, 1, 1, 1], [], []>} : vector<16x8xf32>, vector<16x32xf32>, vector<8x32xf32> -> vector<8x32xf32>
    %cst_114 = arith.constant 1.000000e+00 : f32
    %287 = vector.broadcast %cst_114 : f32 to vector<8x1xf32>
    %cst_115 = arith.constant dense<0.000000e+00> : vector<8x1xf32>
    %288 = tpu.matmul %285, %287, %cst_115 {dimension_numbers = #tpu.dot_dimension_numbers<[0], [0], [1], [1], [0, 1, 1, 1], [], []>} : vector<8x8xf32>, vector<8x1xf32>, vector<8x1xf32> -> vector<8x1xf32>
    %cst_116 = arith.constant dense<0.000000e+00> : vector<8xf32>
    %289 = vector.multi_reduction <add>, %285, %cst_116 [0] : vector<8x8xf32> to vector<8xf32>
    %290 = vector.shape_cast %289 : vector<8xf32> to vector<1x8xf32>
    %291 = math.sqrt %288 : vector<8x1xf32>
    %cst_117 = arith.constant 1.000000e+00 : f32
    %292 = vector.broadcast %cst_117 : f32 to vector<8x1xf32>
    %293 = arith.divf %292, %291 : vector<8x1xf32>
    %294 = math.sqrt %290 : vector<1x8xf32>
    %cst_118 = arith.constant 1.000000e+00 : f32
    %295 = vector.broadcast %cst_118 : f32 to vector<1x8xf32>
    %296 = arith.divf %295, %294 : vector<1x8xf32>
    %297 = vector.broadcast %293 : vector<8x1xf32> to vector<8x8xf32>
    %298 = arith.mulf %297, %285 : vector<8x8xf32>
    %299 = vector.broadcast %296 : vector<1x8xf32> to vector<8x8xf32>
    %300 = arith.mulf %298, %299 : vector<8x8xf32>
    %cst_119 = arith.constant dense<0.000000e+00> : vector<8x32xf32>
    %301 = tpu.matmul %300, %286, %cst_119 {dimension_numbers = #tpu.dot_dimension_numbers<[0], [0], [1], [1], [0, 1, 1, 1], [], []>} : vector<8x8xf32>, vector<8x32xf32>, vector<8x32xf32> -> vector<8x32xf32>
    %302 = vector.broadcast %12 : vector<1x32xf32> to vector<8x32xf32>
    %303 = arith.addf %301, %302 : vector<8x32xf32>
    %cst_120 = arith.constant dense<0.000000e+00> : vector<32xf32>
    %304 = vector.multi_reduction <add>, %303, %cst_120 [0] : vector<8x32xf32> to vector<32xf32>
    %305 = vector.shape_cast %304 : vector<32xf32> to vector<1x32xf32>
    %cst_121 = arith.constant 8.000000e+00 : f32
    %306 = vector.broadcast %cst_121 : f32 to vector<1x32xf32>
    %307 = arith.divf %305, %306 : vector<1x32xf32>
    %308 = vector.extract_strided_slice %6 {offsets = [3, 0, 0], sizes = [1, 16, 8], strides = [1, 1, 1]} : vector<8x16x8xf32> to vector<1x16x8xf32>
    %309 = vector.shape_cast %308 : vector<1x16x8xf32> to vector<16x8xf32>
    %cst_122 = arith.constant dense<0.000000e+00> : vector<16x16xf32>
    %310 = tpu.matmul %309, %309, %cst_122 {dimension_numbers = #tpu.dot_dimension_numbers<[1], [1], [0], [0], [0, 0, 1, 0], [], []>} : vector<16x8xf32>, vector<16x8xf32>, vector<16x16xf32> -> vector<16x16xf32>
    %311 = vector.broadcast %9 : vector<16x1xf32> to vector<16x16xf32>
    %312 = arith.mulf %311, %310 : vector<16x16xf32>
    %313 = vector.broadcast %10 : vector<1x16xf32> to vector<16x16xf32>
    %314 = arith.mulf %312, %313 : vector<16x16xf32>
    %cst_123 = arith.constant 0.353553385 : f32
    %315 = vector.broadcast %cst_123 : f32 to vector<16x16xf32>
    %316 = arith.mulf %314, %315 : vector<16x16xf32>
    %cst_124 = arith.constant dense<0xFF800000> : vector<16xf32>
    %317 = vector.multi_reduction <maximumf>, %316, %cst_124 [1] : vector<16x16xf32> to vector<16xf32>
    %318 = vector.shape_cast %317 : vector<16xf32> to vector<16x1xf32>
    %319 = vector.broadcast %318 : vector<16x1xf32> to vector<16x16xf32>
    %320 = arith.subf %316, %319 : vector<16x16xf32>
    %321 = math.exp %320 : vector<16x16xf32>
    %cst_125 = arith.constant dense<0.000000e+00> : vector<16xf32>
    %322 = vector.multi_reduction <add>, %321, %cst_125 [1] : vector<16x16xf32> to vector<16xf32>
    %323 = vector.shape_cast %322 : vector<16xf32> to vector<16x1xf32>
    %324 = vector.broadcast %323 : vector<16x1xf32> to vector<16x16xf32>
    %325 = arith.divf %321, %324 : vector<16x16xf32>
    %cst_126 = arith.constant dense<0.000000e+00> : vector<16x32xf32>
    %326 = tpu.matmul %309, %13, %cst_126 {dimension_numbers = #tpu.dot_dimension_numbers<[1], [0], [0], [1], [0, 0, 1, 1], [], []>} : vector<16x8xf32>, vector<8x32xf32>, vector<16x32xf32> -> vector<16x32xf32>
    %cst_127 = arith.constant 1.000000e+00 : f32
    %327 = vector.broadcast %cst_127 : f32 to vector<16x1xf32>
    %cst_128 = arith.constant dense<0.000000e+00> : vector<16x1xf32>
    %328 = tpu.matmul %325, %327, %cst_128 {dimension_numbers = #tpu.dot_dimension_numbers<[0], [0], [1], [1], [0, 1, 1, 1], [], []>} : vector<16x16xf32>, vector<16x1xf32>, vector<16x1xf32> -> vector<16x1xf32>
    %cst_129 = arith.constant dense<0.000000e+00> : vector<16xf32>
    %329 = vector.multi_reduction <add>, %325, %cst_129 [0] : vector<16x16xf32> to vector<16xf32>
    %330 = vector.shape_cast %329 : vector<16xf32> to vector<1x16xf32>
    %331 = math.sqrt %328 : vector<16x1xf32>
    %cst_130 = arith.constant 1.000000e+00 : f32
    %332 = vector.broadcast %cst_130 : f32 to vector<16x1xf32>
    %333 = arith.divf %332, %331 : vector<16x1xf32>
    %334 = math.sqrt %330 : vector<1x16xf32>
    %cst_131 = arith.constant 1.000000e+00 : f32
    %335 = vector.broadcast %cst_131 : f32 to vector<1x16xf32>
    %336 = arith.divf %335, %334 : vector<1x16xf32>
    %337 = vector.broadcast %333 : vector<16x1xf32> to vector<16x16xf32>
    %338 = arith.mulf %337, %325 : vector<16x16xf32>
    %339 = vector.broadcast %336 : vector<1x16xf32> to vector<16x16xf32>
    %340 = arith.mulf %338, %339 : vector<16x16xf32>
    %cst_132 = arith.constant dense<0.000000e+00> : vector<16x32xf32>
    %341 = tpu.matmul %340, %326, %cst_132 {dimension_numbers = #tpu.dot_dimension_numbers<[0], [0], [1], [1], [0, 1, 1, 1], [], []>} : vector<16x16xf32>, vector<16x32xf32>, vector<16x32xf32> -> vector<16x32xf32>
    %342 = vector.broadcast %14 : vector<1x32xf32> to vector<16x32xf32>
    %343 = arith.addf %341, %342 : vector<16x32xf32>
    %cst_133 = arith.constant dense<0.000000e+00> : vector<32xf32>
    %344 = vector.multi_reduction <add>, %343, %cst_133 [0] : vector<16x32xf32> to vector<32xf32>
    %345 = vector.shape_cast %344 : vector<32xf32> to vector<1x32xf32>
    %cst_134 = arith.constant 1.600000e+01 : f32
    %346 = vector.broadcast %cst_134 : f32 to vector<1x32xf32>
    %347 = arith.divf %345, %346 : vector<1x32xf32>
    %348 = tpu.concatenate %307, %347 in 1 : vector<1x32xf32>, vector<1x32xf32> -> vector<1x64xf32>
    %cst_135 = arith.constant dense<0.000000e+00> : vector<1x8xf32>
    %349 = tpu.matmul %348, %15, %cst_135 {dimension_numbers = #tpu.dot_dimension_numbers<[1], [0], [0], [1], [0, 0, 1, 1], [], []>} : vector<1x64xf32>, vector<64x8xf32>, vector<1x8xf32> -> vector<1x8xf32>
    %350 = arith.addf %349, %16 : vector<1x8xf32>
    %351 = vector.shape_cast %285 : vector<8x8xf32> to vector<1x8x8xf32>
    %352 = vector.shape_cast %325 : vector<16x16xf32> to vector<1x16x16xf32>
    %353 = vector.extract_strided_slice %5 {offsets = [64, 0], sizes = [16, 8], strides = [1, 1]} : vector<128x8xf32> to vector<16x8xf32>
    %cst_136 = arith.constant dense<0.000000e+00> : vector<8x8xf32>
    %354 = tpu.matmul %353, %353, %cst_136 {dimension_numbers = #tpu.dot_dimension_numbers<[0], [0], [1], [1], [0, 1, 1, 1], [], []>} : vector<16x8xf32>, vector<16x8xf32>, vector<8x8xf32> -> vector<8x8xf32>
    %355 = vector.broadcast %7 : vector<8x1xf32> to vector<8x8xf32>
    %356 = arith.mulf %355, %354 : vector<8x8xf32>
    %357 = vector.broadcast %8 : vector<1x8xf32> to vector<8x8xf32>
    %358 = arith.mulf %356, %357 : vector<8x8xf32>
    %cst_137 = arith.constant 2.500000e-01 : f32
    %359 = vector.broadcast %cst_137 : f32 to vector<8x8xf32>
    %360 = arith.mulf %358, %359 : vector<8x8xf32>
    %cst_138 = arith.constant dense<0xFF800000> : vector<8xf32>
    %361 = vector.multi_reduction <maximumf>, %360, %cst_138 [1] : vector<8x8xf32> to vector<8xf32>
    %362 = vector.shape_cast %361 : vector<8xf32> to vector<8x1xf32>
    %363 = vector.broadcast %362 : vector<8x1xf32> to vector<8x8xf32>
    %364 = arith.subf %360, %363 : vector<8x8xf32>
    %365 = math.exp %364 : vector<8x8xf32>
    %cst_139 = arith.constant dense<0.000000e+00> : vector<8xf32>
    %366 = vector.multi_reduction <add>, %365, %cst_139 [1] : vector<8x8xf32> to vector<8xf32>
    %367 = vector.shape_cast %366 : vector<8xf32> to vector<8x1xf32>
    %368 = vector.broadcast %367 : vector<8x1xf32> to vector<8x8xf32>
    %369 = arith.divf %365, %368 : vector<8x8xf32>
    %cst_140 = arith.constant dense<0.000000e+00> : vector<8x32xf32>
    %370 = tpu.matmul %353, %11, %cst_140 {dimension_numbers = #tpu.dot_dimension_numbers<[0], [0], [1], [1], [0, 1, 1, 1], [], []>} : vector<16x8xf32>, vector<16x32xf32>, vector<8x32xf32> -> vector<8x32xf32>
    %cst_141 = arith.constant 1.000000e+00 : f32
    %371 = vector.broadcast %cst_141 : f32 to vector<8x1xf32>
    %cst_142 = arith.constant dense<0.000000e+00> : vector<8x1xf32>
    %372 = tpu.matmul %369, %371, %cst_142 {dimension_numbers = #tpu.dot_dimension_numbers<[0], [0], [1], [1], [0, 1, 1, 1], [], []>} : vector<8x8xf32>, vector<8x1xf32>, vector<8x1xf32> -> vector<8x1xf32>
    %cst_143 = arith.constant dense<0.000000e+00> : vector<8xf32>
    %373 = vector.multi_reduction <add>, %369, %cst_143 [0] : vector<8x8xf32> to vector<8xf32>
    %374 = vector.shape_cast %373 : vector<8xf32> to vector<1x8xf32>
    %375 = math.sqrt %372 : vector<8x1xf32>
    %cst_144 = arith.constant 1.000000e+00 : f32
    %376 = vector.broadcast %cst_144 : f32 to vector<8x1xf32>
    %377 = arith.divf %376, %375 : vector<8x1xf32>
    %378 = math.sqrt %374 : vector<1x8xf32>
    %cst_145 = arith.constant 1.000000e+00 : f32
    %379 = vector.broadcast %cst_145 : f32 to vector<1x8xf32>
    %380 = arith.divf %379, %378 : vector<1x8xf32>
    %381 = vector.broadcast %377 : vector<8x1xf32> to vector<8x8xf32>
    %382 = arith.mulf %381, %369 : vector<8x8xf32>
    %383 = vector.broadcast %380 : vector<1x8xf32> to vector<8x8xf32>
    %384 = arith.mulf %382, %383 : vector<8x8xf32>
    %cst_146 = arith.constant dense<0.000000e+00> : vector<8x32xf32>
    %385 = tpu.matmul %384, %370, %cst_146 {dimension_numbers = #tpu.dot_dimension_numbers<[0], [0], [1], [1], [0, 1, 1, 1], [], []>} : vector<8x8xf32>, vector<8x32xf32>, vector<8x32xf32> -> vector<8x32xf32>
    %386 = vector.broadcast %12 : vector<1x32xf32> to vector<8x32xf32>
    %387 = arith.addf %385, %386 : vector<8x32xf32>
    %cst_147 = arith.constant dense<0.000000e+00> : vector<32xf32>
    %388 = vector.multi_reduction <add>, %387, %cst_147 [0] : vector<8x32xf32> to vector<32xf32>
    %389 = vector.shape_cast %388 : vector<32xf32> to vector<1x32xf32>
    %cst_148 = arith.constant 8.000000e+00 : f32
    %390 = vector.broadcast %cst_148 : f32 to vector<1x32xf32>
    %391 = arith.divf %389, %390 : vector<1x32xf32>
    %392 = vector.extract_strided_slice %6 {offsets = [4, 0, 0], sizes = [1, 16, 8], strides = [1, 1, 1]} : vector<8x16x8xf32> to vector<1x16x8xf32>
    %393 = vector.shape_cast %392 : vector<1x16x8xf32> to vector<16x8xf32>
    %cst_149 = arith.constant dense<0.000000e+00> : vector<16x16xf32>
    %394 = tpu.matmul %393, %393, %cst_149 {dimension_numbers = #tpu.dot_dimension_numbers<[1], [1], [0], [0], [0, 0, 1, 0], [], []>} : vector<16x8xf32>, vector<16x8xf32>, vector<16x16xf32> -> vector<16x16xf32>
    %395 = vector.broadcast %9 : vector<16x1xf32> to vector<16x16xf32>
    %396 = arith.mulf %395, %394 : vector<16x16xf32>
    %397 = vector.broadcast %10 : vector<1x16xf32> to vector<16x16xf32>
    %398 = arith.mulf %396, %397 : vector<16x16xf32>
    %cst_150 = arith.constant 0.353553385 : f32
    %399 = vector.broadcast %cst_150 : f32 to vector<16x16xf32>
    %400 = arith.mulf %398, %399 : vector<16x16xf32>
    %cst_151 = arith.constant dense<0xFF800000> : vector<16xf32>
    %401 = vector.multi_reduction <maximumf>, %400, %cst_151 [1] : vector<16x16xf32> to vector<16xf32>
    %402 = vector.shape_cast %401 : vector<16xf32> to vector<16x1xf32>
    %403 = vector.broadcast %402 : vector<16x1xf32> to vector<16x16xf32>
    %404 = arith.subf %400, %403 : vector<16x16xf32>
    %405 = math.exp %404 : vector<16x16xf32>
    %cst_152 = arith.constant dense<0.000000e+00> : vector<16xf32>
    %406 = vector.multi_reduction <add>, %405, %cst_152 [1] : vector<16x16xf32> to vector<16xf32>
    %407 = vector.shape_cast %406 : vector<16xf32> to vector<16x1xf32>
    %408 = vector.broadcast %407 : vector<16x1xf32> to vector<16x16xf32>
    %409 = arith.divf %405, %408 : vector<16x16xf32>
    %cst_153 = arith.constant dense<0.000000e+00> : vector<16x32xf32>
    %410 = tpu.matmul %393, %13, %cst_153 {dimension_numbers = #tpu.dot_dimension_numbers<[1], [0], [0], [1], [0, 0, 1, 1], [], []>} : vector<16x8xf32>, vector<8x32xf32>, vector<16x32xf32> -> vector<16x32xf32>
    %cst_154 = arith.constant 1.000000e+00 : f32
    %411 = vector.broadcast %cst_154 : f32 to vector<16x1xf32>
    %cst_155 = arith.constant dense<0.000000e+00> : vector<16x1xf32>
    %412 = tpu.matmul %409, %411, %cst_155 {dimension_numbers = #tpu.dot_dimension_numbers<[0], [0], [1], [1], [0, 1, 1, 1], [], []>} : vector<16x16xf32>, vector<16x1xf32>, vector<16x1xf32> -> vector<16x1xf32>
    %cst_156 = arith.constant dense<0.000000e+00> : vector<16xf32>
    %413 = vector.multi_reduction <add>, %409, %cst_156 [0] : vector<16x16xf32> to vector<16xf32>
    %414 = vector.shape_cast %413 : vector<16xf32> to vector<1x16xf32>
    %415 = math.sqrt %412 : vector<16x1xf32>
    %cst_157 = arith.constant 1.000000e+00 : f32
    %416 = vector.broadcast %cst_157 : f32 to vector<16x1xf32>
    %417 = arith.divf %416, %415 : vector<16x1xf32>
    %418 = math.sqrt %414 : vector<1x16xf32>
    %cst_158 = arith.constant 1.000000e+00 : f32
    %419 = vector.broadcast %cst_158 : f32 to vector<1x16xf32>
    %420 = arith.divf %419, %418 : vector<1x16xf32>
    %421 = vector.broadcast %417 : vector<16x1xf32> to vector<16x16xf32>
    %422 = arith.mulf %421, %409 : vector<16x16xf32>
    %423 = vector.broadcast %420 : vector<1x16xf32> to vector<16x16xf32>
    %424 = arith.mulf %422, %423 : vector<16x16xf32>
    %cst_159 = arith.constant dense<0.000000e+00> : vector<16x32xf32>
    %425 = tpu.matmul %424, %410, %cst_159 {dimension_numbers = #tpu.dot_dimension_numbers<[0], [0], [1], [1], [0, 1, 1, 1], [], []>} : vector<16x16xf32>, vector<16x32xf32>, vector<16x32xf32> -> vector<16x32xf32>
    %426 = vector.broadcast %14 : vector<1x32xf32> to vector<16x32xf32>
    %427 = arith.addf %425, %426 : vector<16x32xf32>
    %cst_160 = arith.constant dense<0.000000e+00> : vector<32xf32>
    %428 = vector.multi_reduction <add>, %427, %cst_160 [0] : vector<16x32xf32> to vector<32xf32>
    %429 = vector.shape_cast %428 : vector<32xf32> to vector<1x32xf32>
    %cst_161 = arith.constant 1.600000e+01 : f32
    %430 = vector.broadcast %cst_161 : f32 to vector<1x32xf32>
    %431 = arith.divf %429, %430 : vector<1x32xf32>
    %432 = tpu.concatenate %391, %431 in 1 : vector<1x32xf32>, vector<1x32xf32> -> vector<1x64xf32>
    %cst_162 = arith.constant dense<0.000000e+00> : vector<1x8xf32>
    %433 = tpu.matmul %432, %15, %cst_162 {dimension_numbers = #tpu.dot_dimension_numbers<[1], [0], [0], [1], [0, 0, 1, 1], [], []>} : vector<1x64xf32>, vector<64x8xf32>, vector<1x8xf32> -> vector<1x8xf32>
    %434 = arith.addf %433, %16 : vector<1x8xf32>
    %435 = vector.shape_cast %369 : vector<8x8xf32> to vector<1x8x8xf32>
    %436 = vector.shape_cast %409 : vector<16x16xf32> to vector<1x16x16xf32>
    %437 = vector.extract_strided_slice %5 {offsets = [80, 0], sizes = [16, 8], strides = [1, 1]} : vector<128x8xf32> to vector<16x8xf32>
    %cst_163 = arith.constant dense<0.000000e+00> : vector<8x8xf32>
    %438 = tpu.matmul %437, %437, %cst_163 {dimension_numbers = #tpu.dot_dimension_numbers<[0], [0], [1], [1], [0, 1, 1, 1], [], []>} : vector<16x8xf32>, vector<16x8xf32>, vector<8x8xf32> -> vector<8x8xf32>
    %439 = vector.broadcast %7 : vector<8x1xf32> to vector<8x8xf32>
    %440 = arith.mulf %439, %438 : vector<8x8xf32>
    %441 = vector.broadcast %8 : vector<1x8xf32> to vector<8x8xf32>
    %442 = arith.mulf %440, %441 : vector<8x8xf32>
    %cst_164 = arith.constant 2.500000e-01 : f32
    %443 = vector.broadcast %cst_164 : f32 to vector<8x8xf32>
    %444 = arith.mulf %442, %443 : vector<8x8xf32>
    %cst_165 = arith.constant dense<0xFF800000> : vector<8xf32>
    %445 = vector.multi_reduction <maximumf>, %444, %cst_165 [1] : vector<8x8xf32> to vector<8xf32>
    %446 = vector.shape_cast %445 : vector<8xf32> to vector<8x1xf32>
    %447 = vector.broadcast %446 : vector<8x1xf32> to vector<8x8xf32>
    %448 = arith.subf %444, %447 : vector<8x8xf32>
    %449 = math.exp %448 : vector<8x8xf32>
    %cst_166 = arith.constant dense<0.000000e+00> : vector<8xf32>
    %450 = vector.multi_reduction <add>, %449, %cst_166 [1] : vector<8x8xf32> to vector<8xf32>
    %451 = vector.shape_cast %450 : vector<8xf32> to vector<8x1xf32>
    %452 = vector.broadcast %451 : vector<8x1xf32> to vector<8x8xf32>
    %453 = arith.divf %449, %452 : vector<8x8xf32>
    %cst_167 = arith.constant dense<0.000000e+00> : vector<8x32xf32>
    %454 = tpu.matmul %437, %11, %cst_167 {dimension_numbers = #tpu.dot_dimension_numbers<[0], [0], [1], [1], [0, 1, 1, 1], [], []>} : vector<16x8xf32>, vector<16x32xf32>, vector<8x32xf32> -> vector<8x32xf32>
    %cst_168 = arith.constant 1.000000e+00 : f32
    %455 = vector.broadcast %cst_168 : f32 to vector<8x1xf32>
    %cst_169 = arith.constant dense<0.000000e+00> : vector<8x1xf32>
    %456 = tpu.matmul %453, %455, %cst_169 {dimension_numbers = #tpu.dot_dimension_numbers<[0], [0], [1], [1], [0, 1, 1, 1], [], []>} : vector<8x8xf32>, vector<8x1xf32>, vector<8x1xf32> -> vector<8x1xf32>
    %cst_170 = arith.constant dense<0.000000e+00> : vector<8xf32>
    %457 = vector.multi_reduction <add>, %453, %cst_170 [0] : vector<8x8xf32> to vector<8xf32>
    %458 = vector.shape_cast %457 : vector<8xf32> to vector<1x8xf32>
    %459 = math.sqrt %456 : vector<8x1xf32>
    %cst_171 = arith.constant 1.000000e+00 : f32
    %460 = vector.broadcast %cst_171 : f32 to vector<8x1xf32>
    %461 = arith.divf %460, %459 : vector<8x1xf32>
    %462 = math.sqrt %458 : vector<1x8xf32>
    %cst_172 = arith.constant 1.000000e+00 : f32
    %463 = vector.broadcast %cst_172 : f32 to vector<1x8xf32>
    %464 = arith.divf %463, %462 : vector<1x8xf32>
    %465 = vector.broadcast %461 : vector<8x1xf32> to vector<8x8xf32>
    %466 = arith.mulf %465, %453 : vector<8x8xf32>
    %467 = vector.broadcast %464 : vector<1x8xf32> to vector<8x8xf32>
    %468 = arith.mulf %466, %467 : vector<8x8xf32>
    %cst_173 = arith.constant dense<0.000000e+00> : vector<8x32xf32>
    %469 = tpu.matmul %468, %454, %cst_173 {dimension_numbers = #tpu.dot_dimension_numbers<[0], [0], [1], [1], [0, 1, 1, 1], [], []>} : vector<8x8xf32>, vector<8x32xf32>, vector<8x32xf32> -> vector<8x32xf32>
    %470 = vector.broadcast %12 : vector<1x32xf32> to vector<8x32xf32>
    %471 = arith.addf %469, %470 : vector<8x32xf32>
    %cst_174 = arith.constant dense<0.000000e+00> : vector<32xf32>
    %472 = vector.multi_reduction <add>, %471, %cst_174 [0] : vector<8x32xf32> to vector<32xf32>
    %473 = vector.shape_cast %472 : vector<32xf32> to vector<1x32xf32>
    %cst_175 = arith.constant 8.000000e+00 : f32
    %474 = vector.broadcast %cst_175 : f32 to vector<1x32xf32>
    %475 = arith.divf %473, %474 : vector<1x32xf32>
    %476 = vector.extract_strided_slice %6 {offsets = [5, 0, 0], sizes = [1, 16, 8], strides = [1, 1, 1]} : vector<8x16x8xf32> to vector<1x16x8xf32>
    %477 = vector.shape_cast %476 : vector<1x16x8xf32> to vector<16x8xf32>
    %cst_176 = arith.constant dense<0.000000e+00> : vector<16x16xf32>
    %478 = tpu.matmul %477, %477, %cst_176 {dimension_numbers = #tpu.dot_dimension_numbers<[1], [1], [0], [0], [0, 0, 1, 0], [], []>} : vector<16x8xf32>, vector<16x8xf32>, vector<16x16xf32> -> vector<16x16xf32>
    %479 = vector.broadcast %9 : vector<16x1xf32> to vector<16x16xf32>
    %480 = arith.mulf %479, %478 : vector<16x16xf32>
    %481 = vector.broadcast %10 : vector<1x16xf32> to vector<16x16xf32>
    %482 = arith.mulf %480, %481 : vector<16x16xf32>
    %cst_177 = arith.constant 0.353553385 : f32
    %483 = vector.broadcast %cst_177 : f32 to vector<16x16xf32>
    %484 = arith.mulf %482, %483 : vector<16x16xf32>
    %cst_178 = arith.constant dense<0xFF800000> : vector<16xf32>
    %485 = vector.multi_reduction <maximumf>, %484, %cst_178 [1] : vector<16x16xf32> to vector<16xf32>
    %486 = vector.shape_cast %485 : vector<16xf32> to vector<16x1xf32>
    %487 = vector.broadcast %486 : vector<16x1xf32> to vector<16x16xf32>
    %488 = arith.subf %484, %487 : vector<16x16xf32>
    %489 = math.exp %488 : vector<16x16xf32>
    %cst_179 = arith.constant dense<0.000000e+00> : vector<16xf32>
    %490 = vector.multi_reduction <add>, %489, %cst_179 [1] : vector<16x16xf32> to vector<16xf32>
    %491 = vector.shape_cast %490 : vector<16xf32> to vector<16x1xf32>
    %492 = vector.broadcast %491 : vector<16x1xf32> to vector<16x16xf32>
    %493 = arith.divf %489, %492 : vector<16x16xf32>
    %cst_180 = arith.constant dense<0.000000e+00> : vector<16x32xf32>
    %494 = tpu.matmul %477, %13, %cst_180 {dimension_numbers = #tpu.dot_dimension_numbers<[1], [0], [0], [1], [0, 0, 1, 1], [], []>} : vector<16x8xf32>, vector<8x32xf32>, vector<16x32xf32> -> vector<16x32xf32>
    %cst_181 = arith.constant 1.000000e+00 : f32
    %495 = vector.broadcast %cst_181 : f32 to vector<16x1xf32>
    %cst_182 = arith.constant dense<0.000000e+00> : vector<16x1xf32>
    %496 = tpu.matmul %493, %495, %cst_182 {dimension_numbers = #tpu.dot_dimension_numbers<[0], [0], [1], [1], [0, 1, 1, 1], [], []>} : vector<16x16xf32>, vector<16x1xf32>, vector<16x1xf32> -> vector<16x1xf32>
    %cst_183 = arith.constant dense<0.000000e+00> : vector<16xf32>
    %497 = vector.multi_reduction <add>, %493, %cst_183 [0] : vector<16x16xf32> to vector<16xf32>
    %498 = vector.shape_cast %497 : vector<16xf32> to vector<1x16xf32>
    %499 = math.sqrt %496 : vector<16x1xf32>
    %cst_184 = arith.constant 1.000000e+00 : f32
    %500 = vector.broadcast %cst_184 : f32 to vector<16x1xf32>
    %501 = arith.divf %500, %499 : vector<16x1xf32>
    %502 = math.sqrt %498 : vector<1x16xf32>
    %cst_185 = arith.constant 1.000000e+00 : f32
    %503 = vector.broadcast %cst_185 : f32 to vector<1x16xf32>
    %504 = arith.divf %503, %502 : vector<1x16xf32>
    %505 = vector.broadcast %501 : vector<16x1xf32> to vector<16x16xf32>
    %506 = arith.mulf %505, %493 : vector<16x16xf32>
    %507 = vector.broadcast %504 : vector<1x16xf32> to vector<16x16xf32>
    %508 = arith.mulf %506, %507 : vector<16x16xf32>
    %cst_186 = arith.constant dense<0.000000e+00> : vector<16x32xf32>
    %509 = tpu.matmul %508, %494, %cst_186 {dimension_numbers = #tpu.dot_dimension_numbers<[0], [0], [1], [1], [0, 1, 1, 1], [], []>} : vector<16x16xf32>, vector<16x32xf32>, vector<16x32xf32> -> vector<16x32xf32>
    %510 = vector.broadcast %14 : vector<1x32xf32> to vector<16x32xf32>
    %511 = arith.addf %509, %510 : vector<16x32xf32>
    %cst_187 = arith.constant dense<0.000000e+00> : vector<32xf32>
    %512 = vector.multi_reduction <add>, %511, %cst_187 [0] : vector<16x32xf32> to vector<32xf32>
    %513 = vector.shape_cast %512 : vector<32xf32> to vector<1x32xf32>
    %cst_188 = arith.constant 1.600000e+01 : f32
    %514 = vector.broadcast %cst_188 : f32 to vector<1x32xf32>
    %515 = arith.divf %513, %514 : vector<1x32xf32>
    %516 = tpu.concatenate %475, %515 in 1 : vector<1x32xf32>, vector<1x32xf32> -> vector<1x64xf32>
    %cst_189 = arith.constant dense<0.000000e+00> : vector<1x8xf32>
    %517 = tpu.matmul %516, %15, %cst_189 {dimension_numbers = #tpu.dot_dimension_numbers<[1], [0], [0], [1], [0, 0, 1, 1], [], []>} : vector<1x64xf32>, vector<64x8xf32>, vector<1x8xf32> -> vector<1x8xf32>
    %518 = arith.addf %517, %16 : vector<1x8xf32>
    %519 = vector.shape_cast %453 : vector<8x8xf32> to vector<1x8x8xf32>
    %520 = vector.shape_cast %493 : vector<16x16xf32> to vector<1x16x16xf32>
    %521 = vector.extract_strided_slice %5 {offsets = [96, 0], sizes = [16, 8], strides = [1, 1]} : vector<128x8xf32> to vector<16x8xf32>
    %cst_190 = arith.constant dense<0.000000e+00> : vector<8x8xf32>
    %522 = tpu.matmul %521, %521, %cst_190 {dimension_numbers = #tpu.dot_dimension_numbers<[0], [0], [1], [1], [0, 1, 1, 1], [], []>} : vector<16x8xf32>, vector<16x8xf32>, vector<8x8xf32> -> vector<8x8xf32>
    %523 = vector.broadcast %7 : vector<8x1xf32> to vector<8x8xf32>
    %524 = arith.mulf %523, %522 : vector<8x8xf32>
    %525 = vector.broadcast %8 : vector<1x8xf32> to vector<8x8xf32>
    %526 = arith.mulf %524, %525 : vector<8x8xf32>
    %cst_191 = arith.constant 2.500000e-01 : f32
    %527 = vector.broadcast %cst_191 : f32 to vector<8x8xf32>
    %528 = arith.mulf %526, %527 : vector<8x8xf32>
    %cst_192 = arith.constant dense<0xFF800000> : vector<8xf32>
    %529 = vector.multi_reduction <maximumf>, %528, %cst_192 [1] : vector<8x8xf32> to vector<8xf32>
    %530 = vector.shape_cast %529 : vector<8xf32> to vector<8x1xf32>
    %531 = vector.broadcast %530 : vector<8x1xf32> to vector<8x8xf32>
    %532 = arith.subf %528, %531 : vector<8x8xf32>
    %533 = math.exp %532 : vector<8x8xf32>
    %cst_193 = arith.constant dense<0.000000e+00> : vector<8xf32>
    %534 = vector.multi_reduction <add>, %533, %cst_193 [1] : vector<8x8xf32> to vector<8xf32>
    %535 = vector.shape_cast %534 : vector<8xf32> to vector<8x1xf32>
    %536 = vector.broadcast %535 : vector<8x1xf32> to vector<8x8xf32>
    %537 = arith.divf %533, %536 : vector<8x8xf32>
    %cst_194 = arith.constant dense<0.000000e+00> : vector<8x32xf32>
    %538 = tpu.matmul %521, %11, %cst_194 {dimension_numbers = #tpu.dot_dimension_numbers<[0], [0], [1], [1], [0, 1, 1, 1], [], []>} : vector<16x8xf32>, vector<16x32xf32>, vector<8x32xf32> -> vector<8x32xf32>
    %cst_195 = arith.constant 1.000000e+00 : f32
    %539 = vector.broadcast %cst_195 : f32 to vector<8x1xf32>
    %cst_196 = arith.constant dense<0.000000e+00> : vector<8x1xf32>
    %540 = tpu.matmul %537, %539, %cst_196 {dimension_numbers = #tpu.dot_dimension_numbers<[0], [0], [1], [1], [0, 1, 1, 1], [], []>} : vector<8x8xf32>, vector<8x1xf32>, vector<8x1xf32> -> vector<8x1xf32>
    %cst_197 = arith.constant dense<0.000000e+00> : vector<8xf32>
    %541 = vector.multi_reduction <add>, %537, %cst_197 [0] : vector<8x8xf32> to vector<8xf32>
    %542 = vector.shape_cast %541 : vector<8xf32> to vector<1x8xf32>
    %543 = math.sqrt %540 : vector<8x1xf32>
    %cst_198 = arith.constant 1.000000e+00 : f32
    %544 = vector.broadcast %cst_198 : f32 to vector<8x1xf32>
    %545 = arith.divf %544, %543 : vector<8x1xf32>
    %546 = math.sqrt %542 : vector<1x8xf32>
    %cst_199 = arith.constant 1.000000e+00 : f32
    %547 = vector.broadcast %cst_199 : f32 to vector<1x8xf32>
    %548 = arith.divf %547, %546 : vector<1x8xf32>
    %549 = vector.broadcast %545 : vector<8x1xf32> to vector<8x8xf32>
    %550 = arith.mulf %549, %537 : vector<8x8xf32>
    %551 = vector.broadcast %548 : vector<1x8xf32> to vector<8x8xf32>
    %552 = arith.mulf %550, %551 : vector<8x8xf32>
    %cst_200 = arith.constant dense<0.000000e+00> : vector<8x32xf32>
    %553 = tpu.matmul %552, %538, %cst_200 {dimension_numbers = #tpu.dot_dimension_numbers<[0], [0], [1], [1], [0, 1, 1, 1], [], []>} : vector<8x8xf32>, vector<8x32xf32>, vector<8x32xf32> -> vector<8x32xf32>
    %554 = vector.broadcast %12 : vector<1x32xf32> to vector<8x32xf32>
    %555 = arith.addf %553, %554 : vector<8x32xf32>
    %cst_201 = arith.constant dense<0.000000e+00> : vector<32xf32>
    %556 = vector.multi_reduction <add>, %555, %cst_201 [0] : vector<8x32xf32> to vector<32xf32>
    %557 = vector.shape_cast %556 : vector<32xf32> to vector<1x32xf32>
    %cst_202 = arith.constant 8.000000e+00 : f32
    %558 = vector.broadcast %cst_202 : f32 to vector<1x32xf32>
    %559 = arith.divf %557, %558 : vector<1x32xf32>
    %560 = vector.extract_strided_slice %6 {offsets = [6, 0, 0], sizes = [1, 16, 8], strides = [1, 1, 1]} : vector<8x16x8xf32> to vector<1x16x8xf32>
    %561 = vector.shape_cast %560 : vector<1x16x8xf32> to vector<16x8xf32>
    %cst_203 = arith.constant dense<0.000000e+00> : vector<16x16xf32>
    %562 = tpu.matmul %561, %561, %cst_203 {dimension_numbers = #tpu.dot_dimension_numbers<[1], [1], [0], [0], [0, 0, 1, 0], [], []>} : vector<16x8xf32>, vector<16x8xf32>, vector<16x16xf32> -> vector<16x16xf32>
    %563 = vector.broadcast %9 : vector<16x1xf32> to vector<16x16xf32>
    %564 = arith.mulf %563, %562 : vector<16x16xf32>
    %565 = vector.broadcast %10 : vector<1x16xf32> to vector<16x16xf32>
    %566 = arith.mulf %564, %565 : vector<16x16xf32>
    %cst_204 = arith.constant 0.353553385 : f32
    %567 = vector.broadcast %cst_204 : f32 to vector<16x16xf32>
    %568 = arith.mulf %566, %567 : vector<16x16xf32>
    %cst_205 = arith.constant dense<0xFF800000> : vector<16xf32>
    %569 = vector.multi_reduction <maximumf>, %568, %cst_205 [1] : vector<16x16xf32> to vector<16xf32>
    %570 = vector.shape_cast %569 : vector<16xf32> to vector<16x1xf32>
    %571 = vector.broadcast %570 : vector<16x1xf32> to vector<16x16xf32>
    %572 = arith.subf %568, %571 : vector<16x16xf32>
    %573 = math.exp %572 : vector<16x16xf32>
    %cst_206 = arith.constant dense<0.000000e+00> : vector<16xf32>
    %574 = vector.multi_reduction <add>, %573, %cst_206 [1] : vector<16x16xf32> to vector<16xf32>
    %575 = vector.shape_cast %574 : vector<16xf32> to vector<16x1xf32>
    %576 = vector.broadcast %575 : vector<16x1xf32> to vector<16x16xf32>
    %577 = arith.divf %573, %576 : vector<16x16xf32>
    %cst_207 = arith.constant dense<0.000000e+00> : vector<16x32xf32>
    %578 = tpu.matmul %561, %13, %cst_207 {dimension_numbers = #tpu.dot_dimension_numbers<[1], [0], [0], [1], [0, 0, 1, 1], [], []>} : vector<16x8xf32>, vector<8x32xf32>, vector<16x32xf32> -> vector<16x32xf32>
    %cst_208 = arith.constant 1.000000e+00 : f32
    %579 = vector.broadcast %cst_208 : f32 to vector<16x1xf32>
    %cst_209 = arith.constant dense<0.000000e+00> : vector<16x1xf32>
    %580 = tpu.matmul %577, %579, %cst_209 {dimension_numbers = #tpu.dot_dimension_numbers<[0], [0], [1], [1], [0, 1, 1, 1], [], []>} : vector<16x16xf32>, vector<16x1xf32>, vector<16x1xf32> -> vector<16x1xf32>
    %cst_210 = arith.constant dense<0.000000e+00> : vector<16xf32>
    %581 = vector.multi_reduction <add>, %577, %cst_210 [0] : vector<16x16xf32> to vector<16xf32>
    %582 = vector.shape_cast %581 : vector<16xf32> to vector<1x16xf32>
    %583 = math.sqrt %580 : vector<16x1xf32>
    %cst_211 = arith.constant 1.000000e+00 : f32
    %584 = vector.broadcast %cst_211 : f32 to vector<16x1xf32>
    %585 = arith.divf %584, %583 : vector<16x1xf32>
    %586 = math.sqrt %582 : vector<1x16xf32>
    %cst_212 = arith.constant 1.000000e+00 : f32
    %587 = vector.broadcast %cst_212 : f32 to vector<1x16xf32>
    %588 = arith.divf %587, %586 : vector<1x16xf32>
    %589 = vector.broadcast %585 : vector<16x1xf32> to vector<16x16xf32>
    %590 = arith.mulf %589, %577 : vector<16x16xf32>
    %591 = vector.broadcast %588 : vector<1x16xf32> to vector<16x16xf32>
    %592 = arith.mulf %590, %591 : vector<16x16xf32>
    %cst_213 = arith.constant dense<0.000000e+00> : vector<16x32xf32>
    %593 = tpu.matmul %592, %578, %cst_213 {dimension_numbers = #tpu.dot_dimension_numbers<[0], [0], [1], [1], [0, 1, 1, 1], [], []>} : vector<16x16xf32>, vector<16x32xf32>, vector<16x32xf32> -> vector<16x32xf32>
    %594 = vector.broadcast %14 : vector<1x32xf32> to vector<16x32xf32>
    %595 = arith.addf %593, %594 : vector<16x32xf32>
    %cst_214 = arith.constant dense<0.000000e+00> : vector<32xf32>
    %596 = vector.multi_reduction <add>, %595, %cst_214 [0] : vector<16x32xf32> to vector<32xf32>
    %597 = vector.shape_cast %596 : vector<32xf32> to vector<1x32xf32>
    %cst_215 = arith.constant 1.600000e+01 : f32
    %598 = vector.broadcast %cst_215 : f32 to vector<1x32xf32>
    %599 = arith.divf %597, %598 : vector<1x32xf32>
    %600 = tpu.concatenate %559, %599 in 1 : vector<1x32xf32>, vector<1x32xf32> -> vector<1x64xf32>
    %cst_216 = arith.constant dense<0.000000e+00> : vector<1x8xf32>
    %601 = tpu.matmul %600, %15, %cst_216 {dimension_numbers = #tpu.dot_dimension_numbers<[1], [0], [0], [1], [0, 0, 1, 1], [], []>} : vector<1x64xf32>, vector<64x8xf32>, vector<1x8xf32> -> vector<1x8xf32>
    %602 = arith.addf %601, %16 : vector<1x8xf32>
    %603 = vector.shape_cast %537 : vector<8x8xf32> to vector<1x8x8xf32>
    %604 = vector.shape_cast %577 : vector<16x16xf32> to vector<1x16x16xf32>
    %605 = vector.extract_strided_slice %5 {offsets = [112, 0], sizes = [16, 8], strides = [1, 1]} : vector<128x8xf32> to vector<16x8xf32>
    %cst_217 = arith.constant dense<0.000000e+00> : vector<8x8xf32>
    %606 = tpu.matmul %605, %605, %cst_217 {dimension_numbers = #tpu.dot_dimension_numbers<[0], [0], [1], [1], [0, 1, 1, 1], [], []>} : vector<16x8xf32>, vector<16x8xf32>, vector<8x8xf32> -> vector<8x8xf32>
    %607 = vector.broadcast %7 : vector<8x1xf32> to vector<8x8xf32>
    %608 = arith.mulf %607, %606 : vector<8x8xf32>
    %609 = vector.broadcast %8 : vector<1x8xf32> to vector<8x8xf32>
    %610 = arith.mulf %608, %609 : vector<8x8xf32>
    %cst_218 = arith.constant 2.500000e-01 : f32
    %611 = vector.broadcast %cst_218 : f32 to vector<8x8xf32>
    %612 = arith.mulf %610, %611 : vector<8x8xf32>
    %cst_219 = arith.constant dense<0xFF800000> : vector<8xf32>
    %613 = vector.multi_reduction <maximumf>, %612, %cst_219 [1] : vector<8x8xf32> to vector<8xf32>
    %614 = vector.shape_cast %613 : vector<8xf32> to vector<8x1xf32>
    %615 = vector.broadcast %614 : vector<8x1xf32> to vector<8x8xf32>
    %616 = arith.subf %612, %615 : vector<8x8xf32>
    %617 = math.exp %616 : vector<8x8xf32>
    %cst_220 = arith.constant dense<0.000000e+00> : vector<8xf32>
    %618 = vector.multi_reduction <add>, %617, %cst_220 [1] : vector<8x8xf32> to vector<8xf32>
    %619 = vector.shape_cast %618 : vector<8xf32> to vector<8x1xf32>
    %620 = vector.broadcast %619 : vector<8x1xf32> to vector<8x8xf32>
    %621 = arith.divf %617, %620 : vector<8x8xf32>
    %cst_221 = arith.constant dense<0.000000e+00> : vector<8x32xf32>
    %622 = tpu.matmul %605, %11, %cst_221 {dimension_numbers = #tpu.dot_dimension_numbers<[0], [0], [1], [1], [0, 1, 1, 1], [], []>} : vector<16x8xf32>, vector<16x32xf32>, vector<8x32xf32> -> vector<8x32xf32>
    %cst_222 = arith.constant 1.000000e+00 : f32
    %623 = vector.broadcast %cst_222 : f32 to vector<8x1xf32>
    %cst_223 = arith.constant dense<0.000000e+00> : vector<8x1xf32>
    %624 = tpu.matmul %621, %623, %cst_223 {dimension_numbers = #tpu.dot_dimension_numbers<[0], [0], [1], [1], [0, 1, 1, 1], [], []>} : vector<8x8xf32>, vector<8x1xf32>, vector<8x1xf32> -> vector<8x1xf32>
    %cst_224 = arith.constant dense<0.000000e+00> : vector<8xf32>
    %625 = vector.multi_reduction <add>, %621, %cst_224 [0] : vector<8x8xf32> to vector<8xf32>
    %626 = vector.shape_cast %625 : vector<8xf32> to vector<1x8xf32>
    %627 = math.sqrt %624 : vector<8x1xf32>
    %cst_225 = arith.constant 1.000000e+00 : f32
    %628 = vector.broadcast %cst_225 : f32 to vector<8x1xf32>
    %629 = arith.divf %628, %627 : vector<8x1xf32>
    %630 = math.sqrt %626 : vector<1x8xf32>
    %cst_226 = arith.constant 1.000000e+00 : f32
    %631 = vector.broadcast %cst_226 : f32 to vector<1x8xf32>
    %632 = arith.divf %631, %630 : vector<1x8xf32>
    %633 = vector.broadcast %629 : vector<8x1xf32> to vector<8x8xf32>
    %634 = arith.mulf %633, %621 : vector<8x8xf32>
    %635 = vector.broadcast %632 : vector<1x8xf32> to vector<8x8xf32>
    %636 = arith.mulf %634, %635 : vector<8x8xf32>
    %cst_227 = arith.constant dense<0.000000e+00> : vector<8x32xf32>
    %637 = tpu.matmul %636, %622, %cst_227 {dimension_numbers = #tpu.dot_dimension_numbers<[0], [0], [1], [1], [0, 1, 1, 1], [], []>} : vector<8x8xf32>, vector<8x32xf32>, vector<8x32xf32> -> vector<8x32xf32>
    %638 = vector.broadcast %12 : vector<1x32xf32> to vector<8x32xf32>
    %639 = arith.addf %637, %638 : vector<8x32xf32>
    %cst_228 = arith.constant dense<0.000000e+00> : vector<32xf32>
    %640 = vector.multi_reduction <add>, %639, %cst_228 [0] : vector<8x32xf32> to vector<32xf32>
    %641 = vector.shape_cast %640 : vector<32xf32> to vector<1x32xf32>
    %cst_229 = arith.constant 8.000000e+00 : f32
    %642 = vector.broadcast %cst_229 : f32 to vector<1x32xf32>
    %643 = arith.divf %641, %642 : vector<1x32xf32>
    %644 = vector.extract_strided_slice %6 {offsets = [7, 0, 0], sizes = [1, 16, 8], strides = [1, 1, 1]} : vector<8x16x8xf32> to vector<1x16x8xf32>
    %645 = vector.shape_cast %644 : vector<1x16x8xf32> to vector<16x8xf32>
    %cst_230 = arith.constant dense<0.000000e+00> : vector<16x16xf32>
    %646 = tpu.matmul %645, %645, %cst_230 {dimension_numbers = #tpu.dot_dimension_numbers<[1], [1], [0], [0], [0, 0, 1, 0], [], []>} : vector<16x8xf32>, vector<16x8xf32>, vector<16x16xf32> -> vector<16x16xf32>
    %647 = vector.broadcast %9 : vector<16x1xf32> to vector<16x16xf32>
    %648 = arith.mulf %647, %646 : vector<16x16xf32>
    %649 = vector.broadcast %10 : vector<1x16xf32> to vector<16x16xf32>
    %650 = arith.mulf %648, %649 : vector<16x16xf32>
    %cst_231 = arith.constant 0.353553385 : f32
    %651 = vector.broadcast %cst_231 : f32 to vector<16x16xf32>
    %652 = arith.mulf %650, %651 : vector<16x16xf32>
    %cst_232 = arith.constant dense<0xFF800000> : vector<16xf32>
    %653 = vector.multi_reduction <maximumf>, %652, %cst_232 [1] : vector<16x16xf32> to vector<16xf32>
    %654 = vector.shape_cast %653 : vector<16xf32> to vector<16x1xf32>
    %655 = vector.broadcast %654 : vector<16x1xf32> to vector<16x16xf32>
    %656 = arith.subf %652, %655 : vector<16x16xf32>
    %657 = math.exp %656 : vector<16x16xf32>
    %cst_233 = arith.constant dense<0.000000e+00> : vector<16xf32>
    %658 = vector.multi_reduction <add>, %657, %cst_233 [1] : vector<16x16xf32> to vector<16xf32>
    %659 = vector.shape_cast %658 : vector<16xf32> to vector<16x1xf32>
    %660 = vector.broadcast %659 : vector<16x1xf32> to vector<16x16xf32>
    %661 = arith.divf %657, %660 : vector<16x16xf32>
    %cst_234 = arith.constant dense<0.000000e+00> : vector<16x32xf32>
    %662 = tpu.matmul %645, %13, %cst_234 {dimension_numbers = #tpu.dot_dimension_numbers<[1], [0], [0], [1], [0, 0, 1, 1], [], []>} : vector<16x8xf32>, vector<8x32xf32>, vector<16x32xf32> -> vector<16x32xf32>
    %cst_235 = arith.constant 1.000000e+00 : f32
    %663 = vector.broadcast %cst_235 : f32 to vector<16x1xf32>
    %cst_236 = arith.constant dense<0.000000e+00> : vector<16x1xf32>
    %664 = tpu.matmul %661, %663, %cst_236 {dimension_numbers = #tpu.dot_dimension_numbers<[0], [0], [1], [1], [0, 1, 1, 1], [], []>} : vector<16x16xf32>, vector<16x1xf32>, vector<16x1xf32> -> vector<16x1xf32>
    %cst_237 = arith.constant dense<0.000000e+00> : vector<16xf32>
    %665 = vector.multi_reduction <add>, %661, %cst_237 [0] : vector<16x16xf32> to vector<16xf32>
    %666 = vector.shape_cast %665 : vector<16xf32> to vector<1x16xf32>
    %667 = math.sqrt %664 : vector<16x1xf32>
    %cst_238 = arith.constant 1.000000e+00 : f32
    %668 = vector.broadcast %cst_238 : f32 to vector<16x1xf32>
    %669 = arith.divf %668, %667 : vector<16x1xf32>
    %670 = math.sqrt %666 : vector<1x16xf32>
    %cst_239 = arith.constant 1.000000e+00 : f32
    %671 = vector.broadcast %cst_239 : f32 to vector<1x16xf32>
    %672 = arith.divf %671, %670 : vector<1x16xf32>
    %673 = vector.broadcast %669 : vector<16x1xf32> to vector<16x16xf32>
    %674 = arith.mulf %673, %661 : vector<16x16xf32>
    %675 = vector.broadcast %672 : vector<1x16xf32> to vector<16x16xf32>
    %676 = arith.mulf %674, %675 : vector<16x16xf32>
    %cst_240 = arith.constant dense<0.000000e+00> : vector<16x32xf32>
    %677 = tpu.matmul %676, %662, %cst_240 {dimension_numbers = #tpu.dot_dimension_numbers<[0], [0], [1], [1], [0, 1, 1, 1], [], []>} : vector<16x16xf32>, vector<16x32xf32>, vector<16x32xf32> -> vector<16x32xf32>
    %678 = vector.broadcast %14 : vector<1x32xf32> to vector<16x32xf32>
    %679 = arith.addf %677, %678 : vector<16x32xf32>
    %cst_241 = arith.constant dense<0.000000e+00> : vector<32xf32>
    %680 = vector.multi_reduction <add>, %679, %cst_241 [0] : vector<16x32xf32> to vector<32xf32>
    %681 = vector.shape_cast %680 : vector<32xf32> to vector<1x32xf32>
    %cst_242 = arith.constant 1.600000e+01 : f32
    %682 = vector.broadcast %cst_242 : f32 to vector<1x32xf32>
    %683 = arith.divf %681, %682 : vector<1x32xf32>
    %684 = tpu.concatenate %643, %683 in 1 : vector<1x32xf32>, vector<1x32xf32> -> vector<1x64xf32>
    %cst_243 = arith.constant dense<0.000000e+00> : vector<1x8xf32>
    %685 = tpu.matmul %684, %15, %cst_243 {dimension_numbers = #tpu.dot_dimension_numbers<[1], [0], [0], [1], [0, 0, 1, 1], [], []>} : vector<1x64xf32>, vector<64x8xf32>, vector<1x8xf32> -> vector<1x8xf32>
    %686 = arith.addf %685, %16 : vector<1x8xf32>
    %687 = vector.shape_cast %621 : vector<8x8xf32> to vector<1x8x8xf32>
    %688 = vector.shape_cast %661 : vector<16x16xf32> to vector<1x16x16xf32>
    %689 = tpu.concatenate %98, %182, %266, %350, %434, %518, %602, %686 in 0 : vector<1x8xf32>, vector<1x8xf32>, vector<1x8xf32>, vector<1x8xf32>, vector<1x8xf32>, vector<1x8xf32>, vector<1x8xf32>, vector<1x8xf32> -> vector<8x8xf32>
    %c0_244 = arith.constant 0 : index
    %c0_245 = arith.constant 0 : index
    %690 = vector.load %arg15[%c0_244, %c0_245] : memref<8x8xf32, #tpu.memory_space<vmem>>, vector<8x8xf32>
    tpu.vector_store %arg15[%c0_244, %c0_245], %689 {strides = array<i32>} : memref<8x8xf32, #tpu.memory_space<vmem>>, vector<8x8xf32>,
    %691 = tpu.concatenate %99, %183, %267, %351, %435, %519, %603, %687 in 0 : vector<1x8x8xf32>, vector<1x8x8xf32>, vector<1x8x8xf32>, vector<1x8x8xf32>, vector<1x8x8xf32>, vector<1x8x8xf32>, vector<1x8x8xf32>, vector<1x8x8xf32> -> vector<8x8x8xf32>
    %c0_246 = arith.constant 0 : index
    %c0_247 = arith.constant 0 : index
    %c0_248 = arith.constant 0 : index
    %692 = vector.load %arg16[%c0_246, %c0_247, %c0_248] : memref<8x8x8xf32, #tpu.memory_space<vmem>>, vector<8x8x8xf32>
    tpu.vector_store %arg16[%c0_246, %c0_247, %c0_248], %691 {strides = array<i32>} : memref<8x8x8xf32, #tpu.memory_space<vmem>>, vector<8x8x8xf32>,
    %693 = tpu.concatenate %100, %184, %268, %352, %436, %520, %604, %688 in 0 : vector<1x16x16xf32>, vector<1x16x16xf32>, vector<1x16x16xf32>, vector<1x16x16xf32>, vector<1x16x16xf32>, vector<1x16x16xf32>, vector<1x16x16xf32>, vector<1x16x16xf32> -> vector<8x16x16xf32>
    %c0_249 = arith.constant 0 : index
    %c0_250 = arith.constant 0 : index
    %c0_251 = arith.constant 0 : index
    %694 = vector.load %arg17[%c0_249, %c0_250, %c0_251] : memref<8x16x16xf32, #tpu.memory_space<vmem>>, vector<8x16x16xf32>
    tpu.vector_store %arg17[%c0_249, %c0_250, %c0_251], %693 {strides = array<i32>} : memref<8x16x16xf32, #tpu.memory_space<vmem>>, vector<8x16x16xf32>,
    return
  }
  func.func @transform_0(%arg0: i32) -> (i32, i32) {
    %c0_i32 = arith.constant 0 : i32
    %c0_i32_0 = arith.constant 0 : i32
    return %arg0, %c0_i32 : i32, i32
  }
  func.func @transform_1(%arg0: i32) -> (i32, i32, i32) {
    %c0_i32 = arith.constant 0 : i32
    %c0_i32_0 = arith.constant 0 : i32
    %c0_i32_1 = arith.constant 0 : i32
    return %arg0, %c0_i32, %c0_i32_0 : i32, i32, i32
  }
  func.func @transform_2(%arg0: i32) -> (i32, i32) {
    %c0_i32 = arith.constant 0 : i32
    %c0_i32_0 = arith.constant 0 : i32
    %c0_i32_1 = arith.constant 0 : i32
    return %c0_i32, %c0_i32_0 : i32, i32
  }
  func.func @transform_3(%arg0: i32) -> (i32, i32) {
    %c0_i32 = arith.constant 0 : i32
    %c0_i32_0 = arith.constant 0 : i32
    %c0_i32_1 = arith.constant 0 : i32
    return %c0_i32, %c0_i32_0 : i32, i32
  }
  func.func @transform_4(%arg0: i32) -> (i32, i32) {
    %c0_i32 = arith.constant 0 : i32
    %c0_i32_0 = arith.constant 0 : i32
    %c0_i32_1 = arith.constant 0 : i32
    return %c0_i32, %c0_i32_0 : i32, i32
  }
  func.func @transform_5(%arg0: i32) -> (i32, i32) {
    %c0_i32 = arith.constant 0 : i32
    %c0_i32_0 = arith.constant 0 : i32
    %c0_i32_1 = arith.constant 0 : i32
    return %c0_i32, %c0_i32_0 : i32, i32
  }
  func.func @transform_6(%arg0: i32) -> (i32, i32) {
    %c0_i32 = arith.constant 0 : i32
    %c0_i32_0 = arith.constant 0 : i32
    %c0_i32_1 = arith.constant 0 : i32
    return %c0_i32, %c0_i32_0 : i32, i32
  }
  func.func @transform_7(%arg0: i32) -> (i32, i32) {
    %c0_i32 = arith.constant 0 : i32
    %c0_i32_0 = arith.constant 0 : i32
    %c0_i32_1 = arith.constant 0 : i32
    return %c0_i32, %c0_i32_0 : i32, i32
  }
  func.func @transform_8(%arg0: i32) -> (i32, i32) {
    %c0_i32 = arith.constant 0 : i32
    %c0_i32_0 = arith.constant 0 : i32
    %c0_i32_1 = arith.constant 0 : i32
    return %c0_i32, %c0_i32_0 : i32, i32
  }
  func.func @transform_9(%arg0: i32) -> (i32, i32) {
    %c0_i32 = arith.constant 0 : i32
    %c0_i32_0 = arith.constant 0 : i32
    %c0_i32_1 = arith.constant 0 : i32
    return %c0_i32, %c0_i32_0 : i32, i32
  }
  func.func @transform_10(%arg0: i32) -> (i32, i32) {
    %c0_i32 = arith.constant 0 : i32
    %c0_i32_0 = arith.constant 0 : i32
    %c0_i32_1 = arith.constant 0 : i32
    return %c0_i32, %c0_i32_0 : i32, i32
  }
  func.func @transform_11(%arg0: i32) -> (i32, i32) {
    %c0_i32 = arith.constant 0 : i32
    %c0_i32_0 = arith.constant 0 : i32
    %c0_i32_1 = arith.constant 0 : i32
    return %c0_i32, %c0_i32_0 : i32, i32
  }
  func.func @transform_12(%arg0: i32) -> (i32, i32) {
    %c0_i32 = arith.constant 0 : i32
    %c0_i32_0 = arith.constant 0 : i32
    %c0_i32_1 = arith.constant 0 : i32
    return %c0_i32, %c0_i32_0 : i32, i32
  }
  func.func @transform_13(%arg0: i32) -> (i32, i32) {
    %c0_i32 = arith.constant 0 : i32
    %c0_i32_0 = arith.constant 0 : i32
    %c0_i32_1 = arith.constant 0 : i32
    return %c0_i32, %c0_i32_0 : i32, i32
  }
  func.func @transform_14(%arg0: i32) -> (i32, i32) {
    %c0_i32 = arith.constant 0 : i32
    %c0_i32_0 = arith.constant 0 : i32
    return %arg0, %c0_i32 : i32, i32
  }
  func.func @transform_15(%arg0: i32) -> (i32, i32, i32) {
    %c0_i32 = arith.constant 0 : i32
    %c0_i32_0 = arith.constant 0 : i32
    %c0_i32_1 = arith.constant 0 : i32
    return %arg0, %c0_i32, %c0_i32_0 : i32, i32, i32
  }
  func.func @transform_16(%arg0: i32) -> (i32, i32, i32) {
    %c0_i32 = arith.constant 0 : i32
    %c0_i32_0 = arith.constant 0 : i32
    %c0_i32_1 = arith.constant 0 : i32
    return %arg0, %c0_i32, %c0_i32_0 : i32, i32, i32
  }
}

</mosaic_0001>

<llo_original>
// kernel: tpu_custom_call.1
$region0: #{tpu_custom_call.1}
  #allocation0 [shape = 'u32[]', space=smem, size = 0x4, offset = 0x4, fixed_abs, tag = 'smem constant byte address 0x4 - core index']
  #allocation1 [shape = 'u32[144,128]{1,0:T(1,128)}', space=vmem, size = 0x12000, scoped, tag = 'internal scratch']
  %s0 = inlined_call_operand.vmem [shape: f32[256,24], index: 0, kind: input, shape index: {}]
  %s1 = inlined_call_operand.vmem [shape: f32[16,16,8], index: 1, kind: input, shape index: {}]
  %s2 = inlined_call_operand.vmem [shape: f32[24,8], index: 2, kind: input, shape index: {}]
  %s3 = inlined_call_operand.vmem [shape: f32[1,8], index: 3, kind: input, shape index: {}]
  %s4 = inlined_call_operand.vmem [shape: f32[8,1], index: 4, kind: input, shape index: {}]
  %s5 = inlined_call_operand.vmem [shape: f32[1,8], index: 5, kind: input, shape index: {}]
  %s6 = inlined_call_operand.vmem [shape: f32[16,1], index: 6, kind: input, shape index: {}]
  %s7 = inlined_call_operand.vmem [shape: f32[1,16], index: 7, kind: input, shape index: {}]
  %s8 = inlined_call_operand.vmem [shape: f32[16,32], index: 8, kind: input, shape index: {}]
  %s9 = inlined_call_operand.vmem [shape: f32[1,32], index: 9, kind: input, shape index: {}]
  %s10 = inlined_call_operand.vmem [shape: f32[8,32], index: 10, kind: input, shape index: {}]
  %s11 = inlined_call_operand.vmem [shape: f32[1,32], index: 11, kind: input, shape index: {}]
  %s12 = inlined_call_operand.vmem [shape: f32[64,8], index: 12, kind: input, shape index: {}]
  %s13 = inlined_call_operand.vmem [shape: f32[1,8], index: 13, kind: input, shape index: {}]
  %s14 = inlined_call_operand.vmem [shape: f32[16,8], index: 14, kind: output, shape index: {0}]
  %s15 = inlined_call_operand.vmem [shape: f32[16,8,8], index: 15, kind: output, shape index: {1}]
  %s16 = inlined_call_operand.hbm [shape: f32[16,16,16], index: 16, kind: output, shape index: {2}]
  %17 = xla_tuple %s14, %s15, %s16
  %s18 = sld [smem:[#allocation0]]
  $region105: #{tpu_custom_call.1} parent=0
    _
  %s20 = ssub.s32 1, %s18
  %s21 = scalar_select 0, %s20, %s18
  $region1: #{tpu_custom_call.1} parent=0
    #allocation2 [shape = 'u8[131072]{0}', space=vmem, size = 0x20000, scoped, tag = 'output window, operand 2']
    #allocation3 [shape = 's32[2]{0}', space=sflag, size = 0x8, scoped, tag = 'scoped memory for tpu_custom_call.1']
    %22 = vsyncpa [#allocation3], 0
    %s23 = scalar_lea.sflag [#allocation3], 1
    %24 = vsyncpa %s23, 0
    loop: start=0, step=1, limit=4
    $region2: #{tpu_custom_call.1} parent=1 // loop_pre_header
      _
    $region3: #{tpu_custom_call.1} parent=1 // loop_header
      %s26 = sphi 0, %s30
      %p27 = scmp.ge.s32.totalorder %s26, 4
      %s36 = sphi 0, %s38
      %s39 = sphi 0, %s36
      %s40 = sphi 0, %s39
      %s56 = sphi 0, %s40
      %s62 = sphi 0, %s64
      %s65 = sphi 0, %s62
      %s66 = sphi 0, %s65
      %s82 = sphi 0, %s66
      %s86 = sphi 0, %s86
      %s88 = sphi 0, %s86
      %s89 = sphi 0, %s88
      %s103 = sphi 0, %s89
      %s107 = sphi 0, %s107
      %s109 = sphi 0, %s107
      %s110 = sphi 0, %s109
      %s124 = sphi 0, %s110
      %s128 = sphi 0, %s128
      %s130 = sphi 0, %s128
      %s131 = sphi 0, %s130
      %s145 = sphi 0, %s131
      %s149 = sphi 0, %s149
      %s151 = sphi 0, %s149
      %s152 = sphi 0, %s151
      %s166 = sphi 0, %s152
      %s170 = sphi 0, %s170
      %s172 = sphi 0, %s170
      %s173 = sphi 0, %s172
      %s187 = sphi 0, %s173
      %s191 = sphi 0, %s191
      %s193 = sphi 0, %s191
      %s194 = sphi 0, %s193
      %s208 = sphi 0, %s194
      %s212 = sphi 0, %s212
      %s214 = sphi 0, %s212
      %s215 = sphi 0, %s214
      %s229 = sphi 0, %s215
      %s233 = sphi 0, %s233
      %s235 = sphi 0, %s233
      %s236 = sphi 0, %s235
      %s250 = sphi 0, %s236
      %s254 = sphi 0, %s254
      %s256 = sphi 0, %s254
      %s257 = sphi 0, %s256
      %s271 = sphi 0, %s257
      %s275 = sphi 0, %s275
      %s277 = sphi 0, %s275
      %s278 = sphi 0, %s277
      %s292 = sphi 0, %s278
      %s296 = sphi 0, %s296
      %s298 = sphi 0, %s296
      %s299 = sphi 0, %s298
      %s313 = sphi 0, %s299
      %s317 = sphi 0, %s317
      %s319 = sphi 0, %s317
      %s320 = sphi 0, %s319
      %s334 = sphi 0, %s320
      %s340 = sphi 0, %s342
      %s343 = sphi 0, %s340
      %s344 = sphi 0, %s343
      %s360 = sphi 0, %s344
      %s366 = sphi 0, %s368
      %s369 = sphi 0, %s366
      %s370 = sphi 0, %s369
      %s386 = sphi 0, %s370
      %s392 = sphi 0, %s394
      %s395 = sphi 0, %s392
      %s396 = sphi 0, %s395
      %s412 = sphi 0, %s396
    $region4: #{tpu_custom_call.1} parent=1 // loop_header_branch
      %29 = sbr.rel (%p27) target = $region8
    $region5: #{tpu_custom_call.1} parent=1 // loop_body
      %s31 = ssub.s32 %s26, 1
      %s32 = ssub.s32 %s26, 2
      %s33 = sadd.s32 %s26, 1
      %s34 = ssub.s32 %s26, %s33
      %p35 = scmp.eq.s32.totalorder %s34, 0
      %s37 = sadd.s32 %s36, 1
      %s38 = scalar_select %p35, %s36, %s37
      %p41 = pneg %p35
      %p42 = scmp.eq.s32.totalorder %s26, 1
      %p43 = por %p41, %p42
      %p44 = scmp.ne.s32.totalorder %s36, %s39
      %p45 = scmp.eq.s32.totalorder %s26, 0
      %p46 = por %p44, %p45
      %p47 = scmp.ne.s32.totalorder %s36, %s39
      %p48 = scmp.eq.s32.totalorder %s31, 1
      %p49 = por %p47, %p48
      %p50 = scmp.ne.s32.totalorder %s39, %s40
      %p51 = scmp.eq.s32.totalorder %s31, 0
      %p52 = por %p50, %p51
      %p53 = scmp.ne.s32.totalorder %s39, %s40
      %p54 = scmp.eq.s32.totalorder %s32, 1
      %p55 = por %p53, %p54
      %p57 = scmp.ne.s32.totalorder %s40, %s56
      %p58 = scmp.eq.s32.totalorder %s32, 0
      %p59 = por %p57, %p58
      %s60 = ssub.s32 %s26, %s33
      %p61 = scmp.eq.s32.totalorder %s60, 0
      %s63 = sadd.s32 %s62, 1
      %s64 = scalar_select %p61, %s62, %s63
      %p67 = pneg %p61
      %p68 = scmp.eq.s32.totalorder %s26, 1
      %p69 = por %p67, %p68
      %p70 = scmp.ne.s32.totalorder %s62, %s65
      %p71 = scmp.eq.s32.totalorder %s26, 0
      %p72 = por %p70, %p71
      %p73 = scmp.ne.s32.totalorder %s62, %s65
      %p74 = scmp.eq.s32.totalorder %s31, 1
      %p75 = por %p73, %p74
      %p76 = scmp.ne.s32.totalorder %s65, %s66
      %p77 = scmp.eq.s32.totalorder %s31, 0
      %p78 = por %p76, %p77
      %p79 = scmp.ne.s32.totalorder %s65, %s66
      %p80 = scmp.eq.s32.totalorder %s32, 1
      %p81 = por %p79, %p80
      %p83 = scmp.ne.s32.totalorder %s66, %s82
      %p84 = scmp.eq.s32.totalorder %s32, 0
      %p85 = por %p83, %p84
      %s87 = sadd.s32 %s86, 1
      %p90 = scmp.eq.s32.totalorder %s26, 1
      %p91 = scmp.ne.s32.totalorder %s86, %s88
      %p92 = scmp.eq.s32.totalorder %s26, 0
      %p93 = por %p91, %p92
      %p94 = scmp.ne.s32.totalorder %s86, %s88
      %p95 = scmp.eq.s32.totalorder %s31, 1
      %p96 = por %p94, %p95
      %p97 = scmp.ne.s32.totalorder %s88, %s89
      %p98 = scmp.eq.s32.totalorder %s31, 0
      %p99 = por %p97, %p98
      %p100 = scmp.ne.s32.totalorder %s88, %s89
      %p101 = scmp.eq.s32.totalorder %s32, 1
      %p102 = por %p100, %p101
      %p104 = scmp.ne.s32.totalorder %s89, %s103
      %p105 = scmp.eq.s32.totalorder %s32, 0
      %p106 = por %p104, %p105
      %s108 = sadd.s32 %s107, 1
      %p111 = scmp.eq.s32.totalorder %s26, 1
      %p112 = scmp.ne.s32.totalorder %s107, %s109
      %p113 = scmp.eq.s32.totalorder %s26, 0
      %p114 = por %p112, %p113
      %p115 = scmp.ne.s32.totalorder %s107, %s109
      %p116 = scmp.eq.s32.totalorder %s31, 1
      %p117 = por %p115, %p116
      %p118 = scmp.ne.s32.totalorder %s109, %s110
      %p119 = scmp.eq.s32.totalorder %s31, 0
      %p120 = por %p118, %p119
      %p121 = scmp.ne.s32.totalorder %s109, %s110
      %p122 = scmp.eq.s32.totalorder %s32, 1
      %p123 = por %p121, %p122
      %p125 = scmp.ne.s32.totalorder %s110, %s124
      %p126 = scmp.eq.s32.totalorder %s32, 0
      %p127 = por %p125, %p126
      %s129 = sadd.s32 %s128, 1
      %p132 = scmp.eq.s32.totalorder %s26, 1
      %p133 = scmp.ne.s32.totalorder %s128, %s130
      %p134 = scmp.eq.s32.totalorder %s26, 0
      %p135 = por %p133, %p134
      %p136 = scmp.ne.s32.totalorder %s128, %s130
      %p137 = scmp.eq.s32.totalorder %s31, 1
      %p138 = por %p136, %p137
      %p139 = scmp.ne.s32.totalorder %s130, %s131
      %p140 = scmp.eq.s32.totalorder %s31, 0
      %p141 = por %p139, %p140
      %p142 = scmp.ne.s32.totalorder %s130, %s131
      %p143 = scmp.eq.s32.totalorder %s32, 1
      %p144 = por %p142, %p143
      %p146 = scmp.ne.s32.totalorder %s131, %s145
      %p147 = scmp.eq.s32.totalorder %s32, 0
      %p148 = por %p146, %p147
      %s150 = sadd.s32 %s149, 1
      %p153 = scmp.eq.s32.totalorder %s26, 1
      %p154 = scmp.ne.s32.totalorder %s149, %s151
      %p155 = scmp.eq.s32.totalorder %s26, 0
      %p156 = por %p154, %p155
      %p157 = scmp.ne.s32.totalorder %s149, %s151
      %p158 = scmp.eq.s32.totalorder %s31, 1
      %p159 = por %p157, %p158
      %p160 = scmp.ne.s32.totalorder %s151, %s152
      %p161 = scmp.eq.s32.totalorder %s31, 0
      %p162 = por %p160, %p161
      %p163 = scmp.ne.s32.totalorder %s151, %s152
      %p164 = scmp.eq.s32.totalorder %s32, 1
      %p165 = por %p163, %p164
      %p167 = scmp.ne.s32.totalorder %s152, %s166
      %p168 = scmp.eq.s32.totalorder %s32, 0
      %p169 = por %p167, %p168
      %s171 = sadd.s32 %s170, 1
      %p174 = scmp.eq.s32.totalorder %s26, 1
      %p175 = scmp.ne.s32.totalorder %s170, %s172
      %p176 = scmp.eq.s32.totalorder %s26, 0
      %p177 = por %p175, %p176
      %p178 = scmp.ne.s32.totalorder %s170, %s172
      %p179 = scmp.eq.s32.totalorder %s31, 1
      %p180 = por %p178, %p179
      %p181 = scmp.ne.s32.totalorder %s172, %s173
      %p182 = scmp.eq.s32.totalorder %s31, 0
      %p183 = por %p181, %p182
      %p184 = scmp.ne.s32.totalorder %s172, %s173
      %p185 = scmp.eq.s32.totalorder %s32, 1
      %p186 = por %p184, %p185
      %p188 = scmp.ne.s32.totalorder %s173, %s187
      %p189 = scmp.eq.s32.totalorder %s32, 0
      %p190 = por %p188, %p189
      %s192 = sadd.s32 %s191, 1
      %p195 = scmp.eq.s32.totalorder %s26, 1
      %p196 = scmp.ne.s32.totalorder %s191, %s193
      %p197 = scmp.eq.s32.totalorder %s26, 0
      %p198 = por %p196, %p197
      %p199 = scmp.ne.s32.totalorder %s191, %s193
      %p200 = scmp.eq.s32.totalorder %s31, 1
      %p201 = por %p199, %p200
      %p202 = scmp.ne.s32.totalorder %s193, %s194
      %p203 = scmp.eq.s32.totalorder %s31, 0
      %p204 = por %p202, %p203
      %p205 = scmp.ne.s32.totalorder %s193, %s194
      %p206 = scmp.eq.s32.totalorder %s32, 1
      %p207 = por %p205, %p206
      %p209 = scmp.ne.s32.totalorder %s194, %s208
      %p210 = scmp.eq.s32.totalorder %s32, 0
      %p211 = por %p209, %p210
      %s213 = sadd.s32 %s212, 1
      %p216 = scmp.eq.s32.totalorder %s26, 1
      %p217 = scmp.ne.s32.totalorder %s212, %s214
      %p218 = scmp.eq.s32.totalorder %s26, 0
      %p219 = por %p217, %p218
      %p220 = scmp.ne.s32.totalorder %s212, %s214
      %p221 = scmp.eq.s32.totalorder %s31, 1
      %p222 = por %p220, %p221
      %p223 = scmp.ne.s32.totalorder %s214, %s215
      %p224 = scmp.eq.s32.totalorder %s31, 0
      %p225 = por %p223, %p224
      %p226 = scmp.ne.s32.totalorder %s214, %s215
      %p227 = scmp.eq.s32.totalorder %s32, 1
      %p228 = por %p226, %p227
      %p230 = scmp.ne.s32.totalorder %s215, %s229
      %p231 = scmp.eq.s32.totalorder %s32, 0
      %p232 = por %p230, %p231
      %s234 = sadd.s32 %s233, 1
      %p237 = scmp.eq.s32.totalorder %s26, 1
      %p238 = scmp.ne.s32.totalorder %s233, %s235
      %p239 = scmp.eq.s32.totalorder %s26, 0
      %p240 = por %p238, %p239
      %p241 = scmp.ne.s32.totalorder %s233, %s235
      %p242 = scmp.eq.s32.totalorder %s31, 1
      %p243 = por %p241, %p242
      %p244 = scmp.ne.s32.totalorder %s235, %s236
      %p245 = scmp.eq.s32.totalorder %s31, 0
      %p246 = por %p244, %p245
      %p247 = scmp.ne.s32.totalorder %s235, %s236
      %p248 = scmp.eq.s32.totalorder %s32, 1
      %p249 = por %p247, %p248
      %p251 = scmp.ne.s32.totalorder %s236, %s250
      %p252 = scmp.eq.s32.totalorder %s32, 0
      %p253 = por %p251, %p252
      %s255 = sadd.s32 %s254, 1
      %p258 = scmp.eq.s32.totalorder %s26, 1
      %p259 = scmp.ne.s32.totalorder %s254, %s256
      %p260 = scmp.eq.s32.totalorder %s26, 0
      %p261 = por %p259, %p260
      %p262 = scmp.ne.s32.totalorder %s254, %s256
      %p263 = scmp.eq.s32.totalorder %s31, 1
      %p264 = por %p262, %p263
      %p265 = scmp.ne.s32.totalorder %s256, %s257
      %p266 = scmp.eq.s32.totalorder %s31, 0
      %p267 = por %p265, %p266
      %p268 = scmp.ne.s32.totalorder %s256, %s257
      %p269 = scmp.eq.s32.totalorder %s32, 1
      %p270 = por %p268, %p269
      %p272 = scmp.ne.s32.totalorder %s257, %s271
      %p273 = scmp.eq.s32.totalorder %s32, 0
      %p274 = por %p272, %p273
      %s276 = sadd.s32 %s275, 1
      %p279 = scmp.eq.s32.totalorder %s26, 1
      %p280 = scmp.ne.s32.totalorder %s275, %s277
      %p281 = scmp.eq.s32.totalorder %s26, 0
      %p282 = por %p280, %p281
      %p283 = scmp.ne.s32.totalorder %s275, %s277
      %p284 = scmp.eq.s32.totalorder %s31, 1
      %p285 = por %p283, %p284
      %p286 = scmp.ne.s32.totalorder %s277, %s278
      %p287 = scmp.eq.s32.totalorder %s31, 0
      %p288 = por %p286, %p287
      %p289 = scmp.ne.s32.totalorder %s277, %s278
      %p290 = scmp.eq.s32.totalorder %s32, 1
      %p291 = por %p289, %p290
      %p293 = scmp.ne.s32.totalorder %s278, %s292
      %p294 = scmp.eq.s32.totalorder %s32, 0
      %p295 = por %p293, %p294
      %s297 = sadd.s32 %s296, 1
      %p300 = scmp.eq.s32.totalorder %s26, 1
      %p301 = scmp.ne.s32.totalorder %s296, %s298
      %p302 = scmp.eq.s32.totalorder %s26, 0
      %p303 = por %p301, %p302
      %p304 = scmp.ne.s32.totalorder %s296, %s298
      %p305 = scmp.eq.s32.totalorder %s31, 1
      %p306 = por %p304, %p305
      %p307 = scmp.ne.s32.totalorder %s298, %s299
      %p308 = scmp.eq.s32.totalorder %s31, 0
      %p309 = por %p307, %p308
      %p310 = scmp.ne.s32.totalorder %s298, %s299
      %p311 = scmp.eq.s32.totalorder %s32, 1
      %p312 = por %p310, %p311
      %p314 = scmp.ne.s32.totalorder %s299, %s313
      %p315 = scmp.eq.s32.totalorder %s32, 0
      %p316 = por %p314, %p315
      %s318 = sadd.s32 %s317, 1
      %p321 = scmp.eq.s32.totalorder %s26, 1
      %p322 = scmp.ne.s32.totalorder %s317, %s319
      %p323 = scmp.eq.s32.totalorder %s26, 0
      %p324 = por %p322, %p323
      %p325 = scmp.ne.s32.totalorder %s317, %s319
      %p326 = scmp.eq.s32.totalorder %s31, 1
      %p327 = por %p325, %p326
      %p328 = scmp.ne.s32.totalorder %s319, %s320
      %p329 = scmp.eq.s32.totalorder %s31, 0
      %p330 = por %p328, %p329
      %p331 = scmp.ne.s32.totalorder %s319, %s320
      %p332 = scmp.eq.s32.totalorder %s32, 1
      %p333 = por %p331, %p332
      %p335 = scmp.ne.s32.totalorder %s320, %s334
      %p336 = scmp.eq.s32.totalorder %s32, 0
      %p337 = por %p335, %p336
      %s338 = ssub.s32 %s26, %s33
      %p339 = scmp.eq.s32.totalorder %s338, 0
      %s341 = sadd.s32 %s340, 1
      %s342 = scalar_select %p339, %s340, %s341
      %p345 = pneg %p339
      %p346 = scmp.eq.s32.totalorder %s26, 1
      %p347 = por %p345, %p346
      %p348 = scmp.ne.s32.totalorder %s340, %s343
      %p349 = scmp.eq.s32.totalorder %s26, 0
      %p350 = por %p348, %p349
      %p351 = scmp.ne.s32.totalorder %s340, %s343
      %p352 = scmp.eq.s32.totalorder %s31, 1
      %p353 = por %p351, %p352
      %p354 = scmp.ne.s32.totalorder %s343, %s344
      %p355 = scmp.eq.s32.totalorder %s31, 0
      %p356 = por %p354, %p355
      %p357 = scmp.ne.s32.totalorder %s343, %s344
      %p358 = scmp.eq.s32.totalorder %s32, 1
      %p359 = por %p357, %p358
      %p361 = scmp.ne.s32.totalorder %s344, %s360
      %p362 = scmp.eq.s32.totalorder %s32, 0
      %p363 = por %p361, %p362
      %s364 = ssub.s32 %s26, %s33
      %p365 = scmp.eq.s32.totalorder %s364, 0
      %s367 = sadd.s32 %s366, 1
      %s368 = scalar_select %p365, %s366, %s367
      %p371 = pneg %p365
      %p372 = scmp.eq.s32.totalorder %s26, 1
      %p373 = por %p371, %p372
      %p374 = scmp.ne.s32.totalorder %s366, %s369
      %p375 = scmp.eq.s32.totalorder %s26, 0
      %p376 = por %p374, %p375
      %p377 = scmp.ne.s32.totalorder %s366, %s369
      %p378 = scmp.eq.s32.totalorder %s31, 1
      %p379 = por %p377, %p378
      %p380 = scmp.ne.s32.totalorder %s369, %s370
      %p381 = scmp.eq.s32.totalorder %s31, 0
      %p382 = por %p380, %p381
      %p383 = scmp.ne.s32.totalorder %s369, %s370
      %p384 = scmp.eq.s32.totalorder %s32, 1
      %p385 = por %p383, %p384
      %p387 = scmp.ne.s32.totalorder %s370, %s386
      %p388 = scmp.eq.s32.totalorder %s32, 0
      %p389 = por %p387, %p388
      %s390 = ssub.s32 %s26, %s33
      %p391 = scmp.eq.s32.totalorder %s390, 0
      %s393 = sadd.s32 %s392, 1
      %s394 = scalar_select %p391, %s392, %s393
      %p397 = pneg %p391
      %p398 = scmp.eq.s32.totalorder %s26, 1
      %p399 = por %p397, %p398
      %p400 = scmp.ne.s32.totalorder %s392, %s395
      %p401 = scmp.eq.s32.totalorder %s26, 0
      %p402 = por %p400, %p401
      %p403 = scmp.ne.s32.totalorder %s392, %s395
      %p404 = scmp.eq.s32.totalorder %s31, 1
      %p405 = por %p403, %p404
      %p406 = scmp.ne.s32.totalorder %s395, %s396
      %p407 = scmp.eq.s32.totalorder %s31, 0
      %p408 = por %p406, %p407
      %p409 = scmp.ne.s32.totalorder %s395, %s396
      %p410 = scmp.eq.s32.totalorder %s32, 1
      %p411 = por %p409, %p410
      %p413 = scmp.ne.s32.totalorder %s396, %s412
      %p414 = scmp.eq.s32.totalorder %s32, 0
      %p415 = por %p413, %p414
      %p416 = scmp.le.s32.totalorder 1, %s26
      %p417 = scmp.lt.s32.totalorder %s26, 3
      %p418 = pnand %p416, %p417
      %p419 = pneg %p418
      // Predicated region
      $region9: #{tpu_custom_call.1} parent=5 // pred_check
        _
      $region10: #{tpu_custom_call.1} parent=5 // pred_check_branch
        %421 = sbr.rel (%p418) target = $region12
      $region11: #{tpu_custom_call.1} parent=5 // pred_region
        %s422 = ssub.s32 %s26, 1
        // Predicated region
        $region13: #{tpu_custom_call.1} parent=11 // pred_check
          %p423 = pneg %p99
        $region14: #{tpu_custom_call.1} parent=11 // pred_check_branch
          %425 = sbr.rel (%p423) target = $region16
        $region15: #{tpu_custom_call.1} parent=11 // pred_region
          _
        $region16: #{tpu_custom_call.1} parent=11 // pred_fallthru
          _
        // Predicated region
        $region17: #{tpu_custom_call.1} parent=11 // pred_check
          %p426 = pneg %p120
        $region18: #{tpu_custom_call.1} parent=11 // pred_check_branch
          %428 = sbr.rel (%p426) target = $region20
        $region19: #{tpu_custom_call.1} parent=11 // pred_region
          _
        $region20: #{tpu_custom_call.1} parent=11 // pred_fallthru
          _
        // Predicated region
        $region21: #{tpu_custom_call.1} parent=11 // pred_check
          %p429 = pneg %p141
        $region22: #{tpu_custom_call.1} parent=11 // pred_check_branch
          %431 = sbr.rel (%p429) target = $region24
        $region23: #{tpu_custom_call.1} parent=11 // pred_region
          _
        $region24: #{tpu_custom_call.1} parent=11 // pred_fallthru
          _
        // Predicated region
        $region25: #{tpu_custom_call.1} parent=11 // pred_check
          %p432 = pneg %p162
        $region26: #{tpu_custom_call.1} parent=11 // pred_check_branch
          %434 = sbr.rel (%p432) target = $region28
        $region27: #{tpu_custom_call.1} parent=11 // pred_region
          _
        $region28: #{tpu_custom_call.1} parent=11 // pred_fallthru
          _
        // Predicated region
        $region29: #{tpu_custom_call.1} parent=11 // pred_check
          %p435 = pneg %p183
        $region30: #{tpu_custom_call.1} parent=11 // pred_check_branch
          %437 = sbr.rel (%p435) target = $region32
        $region31: #{tpu_custom_call.1} parent=11 // pred_region
          _
        $region32: #{tpu_custom_call.1} parent=11 // pred_fallthru
          _
        // Predicated region
        $region33: #{tpu_custom_call.1} parent=11 // pred_check
          %p438 = pneg %p204
        $region34: #{tpu_custom_call.1} parent=11 // pred_check_branch
          %440 = sbr.rel (%p438) target = $region36
        $region35: #{tpu_custom_call.1} parent=11 // pred_region
          _
        $region36: #{tpu_custom_call.1} parent=11 // pred_fallthru
          _
        // Predicated region
        $region37: #{tpu_custom_call.1} parent=11 // pred_check
          %p441 = pneg %p225
        $region38: #{tpu_custom_call.1} parent=11 // pred_check_branch
          %443 = sbr.rel (%p441) target = $region40
        $region39: #{tpu_custom_call.1} parent=11 // pred_region
          _
        $region40: #{tpu_custom_call.1} parent=11 // pred_fallthru
          _
        // Predicated region
        $region41: #{tpu_custom_call.1} parent=11 // pred_check
          %p444 = pneg %p246
        $region42: #{tpu_custom_call.1} parent=11 // pred_check_branch
          %446 = sbr.rel (%p444) target = $region44
        $region43: #{tpu_custom_call.1} parent=11 // pred_region
          _
        $region44: #{tpu_custom_call.1} parent=11 // pred_fallthru
          _
        // Predicated region
        $region45: #{tpu_custom_call.1} parent=11 // pred_check
          %p447 = pneg %p267
        $region46: #{tpu_custom_call.1} parent=11 // pred_check_branch
          %449 = sbr.rel (%p447) target = $region48
        $region47: #{tpu_custom_call.1} parent=11 // pred_region
          _
        $region48: #{tpu_custom_call.1} parent=11 // pred_fallthru
          _
        // Predicated region
        $region49: #{tpu_custom_call.1} parent=11 // pred_check
          %p450 = pneg %p288
        $region50: #{tpu_custom_call.1} parent=11 // pred_check_branch
          %452 = sbr.rel (%p450) target = $region52
        $region51: #{tpu_custom_call.1} parent=11 // pred_region
          _
        $region52: #{tpu_custom_call.1} parent=11 // pred_fallthru
          _
        // Predicated region
        $region53: #{tpu_custom_call.1} parent=11 // pred_check
          %p453 = pneg %p309
        $region54: #{tpu_custom_call.1} parent=11 // pred_check_branch
          %455 = sbr.rel (%p453) target = $region56
        $region55: #{tpu_custom_call.1} parent=11 // pred_region
          _
        $region56: #{tpu_custom_call.1} parent=11 // pred_fallthru
          _
        // Predicated region
        $region57: #{tpu_custom_call.1} parent=11 // pred_check
          %p456 = pneg %p330
        $region58: #{tpu_custom_call.1} parent=11 // pred_check_branch
          %458 = sbr.rel (%p456) target = $region60
        $region59: #{tpu_custom_call.1} parent=11 // pred_region
          _
        $region60: #{tpu_custom_call.1} parent=11 // pred_fallthru
          _
      $region12: #{tpu_custom_call.1} parent=5 // pred_fallthru
        _
      %p459 = scmp.lt.s32.totalorder %s26, 2
      // Predicated region
      $region61: #{tpu_custom_call.1} parent=5 // pred_check
        %p460 = pneg %p459
      $region62: #{tpu_custom_call.1} parent=5 // pred_check_branch
        %462 = sbr.rel (%p460) target = $region64
      $region63: #{tpu_custom_call.1} parent=5 // pred_region
        // Predicated region
        $region65: #{tpu_custom_call.1} parent=63 // pred_check
          %p463 = pneg %p46
        $region66: #{tpu_custom_call.1} parent=63 // pred_check_branch
          %465 = sbr.rel (%p463) target = $region68
        $region67: #{tpu_custom_call.1} parent=63 // pred_region
          %s466 = smul.u32 16, %s26
          %p467 = scmp.lt.s32.totalorder %s466, 31
          %s468 = scalar_select %p467, %s466, 31
          %s469 = smul.addr %s468, 8
          %s470 = scalar_lea.vmem %s0, %s469
          %s471 = smul.u32 16, %s26
        $region68: #{tpu_custom_call.1} parent=63 // pred_fallthru
          _
        // Predicated region
        $region69: #{tpu_custom_call.1} parent=63 // pred_check
          %p472 = pneg %p72
        $region70: #{tpu_custom_call.1} parent=63 // pred_check_branch
          %474 = sbr.rel (%p472) target = $region72
        $region71: #{tpu_custom_call.1} parent=63 // pred_region
          %s475 = smul.u32 8, %s26
          %p476 = scmp.lt.s32.totalorder %s475, 15
          %s477 = scalar_select %p476, %s475, 15
          %s478 = smul.addr %s477, 2
          %s479 = smul.addr %s478, 8
          %s480 = scalar_lea.vmem %s1, %s479
          %s481 = smul.u32 8, %s26
        $region72: #{tpu_custom_call.1} parent=63 // pred_fallthru
          _
      $region64: #{tpu_custom_call.1} parent=5 // pred_fallthru
        _
      %p482 = scmp.le.s32.totalorder 1, %s26
      %p483 = scmp.lt.s32.totalorder %s26, 3
      %p484 = pnand %p482, %p483
      %p485 = pneg %p484
      // Predicated region
      $region73: #{tpu_custom_call.1} parent=5 // pred_check
        _
      $region74: #{tpu_custom_call.1} parent=5 // pred_check_branch
        %487 = sbr.rel (%p484) target = $region76
      $region75: #{tpu_custom_call.1} parent=5 // pred_region
        %s488 = ssub.s32 %s26, 1
        %s489 = smul.u32 16, %s31
        %p490 = scmp.lt.s32.totalorder %s489, 31
        %s491 = scalar_select %p490, %s489, 31
        %s492 = smul.addr %s491, 8
        %s493 = scalar_lea.vmem %s0, %s492
        %p494 = pneg %p52
        %p495 = pneg %p49
        %s496 = smul.u32 8, %s31
        %p497 = scmp.lt.s32.totalorder %s496, 15
        %s498 = scalar_select %p497, %s496, 15
        %s499 = smul.addr %s498, 2
        %s500 = smul.addr %s499, 8
        %s501 = scalar_lea.vmem %s1, %s500
        %p502 = pneg %p78
        %p503 = pneg %p75
        %p504 = pneg %p99
        %p505 = pneg %p96
        %p506 = pneg %p120
        %p507 = pneg %p117
        %p508 = pneg %p141
        %p509 = pneg %p138
        %p510 = pneg %p162
        %p511 = pneg %p159
        %p512 = pneg %p183
        %p513 = pneg %p180
        %p514 = pneg %p204
        %p515 = pneg %p201
        %p516 = pneg %p225
        %p517 = pneg %p222
        %p518 = pneg %p246
        %p519 = pneg %p243
        %p520 = pneg %p267
        %p521 = pneg %p264
        %p522 = pneg %p288
        %p523 = pneg %p285
        %p524 = pneg %p309
        %p525 = pneg %p306
        %p526 = pneg %p330
        %p527 = pneg %p327
        %p528 = pneg %p356
        %p529 = pneg %p353
        %p530 = scmp.lt.s32.totalorder %s31, 1
        %s531 = scalar_select %p530, %s31, 1
        %s532 = smul.addr %s531, 8
        %s533 = scalar_lea.vmem %s14, %s532
        %p534 = pneg %p382
        %p535 = pneg %p379
        %s536 = smul.u32 8, %s31
        %p537 = scmp.lt.s32.totalorder %s536, 15
        %s538 = scalar_select %p537, %s536, 15
        %s539 = smul.addr %s538, 8
        %s540 = scalar_lea.vmem %s15, %s539
        %p541 = pneg %p408
        %p542 = pneg %p405
        %s543 = sand.u32 %s395, 1
        %s544 = scalar_lea.sflag [#allocation3], %s543
        %s545 = sand.u32 %s395, 1
        %s546 = smul.addr %s545, 128
        %s547 = scalar_lea.vmem [#allocation2], %s546
        %s548 = smul.u32 16, %s31
        %p549 = scmp.lt.s32.totalorder %s548, 31
        %s550 = scalar_select %p549, %s548, 31
        %s551 = smul.addr %s550, 8
        %s552 = scalar_lea.vmem %s0, %s551
        %s553 = smul.u32 16, %s31
        %s554 = smul.u32 8, %s31
        %p555 = scmp.lt.s32.totalorder %s554, 15
        %s556 = scalar_select %p555, %s554, 15
        %s557 = smul.addr %s556, 2
        %s558 = smul.addr %s557, 8
        %s559 = scalar_lea.vmem %s1, %s558
        %s560 = smul.u32 8, %s31
        %p561 = scmp.lt.s32.totalorder %s31, 1
        %s562 = scalar_select %p561, %s31, 1
        %s563 = smul.addr %s562, 8
        %s564 = scalar_lea.vmem %s14, %s563
        %s565 = smul.u32 8, %s31
        %p566 = scmp.lt.s32.totalorder %s565, 15
        %s567 = scalar_select %p566, %s565, 15
        %s568 = smul.addr %s567, 8
        %s569 = scalar_lea.vmem %s15, %s568
        %s570 = smul.u32 8, %s31
        %s571 = smul.u32 8, %s31
        %v572 = vld [vmem:[%s552] sm:$0xff]
        %v573 = vld [vmem:[%s552 + $0x8] sm:$0xff]
        %v574 = vld [vmem:[%s552 + $0x10] sm:$0xff]
        %v575 = vld [vmem:[%s552 + $0x18] sm:$0xff]
        %v576 = vld [vmem:[%s552 + $0x20] sm:$0xff]
        %v577 = vld [vmem:[%s552 + $0x28] sm:$0xff]
        %v578 = vld [vmem:[%s552 + $0x30] sm:$0xff]
        %v579 = vld [vmem:[%s552 + $0x38] sm:$0xff]
        %v580 = vld [vmem:[%s552 + $0x40] sm:$0xff]
        %v581 = vld [vmem:[%s552 + $0x48] sm:$0xff]
        %v582 = vld [vmem:[%s552 + $0x50] sm:$0xff]
        %v583 = vld [vmem:[%s552 + $0x58] sm:$0xff]
        %v584 = vld [vmem:[%s552 + $0x60] sm:$0xff]
        %v585 = vld [vmem:[%s552 + $0x68] sm:$0xff]
        %v586 = vld [vmem:[%s552 + $0x70] sm:$0xff]
        %v587 = vld [vmem:[%s552 + $0x78] sm:$0xff]
        %v588 = vld [vmem:[%s2] sm:$0xff]
        %v589 = vld [vmem:[%s2 + $0x8] sm:$0xff]
        %v590 = vld [vmem:[%s2 + $0x10] sm:$0xff]
        %v591 = vld [vmem:[%s3] sm:$0x1]
        %v593 = vlaneseq
        %v594 = vshrl.u32 %v593, 7
        %v595 = vsub.s32 0, %v594
        %v596 = vrot.slane %v591, %v595
        %vm598 = vcmask 195584
        %v600 = vsel %vm598, %v572, 0
        %v603 = vsel %vm598, %v573, 0
        %v606 = vsel %vm598, %v574, 0
        %v609 = vsel %vm598, %v575, 0
        %v612 = vsel %vm598, %v576, 0
        %v615 = vsel %vm598, %v577, 0
        %v618 = vsel %vm598, %v578, 0
        %v621 = vsel %vm598, %v579, 0
        %v624 = vsel %vm598, %v580, 0
        %v627 = vsel %vm598, %v581, 0
        %v630 = vsel %vm598, %v582, 0
        %v633 = vsel %vm598, %v583, 0
        %v636 = vsel %vm598, %v584, 0
        %v639 = vsel %vm598, %v585, 0
        %v642 = vsel %vm598, %v586, 0
        %v645 = vsel %vm598, %v587, 0
        %647 = vmatprep.subr.mxu0 0.0
        %648 = vmatpush1.msra.mxu0 %v588
        %649 = vmatprep.subr.mxu0 0.0
        %650 = vmatpush1.msra.mxu0 %v589
        %651 = vmatprep.subr.mxu0 0.0
        %652 = vmatpush1.msra.mxu0 %v590
        %653 = vmatprep.subr.mxu0 0.0
        %654 = vmatpush1.msra.mxu0 0.0
        %655 = vmatprep.subr.mxu0 0.0
        %656 = vmatpush1.msra.mxu0 0.0
        %657 = vmatprep.subr.mxu0 0.0
        %658 = vmatpush1.msra.mxu0 0.0
        %659 = vmatprep.subr.mxu0 0.0
        %660 = vmatpush1.msra.mxu0 0.0
        %661 = vmatprep.subr.mxu0 0.0
        %662 = vmatpush1.msra.mxu0 0.0
        %663 = vmatprep.subr.mxu0 0.0
        %664 = vmatpush1.msra.mxu0 0.0
        %665 = vmatprep.subr.mxu0 0.0
        %666 = vmatpush1.msra.mxu0 0.0
        %667 = vmatprep.subr.mxu0 0.0
        %668 = vmatpush1.msra.mxu0 0.0
        %669 = vmatprep.subr.mxu0 0.0
        %670 = vmatpush1.msra.mxu0 0.0
        %671 = vmatprep.subr.mxu0 0.0
        %672 = vmatpush1.msra.mxu0 0.0
        %673 = vmatprep.subr.mxu0 0.0
        %674 = vmatpush1.msra.mxu0 0.0
        %675 = vmatprep.subr.mxu0 0.0
        %676 = vmatpush1.msra.mxu0 0.0
        %677 = vmatprep.subr.mxu0 0.0
        %678 = vmatpush1.msra.mxu0 0.0
        %679 = vmatprep.subr.mxu0 0.0
        %680 = vmatpush1.msra.mxu0 0.0
        %681 = vmatprep.subr.mxu0 0.0
        %682 = vmatpush1.msra.mxu0 0.0
        %683 = vmatprep.subr.mxu0 0.0
        %684 = vmatpush1.msra.mxu0 0.0
        %685 = vmatprep.subr.mxu0 0.0
        %686 = vmatpush1.msra.mxu0 0.0
        %687 = vmatprep.subr.mxu0 0.0
        %688 = vmatpush1.msra.mxu0 0.0
        %689 = vmatprep.subr.mxu0 0.0
        %690 = vmatpush1.msra.mxu0 0.0
        %691 = vmatprep.subr.mxu0 0.0
        %692 = vmatpush1.msra.mxu0 0.0
        %693 = vmatprep.subr.mxu0 0.0
        %694 = vmatpush1.msra.mxu0 0.0
        %695 = vmatprep.subr.mxu0 0.0
        %696 = vmatpush1.msra.mxu0 0.0
        %697 = vmatprep.subr.mxu0 0.0
        %698 = vmatpush1.msra.mxu0 0.0
        %699 = vmatprep.subr.mxu0 0.0
        %700 = vmatpush1.msra.mxu0 0.0
        %701 = vmatprep.subr.mxu0 0.0
        %702 = vmatpush1.msra.mxu0 0.0
        %703 = vmatprep.subr.mxu0 0.0
        %704 = vmatpush1.msra.mxu0 0.0
        %705 = vmatprep.subr.mxu0 0.0
        %706 = vmatpush1.msra.mxu0 0.0
        %707 = vmatprep.subr.mxu0 0.0
        %708 = vmatpush1.msra.mxu0 0.0
        %709 = vmatprep.subr.mxu0 0.0
        %710 = vmatpush1.msra.mxu0 0.0
        %711 = vmatprep.mubr.f32.mxu0 0.0
        %712 = vmatmul.mubr.f32.gmra.mrb[0].mxu0 %v600
        %v713 = vpop.f32.mrb[0].mxu0
        %v714 = vadd.f32 %v596, %v713
        %v715 = vpop.f32.mrb[0].mxu0
        %716 = vmatprep.mubr.f32.mxu0 0.0
        %717 = vmatmul.mubr.f32.gmra.mrb[0].mxu0 %v603
        %v718 = vpop.f32.mrb[0].mxu0
        %v719 = vadd.f32 %v596, %v718
        %v720 = vpop.f32.mrb[0].mxu0
        %721 = vmatprep.mubr.f32.mxu0 0.0
        %722 = vmatmul.mubr.f32.gmra.mrb[0].mxu0 %v606
        %v723 = vpop.f32.mrb[0].mxu0
        %v724 = vadd.f32 %v596, %v723
        %v725 = vpop.f32.mrb[0].mxu0
        %726 = vmatprep.mubr.f32.mxu0 0.0
        %727 = vmatmul.mubr.f32.gmra.mrb[0].mxu0 %v609
        %v728 = vpop.f32.mrb[0].mxu0
        %v729 = vadd.f32 %v596, %v728
        %v730 = vpop.f32.mrb[0].mxu0
        %731 = vmatprep.mubr.f32.mxu0 0.0
        %732 = vmatmul.mubr.f32.gmra.mrb[0].mxu0 %v612
        %v733 = vpop.f32.mrb[0].mxu0
        %v734 = vadd.f32 %v596, %v733
        %v735 = vpop.f32.mrb[0].mxu0
        %736 = vmatprep.mubr.f32.mxu0 0.0
        %737 = vmatmul.mubr.f32.gmra.mrb[0].mxu0 %v615
        %v738 = vpop.f32.mrb[0].mxu0
        %v739 = vadd.f32 %v596, %v738
        %v740 = vpop.f32.mrb[0].mxu0
        %741 = vmatprep.mubr.f32.mxu0 0.0
        %742 = vmatmul.mubr.f32.gmra.mrb[0].mxu0 %v618
        %v743 = vpop.f32.mrb[0].mxu0
        %v744 = vadd.f32 %v596, %v743
        %v745 = vpop.f32.mrb[0].mxu0
        %746 = vmatprep.mubr.f32.mxu0 0.0
        %747 = vmatmul.mubr.f32.gmra.mrb[0].mxu0 %v621
        %v748 = vpop.f32.mrb[0].mxu0
        %v749 = vadd.f32 %v596, %v748
        %v750 = vpop.f32.mrb[0].mxu0
        %751 = vmatprep.mubr.f32.mxu0 0.0
        %752 = vmatmul.mubr.f32.gmra.mrb[0].mxu0 %v624
        %v753 = vpop.f32.mrb[0].mxu0
        %v754 = vadd.f32 %v596, %v753
        %v755 = vpop.f32.mrb[0].mxu0
        %756 = vmatprep.mubr.f32.mxu0 0.0
        %757 = vmatmul.mubr.f32.gmra.mrb[0].mxu0 %v627
        %v758 = vpop.f32.mrb[0].mxu0
        %v759 = vadd.f32 %v596, %v758
        %v760 = vpop.f32.mrb[0].mxu0
        %761 = vmatprep.mubr.f32.mxu0 0.0
        %762 = vmatmul.mubr.f32.gmra.mrb[0].mxu0 %v630
        %v763 = vpop.f32.mrb[0].mxu0
        %v764 = vadd.f32 %v596, %v763
        %v765 = vpop.f32.mrb[0].mxu0
        %766 = vmatprep.mubr.f32.mxu0 0.0
        %767 = vmatmul.mubr.f32.gmra.mrb[0].mxu0 %v633
        %v768 = vpop.f32.mrb[0].mxu0
        %v769 = vadd.f32 %v596, %v768
        %v770 = vpop.f32.mrb[0].mxu0
        %771 = vmatprep.mubr.f32.mxu0 0.0
        %772 = vmatmul.mubr.f32.gmra.mrb[0].mxu0 %v636
        %v773 = vpop.f32.mrb[0].mxu0
        %v774 = vadd.f32 %v596, %v773
        %v775 = vpop.f32.mrb[0].mxu0
        %776 = vmatprep.mubr.f32.mxu0 0.0
        %777 = vmatmul.mubr.f32.gmra.mrb[0].mxu0 %v639
        %v778 = vpop.f32.mrb[0].mxu0
        %v779 = vadd.f32 %v596, %v778
        %v780 = vpop.f32.mrb[0].mxu0
        %781 = vmatprep.mubr.f32.mxu0 0.0
        %782 = vmatmul.mubr.f32.gmra.mrb[0].mxu0 %v642
        %v783 = vpop.f32.mrb[0].mxu0
        %v784 = vadd.f32 %v596, %v783
        %v785 = vpop.f32.mrb[0].mxu0
        %786 = vmatprep.mubr.f32.mxu0 0.0
        %787 = vmatmul.mubr.f32.gmra.mrb[0].mxu0 %v645
        %v788 = vpop.f32.mrb[0].mxu0
        %v789 = vadd.f32 %v596, %v788
        %v790 = vpop.f32.mrb[0].mxu0
        %791 = vdwg.mxu0
        %v792 = vld [vmem:[%s559] sm:$0xff]
        %v793 = vld [vmem:[%s559 + $0x8] sm:$0xff]
        %v794 = vld [vmem:[%s559 + $0x10] sm:$0xff]
        %v795 = vld [vmem:[%s559 + $0x18] sm:$0xff]
        %v796 = vld [vmem:[%s559 + $0x20] sm:$0xff]
        %v797 = vld [vmem:[%s559 + $0x28] sm:$0xff]
        %v798 = vld [vmem:[%s559 + $0x30] sm:$0xff]
        %v799 = vld [vmem:[%s559 + $0x38] sm:$0xff]
        %v800 = vld [vmem:[%s559 + $0x40] sm:$0xff]
        %v801 = vld [vmem:[%s559 + $0x48] sm:$0xff]
        %v802 = vld [vmem:[%s559 + $0x50] sm:$0xff]
        %v803 = vld [vmem:[%s559 + $0x58] sm:$0xff]
        %v804 = vld [vmem:[%s559 + $0x60] sm:$0xff]
        %v805 = vld [vmem:[%s559 + $0x68] sm:$0xff]
        %v806 = vld [vmem:[%s559 + $0x70] sm:$0xff]
        %v807 = vld [vmem:[%s559 + $0x78] sm:$0xff]
        %v808 = vld [vmem:[%s4] sm:$0xff]
        %v809 = vld [vmem:[%s5] sm:$0x1]
        %v810 = vld [vmem:[%s6] sm:$0xff]
        %v811 = vld [vmem:[%s6 + $0x8] sm:$0xff]
        %v812 = vld [vmem:[%s7] sm:$0x1]
        %v813 = vld [vmem:[%s8] sm:$0xff]
        %v814 = vld [vmem:[%s8 + $0x8] sm:$0xff]
        %v815 = vld [vmem:[%s9] sm:$0x1]
        %v816 = vld [vmem:[%s10] sm:$0xff]
        %v817 = vld [vmem:[%s11] sm:$0x1]
        %v818 = vld [vmem:[%s12] sm:$0xff]
        %v819 = vld [vmem:[%s12 + $0x8] sm:$0xff]
        %v820 = vld [vmem:[%s12 + $0x10] sm:$0xff]
        %v821 = vld [vmem:[%s12 + $0x18] sm:$0xff]
        %v822 = vld [vmem:[%s12 + $0x20] sm:$0xff]
        %v823 = vld [vmem:[%s12 + $0x28] sm:$0xff]
        %v824 = vld [vmem:[%s12 + $0x30] sm:$0xff]
        %v825 = vld [vmem:[%s12 + $0x38] sm:$0xff]
        %v826 = vld [vmem:[%s13] sm:$0x1]
        %827 = vxpose.xlu0.b32.start [1/16] %v714, 128
        %828 = vxpose.xlu0.b32.cont [2/16] %v719, 128
        %829 = vxpose.xlu0.b32.cont [3/16] 0.0, 128
        %830 = vxpose.xlu0.b32.cont [4/16] 0.0, 128
        %831 = vxpose.xlu0.b32.cont [5/16] 0.0, 128
        %832 = vxpose.xlu0.b32.cont [6/16] 0.0, 128
        %833 = vxpose.xlu0.b32.cont [7/16] 0.0, 128
        %834 = vxpose.xlu0.b32.cont [8/16] 0.0, 128
        %835 = vxpose.xlu0.b32.cont [9/16] 0.0, 128
        %836 = vxpose.xlu0.b32.cont [10/16] 0.0, 128
        %837 = vxpose.xlu0.b32.cont [11/16] 0.0, 128
        %838 = vxpose.xlu0.b32.cont [12/16] 0.0, 128
        %839 = vxpose.xlu0.b32.cont [13/16] 0.0, 128
        %840 = vxpose.xlu0.b32.cont [14/16] 0.0, 128
        %841 = vxpose.xlu0.b32.cont [15/16] 0.0, 128
        %842 = vxpose.xlu0.b32.end [16/16] 0.0, 128
        %v843 = vpop.trf.xlu0
        %v844 = vpop.trf.xlu0
        %v845 = vpop.trf.xlu0
        %v846 = vpop.trf.xlu0
        %v847 = vpop.trf.xlu0
        %v848 = vpop.trf.xlu0
        %v849 = vpop.trf.xlu0
        %v850 = vpop.trf.xlu0
        %v851 = vpop.trf.xlu0
        %v852 = vpop.trf.xlu0
        %v853 = vpop.trf.xlu0
        %v854 = vpop.trf.xlu0
        %v855 = vpop.trf.xlu0
        %v856 = vpop.trf.xlu0
        %v857 = vpop.trf.xlu0
        %v858 = vpop.trf.xlu0
        %vm859 = vcmask 130048
        %v861 = vsel %vm859, %v843, 0
        %863 = vmatprep.subr.mxu0 0.0
        %864 = vmatpush1.msra.mxu0 %v714
        %865 = vmatprep.subr.mxu0 0.0
        %866 = vmatpush1.msra.mxu0 %v719
        %867 = vmatprep.subr.mxu0 0.0
        %868 = vmatpush1.msra.mxu0 0.0
        %869 = vmatprep.subr.mxu0 0.0
        %870 = vmatpush1.msra.mxu0 0.0
        %871 = vmatprep.subr.mxu0 0.0
        %872 = vmatpush1.msra.mxu0 0.0
        %873 = vmatprep.subr.mxu0 0.0
        %874 = vmatpush1.msra.mxu0 0.0
        %875 = vmatprep.subr.mxu0 0.0
        %876 = vmatpush1.msra.mxu0 0.0
        %877 = vmatprep.subr.mxu0 0.0
        %878 = vmatpush1.msra.mxu0 0.0
        %879 = vmatprep.subr.mxu0 0.0
        %880 = vmatpush1.msra.mxu0 0.0
        %881 = vmatprep.subr.mxu0 0.0
        %882 = vmatpush1.msra.mxu0 0.0
        %883 = vmatprep.subr.mxu0 0.0
        %884 = vmatpush1.msra.mxu0 0.0
        %885 = vmatprep.subr.mxu0 0.0
        %886 = vmatpush1.msra.mxu0 0.0
        %887 = vmatprep.subr.mxu0 0.0
        %888 = vmatpush1.msra.mxu0 0.0
        %889 = vmatprep.subr.mxu0 0.0
        %890 = vmatpush1.msra.mxu0 0.0
        %891 = vmatprep.subr.mxu0 0.0
        %892 = vmatpush1.msra.mxu0 0.0
        %893 = vmatprep.subr.mxu0 0.0
        %894 = vmatpush1.msra.mxu0 0.0
        %895 = vmatprep.subr.mxu0 0.0
        %896 = vmatpush1.msra.mxu0 0.0
        %897 = vmatprep.subr.mxu0 0.0
        %898 = vmatpush1.msra.mxu0 0.0
        %899 = vmatprep.subr.mxu0 0.0
        %900 = vmatpush1.msra.mxu0 0.0
        %901 = vmatprep.subr.mxu0 0.0
        %902 = vmatpush1.msra.mxu0 0.0
        %903 = vmatprep.subr.mxu0 0.0
        %904 = vmatpush1.msra.mxu0 0.0
        %905 = vmatprep.subr.mxu0 0.0
        %906 = vmatpush1.msra.mxu0 0.0
        %907 = vmatprep.subr.mxu0 0.0
        %908 = vmatpush1.msra.mxu0 0.0
        %909 = vmatprep.subr.mxu0 0.0
        %910 = vmatpush1.msra.mxu0 0.0
        %911 = vmatprep.subr.mxu0 0.0
        %912 = vmatpush1.msra.mxu0 0.0
        %913 = vmatprep.subr.mxu0 0.0
        %914 = vmatpush1.msra.mxu0 0.0
        %915 = vmatprep.subr.mxu0 0.0
        %916 = vmatpush1.msra.mxu0 0.0
        %917 = vmatprep.subr.mxu0 0.0
        %918 = vmatpush1.msra.mxu0 0.0
        %919 = vmatprep.subr.mxu0 0.0
        %920 = vmatpush1.msra.mxu0 0.0
        %921 = vmatprep.subr.mxu0 0.0
        %922 = vmatpush1.msra.mxu0 0.0
        %923 = vmatprep.subr.mxu0 0.0
        %924 = vmatpush1.msra.mxu0 0.0
        %925 = vmatprep.subr.mxu0 0.0
        %926 = vmatpush1.msra.mxu0 0.0
        %927 = vmatprep.mubr.f32.mxu0 0.0
        %928 = vmatmul.mubr.f32.gmra.mrb[0].mxu0 %v861
        %v929 = vpop.f32.mrb[0].mxu0
        %v930 = vadd.f32 0.0, %v929
        %v931 = vpop.f32.mrb[0].mxu0
        %932 = vdwg.mxu0
        %934 = vset.pattern.permute.xlu0 0
        %935 = vperm.xlu0 %934, %v808
        %v936 = vpop.permute.xlu0 %935
        %v938 = vmul.f32 %v936, %v930
        %v940 = vlaneseq
        %v941 = vshrl.u32 %v940, 7
        %v942 = vsub.s32 0, %v941
        %v943 = vrot.slane %v809, %v942
        %v945 = vmul.f32 %v938, %v943
        %v946 = vmul.f32 %v945, 0.25
        %vm947 = vcmask 64512
        %v948 = vsel %vm947, %v946, -inf
        %949 = vmax.xlane.f32.xlu0 %v948
        %v950 = vpop.xlane.xlu0 %949
        %v951 = vsub.f32 %v946, %v950
        %v952 = vmul.f32 %v951, 1.442695
        %v953 = vpow.pop %v952
        %v954 = vsel %vm947, %v953, 0.0
        %955 = vadd.xlane.f32.xlu0 %v954
        %v956 = vpop.xlane.xlu0 %955
        %v957 = vrcp.pop %v956
        %v958 = vmul.f32 %v953, %v957
        %959 = vmatprep.subr.mxu0 0.0
        %960 = vmatpush1.msra.mxu0 %v813
        %961 = vmatprep.subr.mxu0 0.0
        %962 = vmatpush1.msra.mxu0 %v814
        %963 = vmatprep.subr.mxu0 0.0
        %964 = vmatpush1.msra.mxu0 0.0
        %965 = vmatprep.subr.mxu0 0.0
        %966 = vmatpush1.msra.mxu0 0.0
        %967 = vmatprep.subr.mxu0 0.0
        %968 = vmatpush1.msra.mxu0 0.0
        %969 = vmatprep.subr.mxu0 0.0
        %970 = vmatpush1.msra.mxu0 0.0
        %971 = vmatprep.subr.mxu0 0.0
        %972 = vmatpush1.msra.mxu0 0.0
        %973 = vmatprep.subr.mxu0 0.0
        %974 = vmatpush1.msra.mxu0 0.0
        %975 = vmatprep.subr.mxu0 0.0
        %976 = vmatpush1.msra.mxu0 0.0
        %977 = vmatprep.subr.mxu0 0.0
        %978 = vmatpush1.msra.mxu0 0.0
        %979 = vmatprep.subr.mxu0 0.0
        %980 = vmatpush1.msra.mxu0 0.0
        %981 = vmatprep.subr.mxu0 0.0
        %982 = vmatpush1.msra.mxu0 0.0
        %983 = vmatprep.subr.mxu0 0.0
        %984 = vmatpush1.msra.mxu0 0.0
        %985 = vmatprep.subr.mxu0 0.0
        %986 = vmatpush1.msra.mxu0 0.0
        %987 = vmatprep.subr.mxu0 0.0
        %988 = vmatpush1.msra.mxu0 0.0
        %989 = vmatprep.subr.mxu0 0.0
        %990 = vmatpush1.msra.mxu0 0.0
        %991 = vmatprep.subr.mxu0 0.0
        %992 = vmatpush1.msra.mxu0 0.0
        %993 = vmatprep.subr.mxu0 0.0
        %994 = vmatpush1.msra.mxu0 0.0
        %995 = vmatprep.subr.mxu0 0.0
        %996 = vmatpush1.msra.mxu0 0.0
        %997 = vmatprep.subr.mxu0 0.0
        %998 = vmatpush1.msra.mxu0 0.0
        %999 = vmatprep.subr.mxu0 0.0
        %1000 = vmatpush1.msra.mxu0 0.0
        %1001 = vmatprep.subr.mxu0 0.0
        %1002 = vmatpush1.msra.mxu0 0.0
        %1003 = vmatprep.subr.mxu0 0.0
        %1004 = vmatpush1.msra.mxu0 0.0
        %1005 = vmatprep.subr.mxu0 0.0
        %1006 = vmatpush1.msra.mxu0 0.0
        %1007 = vmatprep.subr.mxu0 0.0
        %1008 = vmatpush1.msra.mxu0 0.0
        %1009 = vmatprep.subr.mxu0 0.0
        %1010 = vmatpush1.msra.mxu0 0.0
        %1011 = vmatprep.subr.mxu0 0.0
        %1012 = vmatpush1.msra.mxu0 0.0
        %1013 = vmatprep.subr.mxu0 0.0
        %1014 = vmatpush1.msra.mxu0 0.0
        %1015 = vmatprep.subr.mxu0 0.0
        %1016 = vmatpush1.msra.mxu0 0.0
        %1017 = vmatprep.subr.mxu0 0.0
        %1018 = vmatpush1.msra.mxu0 0.0
        %1019 = vmatprep.subr.mxu0 0.0
        %1020 = vmatpush1.msra.mxu0 0.0
        %1021 = vmatprep.subr.mxu0 0.0
        %1022 = vmatpush1.msra.mxu0 0.0
        %1023 = vmatprep.mubr.f32.mxu0 0.0
        %1024 = vmatmul.mubr.f32.gmra.mrb[0].mxu0 %v861
        %v1025 = vpop.f32.mrb[0].mxu0
        %v1026 = vadd.f32 0.0, %v1025
        %v1027 = vpop.f32.mrb[0].mxu0
        %1028 = vdwg.mxu0
        %1029 = vxpose.xlu0.b32.start [1/16] %v958, 128
        %1030 = vxpose.xlu0.b32.cont [2/16] 0.0, 128
        %1031 = vxpose.xlu0.b32.cont [3/16] 0.0, 128
        %1032 = vxpose.xlu0.b32.cont [4/16] 0.0, 128
        %1033 = vxpose.xlu0.b32.cont [5/16] 0.0, 128
        %1034 = vxpose.xlu0.b32.cont [6/16] 0.0, 128
        %1035 = vxpose.xlu0.b32.cont [7/16] 0.0, 128
        %1036 = vxpose.xlu0.b32.cont [8/16] 0.0, 128
        %1037 = vxpose.xlu0.b32.cont [9/16] 0.0, 128
        %1038 = vxpose.xlu0.b32.cont [10/16] 0.0, 128
        %1039 = vxpose.xlu0.b32.cont [11/16] 0.0, 128
        %1040 = vxpose.xlu0.b32.cont [12/16] 0.0, 128
        %1041 = vxpose.xlu0.b32.cont [13/16] 0.0, 128
        %1042 = vxpose.xlu0.b32.cont [14/16] 0.0, 128
        %1043 = vxpose.xlu0.b32.cont [15/16] 0.0, 128
        %1044 = vxpose.xlu0.b32.end [16/16] 0.0, 128
        %v1045 = vpop.trf.xlu0
        %v1046 = vpop.trf.xlu0
        %v1047 = vpop.trf.xlu0
        %v1048 = vpop.trf.xlu0
        %v1049 = vpop.trf.xlu0
        %v1050 = vpop.trf.xlu0
        %v1051 = vpop.trf.xlu0
        %v1052 = vpop.trf.xlu0
        %v1053 = vpop.trf.xlu0
        %v1054 = vpop.trf.xlu0
        %v1055 = vpop.trf.xlu0
        %v1056 = vpop.trf.xlu0
        %v1057 = vpop.trf.xlu0
        %v1058 = vpop.trf.xlu0
        %v1059 = vpop.trf.xlu0
        %v1060 = vpop.trf.xlu0
        %v1062 = vsel %vm947, %v1045, 0
        %1064 = vmatprep.subr.mxu0 0.0
        %1065 = vmatpush1.msra.mxu0 1.0
        %1066 = vmatprep.subr.mxu0 0.0
        %1067 = vmatpush1.msra.mxu0 0.0
        %1068 = vmatprep.subr.mxu0 0.0
        %1069 = vmatpush1.msra.mxu0 0.0
        %1070 = vmatprep.subr.mxu0 0.0
        %1071 = vmatpush1.msra.mxu0 0.0
        %1072 = vmatprep.subr.mxu0 0.0
        %1073 = vmatpush1.msra.mxu0 0.0
        %1074 = vmatprep.subr.mxu0 0.0
        %1075 = vmatpush1.msra.mxu0 0.0
        %1076 = vmatprep.subr.mxu0 0.0
        %1077 = vmatpush1.msra.mxu0 0.0
        %1078 = vmatprep.subr.mxu0 0.0
        %1079 = vmatpush1.msra.mxu0 0.0
        %1080 = vmatprep.subr.mxu0 0.0
        %1081 = vmatpush1.msra.mxu0 0.0
        %1082 = vmatprep.subr.mxu0 0.0
        %1083 = vmatpush1.msra.mxu0 0.0
        %1084 = vmatprep.subr.mxu0 0.0
        %1085 = vmatpush1.msra.mxu0 0.0
        %1086 = vmatprep.subr.mxu0 0.0
        %1087 = vmatpush1.msra.mxu0 0.0
        %1088 = vmatprep.subr.mxu0 0.0
        %1089 = vmatpush1.msra.mxu0 0.0
        %1090 = vmatprep.subr.mxu0 0.0
        %1091 = vmatpush1.msra.mxu0 0.0
        %1092 = vmatprep.subr.mxu0 0.0
        %1093 = vmatpush1.msra.mxu0 0.0
        %1094 = vmatprep.subr.mxu0 0.0
        %1095 = vmatpush1.msra.mxu0 0.0
        %1096 = vmatprep.subr.mxu0 0.0
        %1097 = vmatpush1.msra.mxu0 0.0
        %1098 = vmatprep.subr.mxu0 0.0
        %1099 = vmatpush1.msra.mxu0 0.0
        %1100 = vmatprep.subr.mxu0 0.0
        %1101 = vmatpush1.msra.mxu0 0.0
        %1102 = vmatprep.subr.mxu0 0.0
        %1103 = vmatpush1.msra.mxu0 0.0
        %1104 = vmatprep.subr.mxu0 0.0
        %1105 = vmatpush1.msra.mxu0 0.0
        %1106 = vmatprep.subr.mxu0 0.0
        %1107 = vmatpush1.msra.mxu0 0.0
        %1108 = vmatprep.subr.mxu0 0.0
        %1109 = vmatpush1.msra.mxu0 0.0
        %1110 = vmatprep.subr.mxu0 0.0
        %1111 = vmatpush1.msra.mxu0 0.0
        %1112 = vmatprep.subr.mxu0 0.0
        %1113 = vmatpush1.msra.mxu0 0.0
        %1114 = vmatprep.subr.mxu0 0.0
        %1115 = vmatpush1.msra.mxu0 0.0
        %1116 = vmatprep.subr.mxu0 0.0
        %1117 = vmatpush1.msra.mxu0 0.0
        %1118 = vmatprep.subr.mxu0 0.0
        %1119 = vmatpush1.msra.mxu0 0.0
        %1120 = vmatprep.subr.mxu0 0.0
        %1121 = vmatpush1.msra.mxu0 0.0
        %1122 = vmatprep.subr.mxu0 0.0
        %1123 = vmatpush1.msra.mxu0 0.0
        %1124 = vmatprep.subr.mxu0 0.0
        %1125 = vmatpush1.msra.mxu0 0.0
        %1126 = vmatprep.subr.mxu0 0.0
        %1127 = vmatpush1.msra.mxu0 0.0
        %1128 = vmatprep.mubr.f32.mxu0 0.0
        %1129 = vmatmul.mubr.f32.gmra.mrb[0].mxu0 %v1062
        %v1130 = vpop.f32.mrb[0].mxu0
        %v1131 = vadd.f32 0.0, %v1130
        %v1132 = vpop.f32.mrb[0].mxu0
        %1133 = vdwg.mxu0
        %v1134 = vsel %vm947, %v958, 0.0
        %v1135 = vrot.slane %v1134, 4
        %v1136 = vadd.f32 %v1134, %v1135
        %v1137 = vrot.slane %v1136, 2
        %v1138 = vadd.f32 %v1136, %v1137
        %v1139 = vrot.slane %v1138, 1
        %v1140 = vadd.f32 %v1138, %v1139
        %v1141 = vrsqrt.pop %v1131
        %v1142 = vmul.f32 %v1131, %v1141
        %vm1143 = vcmp.eq.f32.partialorder %v1131, inf
        %v1144 = vsel %vm1143, %v1131, %v1142
        %vm1145 = vcmp.eq.f32.partialorder %v1131, 0.0
        %v1146 = vand.u32 %v1131, 2147483648
        %v1147 = vsel %vm1145, %v1146, %v1144
        %v1148 = vrcp.pop %v1147
        %v1149 = vmul.f32 1.0, %v1148
        %v1150 = vrsqrt.pop %v1140
        %v1151 = vmul.f32 %v1140, %v1150
        %vm1152 = vcmp.eq.f32.partialorder %v1140, inf
        %v1153 = vsel %vm1152, %v1140, %v1151
        %vm1154 = vcmp.eq.f32.partialorder %v1140, 0.0
        %v1155 = vand.u32 %v1140, 2147483648
        %v1156 = vsel %vm1154, %v1155, %v1153
        %v1157 = vrcp.pop %v1156
        %v1158 = vmul.f32 1.0, %v1157
        %1160 = vset.pattern.permute.xlu0 0
        %1161 = vperm.xlu0 %1160, %v1149
        %v1162 = vpop.permute.xlu0 %1161
        %v1164 = vmul.f32 %v1162, %v958
        %v1165 = vmul.f32 %v1164, %v1158
        %v1167 = vlaneseq
        %v1168 = vshrl.u32 %v1167, 7
        %v1169 = vsub.s32 0, %v1168
        %v1170 = vrot.slane %v815, %v1169
        %1172 = vxpose.xlu0.b32.start [1/16] %v1165, 128
        %1173 = vxpose.xlu0.b32.cont [2/16] 0.0, 128
        %1174 = vxpose.xlu0.b32.cont [3/16] 0.0, 128
        %1175 = vxpose.xlu0.b32.cont [4/16] 0.0, 128
        %1176 = vxpose.xlu0.b32.cont [5/16] 0.0, 128
        %1177 = vxpose.xlu0.b32.cont [6/16] 0.0, 128
        %1178 = vxpose.xlu0.b32.cont [7/16] 0.0, 128
        %1179 = vxpose.xlu0.b32.cont [8/16] 0.0, 128
        %1180 = vxpose.xlu0.b32.cont [9/16] 0.0, 128
        %1181 = vxpose.xlu0.b32.cont [10/16] 0.0, 128
        %1182 = vxpose.xlu0.b32.cont [11/16] 0.0, 128
        %1183 = vxpose.xlu0.b32.cont [12/16] 0.0, 128
        %1184 = vxpose.xlu0.b32.cont [13/16] 0.0, 128
        %1185 = vxpose.xlu0.b32.cont [14/16] 0.0, 128
        %1186 = vxpose.xlu0.b32.cont [15/16] 0.0, 128
        %1187 = vxpose.xlu0.b32.end [16/16] 0.0, 128
        %v1188 = vpop.trf.xlu0
        %v1189 = vpop.trf.xlu0
        %v1190 = vpop.trf.xlu0
        %v1191 = vpop.trf.xlu0
        %v1192 = vpop.trf.xlu0
        %v1193 = vpop.trf.xlu0
        %v1194 = vpop.trf.xlu0
        %v1195 = vpop.trf.xlu0
        %v1196 = vpop.trf.xlu0
        %v1197 = vpop.trf.xlu0
        %v1198 = vpop.trf.xlu0
        %v1199 = vpop.trf.xlu0
        %v1200 = vpop.trf.xlu0
        %v1201 = vpop.trf.xlu0
        %v1202 = vpop.trf.xlu0
        %v1203 = vpop.trf.xlu0
        %v1205 = vsel %vm947, %v1188, 0
        %1207 = vmatprep.subr.mxu0 0.0
        %1208 = vmatpush1.msra.mxu0 %v1026
        %1209 = vmatprep.subr.mxu0 0.0
        %1210 = vmatpush1.msra.mxu0 0.0
        %1211 = vmatprep.subr.mxu0 0.0
        %1212 = vmatpush1.msra.mxu0 0.0
        %1213 = vmatprep.subr.mxu0 0.0
        %1214 = vmatpush1.msra.mxu0 0.0
        %1215 = vmatprep.subr.mxu0 0.0
        %1216 = vmatpush1.msra.mxu0 0.0
        %1217 = vmatprep.subr.mxu0 0.0
        %1218 = vmatpush1.msra.mxu0 0.0
        %1219 = vmatprep.subr.mxu0 0.0
        %1220 = vmatpush1.msra.mxu0 0.0
        %1221 = vmatprep.subr.mxu0 0.0
        %1222 = vmatpush1.msra.mxu0 0.0
        %1223 = vmatprep.subr.mxu0 0.0
        %1224 = vmatpush1.msra.mxu0 0.0
        %1225 = vmatprep.subr.mxu0 0.0
        %1226 = vmatpush1.msra.mxu0 0.0
        %1227 = vmatprep.subr.mxu0 0.0
        %1228 = vmatpush1.msra.mxu0 0.0
        %1229 = vmatprep.subr.mxu0 0.0
        %1230 = vmatpush1.msra.mxu0 0.0
        %1231 = vmatprep.subr.mxu0 0.0
        %1232 = vmatpush1.msra.mxu0 0.0
        %1233 = vmatprep.subr.mxu0 0.0
        %1234 = vmatpush1.msra.mxu0 0.0
        %1235 = vmatprep.subr.mxu0 0.0
        %1236 = vmatpush1.msra.mxu0 0.0
        %1237 = vmatprep.subr.mxu0 0.0
        %1238 = vmatpush1.msra.mxu0 0.0
        %1239 = vmatprep.subr.mxu0 0.0
        %1240 = vmatpush1.msra.mxu0 0.0
        %1241 = vmatprep.subr.mxu0 0.0
        %1242 = vmatpush1.msra.mxu0 0.0
        %1243 = vmatprep.subr.mxu0 0.0
        %1244 = vmatpush1.msra.mxu0 0.0
        %1245 = vmatprep.subr.mxu0 0.0
        %1246 = vmatpush1.msra.mxu0 0.0
        %1247 = vmatprep.subr.mxu0 0.0
        %1248 = vmatpush1.msra.mxu0 0.0
        %1249 = vmatprep.subr.mxu0 0.0
        %1250 = vmatpush1.msra.mxu0 0.0
        %1251 = vmatprep.subr.mxu0 0.0
        %1252 = vmatpush1.msra.mxu0 0.0
        %1253 = vmatprep.subr.mxu0 0.0
        %1254 = vmatpush1.msra.mxu0 0.0
        %1255 = vmatprep.subr.mxu0 0.0
        %1256 = vmatpush1.msra.mxu0 0.0
        %1257 = vmatprep.subr.mxu0 0.0
        %1258 = vmatpush1.msra.mxu0 0.0
        %1259 = vmatprep.subr.mxu0 0.0
        %1260 = vmatpush1.msra.mxu0 0.0
        %1261 = vmatprep.subr.mxu0 0.0
        %1262 = vmatpush1.msra.mxu0 0.0
        %1263 = vmatprep.subr.mxu0 0.0
        %1264 = vmatpush1.msra.mxu0 0.0
        %1265 = vmatprep.subr.mxu0 0.0
        %1266 = vmatpush1.msra.mxu0 0.0
        %1267 = vmatprep.subr.mxu0 0.0
        %1268 = vmatpush1.msra.mxu0 0.0
        %1269 = vmatprep.subr.mxu0 0.0
        %1270 = vmatpush1.msra.mxu0 0.0
        %1271 = vmatprep.mubr.f32.mxu0 0.0
        %1272 = vmatmul.mubr.f32.gmra.mrb[0].mxu0 %v1205
        %v1273 = vpop.f32.mrb[0].mxu0
        %v1274 = vadd.f32 %v1170, %v1273
        %v1275 = vpop.f32.mrb[0].mxu0
        %1276 = vdwg.mxu0
        %vm1277 = vcmask 261120
        %v1278 = vsel %vm1277, %v1274, 0.0
        %v1279 = vrot.slane %v1278, 4
        %v1280 = vadd.f32 %v1278, %v1279
        %v1281 = vrot.slane %v1280, 2
        %v1282 = vadd.f32 %v1280, %v1281
        %v1283 = vrot.slane %v1282, 1
        %v1284 = vadd.f32 %v1282, %v1283
        %v1285 = vrcp.pop 8.0
        %v1286 = vmul.f32 %v1284, %v1285
        %v1288 = vsel %vm947, %v792, 0
        %v1291 = vsel %vm947, %v793, 0
        %1293 = vmatprep.subr.mxu0 0.0
        %1294 = vmatpush1.xpose.msra.mxu0 %v1288
        %1295 = vmatprep.subr.mxu0 0.0
        %1296 = vmatpush1.xpose.msra.mxu0 %v1291
        %1297 = vmatprep.subr.mxu0 0.0
        %1298 = vmatpush1.xpose.msra.mxu0 0.0
        %1299 = vmatprep.subr.mxu0 0.0
        %1300 = vmatpush1.xpose.msra.mxu0 0.0
        %1301 = vmatprep.subr.mxu0 0.0
        %1302 = vmatpush1.xpose.msra.mxu0 0.0
        %1303 = vmatprep.subr.mxu0 0.0
        %1304 = vmatpush1.xpose.msra.mxu0 0.0
        %1305 = vmatprep.subr.mxu0 0.0
        %1306 = vmatpush1.xpose.msra.mxu0 0.0
        %1307 = vmatprep.subr.mxu0 0.0
        %1308 = vmatpush1.xpose.msra.mxu0 0.0
        %1309 = vmatprep.subr.mxu0 0.0
        %1310 = vmatpush1.xpose.msra.mxu0 0.0
        %1311 = vmatprep.subr.mxu0 0.0
        %1312 = vmatpush1.xpose.msra.mxu0 0.0
        %1313 = vmatprep.subr.mxu0 0.0
        %1314 = vmatpush1.xpose.msra.mxu0 0.0
        %1315 = vmatprep.subr.mxu0 0.0
        %1316 = vmatpush1.xpose.msra.mxu0 0.0
        %1317 = vmatprep.subr.mxu0 0.0
        %1318 = vmatpush1.xpose.msra.mxu0 0.0
        %1319 = vmatprep.subr.mxu0 0.0
        %1320 = vmatpush1.xpose.msra.mxu0 0.0
        %1321 = vmatprep.subr.mxu0 0.0
        %1322 = vmatpush1.xpose.msra.mxu0 0.0
        %1323 = vmatprep.subr.mxu0 0.0
        %1324 = vmatpush1.xpose.msra.mxu0 0.0
        %1325 = vmatprep.subr.mxu0 0.0
        %1326 = vmatpush1.xpose.msra.mxu0 0.0
        %1327 = vmatprep.subr.mxu0 0.0
        %1328 = vmatpush1.xpose.msra.mxu0 0.0
        %1329 = vmatprep.subr.mxu0 0.0
        %1330 = vmatpush1.xpose.msra.mxu0 0.0
        %1331 = vmatprep.subr.mxu0 0.0
        %1332 = vmatpush1.xpose.msra.mxu0 0.0
        %1333 = vmatprep.subr.mxu0 0.0
        %1334 = vmatpush1.xpose.msra.mxu0 0.0
        %1335 = vmatprep.subr.mxu0 0.0
        %1336 = vmatpush1.xpose.msra.mxu0 0.0
        %1337 = vmatprep.subr.mxu0 0.0
        %1338 = vmatpush1.xpose.msra.mxu0 0.0
        %1339 = vmatprep.subr.mxu0 0.0
        %1340 = vmatpush1.xpose.msra.mxu0 0.0
        %1341 = vmatprep.subr.mxu0 0.0
        %1342 = vmatpush1.xpose.msra.mxu0 0.0
        %1343 = vmatprep.subr.mxu0 0.0
        %1344 = vmatpush1.xpose.msra.mxu0 0.0
        %1345 = vmatprep.subr.mxu0 0.0
        %1346 = vmatpush1.xpose.msra.mxu0 0.0
        %1347 = vmatprep.subr.mxu0 0.0
        %1348 = vmatpush1.xpose.msra.mxu0 0.0
        %1349 = vmatprep.subr.mxu0 0.0
        %1350 = vmatpush1.xpose.msra.mxu0 0.0
        %1351 = vmatprep.subr.mxu0 0.0
        %1352 = vmatpush1.xpose.msra.mxu0 0.0
        %1353 = vmatprep.subr.mxu0 0.0
        %1354 = vmatpush1.xpose.msra.mxu0 0.0
        %1355 = vmatprep.subr.mxu0 0.0
        %1356 = vmatpush1.xpose.msra.mxu0 0.0
        %1357 = vmatprep.mubr.f32.mxu0 0.0
        %1358 = vmatmul.mubr.f32.gmra.mrb[0].mxu0 %v1288
        %v1359 = vpop.f32.mrb[0].mxu0
        %v1360 = vadd.f32 0.0, %v1359
        %v1361 = vpop.f32.mrb[0].mxu0
        %1362 = vmatprep.mubr.f32.mxu0 0.0
        %1363 = vmatmul.mubr.f32.gmra.mrb[0].mxu0 %v1291
        %v1364 = vpop.f32.mrb[0].mxu0
        %v1365 = vadd.f32 0.0, %v1364
        %v1366 = vpop.f32.mrb[0].mxu0
        %1367 = vdwg.mxu0
        %1369 = vset.pattern.permute.xlu0 0
        %1370 = vperm.xlu0 %1369, %v810
        %v1371 = vpop.permute.xlu0 %1370
        %1374 = vset.pattern.permute.xlu0 0
        %1375 = vperm.xlu0 %1374, %v811
        %v1376 = vpop.permute.xlu0 %1375
        %v1378 = vmul.f32 %v1371, %v1360
        %v1379 = vmul.f32 %v1376, %v1365
        %v1381 = vlaneseq
        %v1382 = vshrl.u32 %v1381, 7
        %v1383 = vsub.s32 0, %v1382
        %v1384 = vrot.slane %v812, %v1383
        %v1386 = vmul.f32 %v1378, %v1384
        %v1387 = vmul.f32 %v1379, %v1384
        %v1388 = vmul.f32 %v1386, 0.35355338
        %v1389 = vmul.f32 %v1387, 0.35355338
        %v1390 = vsel %vm859, %v1388, -inf
        %1391 = vmax.xlane.f32.xlu0 %v1390
        %v1392 = vpop.xlane.xlu0 %1391
        %v1393 = vsel %vm859, %v1389, -inf
        %1394 = vmax.xlane.f32.xlu0 %v1393
        %v1395 = vpop.xlane.xlu0 %1394
        %v1396 = vsub.f32 %v1388, %v1392
        %v1397 = vsub.f32 %v1389, %v1395
        %v1398 = vmul.f32 %v1396, 1.442695
        %v1399 = vpow.pop %v1398
        %v1400 = vmul.f32 %v1397, 1.442695
        %v1401 = vpow.pop %v1400
        %v1402 = vsel %vm859, %v1399, 0.0
        %1403 = vadd.xlane.f32.xlu0 %v1402
        %v1404 = vpop.xlane.xlu0 %1403
        %v1405 = vsel %vm859, %v1401, 0.0
        %1406 = vadd.xlane.f32.xlu0 %v1405
        %v1407 = vpop.xlane.xlu0 %1406
        %v1408 = vrcp.pop %v1404
        %v1409 = vmul.f32 %v1399, %v1408
        %v1410 = vrcp.pop %v1407
        %v1411 = vmul.f32 %v1401, %v1410
        %1412 = vmatprep.subr.mxu0 0.0
        %1413 = vmatpush1.msra.mxu0 %v816
        %1414 = vmatprep.subr.mxu0 0.0
        %1415 = vmatpush1.msra.mxu0 0.0
        %1416 = vmatprep.subr.mxu0 0.0
        %1417 = vmatpush1.msra.mxu0 0.0
        %1418 = vmatprep.subr.mxu0 0.0
        %1419 = vmatpush1.msra.mxu0 0.0
        %1420 = vmatprep.subr.mxu0 0.0
        %1421 = vmatpush1.msra.mxu0 0.0
        %1422 = vmatprep.subr.mxu0 0.0
        %1423 = vmatpush1.msra.mxu0 0.0
        %1424 = vmatprep.subr.mxu0 0.0
        %1425 = vmatpush1.msra.mxu0 0.0
        %1426 = vmatprep.subr.mxu0 0.0
        %1427 = vmatpush1.msra.mxu0 0.0
        %1428 = vmatprep.subr.mxu0 0.0
        %1429 = vmatpush1.msra.mxu0 0.0
        %1430 = vmatprep.subr.mxu0 0.0
        %1431 = vmatpush1.msra.mxu0 0.0
        %1432 = vmatprep.subr.mxu0 0.0
        %1433 = vmatpush1.msra.mxu0 0.0
        %1434 = vmatprep.subr.mxu0 0.0
        %1435 = vmatpush1.msra.mxu0 0.0
        %1436 = vmatprep.subr.mxu0 0.0
        %1437 = vmatpush1.msra.mxu0 0.0
        %1438 = vmatprep.subr.mxu0 0.0
        %1439 = vmatpush1.msra.mxu0 0.0
        %1440 = vmatprep.subr.mxu0 0.0
        %1441 = vmatpush1.msra.mxu0 0.0
        %1442 = vmatprep.subr.mxu0 0.0
        %1443 = vmatpush1.msra.mxu0 0.0
        %1444 = vmatprep.subr.mxu0 0.0
        %1445 = vmatpush1.msra.mxu0 0.0
        %1446 = vmatprep.subr.mxu0 0.0
        %1447 = vmatpush1.msra.mxu0 0.0
        %1448 = vmatprep.subr.mxu0 0.0
        %1449 = vmatpush1.msra.mxu0 0.0
        %1450 = vmatprep.subr.mxu0 0.0
        %1451 = vmatpush1.msra.mxu0 0.0
        %1452 = vmatprep.subr.mxu0 0.0
        %1453 = vmatpush1.msra.mxu0 0.0
        %1454 = vmatprep.subr.mxu0 0.0
        %1455 = vmatpush1.msra.mxu0 0.0
        %1456 = vmatprep.subr.mxu0 0.0
        %1457 = vmatpush1.msra.mxu0 0.0
        %1458 = vmatprep.subr.mxu0 0.0
        %1459 = vmatpush1.msra.mxu0 0.0
        %1460 = vmatprep.subr.mxu0 0.0
        %1461 = vmatpush1.msra.mxu0 0.0
        %1462 = vmatprep.subr.mxu0 0.0
        %1463 = vmatpush1.msra.mxu0 0.0
        %1464 = vmatprep.subr.mxu0 0.0
        %1465 = vmatpush1.msra.mxu0 0.0
        %1466 = vmatprep.subr.mxu0 0.0
        %1467 = vmatpush1.msra.mxu0 0.0
        %1468 = vmatprep.subr.mxu0 0.0
        %1469 = vmatpush1.msra.mxu0 0.0
        %1470 = vmatprep.subr.mxu0 0.0
        %1471 = vmatpush1.msra.mxu0 0.0
        %1472 = vmatprep.subr.mxu0 0.0
        %1473 = vmatpush1.msra.mxu0 0.0
        %1474 = vmatprep.subr.mxu0 0.0
        %1475 = vmatpush1.msra.mxu0 0.0
        %1476 = vmatprep.mubr.f32.mxu0 0.0
        %1477 = vmatmul.mubr.f32.gmra.mrb[0].mxu0 %v1288
        %v1478 = vpop.f32.mrb[0].mxu0
        %v1479 = vadd.f32 0.0, %v1478
        %v1480 = vpop.f32.mrb[0].mxu0
        %1481 = vmatprep.mubr.f32.mxu0 0.0
        %1482 = vmatmul.mubr.f32.gmra.mrb[0].mxu0 %v1291
        %v1483 = vpop.f32.mrb[0].mxu0
        %v1484 = vadd.f32 0.0, %v1483
        %v1485 = vpop.f32.mrb[0].mxu0
        %1486 = vdwg.mxu0
        %1487 = vxpose.xlu0.b32.start [1/16] %v1409, 128
        %1488 = vxpose.xlu0.b32.cont [2/16] %v1411, 128
        %1489 = vxpose.xlu0.b32.cont [3/16] 0.0, 128
        %1490 = vxpose.xlu0.b32.cont [4/16] 0.0, 128
        %1491 = vxpose.xlu0.b32.cont [5/16] 0.0, 128
        %1492 = vxpose.xlu0.b32.cont [6/16] 0.0, 128
        %1493 = vxpose.xlu0.b32.cont [7/16] 0.0, 128
        %1494 = vxpose.xlu0.b32.cont [8/16] 0.0, 128
        %1495 = vxpose.xlu0.b32.cont [9/16] 0.0, 128
        %1496 = vxpose.xlu0.b32.cont [10/16] 0.0, 128
        %1497 = vxpose.xlu0.b32.cont [11/16] 0.0, 128
        %1498 = vxpose.xlu0.b32.cont [12/16] 0.0, 128
        %1499 = vxpose.xlu0.b32.cont [13/16] 0.0, 128
        %1500 = vxpose.xlu0.b32.cont [14/16] 0.0, 128
        %1501 = vxpose.xlu0.b32.cont [15/16] 0.0, 128
        %1502 = vxpose.xlu0.b32.end [16/16] 0.0, 128
        %v1503 = vpop.trf.xlu0
        %v1504 = vpop.trf.xlu0
        %v1505 = vpop.trf.xlu0
        %v1506 = vpop.trf.xlu0
        %v1507 = vpop.trf.xlu0
        %v1508 = vpop.trf.xlu0
        %v1509 = vpop.trf.xlu0
        %v1510 = vpop.trf.xlu0
        %v1511 = vpop.trf.xlu0
        %v1512 = vpop.trf.xlu0
        %v1513 = vpop.trf.xlu0
        %v1514 = vpop.trf.xlu0
        %v1515 = vpop.trf.xlu0
        %v1516 = vpop.trf.xlu0
        %v1517 = vpop.trf.xlu0
        %v1518 = vpop.trf.xlu0
        %v1520 = vsel %vm859, %v1503, 0
        %v1523 = vsel %vm859, %v1504, 0
        %1525 = vmatprep.subr.mxu0 0.0
        %1526 = vmatpush1.msra.mxu0 1.0
        %1527 = vmatprep.subr.mxu0 0.0
        %1528 = vmatpush1.msra.mxu0 1.0
        %1529 = vmatprep.subr.mxu0 0.0
        %1530 = vmatpush1.msra.mxu0 0.0
        %1531 = vmatprep.subr.mxu0 0.0
        %1532 = vmatpush1.msra.mxu0 0.0
        %1533 = vmatprep.subr.mxu0 0.0
        %1534 = vmatpush1.msra.mxu0 0.0
        %1535 = vmatprep.subr.mxu0 0.0
        %1536 = vmatpush1.msra.mxu0 0.0
        %1537 = vmatprep.subr.mxu0 0.0
        %1538 = vmatpush1.msra.mxu0 0.0
        %1539 = vmatprep.subr.mxu0 0.0
        %1540 = vmatpush1.msra.mxu0 0.0
        %1541 = vmatprep.subr.mxu0 0.0
        %1542 = vmatpush1.msra.mxu0 0.0
        %1543 = vmatprep.subr.mxu0 0.0
        %1544 = vmatpush1.msra.mxu0 0.0
        %1545 = vmatprep.subr.mxu0 0.0
        %1546 = vmatpush1.msra.mxu0 0.0
        %1547 = vmatprep.subr.mxu0 0.0
        %1548 = vmatpush1.msra.mxu0 0.0
        %1549 = vmatprep.subr.mxu0 0.0
        %1550 = vmatpush1.msra.mxu0 0.0
        %1551 = vmatprep.subr.mxu0 0.0
        %1552 = vmatpush1.msra.mxu0 0.0
        %1553 = vmatprep.subr.mxu0 0.0
        %1554 = vmatpush1.msra.mxu0 0.0
        %1555 = vmatprep.subr.mxu0 0.0
        %1556 = vmatpush1.msra.mxu0 0.0
        %1557 = vmatprep.subr.mxu0 0.0
        %1558 = vmatpush1.msra.mxu0 0.0
        %1559 = vmatprep.subr.mxu0 0.0
        %1560 = vmatpush1.msra.mxu0 0.0
        %1561 = vmatprep.subr.mxu0 0.0
        %1562 = vmatpush1.msra.mxu0 0.0
        %1563 = vmatprep.subr.mxu0 0.0
        %1564 = vmatpush1.msra.mxu0 0.0
        %1565 = vmatprep.subr.mxu0 0.0
        %1566 = vmatpush1.msra.mxu0 0.0
        %1567 = vmatprep.subr.mxu0 0.0
        %1568 = vmatpush1.msra.mxu0 0.0
        %1569 = vmatprep.subr.mxu0 0.0
        %1570 = vmatpush1.msra.mxu0 0.0
        %1571 = vmatprep.subr.mxu0 0.0
        %1572 = vmatpush1.msra.mxu0 0.0
        %1573 = vmatprep.subr.mxu0 0.0
        %1574 = vmatpush1.msra.mxu0 0.0
        %1575 = vmatprep.subr.mxu0 0.0
        %1576 = vmatpush1.msra.mxu0 0.0
        %1577 = vmatprep.subr.mxu0 0.0
        %1578 = vmatpush1.msra.mxu0 0.0
        %1579 = vmatprep.subr.mxu0 0.0
        %1580 = vmatpush1.msra.mxu0 0.0
        %1581 = vmatprep.subr.mxu0 0.0
        %1582 = vmatpush1.msra.mxu0 0.0
        %1583 = vmatprep.subr.mxu0 0.0
        %1584 = vmatpush1.msra.mxu0 0.0
        %1585 = vmatprep.subr.mxu0 0.0
        %1586 = vmatpush1.msra.mxu0 0.0
        %1587 = vmatprep.subr.mxu0 0.0
        %1588 = vmatpush1.msra.mxu0 0.0
        %1589 = vmatprep.mubr.f32.mxu0 0.0
        %1590 = vmatmul.mubr.f32.gmra.mrb[0].mxu0 %v1520
        %v1591 = vpop.f32.mrb[0].mxu0
        %v1592 = vadd.f32 0.0, %v1591
        %v1593 = vpop.f32.mrb[0].mxu0
        %1594 = vmatprep.mubr.f32.mxu0 0.0
        %1595 = vmatmul.mubr.f32.gmra.mrb[0].mxu0 %v1523
        %v1596 = vpop.f32.mrb[0].mxu0
        %v1597 = vadd.f32 0.0, %v1596
        %v1598 = vpop.f32.mrb[0].mxu0
        %1599 = vdwg.mxu0
        %v1600 = vsel %vm859, %v1409, 0.0
        %v1601 = vsel %vm859, %v1411, 0.0
        %v1602 = vadd.f32 %v1600, %v1601
        %v1603 = vrot.slane %v1602, 4
        %v1604 = vadd.f32 %v1602, %v1603
        %v1605 = vrot.slane %v1604, 2
        %v1606 = vadd.f32 %v1604, %v1605
        %v1607 = vrot.slane %v1606, 1
        %v1608 = vadd.f32 %v1606, %v1607
        %v1609 = vrsqrt.pop %v1592
        %v1610 = vmul.f32 %v1592, %v1609
        %vm1611 = vcmp.eq.f32.partialorder %v1592, inf
        %v1612 = vsel %vm1611, %v1592, %v1610
        %vm1613 = vcmp.eq.f32.partialorder %v1592, 0.0
        %v1614 = vand.u32 %v1592, 2147483648
        %v1615 = vsel %vm1613, %v1614, %v1612
        %v1616 = vrsqrt.pop %v1597
        %v1617 = vmul.f32 %v1597, %v1616
        %vm1618 = vcmp.eq.f32.partialorder %v1597, inf
        %v1619 = vsel %vm1618, %v1597, %v1617
        %vm1620 = vcmp.eq.f32.partialorder %v1597, 0.0
        %v1621 = vand.u32 %v1597, 2147483648
        %v1622 = vsel %vm1620, %v1621, %v1619
        %v1623 = vrcp.pop %v1615
        %v1624 = vmul.f32 1.0, %v1623
        %v1625 = vrcp.pop %v1622
        %v1626 = vmul.f32 1.0, %v1625
        %v1627 = vrsqrt.pop %v1608
        %v1628 = vmul.f32 %v1608, %v1627
        %vm1629 = vcmp.eq.f32.partialorder %v1608, inf
        %v1630 = vsel %vm1629, %v1608, %v1628
        %vm1631 = vcmp.eq.f32.partialorder %v1608, 0.0
        %v1632 = vand.u32 %v1608, 2147483648
        %v1633 = vsel %vm1631, %v1632, %v1630
        %v1634 = vrcp.pop %v1633
        %v1635 = vmul.f32 1.0, %v1634
        %1637 = vset.pattern.permute.xlu0 0
        %1638 = vperm.xlu0 %1637, %v1624
        %v1639 = vpop.permute.xlu0 %1638
        %1642 = vset.pattern.permute.xlu0 0
        %1643 = vperm.xlu0 %1642, %v1626
        %v1644 = vpop.permute.xlu0 %1643
        %v1646 = vmul.f32 %v1639, %v1409
        %v1647 = vmul.f32 %v1644, %v1411
        %v1648 = vmul.f32 %v1646, %v1635
        %v1649 = vmul.f32 %v1647, %v1635
        %v1651 = vlaneseq
        %v1652 = vshrl.u32 %v1651, 7
        %v1653 = vsub.s32 0, %v1652
        %v1654 = vrot.slane %v817, %v1653
        %1656 = vxpose.xlu0.b32.start [1/16] %v1648, 128
        %1657 = vxpose.xlu0.b32.cont [2/16] %v1649, 128
        %1658 = vxpose.xlu0.b32.cont [3/16] 0.0, 128
        %1659 = vxpose.xlu0.b32.cont [4/16] 0.0, 128
        %1660 = vxpose.xlu0.b32.cont [5/16] 0.0, 128
        %1661 = vxpose.xlu0.b32.cont [6/16] 0.0, 128
        %1662 = vxpose.xlu0.b32.cont [7/16] 0.0, 128
        %1663 = vxpose.xlu0.b32.cont [8/16] 0.0, 128
        %1664 = vxpose.xlu0.b32.cont [9/16] 0.0, 128
        %1665 = vxpose.xlu0.b32.cont [10/16] 0.0, 128
        %1666 = vxpose.xlu0.b32.cont [11/16] 0.0, 128
        %1667 = vxpose.xlu0.b32.cont [12/16] 0.0, 128
        %1668 = vxpose.xlu0.b32.cont [13/16] 0.0, 128
        %1669 = vxpose.xlu0.b32.cont [14/16] 0.0, 128
        %1670 = vxpose.xlu0.b32.cont [15/16] 0.0, 128
        %1671 = vxpose.xlu0.b32.end [16/16] 0.0, 128
        %v1672 = vpop.trf.xlu0
        %v1673 = vpop.trf.xlu0
        %v1674 = vpop.trf.xlu0
        %v1675 = vpop.trf.xlu0
        %v1676 = vpop.trf.xlu0
        %v1677 = vpop.trf.xlu0
        %v1678 = vpop.trf.xlu0
        %v1679 = vpop.trf.xlu0
        %v1680 = vpop.trf.xlu0
        %v1681 = vpop.trf.xlu0
        %v1682 = vpop.trf.xlu0
        %v1683 = vpop.trf.xlu0
        %v1684 = vpop.trf.xlu0
        %v1685 = vpop.trf.xlu0
        %v1686 = vpop.trf.xlu0
        %v1687 = vpop.trf.xlu0
        %v1689 = vsel %vm859, %v1672, 0
        %v1692 = vsel %vm859, %v1673, 0
        %1694 = vmatprep.subr.mxu0 0.0
        %1695 = vmatpush1.msra.mxu0 %v1479
        %1696 = vmatprep.subr.mxu0 0.0
        %1697 = vmatpush1.msra.mxu0 %v1484
        %1698 = vmatprep.subr.mxu0 0.0
        %1699 = vmatpush1.msra.mxu0 0.0
        %1700 = vmatprep.subr.mxu0 0.0
        %1701 = vmatpush1.msra.mxu0 0.0
        %1702 = vmatprep.subr.mxu0 0.0
        %1703 = vmatpush1.msra.mxu0 0.0
        %1704 = vmatprep.subr.mxu0 0.0
        %1705 = vmatpush1.msra.mxu0 0.0
        %1706 = vmatprep.subr.mxu0 0.0
        %1707 = vmatpush1.msra.mxu0 0.0
        %1708 = vmatprep.subr.mxu0 0.0
        %1709 = vmatpush1.msra.mxu0 0.0
        %1710 = vmatprep.subr.mxu0 0.0
        %1711 = vmatpush1.msra.mxu0 0.0
        %1712 = vmatprep.subr.mxu0 0.0
        %1713 = vmatpush1.msra.mxu0 0.0
        %1714 = vmatprep.subr.mxu0 0.0
        %1715 = vmatpush1.msra.mxu0 0.0
        %1716 = vmatprep.subr.mxu0 0.0
        %1717 = vmatpush1.msra.mxu0 0.0
        %1718 = vmatprep.subr.mxu0 0.0
        %1719 = vmatpush1.msra.mxu0 0.0
        %1720 = vmatprep.subr.mxu0 0.0
        %1721 = vmatpush1.msra.mxu0 0.0
        %1722 = vmatprep.subr.mxu0 0.0
        %1723 = vmatpush1.msra.mxu0 0.0
        %1724 = vmatprep.subr.mxu0 0.0
        %1725 = vmatpush1.msra.mxu0 0.0
        %1726 = vmatprep.subr.mxu0 0.0
        %1727 = vmatpush1.msra.mxu0 0.0
        %1728 = vmatprep.subr.mxu0 0.0
        %1729 = vmatpush1.msra.mxu0 0.0
        %1730 = vmatprep.subr.mxu0 0.0
        %1731 = vmatpush1.msra.mxu0 0.0
        %1732 = vmatprep.subr.mxu0 0.0
        %1733 = vmatpush1.msra.mxu0 0.0
        %1734 = vmatprep.subr.mxu0 0.0
        %1735 = vmatpush1.msra.mxu0 0.0
        %1736 = vmatprep.subr.mxu0 0.0
        %1737 = vmatpush1.msra.mxu0 0.0
        %1738 = vmatprep.subr.mxu0 0.0
        %1739 = vmatpush1.msra.mxu0 0.0
        %1740 = vmatprep.subr.mxu0 0.0
        %1741 = vmatpush1.msra.mxu0 0.0
        %1742 = vmatprep.subr.mxu0 0.0
        %1743 = vmatpush1.msra.mxu0 0.0
        %1744 = vmatprep.subr.mxu0 0.0
        %1745 = vmatpush1.msra.mxu0 0.0
        %1746 = vmatprep.subr.mxu0 0.0
        %1747 = vmatpush1.msra.mxu0 0.0
        %1748 = vmatprep.subr.mxu0 0.0
        %1749 = vmatpush1.msra.mxu0 0.0
        %1750 = vmatprep.subr.mxu0 0.0
        %1751 = vmatpush1.msra.mxu0 0.0
        %1752 = vmatprep.subr.mxu0 0.0
        %1753 = vmatpush1.msra.mxu0 0.0
        %1754 = vmatprep.subr.mxu0 0.0
        %1755 = vmatpush1.msra.mxu0 0.0
        %1756 = vmatprep.subr.mxu0 0.0
        %1757 = vmatpush1.msra.mxu0 0.0
        %1758 = vmatprep.mubr.f32.mxu0 0.0
        %1759 = vmatmul.mubr.f32.gmra.mrb[0].mxu0 %v1689
        %v1760 = vpop.f32.mrb[0].mxu0
        %v1761 = vadd.f32 %v1654, %v1760
        %v1762 = vpop.f32.mrb[0].mxu0
        %1763 = vmatprep.mubr.f32.mxu0 0.0
        %1764 = vmatmul.mubr.f32.gmra.mrb[0].mxu0 %v1692
        %v1765 = vpop.f32.mrb[0].mxu0
        %v1766 = vadd.f32 %v1654, %v1765
        %v1767 = vpop.f32.mrb[0].mxu0
        %1768 = vdwg.mxu0
        %v1769 = vsel %vm1277, %v1761, 0.0
        %v1770 = vsel %vm1277, %v1766, 0.0
        %v1771 = vadd.f32 %v1769, %v1770
        %v1772 = vrot.slane %v1771, 4
        %v1773 = vadd.f32 %v1771, %v1772
        %v1774 = vrot.slane %v1773, 2
        %v1775 = vadd.f32 %v1773, %v1774
        %v1776 = vrot.slane %v1775, 1
        %v1777 = vadd.f32 %v1775, %v1776
        %v1778 = vrcp.pop 16.0
        %v1779 = vmul.f32 %v1777, %v1778
        %1781 = vrot.lane.b32.xlu0 %v1779, 32
        %v1782 = vpop.permute.xlu0 %1781
        %v1784 = vsel %vm1277, %v1286, %v1782
        %vm1785 = vcmask 523264
        %v1787 = vsel %vm1785, %v1784, 0
        %1789 = vmatprep.subr.mxu0 0.0
        %1790 = vmatpush1.msra.mxu0 %v818
        %1791 = vmatprep.subr.mxu0 0.0
        %1792 = vmatpush1.msra.mxu0 %v819
        %1793 = vmatprep.subr.mxu0 0.0
        %1794 = vmatpush1.msra.mxu0 %v820
        %1795 = vmatprep.subr.mxu0 0.0
        %1796 = vmatpush1.msra.mxu0 %v821
        %1797 = vmatprep.subr.mxu0 0.0
        %1798 = vmatpush1.msra.mxu0 %v822
        %1799 = vmatprep.subr.mxu0 0.0
        %1800 = vmatpush1.msra.mxu0 %v823
        %1801 = vmatprep.subr.mxu0 0.0
        %1802 = vmatpush1.msra.mxu0 %v824
        %1803 = vmatprep.subr.mxu0 0.0
        %1804 = vmatpush1.msra.mxu0 %v825
        %1805 = vmatprep.subr.mxu0 0.0
        %1806 = vmatpush1.msra.mxu0 0.0
        %1807 = vmatprep.subr.mxu0 0.0
        %1808 = vmatpush1.msra.mxu0 0.0
        %1809 = vmatprep.subr.mxu0 0.0
        %1810 = vmatpush1.msra.mxu0 0.0
        %1811 = vmatprep.subr.mxu0 0.0
        %1812 = vmatpush1.msra.mxu0 0.0
        %1813 = vmatprep.subr.mxu0 0.0
        %1814 = vmatpush1.msra.mxu0 0.0
        %1815 = vmatprep.subr.mxu0 0.0
        %1816 = vmatpush1.msra.mxu0 0.0
        %1817 = vmatprep.subr.mxu0 0.0
        %1818 = vmatpush1.msra.mxu0 0.0
        %1819 = vmatprep.subr.mxu0 0.0
        %1820 = vmatpush1.msra.mxu0 0.0
        %1821 = vmatprep.subr.mxu0 0.0
        %1822 = vmatpush1.msra.mxu0 0.0
        %1823 = vmatprep.subr.mxu0 0.0
        %1824 = vmatpush1.msra.mxu0 0.0
        %1825 = vmatprep.subr.mxu0 0.0
        %1826 = vmatpush1.msra.mxu0 0.0
        %1827 = vmatprep.subr.mxu0 0.0
        %1828 = vmatpush1.msra.mxu0 0.0
        %1829 = vmatprep.subr.mxu0 0.0
        %1830 = vmatpush1.msra.mxu0 0.0
        %1831 = vmatprep.subr.mxu0 0.0
        %1832 = vmatpush1.msra.mxu0 0.0
        %1833 = vmatprep.subr.mxu0 0.0
        %1834 = vmatpush1.msra.mxu0 0.0
        %1835 = vmatprep.subr.mxu0 0.0
        %1836 = vmatpush1.msra.mxu0 0.0
        %1837 = vmatprep.subr.mxu0 0.0
        %1838 = vmatpush1.msra.mxu0 0.0
        %1839 = vmatprep.subr.mxu0 0.0
        %1840 = vmatpush1.msra.mxu0 0.0
        %1841 = vmatprep.subr.mxu0 0.0
        %1842 = vmatpush1.msra.mxu0 0.0
        %1843 = vmatprep.subr.mxu0 0.0
        %1844 = vmatpush1.msra.mxu0 0.0
        %1845 = vmatprep.subr.mxu0 0.0
        %1846 = vmatpush1.msra.mxu0 0.0
        %1847 = vmatprep.subr.mxu0 0.0
        %1848 = vmatpush1.msra.mxu0 0.0
        %1849 = vmatprep.subr.mxu0 0.0
        %1850 = vmatpush1.msra.mxu0 0.0
        %1851 = vmatprep.subr.mxu0 0.0
        %1852 = vmatpush1.msra.mxu0 0.0
        %1853 = vmatprep.mubr.f32.mxu0 0.0
        %1854 = vmatmul.mubr.f32.gmra.mrb[0].mxu0 %v1787
        %v1855 = vpop.f32.mrb[0].mxu0
        %v1856 = vadd.f32 %v826, %v1855
        %v1857 = vpop.f32.mrb[0].mxu0
        %1858 = vdwg.mxu0
        %1859 = vxpose.xlu0.b32.start [1/16] %v724, 128
        %1860 = vxpose.xlu0.b32.cont [2/16] %v729, 128
        %1861 = vxpose.xlu0.b32.cont [3/16] 0.0, 128
        %1862 = vxpose.xlu0.b32.cont [4/16] 0.0, 128
        %1863 = vxpose.xlu0.b32.cont [5/16] 0.0, 128
        %1864 = vxpose.xlu0.b32.cont [6/16] 0.0, 128
        %1865 = vxpose.xlu0.b32.cont [7/16] 0.0, 128
        %1866 = vxpose.xlu0.b32.cont [8/16] 0.0, 128
        %1867 = vxpose.xlu0.b32.cont [9/16] 0.0, 128
        %1868 = vxpose.xlu0.b32.cont [10/16] 0.0, 128
        %1869 = vxpose.xlu0.b32.cont [11/16] 0.0, 128
        %1870 = vxpose.xlu0.b32.cont [12/16] 0.0, 128
        %1871 = vxpose.xlu0.b32.cont [13/16] 0.0, 128
        %1872 = vxpose.xlu0.b32.cont [14/16] 0.0, 128
        %1873 = vxpose.xlu0.b32.cont [15/16] 0.0, 128
        %1874 = vxpose.xlu0.b32.end [16/16] 0.0, 128
        %v1875 = vpop.trf.xlu0
        %v1876 = vpop.trf.xlu0
        %v1877 = vpop.trf.xlu0
        %v1878 = vpop.trf.xlu0
        %v1879 = vpop.trf.xlu0
        %v1880 = vpop.trf.xlu0
        %v1881 = vpop.trf.xlu0
        %v1882 = vpop.trf.xlu0
        %v1883 = vpop.trf.xlu0
        %v1884 = vpop.trf.xlu0
        %v1885 = vpop.trf.xlu0
        %v1886 = vpop.trf.xlu0
        %v1887 = vpop.trf.xlu0
        %v1888 = vpop.trf.xlu0
        %v1889 = vpop.trf.xlu0
        %v1890 = vpop.trf.xlu0
        %v1892 = vsel %vm859, %v1875, 0
        %1894 = vmatprep.subr.mxu0 0.0
        %1895 = vmatpush1.msra.mxu0 %v724
        %1896 = vmatprep.subr.mxu0 0.0
        %1897 = vmatpush1.msra.mxu0 %v729
        %1898 = vmatprep.subr.mxu0 0.0
        %1899 = vmatpush1.msra.mxu0 0.0
        %1900 = vmatprep.subr.mxu0 0.0
        %1901 = vmatpush1.msra.mxu0 0.0
        %1902 = vmatprep.subr.mxu0 0.0
        %1903 = vmatpush1.msra.mxu0 0.0
        %1904 = vmatprep.subr.mxu0 0.0
        %1905 = vmatpush1.msra.mxu0 0.0
        %1906 = vmatprep.subr.mxu0 0.0
        %1907 = vmatpush1.msra.mxu0 0.0
        %1908 = vmatprep.subr.mxu0 0.0
        %1909 = vmatpush1.msra.mxu0 0.0
        %1910 = vmatprep.subr.mxu0 0.0
        %1911 = vmatpush1.msra.mxu0 0.0
        %1912 = vmatprep.subr.mxu0 0.0
        %1913 = vmatpush1.msra.mxu0 0.0
        %1914 = vmatprep.subr.mxu0 0.0
        %1915 = vmatpush1.msra.mxu0 0.0
        %1916 = vmatprep.subr.mxu0 0.0
        %1917 = vmatpush1.msra.mxu0 0.0
        %1918 = vmatprep.subr.mxu0 0.0
        %1919 = vmatpush1.msra.mxu0 0.0
        %1920 = vmatprep.subr.mxu0 0.0
        %1921 = vmatpush1.msra.mxu0 0.0
        %1922 = vmatprep.subr.mxu0 0.0
        %1923 = vmatpush1.msra.mxu0 0.0
        %1924 = vmatprep.subr.mxu0 0.0
        %1925 = vmatpush1.msra.mxu0 0.0
        %1926 = vmatprep.subr.mxu0 0.0
        %1927 = vmatpush1.msra.mxu0 0.0
        %1928 = vmatprep.subr.mxu0 0.0
        %1929 = vmatpush1.msra.mxu0 0.0
        %1930 = vmatprep.subr.mxu0 0.0
        %1931 = vmatpush1.msra.mxu0 0.0
        %1932 = vmatprep.subr.mxu0 0.0
        %1933 = vmatpush1.msra.mxu0 0.0
        %1934 = vmatprep.subr.mxu0 0.0
        %1935 = vmatpush1.msra.mxu0 0.0
        %1936 = vmatprep.subr.mxu0 0.0
        %1937 = vmatpush1.msra.mxu0 0.0
        %1938 = vmatprep.subr.mxu0 0.0
        %1939 = vmatpush1.msra.mxu0 0.0
        %1940 = vmatprep.subr.mxu0 0.0
        %1941 = vmatpush1.msra.mxu0 0.0
        %1942 = vmatprep.subr.mxu0 0.0
        %1943 = vmatpush1.msra.mxu0 0.0
        %1944 = vmatprep.subr.mxu0 0.0
        %1945 = vmatpush1.msra.mxu0 0.0
        %1946 = vmatprep.subr.mxu0 0.0
        %1947 = vmatpush1.msra.mxu0 0.0
        %1948 = vmatprep.subr.mxu0 0.0
        %1949 = vmatpush1.msra.mxu0 0.0
        %1950 = vmatprep.subr.mxu0 0.0
        %1951 = vmatpush1.msra.mxu0 0.0
        %1952 = vmatprep.subr.mxu0 0.0
        %1953 = vmatpush1.msra.mxu0 0.0
        %1954 = vmatprep.subr.mxu0 0.0
        %1955 = vmatpush1.msra.mxu0 0.0
        %1956 = vmatprep.subr.mxu0 0.0
        %1957 = vmatpush1.msra.mxu0 0.0
        %1958 = vmatprep.mubr.f32.mxu0 0.0
        %1959 = vmatmul.mubr.f32.gmra.mrb[0].mxu0 %v1892
        %v1960 = vpop.f32.mrb[0].mxu0
        %v1961 = vadd.f32 0.0, %v1960
        %v1962 = vpop.f32.mrb[0].mxu0
        %1963 = vdwg.mxu0
        %v1964 = vmul.f32 %v936, %v1961
        %v1965 = vmul.f32 %v1964, %v943
        %v1966 = vmul.f32 %v1965, 0.25
        %v1967 = vsel %vm947, %v1966, -inf
        %1968 = vmax.xlane.f32.xlu0 %v1967
        %v1969 = vpop.xlane.xlu0 %1968
        %v1970 = vsub.f32 %v1966, %v1969
        %v1971 = vmul.f32 %v1970, 1.442695
        %v1972 = vpow.pop %v1971
        %v1973 = vsel %vm947, %v1972, 0.0
        %1974 = vadd.xlane.f32.xlu0 %v1973
        %v1975 = vpop.xlane.xlu0 %1974
        %v1976 = vrcp.pop %v1975
        %v1977 = vmul.f32 %v1972, %v1976
        %1978 = vmatprep.subr.mxu0 0.0
        %1979 = vmatpush1.msra.mxu0 %v813
        %1980 = vmatprep.subr.mxu0 0.0
        %1981 = vmatpush1.msra.mxu0 %v814
        %1982 = vmatprep.subr.mxu0 0.0
        %1983 = vmatpush1.msra.mxu0 0.0
        %1984 = vmatprep.subr.mxu0 0.0
        %1985 = vmatpush1.msra.mxu0 0.0
        %1986 = vmatprep.subr.mxu0 0.0
        %1987 = vmatpush1.msra.mxu0 0.0
        %1988 = vmatprep.subr.mxu0 0.0
        %1989 = vmatpush1.msra.mxu0 0.0
        %1990 = vmatprep.subr.mxu0 0.0
        %1991 = vmatpush1.msra.mxu0 0.0
        %1992 = vmatprep.subr.mxu0 0.0
        %1993 = vmatpush1.msra.mxu0 0.0
        %1994 = vmatprep.subr.mxu0 0.0
        %1995 = vmatpush1.msra.mxu0 0.0
        %1996 = vmatprep.subr.mxu0 0.0
        %1997 = vmatpush1.msra.mxu0 0.0
        %1998 = vmatprep.subr.mxu0 0.0
        %1999 = vmatpush1.msra.mxu0 0.0
        %2000 = vmatprep.subr.mxu0 0.0
        %2001 = vmatpush1.msra.mxu0 0.0
        %2002 = vmatprep.subr.mxu0 0.0
        %2003 = vmatpush1.msra.mxu0 0.0
        %2004 = vmatprep.subr.mxu0 0.0
        %2005 = vmatpush1.msra.mxu0 0.0
        %2006 = vmatprep.subr.mxu0 0.0
        %2007 = vmatpush1.msra.mxu0 0.0
        %2008 = vmatprep.subr.mxu0 0.0
        %2009 = vmatpush1.msra.mxu0 0.0
        %2010 = vmatprep.subr.mxu0 0.0
        %2011 = vmatpush1.msra.mxu0 0.0
        %2012 = vmatprep.subr.mxu0 0.0
        %2013 = vmatpush1.msra.mxu0 0.0
        %2014 = vmatprep.subr.mxu0 0.0
        %2015 = vmatpush1.msra.mxu0 0.0
        %2016 = vmatprep.subr.mxu0 0.0
        %2017 = vmatpush1.msra.mxu0 0.0
        %2018 = vmatprep.subr.mxu0 0.0
        %2019 = vmatpush1.msra.mxu0 0.0
        %2020 = vmatprep.subr.mxu0 0.0
        %2021 = vmatpush1.msra.mxu0 0.0
        %2022 = vmatprep.subr.mxu0 0.0
        %2023 = vmatpush1.msra.mxu0 0.0
        %2024 = vmatprep.subr.mxu0 0.0
        %2025 = vmatpush1.msra.mxu0 0.0
        %2026 = vmatprep.subr.mxu0 0.0
        %2027 = vmatpush1.msra.mxu0 0.0
        %2028 = vmatprep.subr.mxu0 0.0
        %2029 = vmatpush1.msra.mxu0 0.0
        %2030 = vmatprep.subr.mxu0 0.0
        %2031 = vmatpush1.msra.mxu0 0.0
        %2032 = vmatprep.subr.mxu0 0.0
        %2033 = vmatpush1.msra.mxu0 0.0
        %2034 = vmatprep.subr.mxu0 0.0
        %2035 = vmatpush1.msra.mxu0 0.0
        %2036 = vmatprep.subr.mxu0 0.0
        %2037 = vmatpush1.msra.mxu0 0.0
        %2038 = vmatprep.subr.mxu0 0.0
        %2039 = vmatpush1.msra.mxu0 0.0
        %2040 = vmatprep.subr.mxu0 0.0
        %2041 = vmatpush1.msra.mxu0 0.0
        %2042 = vmatprep.mubr.f32.mxu0 0.0
        %2043 = vmatmul.mubr.f32.gmra.mrb[0].mxu0 %v1892
        %v2044 = vpop.f32.mrb[0].mxu0
        %v2045 = vadd.f32 0.0, %v2044
        %v2046 = vpop.f32.mrb[0].mxu0
        %2047 = vdwg.mxu0
        %2048 = vxpose.xlu0.b32.start [1/16] %v1977, 128
        %2049 = vxpose.xlu0.b32.cont [2/16] 0.0, 128
        %2050 = vxpose.xlu0.b32.cont [3/16] 0.0, 128
        %2051 = vxpose.xlu0.b32.cont [4/16] 0.0, 128
        %2052 = vxpose.xlu0.b32.cont [5/16] 0.0, 128
        %2053 = vxpose.xlu0.b32.cont [6/16] 0.0, 128
        %2054 = vxpose.xlu0.b32.cont [7/16] 0.0, 128
        %2055 = vxpose.xlu0.b32.cont [8/16] 0.0, 128
        %2056 = vxpose.xlu0.b32.cont [9/16] 0.0, 128
        %2057 = vxpose.xlu0.b32.cont [10/16] 0.0, 128
        %2058 = vxpose.xlu0.b32.cont [11/16] 0.0, 128
        %2059 = vxpose.xlu0.b32.cont [12/16] 0.0, 128
        %2060 = vxpose.xlu0.b32.cont [13/16] 0.0, 128
        %2061 = vxpose.xlu0.b32.cont [14/16] 0.0, 128
        %2062 = vxpose.xlu0.b32.cont [15/16] 0.0, 128
        %2063 = vxpose.xlu0.b32.end [16/16] 0.0, 128
        %v2064 = vpop.trf.xlu0
        %v2065 = vpop.trf.xlu0
        %v2066 = vpop.trf.xlu0
        %v2067 = vpop.trf.xlu0
        %v2068 = vpop.trf.xlu0
        %v2069 = vpop.trf.xlu0
        %v2070 = vpop.trf.xlu0
        %v2071 = vpop.trf.xlu0
        %v2072 = vpop.trf.xlu0
        %v2073 = vpop.trf.xlu0
        %v2074 = vpop.trf.xlu0
        %v2075 = vpop.trf.xlu0
        %v2076 = vpop.trf.xlu0
        %v2077 = vpop.trf.xlu0
        %v2078 = vpop.trf.xlu0
        %v2079 = vpop.trf.xlu0
        %v2081 = vsel %vm947, %v2064, 0
        %2083 = vmatprep.subr.mxu0 0.0
        %2084 = vmatpush1.msra.mxu0 1.0
        %2085 = vmatprep.subr.mxu0 0.0
        %2086 = vmatpush1.msra.mxu0 0.0
        %2087 = vmatprep.subr.mxu0 0.0
        %2088 = vmatpush1.msra.mxu0 0.0
        %2089 = vmatprep.subr.mxu0 0.0
        %2090 = vmatpush1.msra.mxu0 0.0
        %2091 = vmatprep.subr.mxu0 0.0
        %2092 = vmatpush1.msra.mxu0 0.0
        %2093 = vmatprep.subr.mxu0 0.0
        %2094 = vmatpush1.msra.mxu0 0.0
        %2095 = vmatprep.subr.mxu0 0.0
        %2096 = vmatpush1.msra.mxu0 0.0
        %2097 = vmatprep.subr.mxu0 0.0
        %2098 = vmatpush1.msra.mxu0 0.0
        %2099 = vmatprep.subr.mxu0 0.0
        %2100 = vmatpush1.msra.mxu0 0.0
        %2101 = vmatprep.subr.mxu0 0.0
        %2102 = vmatpush1.msra.mxu0 0.0
        %2103 = vmatprep.subr.mxu0 0.0
        %2104 = vmatpush1.msra.mxu0 0.0
        %2105 = vmatprep.subr.mxu0 0.0
        %2106 = vmatpush1.msra.mxu0 0.0
        %2107 = vmatprep.subr.mxu0 0.0
        %2108 = vmatpush1.msra.mxu0 0.0
        %2109 = vmatprep.subr.mxu0 0.0
        %2110 = vmatpush1.msra.mxu0 0.0
        %2111 = vmatprep.subr.mxu0 0.0
        %2112 = vmatpush1.msra.mxu0 0.0
        %2113 = vmatprep.subr.mxu0 0.0
        %2114 = vmatpush1.msra.mxu0 0.0
        %2115 = vmatprep.subr.mxu0 0.0
        %2116 = vmatpush1.msra.mxu0 0.0
        %2117 = vmatprep.subr.mxu0 0.0
        %2118 = vmatpush1.msra.mxu0 0.0
        %2119 = vmatprep.subr.mxu0 0.0
        %2120 = vmatpush1.msra.mxu0 0.0
        %2121 = vmatprep.subr.mxu0 0.0
        %2122 = vmatpush1.msra.mxu0 0.0
        %2123 = vmatprep.subr.mxu0 0.0
        %2124 = vmatpush1.msra.mxu0 0.0
        %2125 = vmatprep.subr.mxu0 0.0
        %2126 = vmatpush1.msra.mxu0 0.0
        %2127 = vmatprep.subr.mxu0 0.0
        %2128 = vmatpush1.msra.mxu0 0.0
        %2129 = vmatprep.subr.mxu0 0.0
        %2130 = vmatpush1.msra.mxu0 0.0
        %2131 = vmatprep.subr.mxu0 0.0
        %2132 = vmatpush1.msra.mxu0 0.0
        %2133 = vmatprep.subr.mxu0 0.0
        %2134 = vmatpush1.msra.mxu0 0.0
        %2135 = vmatprep.subr.mxu0 0.0
        %2136 = vmatpush1.msra.mxu0 0.0
        %2137 = vmatprep.subr.mxu0 0.0
        %2138 = vmatpush1.msra.mxu0 0.0
        %2139 = vmatprep.subr.mxu0 0.0
        %2140 = vmatpush1.msra.mxu0 0.0
        %2141 = vmatprep.subr.mxu0 0.0
        %2142 = vmatpush1.msra.mxu0 0.0
        %2143 = vmatprep.subr.mxu0 0.0
        %2144 = vmatpush1.msra.mxu0 0.0
        %2145 = vmatprep.subr.mxu0 0.0
        %2146 = vmatpush1.msra.mxu0 0.0
        %2147 = vmatprep.mubr.f32.mxu0 0.0
        %2148 = vmatmul.mubr.f32.gmra.mrb[0].mxu0 %v2081
        %v2149 = vpop.f32.mrb[0].mxu0
        %v2150 = vadd.f32 0.0, %v2149
        %v2151 = vpop.f32.mrb[0].mxu0
        %2152 = vdwg.mxu0
        %v2153 = vsel %vm947, %v1977, 0.0
        %v2154 = vrot.slane %v2153, 4
        %v2155 = vadd.f32 %v2153, %v2154
        %v2156 = vrot.slane %v2155, 2
        %v2157 = vadd.f32 %v2155, %v2156
        %v2158 = vrot.slane %v2157, 1
        %v2159 = vadd.f32 %v2157, %v2158
        %v2160 = vrsqrt.pop %v2150
        %v2161 = vmul.f32 %v2150, %v2160
        %vm2162 = vcmp.eq.f32.partialorder %v2150, inf
        %v2163 = vsel %vm2162, %v2150, %v2161
        %vm2164 = vcmp.eq.f32.partialorder %v2150, 0.0
        %v2165 = vand.u32 %v2150, 2147483648
        %v2166 = vsel %vm2164, %v2165, %v2163
        %v2167 = vrcp.pop %v2166
        %v2168 = vmul.f32 1.0, %v2167
        %v2169 = vrsqrt.pop %v2159
        %v2170 = vmul.f32 %v2159, %v2169
        %vm2171 = vcmp.eq.f32.partialorder %v2159, inf
        %v2172 = vsel %vm2171, %v2159, %v2170
        %vm2173 = vcmp.eq.f32.partialorder %v2159, 0.0
        %v2174 = vand.u32 %v2159, 2147483648
        %v2175 = vsel %vm2173, %v2174, %v2172
        %v2176 = vrcp.pop %v2175
        %v2177 = vmul.f32 1.0, %v2176
        %2179 = vset.pattern.permute.xlu0 0
        %2180 = vperm.xlu0 %2179, %v2168
        %v2181 = vpop.permute.xlu0 %2180
        %v2183 = vmul.f32 %v2181, %v1977
        %v2184 = vmul.f32 %v2183, %v2177
        %2185 = vxpose.xlu0.b32.start [1/16] %v2184, 128
        %2186 = vxpose.xlu0.b32.cont [2/16] 0.0, 128
        %2187 = vxpose.xlu0.b32.cont [3/16] 0.0, 128
        %2188 = vxpose.xlu0.b32.cont [4/16] 0.0, 128
        %2189 = vxpose.xlu0.b32.cont [5/16] 0.0, 128
        %2190 = vxpose.xlu0.b32.cont [6/16] 0.0, 128
        %2191 = vxpose.xlu0.b32.cont [7/16] 0.0, 128
        %2192 = vxpose.xlu0.b32.cont [8/16] 0.0, 128
        %2193 = vxpose.xlu0.b32.cont [9/16] 0.0, 128
        %2194 = vxpose.xlu0.b32.cont [10/16] 0.0, 128
        %2195 = vxpose.xlu0.b32.cont [11/16] 0.0, 128
        %2196 = vxpose.xlu0.b32.cont [12/16] 0.0, 128
        %2197 = vxpose.xlu0.b32.cont [13/16] 0.0, 128
        %2198 = vxpose.xlu0.b32.cont [14/16] 0.0, 128
        %2199 = vxpose.xlu0.b32.cont [15/16] 0.0, 128
        %2200 = vxpose.xlu0.b32.end [16/16] 0.0, 128
        %v2201 = vpop.trf.xlu0
        %v2202 = vpop.trf.xlu0
        %v2203 = vpop.trf.xlu0
        %v2204 = vpop.trf.xlu0
        %v2205 = vpop.trf.xlu0
        %v2206 = vpop.trf.xlu0
        %v2207 = vpop.trf.xlu0
        %v2208 = vpop.trf.xlu0
        %v2209 = vpop.trf.xlu0
        %v2210 = vpop.trf.xlu0
        %v2211 = vpop.trf.xlu0
        %v2212 = vpop.trf.xlu0
        %v2213 = vpop.trf.xlu0
        %v2214 = vpop.trf.xlu0
        %v2215 = vpop.trf.xlu0
        %v2216 = vpop.trf.xlu0
        %v2218 = vsel %vm947, %v2201, 0
        %2220 = vmatprep.subr.mxu0 0.0
        %2221 = vmatpush1.msra.mxu0 %v2045
        %2222 = vmatprep.subr.mxu0 0.0
        %2223 = vmatpush1.msra.mxu0 0.0
        %2224 = vmatprep.subr.mxu0 0.0
        %2225 = vmatpush1.msra.mxu0 0.0
        %2226 = vmatprep.subr.mxu0 0.0
        %2227 = vmatpush1.msra.mxu0 0.0
        %2228 = vmatprep.subr.mxu0 0.0
        %2229 = vmatpush1.msra.mxu0 0.0
        %2230 = vmatprep.subr.mxu0 0.0
        %2231 = vmatpush1.msra.mxu0 0.0
        %2232 = vmatprep.subr.mxu0 0.0
        %2233 = vmatpush1.msra.mxu0 0.0
        %2234 = vmatprep.subr.mxu0 0.0
        %2235 = vmatpush1.msra.mxu0 0.0
        %2236 = vmatprep.subr.mxu0 0.0
        %2237 = vmatpush1.msra.mxu0 0.0
        %2238 = vmatprep.subr.mxu0 0.0
        %2239 = vmatpush1.msra.mxu0 0.0
        %2240 = vmatprep.subr.mxu0 0.0
        %2241 = vmatpush1.msra.mxu0 0.0
        %2242 = vmatprep.subr.mxu0 0.0
        %2243 = vmatpush1.msra.mxu0 0.0
        %2244 = vmatprep.subr.mxu0 0.0
        %2245 = vmatpush1.msra.mxu0 0.0
        %2246 = vmatprep.subr.mxu0 0.0
        %2247 = vmatpush1.msra.mxu0 0.0
        %2248 = vmatprep.subr.mxu0 0.0
        %2249 = vmatpush1.msra.mxu0 0.0
        %2250 = vmatprep.subr.mxu0 0.0
        %2251 = vmatpush1.msra.mxu0 0.0
        %2252 = vmatprep.subr.mxu0 0.0
        %2253 = vmatpush1.msra.mxu0 0.0
        %2254 = vmatprep.subr.mxu0 0.0
        %2255 = vmatpush1.msra.mxu0 0.0
        %2256 = vmatprep.subr.mxu0 0.0
        %2257 = vmatpush1.msra.mxu0 0.0
        %2258 = vmatprep.subr.mxu0 0.0
        %2259 = vmatpush1.msra.mxu0 0.0
        %2260 = vmatprep.subr.mxu0 0.0
        %2261 = vmatpush1.msra.mxu0 0.0
        %2262 = vmatprep.subr.mxu0 0.0
        %2263 = vmatpush1.msra.mxu0 0.0
        %2264 = vmatprep.subr.mxu0 0.0
        %2265 = vmatpush1.msra.mxu0 0.0
        %2266 = vmatprep.subr.mxu0 0.0
        %2267 = vmatpush1.msra.mxu0 0.0
        %2268 = vmatprep.subr.mxu0 0.0
        %2269 = vmatpush1.msra.mxu0 0.0
        %2270 = vmatprep.subr.mxu0 0.0
        %2271 = vmatpush1.msra.mxu0 0.0
        %2272 = vmatprep.subr.mxu0 0.0
        %2273 = vmatpush1.msra.mxu0 0.0
        %2274 = vmatprep.subr.mxu0 0.0
        %2275 = vmatpush1.msra.mxu0 0.0
        %2276 = vmatprep.subr.mxu0 0.0
        %2277 = vmatpush1.msra.mxu0 0.0
        %2278 = vmatprep.subr.mxu0 0.0
        %2279 = vmatpush1.msra.mxu0 0.0
        %2280 = vmatprep.subr.mxu0 0.0
        %2281 = vmatpush1.msra.mxu0 0.0
        %2282 = vmatprep.subr.mxu0 0.0
        %2283 = vmatpush1.msra.mxu0 0.0
        %2284 = vmatprep.mubr.f32.mxu0 0.0
        %2285 = vmatmul.mubr.f32.gmra.mrb[0].mxu0 %v2218
        %v2286 = vpop.f32.mrb[0].mxu0
        %v2287 = vadd.f32 %v1170, %v2286
        %v2288 = vpop.f32.mrb[0].mxu0
        %2289 = vdwg.mxu0
        %v2290 = vsel %vm1277, %v2287, 0.0
        %v2291 = vrot.slane %v2290, 4
        %v2292 = vadd.f32 %v2290, %v2291
        %v2293 = vrot.slane %v2292, 2
        %v2294 = vadd.f32 %v2292, %v2293
        %v2295 = vrot.slane %v2294, 1
        %v2296 = vadd.f32 %v2294, %v2295
        %v2297 = vmul.f32 %v2296, %v1285
        %v2299 = vsel %vm947, %v794, 0
        %v2302 = vsel %vm947, %v795, 0
        %2304 = vmatprep.subr.mxu0 0.0
        %2305 = vmatpush1.xpose.msra.mxu0 %v2299
        %2306 = vmatprep.subr.mxu0 0.0
        %2307 = vmatpush1.xpose.msra.mxu0 %v2302
        %2308 = vmatprep.subr.mxu0 0.0
        %2309 = vmatpush1.xpose.msra.mxu0 0.0
        %2310 = vmatprep.subr.mxu0 0.0
        %2311 = vmatpush1.xpose.msra.mxu0 0.0
        %2312 = vmatprep.subr.mxu0 0.0
        %2313 = vmatpush1.xpose.msra.mxu0 0.0
        %2314 = vmatprep.subr.mxu0 0.0
        %2315 = vmatpush1.xpose.msra.mxu0 0.0
        %2316 = vmatprep.subr.mxu0 0.0
        %2317 = vmatpush1.xpose.msra.mxu0 0.0
        %2318 = vmatprep.subr.mxu0 0.0
        %2319 = vmatpush1.xpose.msra.mxu0 0.0
        %2320 = vmatprep.subr.mxu0 0.0
        %2321 = vmatpush1.xpose.msra.mxu0 0.0
        %2322 = vmatprep.subr.mxu0 0.0
        %2323 = vmatpush1.xpose.msra.mxu0 0.0
        %2324 = vmatprep.subr.mxu0 0.0
        %2325 = vmatpush1.xpose.msra.mxu0 0.0
        %2326 = vmatprep.subr.mxu0 0.0
        %2327 = vmatpush1.xpose.msra.mxu0 0.0
        %2328 = vmatprep.subr.mxu0 0.0
        %2329 = vmatpush1.xpose.msra.mxu0 0.0
        %2330 = vmatprep.subr.mxu0 0.0
        %2331 = vmatpush1.xpose.msra.mxu0 0.0
        %2332 = vmatprep.subr.mxu0 0.0
        %2333 = vmatpush1.xpose.msra.mxu0 0.0
        %2334 = vmatprep.subr.mxu0 0.0
        %2335 = vmatpush1.xpose.msra.mxu0 0.0
        %2336 = vmatprep.subr.mxu0 0.0
        %2337 = vmatpush1.xpose.msra.mxu0 0.0
        %2338 = vmatprep.subr.mxu0 0.0
        %2339 = vmatpush1.xpose.msra.mxu0 0.0
        %2340 = vmatprep.subr.mxu0 0.0
        %2341 = vmatpush1.xpose.msra.mxu0 0.0
        %2342 = vmatprep.subr.mxu0 0.0
        %2343 = vmatpush1.xpose.msra.mxu0 0.0
        %2344 = vmatprep.subr.mxu0 0.0
        %2345 = vmatpush1.xpose.msra.mxu0 0.0
        %2346 = vmatprep.subr.mxu0 0.0
        %2347 = vmatpush1.xpose.msra.mxu0 0.0
        %2348 = vmatprep.subr.mxu0 0.0
        %2349 = vmatpush1.xpose.msra.mxu0 0.0
        %2350 = vmatprep.subr.mxu0 0.0
        %2351 = vmatpush1.xpose.msra.mxu0 0.0
        %2352 = vmatprep.subr.mxu0 0.0
        %2353 = vmatpush1.xpose.msra.mxu0 0.0
        %2354 = vmatprep.subr.mxu0 0.0
        %2355 = vmatpush1.xpose.msra.mxu0 0.0
        %2356 = vmatprep.subr.mxu0 0.0
        %2357 = vmatpush1.xpose.msra.mxu0 0.0
        %2358 = vmatprep.subr.mxu0 0.0
        %2359 = vmatpush1.xpose.msra.mxu0 0.0
        %2360 = vmatprep.subr.mxu0 0.0
        %2361 = vmatpush1.xpose.msra.mxu0 0.0
        %2362 = vmatprep.subr.mxu0 0.0
        %2363 = vmatpush1.xpose.msra.mxu0 0.0
        %2364 = vmatprep.subr.mxu0 0.0
        %2365 = vmatpush1.xpose.msra.mxu0 0.0
        %2366 = vmatprep.subr.mxu0 0.0
        %2367 = vmatpush1.xpose.msra.mxu0 0.0
        %2368 = vmatprep.mubr.f32.mxu0 0.0
        %2369 = vmatmul.mubr.f32.gmra.mrb[0].mxu0 %v2299
        %v2370 = vpop.f32.mrb[0].mxu0
        %v2371 = vadd.f32 0.0, %v2370
        %v2372 = vpop.f32.mrb[0].mxu0
        %2373 = vmatprep.mubr.f32.mxu0 0.0
        %2374 = vmatmul.mubr.f32.gmra.mrb[0].mxu0 %v2302
        %v2375 = vpop.f32.mrb[0].mxu0
        %v2376 = vadd.f32 0.0, %v2375
        %v2377 = vpop.f32.mrb[0].mxu0
        %2378 = vdwg.mxu0
        %v2379 = vmul.f32 %v1371, %v2371
        %v2380 = vmul.f32 %v1376, %v2376
        %v2381 = vmul.f32 %v2379, %v1384
        %v2382 = vmul.f32 %v2380, %v1384
        %v2383 = vmul.f32 %v2381, 0.35355338
        %v2384 = vmul.f32 %v2382, 0.35355338
        %v2385 = vsel %vm859, %v2383, -inf
        %2386 = vmax.xlane.f32.xlu0 %v2385
        %v2387 = vpop.xlane.xlu0 %2386
        %v2388 = vsel %vm859, %v2384, -inf
        %2389 = vmax.xlane.f32.xlu0 %v2388
        %v2390 = vpop.xlane.xlu0 %2389
        %v2391 = vsub.f32 %v2383, %v2387
        %v2392 = vsub.f32 %v2384, %v2390
        %v2393 = vmul.f32 %v2391, 1.442695
        %v2394 = vpow.pop %v2393
        %v2395 = vmul.f32 %v2392, 1.442695
        %v2396 = vpow.pop %v2395
        %v2397 = vsel %vm859, %v2394, 0.0
        %2398 = vadd.xlane.f32.xlu0 %v2397
        %v2399 = vpop.xlane.xlu0 %2398
        %v2400 = vsel %vm859, %v2396, 0.0
        %2401 = vadd.xlane.f32.xlu0 %v2400
        %v2402 = vpop.xlane.xlu0 %2401
        %v2403 = vrcp.pop %v2399
        %v2404 = vmul.f32 %v2394, %v2403
        %v2405 = vrcp.pop %v2402
        %v2406 = vmul.f32 %v2396, %v2405
        %2407 = vmatprep.subr.mxu0 0.0
        %2408 = vmatpush1.msra.mxu0 %v816
        %2409 = vmatprep.subr.mxu0 0.0
        %2410 = vmatpush1.msra.mxu0 0.0
        %2411 = vmatprep.subr.mxu0 0.0
        %2412 = vmatpush1.msra.mxu0 0.0
        %2413 = vmatprep.subr.mxu0 0.0
        %2414 = vmatpush1.msra.mxu0 0.0
        %2415 = vmatprep.subr.mxu0 0.0
        %2416 = vmatpush1.msra.mxu0 0.0
        %2417 = vmatprep.subr.mxu0 0.0
        %2418 = vmatpush1.msra.mxu0 0.0
        %2419 = vmatprep.subr.mxu0 0.0
        %2420 = vmatpush1.msra.mxu0 0.0
        %2421 = vmatprep.subr.mxu0 0.0
        %2422 = vmatpush1.msra.mxu0 0.0
        %2423 = vmatprep.subr.mxu0 0.0
        %2424 = vmatpush1.msra.mxu0 0.0
        %2425 = vmatprep.subr.mxu0 0.0
        %2426 = vmatpush1.msra.mxu0 0.0
        %2427 = vmatprep.subr.mxu0 0.0
        %2428 = vmatpush1.msra.mxu0 0.0
        %2429 = vmatprep.subr.mxu0 0.0
        %2430 = vmatpush1.msra.mxu0 0.0
        %2431 = vmatprep.subr.mxu0 0.0
        %2432 = vmatpush1.msra.mxu0 0.0
        %2433 = vmatprep.subr.mxu0 0.0
        %2434 = vmatpush1.msra.mxu0 0.0
        %2435 = vmatprep.subr.mxu0 0.0
        %2436 = vmatpush1.msra.mxu0 0.0
        %2437 = vmatprep.subr.mxu0 0.0
        %2438 = vmatpush1.msra.mxu0 0.0
        %2439 = vmatprep.subr.mxu0 0.0
        %2440 = vmatpush1.msra.mxu0 0.0
        %2441 = vmatprep.subr.mxu0 0.0
        %2442 = vmatpush1.msra.mxu0 0.0
        %2443 = vmatprep.subr.mxu0 0.0
        %2444 = vmatpush1.msra.mxu0 0.0
        %2445 = vmatprep.subr.mxu0 0.0
        %2446 = vmatpush1.msra.mxu0 0.0
        %2447 = vmatprep.subr.mxu0 0.0
        %2448 = vmatpush1.msra.mxu0 0.0
        %2449 = vmatprep.subr.mxu0 0.0
        %2450 = vmatpush1.msra.mxu0 0.0
        %2451 = vmatprep.subr.mxu0 0.0
        %2452 = vmatpush1.msra.mxu0 0.0
        %2453 = vmatprep.subr.mxu0 0.0
        %2454 = vmatpush1.msra.mxu0 0.0
        %2455 = vmatprep.subr.mxu0 0.0
        %2456 = vmatpush1.msra.mxu0 0.0
        %2457 = vmatprep.subr.mxu0 0.0
        %2458 = vmatpush1.msra.mxu0 0.0
        %2459 = vmatprep.subr.mxu0 0.0
        %2460 = vmatpush1.msra.mxu0 0.0
        %2461 = vmatprep.subr.mxu0 0.0
        %2462 = vmatpush1.msra.mxu0 0.0
        %2463 = vmatprep.subr.mxu0 0.0
        %2464 = vmatpush1.msra.mxu0 0.0
        %2465 = vmatprep.subr.mxu0 0.0
        %2466 = vmatpush1.msra.mxu0 0.0
        %2467 = vmatprep.subr.mxu0 0.0
        %2468 = vmatpush1.msra.mxu0 0.0
        %2469 = vmatprep.subr.mxu0 0.0
        %2470 = vmatpush1.msra.mxu0 0.0
        %2471 = vmatprep.mubr.f32.mxu0 0.0
        %2472 = vmatmul.mubr.f32.gmra.mrb[0].mxu0 %v2299
        %v2473 = vpop.f32.mrb[0].mxu0
        %v2474 = vadd.f32 0.0, %v2473
        %v2475 = vpop.f32.mrb[0].mxu0
        %2476 = vmatprep.mubr.f32.mxu0 0.0
        %2477 = vmatmul.mubr.f32.gmra.mrb[0].mxu0 %v2302
        %v2478 = vpop.f32.mrb[0].mxu0
        %v2479 = vadd.f32 0.0, %v2478
        %v2480 = vpop.f32.mrb[0].mxu0
        %2481 = vdwg.mxu0
        %2482 = vxpose.xlu0.b32.start [1/16] %v2404, 128
        %2483 = vxpose.xlu0.b32.cont [2/16] %v2406, 128
        %2484 = vxpose.xlu0.b32.cont [3/16] 0.0, 128
        %2485 = vxpose.xlu0.b32.cont [4/16] 0.0, 128
        %2486 = vxpose.xlu0.b32.cont [5/16] 0.0, 128
        %2487 = vxpose.xlu0.b32.cont [6/16] 0.0, 128
        %2488 = vxpose.xlu0.b32.cont [7/16] 0.0, 128
        %2489 = vxpose.xlu0.b32.cont [8/16] 0.0, 128
        %2490 = vxpose.xlu0.b32.cont [9/16] 0.0, 128
        %2491 = vxpose.xlu0.b32.cont [10/16] 0.0, 128
        %2492 = vxpose.xlu0.b32.cont [11/16] 0.0, 128
        %2493 = vxpose.xlu0.b32.cont [12/16] 0.0, 128
        %2494 = vxpose.xlu0.b32.cont [13/16] 0.0, 128
        %2495 = vxpose.xlu0.b32.cont [14/16] 0.0, 128
        %2496 = vxpose.xlu0.b32.cont [15/16] 0.0, 128
        %2497 = vxpose.xlu0.b32.end [16/16] 0.0, 128
        %v2498 = vpop.trf.xlu0
        %v2499 = vpop.trf.xlu0
        %v2500 = vpop.trf.xlu0
        %v2501 = vpop.trf.xlu0
        %v2502 = vpop.trf.xlu0
        %v2503 = vpop.trf.xlu0
        %v2504 = vpop.trf.xlu0
        %v2505 = vpop.trf.xlu0
        %v2506 = vpop.trf.xlu0
        %v2507 = vpop.trf.xlu0
        %v2508 = vpop.trf.xlu0
        %v2509 = vpop.trf.xlu0
        %v2510 = vpop.trf.xlu0
        %v2511 = vpop.trf.xlu0
        %v2512 = vpop.trf.xlu0
        %v2513 = vpop.trf.xlu0
        %v2515 = vsel %vm859, %v2498, 0
        %v2518 = vsel %vm859, %v2499, 0
        %2520 = vmatprep.subr.mxu0 0.0
        %2521 = vmatpush1.msra.mxu0 1.0
        %2522 = vmatprep.subr.mxu0 0.0
        %2523 = vmatpush1.msra.mxu0 1.0
        %2524 = vmatprep.subr.mxu0 0.0
        %2525 = vmatpush1.msra.mxu0 0.0
        %2526 = vmatprep.subr.mxu0 0.0
        %2527 = vmatpush1.msra.mxu0 0.0
        %2528 = vmatprep.subr.mxu0 0.0
        %2529 = vmatpush1.msra.mxu0 0.0
        %2530 = vmatprep.subr.mxu0 0.0
        %2531 = vmatpush1.msra.mxu0 0.0
        %2532 = vmatprep.subr.mxu0 0.0
        %2533 = vmatpush1.msra.mxu0 0.0
        %2534 = vmatprep.subr.mxu0 0.0
        %2535 = vmatpush1.msra.mxu0 0.0
        %2536 = vmatprep.subr.mxu0 0.0
        %2537 = vmatpush1.msra.mxu0 0.0
        %2538 = vmatprep.subr.mxu0 0.0
        %2539 = vmatpush1.msra.mxu0 0.0
        %2540 = vmatprep.subr.mxu0 0.0
        %2541 = vmatpush1.msra.mxu0 0.0
        %2542 = vmatprep.subr.mxu0 0.0
        %2543 = vmatpush1.msra.mxu0 0.0
        %2544 = vmatprep.subr.mxu0 0.0
        %2545 = vmatpush1.msra.mxu0 0.0
        %2546 = vmatprep.subr.mxu0 0.0
        %2547 = vmatpush1.msra.mxu0 0.0
        %2548 = vmatprep.subr.mxu0 0.0
        %2549 = vmatpush1.msra.mxu0 0.0
        %2550 = vmatprep.subr.mxu0 0.0
        %2551 = vmatpush1.msra.mxu0 0.0
        %2552 = vmatprep.subr.mxu0 0.0
        %2553 = vmatpush1.msra.mxu0 0.0
        %2554 = vmatprep.subr.mxu0 0.0
        %2555 = vmatpush1.msra.mxu0 0.0
        %2556 = vmatprep.subr.mxu0 0.0
        %2557 = vmatpush1.msra.mxu0 0.0
        %2558 = vmatprep.subr.mxu0 0.0
        %2559 = vmatpush1.msra.mxu0 0.0
        %2560 = vmatprep.subr.mxu0 0.0
        %2561 = vmatpush1.msra.mxu0 0.0
        %2562 = vmatprep.subr.mxu0 0.0
        %2563 = vmatpush1.msra.mxu0 0.0
        %2564 = vmatprep.subr.mxu0 0.0
        %2565 = vmatpush1.msra.mxu0 0.0
        %2566 = vmatprep.subr.mxu0 0.0
        %2567 = vmatpush1.msra.mxu0 0.0
        %2568 = vmatprep.subr.mxu0 0.0
        %2569 = vmatpush1.msra.mxu0 0.0
        %2570 = vmatprep.subr.mxu0 0.0
        %2571 = vmatpush1.msra.mxu0 0.0
        %2572 = vmatprep.subr.mxu0 0.0
        %2573 = vmatpush1.msra.mxu0 0.0
        %2574 = vmatprep.subr.mxu0 0.0
        %2575 = vmatpush1.msra.mxu0 0.0
        %2576 = vmatprep.subr.mxu0 0.0
        %2577 = vmatpush1.msra.mxu0 0.0
        %2578 = vmatprep.subr.mxu0 0.0
        %2579 = vmatpush1.msra.mxu0 0.0
        %2580 = vmatprep.subr.mxu0 0.0
        %2581 = vmatpush1.msra.mxu0 0.0
        %2582 = vmatprep.subr.mxu0 0.0
        %2583 = vmatpush1.msra.mxu0 0.0
        %2584 = vmatprep.mubr.f32.mxu0 0.0
        %2585 = vmatmul.mubr.f32.gmra.mrb[0].mxu0 %v2515
        %v2586 = vpop.f32.mrb[0].mxu0
        %v2587 = vadd.f32 0.0, %v2586
        %v2588 = vpop.f32.mrb[0].mxu0
        %2589 = vmatprep.mubr.f32.mxu0 0.0
        %2590 = vmatmul.mubr.f32.gmra.mrb[0].mxu0 %v2518
        %v2591 = vpop.f32.mrb[0].mxu0
        %v2592 = vadd.f32 0.0, %v2591
        %v2593 = vpop.f32.mrb[0].mxu0
        %2594 = vdwg.mxu0
        %v2595 = vsel %vm859, %v2404, 0.0
        %v2596 = vsel %vm859, %v2406, 0.0
        %v2597 = vadd.f32 %v2595, %v2596
        %v2598 = vrot.slane %v2597, 4
        %v2599 = vadd.f32 %v2597, %v2598
        %v2600 = vrot.slane %v2599, 2
        %v2601 = vadd.f32 %v2599, %v2600
        %v2602 = vrot.slane %v2601, 1
        %v2603 = vadd.f32 %v2601, %v2602
        %v2604 = vrsqrt.pop %v2587
        %v2605 = vmul.f32 %v2587, %v2604
        %vm2606 = vcmp.eq.f32.partialorder %v2587, inf
        %v2607 = vsel %vm2606, %v2587, %v2605
        %vm2608 = vcmp.eq.f32.partialorder %v2587, 0.0
        %v2609 = vand.u32 %v2587, 2147483648
        %v2610 = vsel %vm2608, %v2609, %v2607
        %v2611 = vrsqrt.pop %v2592
        %v2612 = vmul.f32 %v2592, %v2611
        %vm2613 = vcmp.eq.f32.partialorder %v2592, inf
        %v2614 = vsel %vm2613, %v2592, %v2612
        %vm2615 = vcmp.eq.f32.partialorder %v2592, 0.0
        %v2616 = vand.u32 %v2592, 2147483648
        %v2617 = vsel %vm2615, %v2616, %v2614
        %v2618 = vrcp.pop %v2610
        %v2619 = vmul.f32 1.0, %v2618
        %v2620 = vrcp.pop %v2617
        %v2621 = vmul.f32 1.0, %v2620
        %v2622 = vrsqrt.pop %v2603
        %v2623 = vmul.f32 %v2603, %v2622
        %vm2624 = vcmp.eq.f32.partialorder %v2603, inf
        %v2625 = vsel %vm2624, %v2603, %v2623
        %vm2626 = vcmp.eq.f32.partialorder %v2603, 0.0
        %v2627 = vand.u32 %v2603, 2147483648
        %v2628 = vsel %vm2626, %v2627, %v2625
        %v2629 = vrcp.pop %v2628
        %v2630 = vmul.f32 1.0, %v2629
        %2632 = vset.pattern.permute.xlu0 0
        %2633 = vperm.xlu0 %2632, %v2619
        %v2634 = vpop.permute.xlu0 %2633
        %2637 = vset.pattern.permute.xlu0 0
        %2638 = vperm.xlu0 %2637, %v2621
        %v2639 = vpop.permute.xlu0 %2638
        %v2641 = vmul.f32 %v2634, %v2404
        %v2642 = vmul.f32 %v2639, %v2406
        %v2643 = vmul.f32 %v2641, %v2630
        %v2644 = vmul.f32 %v2642, %v2630
        %2645 = vxpose.xlu0.b32.start [1/16] %v2643, 128
        %2646 = vxpose.xlu0.b32.cont [2/16] %v2644, 128
        %2647 = vxpose.xlu0.b32.cont [3/16] 0.0, 128
        %2648 = vxpose.xlu0.b32.cont [4/16] 0.0, 128
        %2649 = vxpose.xlu0.b32.cont [5/16] 0.0, 128
        %2650 = vxpose.xlu0.b32.cont [6/16] 0.0, 128
        %2651 = vxpose.xlu0.b32.cont [7/16] 0.0, 128
        %2652 = vxpose.xlu0.b32.cont [8/16] 0.0, 128
        %2653 = vxpose.xlu0.b32.cont [9/16] 0.0, 128
        %2654 = vxpose.xlu0.b32.cont [10/16] 0.0, 128
        %2655 = vxpose.xlu0.b32.cont [11/16] 0.0, 128
        %2656 = vxpose.xlu0.b32.cont [12/16] 0.0, 128
        %2657 = vxpose.xlu0.b32.cont [13/16] 0.0, 128
        %2658 = vxpose.xlu0.b32.cont [14/16] 0.0, 128
        %2659 = vxpose.xlu0.b32.cont [15/16] 0.0, 128
        %2660 = vxpose.xlu0.b32.end [16/16] 0.0, 128
        %v2661 = vpop.trf.xlu0
        %v2662 = vpop.trf.xlu0
        %v2663 = vpop.trf.xlu0
        %v2664 = vpop.trf.xlu0
        %v2665 = vpop.trf.xlu0
        %v2666 = vpop.trf.xlu0
        %v2667 = vpop.trf.xlu0
        %v2668 = vpop.trf.xlu0
        %v2669 = vpop.trf.xlu0
        %v2670 = vpop.trf.xlu0
        %v2671 = vpop.trf.xlu0
        %v2672 = vpop.trf.xlu0
        %v2673 = vpop.trf.xlu0
        %v2674 = vpop.trf.xlu0
        %v2675 = vpop.trf.xlu0
        %v2676 = vpop.trf.xlu0
        %v2678 = vsel %vm859, %v2661, 0
        %v2681 = vsel %vm859, %v2662, 0
        %2683 = vmatprep.subr.mxu0 0.0
        %2684 = vmatpush1.msra.mxu0 %v2474
        %2685 = vmatprep.subr.mxu0 0.0
        %2686 = vmatpush1.msra.mxu0 %v2479
        %2687 = vmatprep.subr.mxu0 0.0
        %2688 = vmatpush1.msra.mxu0 0.0
        %2689 = vmatprep.subr.mxu0 0.0
        %2690 = vmatpush1.msra.mxu0 0.0
        %2691 = vmatprep.subr.mxu0 0.0
        %2692 = vmatpush1.msra.mxu0 0.0
        %2693 = vmatprep.subr.mxu0 0.0
        %2694 = vmatpush1.msra.mxu0 0.0
        %2695 = vmatprep.subr.mxu0 0.0
        %2696 = vmatpush1.msra.mxu0 0.0
        %2697 = vmatprep.subr.mxu0 0.0
        %2698 = vmatpush1.msra.mxu0 0.0
        %2699 = vmatprep.subr.mxu0 0.0
        %2700 = vmatpush1.msra.mxu0 0.0
        %2701 = vmatprep.subr.mxu0 0.0
        %2702 = vmatpush1.msra.mxu0 0.0
        %2703 = vmatprep.subr.mxu0 0.0
        %2704 = vmatpush1.msra.mxu0 0.0
        %2705 = vmatprep.subr.mxu0 0.0
        %2706 = vmatpush1.msra.mxu0 0.0
        %2707 = vmatprep.subr.mxu0 0.0
        %2708 = vmatpush1.msra.mxu0 0.0
        %2709 = vmatprep.subr.mxu0 0.0
        %2710 = vmatpush1.msra.mxu0 0.0
        %2711 = vmatprep.subr.mxu0 0.0
        %2712 = vmatpush1.msra.mxu0 0.0
        %2713 = vmatprep.subr.mxu0 0.0
        %2714 = vmatpush1.msra.mxu0 0.0
        %2715 = vmatprep.subr.mxu0 0.0
        %2716 = vmatpush1.msra.mxu0 0.0
        %2717 = vmatprep.subr.mxu0 0.0
        %2718 = vmatpush1.msra.mxu0 0.0
        %2719 = vmatprep.subr.mxu0 0.0
        %2720 = vmatpush1.msra.mxu0 0.0
        %2721 = vmatprep.subr.mxu0 0.0
        %2722 = vmatpush1.msra.mxu0 0.0
        %2723 = vmatprep.subr.mxu0 0.0
        %2724 = vmatpush1.msra.mxu0 0.0
        %2725 = vmatprep.subr.mxu0 0.0
        %2726 = vmatpush1.msra.mxu0 0.0
        %2727 = vmatprep.subr.mxu0 0.0
        %2728 = vmatpush1.msra.mxu0 0.0
        %2729 = vmatprep.subr.mxu0 0.0
        %2730 = vmatpush1.msra.mxu0 0.0
        %2731 = vmatprep.subr.mxu0 0.0
        %2732 = vmatpush1.msra.mxu0 0.0
        %2733 = vmatprep.subr.mxu0 0.0
        %2734 = vmatpush1.msra.mxu0 0.0
        %2735 = vmatprep.subr.mxu0 0.0
        %2736 = vmatpush1.msra.mxu0 0.0
        %2737 = vmatprep.subr.mxu0 0.0
        %2738 = vmatpush1.msra.mxu0 0.0
        %2739 = vmatprep.subr.mxu0 0.0
        %2740 = vmatpush1.msra.mxu0 0.0
        %2741 = vmatprep.subr.mxu0 0.0
        %2742 = vmatpush1.msra.mxu0 0.0
        %2743 = vmatprep.subr.mxu0 0.0
        %2744 = vmatpush1.msra.mxu0 0.0
        %2745 = vmatprep.subr.mxu0 0.0
        %2746 = vmatpush1.msra.mxu0 0.0
        %2747 = vmatprep.mubr.f32.mxu0 0.0
        %2748 = vmatmul.mubr.f32.gmra.mrb[0].mxu0 %v2678
        %v2749 = vpop.f32.mrb[0].mxu0
        %v2750 = vadd.f32 %v1654, %v2749
        %v2751 = vpop.f32.mrb[0].mxu0
        %2752 = vmatprep.mubr.f32.mxu0 0.0
        %2753 = vmatmul.mubr.f32.gmra.mrb[0].mxu0 %v2681
        %v2754 = vpop.f32.mrb[0].mxu0
        %v2755 = vadd.f32 %v1654, %v2754
        %v2756 = vpop.f32.mrb[0].mxu0
        %2757 = vdwg.mxu0
        %v2758 = vsel %vm1277, %v2750, 0.0
        %v2759 = vsel %vm1277, %v2755, 0.0
        %v2760 = vadd.f32 %v2758, %v2759
        %v2761 = vrot.slane %v2760, 4
        %v2762 = vadd.f32 %v2760, %v2761
        %v2763 = vrot.slane %v2762, 2
        %v2764 = vadd.f32 %v2762, %v2763
        %v2765 = vrot.slane %v2764, 1
        %v2766 = vadd.f32 %v2764, %v2765
        %v2767 = vmul.f32 %v2766, %v1778
        %2769 = vrot.lane.b32.xlu0 %v2767, 32
        %v2770 = vpop.permute.xlu0 %2769
        %v2772 = vsel %vm1277, %v2297, %v2770
        %v2774 = vsel %vm1785, %v2772, 0
        %2776 = vmatprep.subr.mxu0 0.0
        %2777 = vmatpush1.msra.mxu0 %v818
        %2778 = vmatprep.subr.mxu0 0.0
        %2779 = vmatpush1.msra.mxu0 %v819
        %2780 = vmatprep.subr.mxu0 0.0
        %2781 = vmatpush1.msra.mxu0 %v820
        %2782 = vmatprep.subr.mxu0 0.0
        %2783 = vmatpush1.msra.mxu0 %v821
        %2784 = vmatprep.subr.mxu0 0.0
        %2785 = vmatpush1.msra.mxu0 %v822
        %2786 = vmatprep.subr.mxu0 0.0
        %2787 = vmatpush1.msra.mxu0 %v823
        %2788 = vmatprep.subr.mxu0 0.0
        %2789 = vmatpush1.msra.mxu0 %v824
        %2790 = vmatprep.subr.mxu0 0.0
        %2791 = vmatpush1.msra.mxu0 %v825
        %2792 = vmatprep.subr.mxu0 0.0
        %2793 = vmatpush1.msra.mxu0 0.0
        %2794 = vmatprep.subr.mxu0 0.0
        %2795 = vmatpush1.msra.mxu0 0.0
        %2796 = vmatprep.subr.mxu0 0.0
        %2797 = vmatpush1.msra.mxu0 0.0
        %2798 = vmatprep.subr.mxu0 0.0
        %2799 = vmatpush1.msra.mxu0 0.0
        %2800 = vmatprep.subr.mxu0 0.0
        %2801 = vmatpush1.msra.mxu0 0.0
        %2802 = vmatprep.subr.mxu0 0.0
        %2803 = vmatpush1.msra.mxu0 0.0
        %2804 = vmatprep.subr.mxu0 0.0
        %2805 = vmatpush1.msra.mxu0 0.0
        %2806 = vmatprep.subr.mxu0 0.0
        %2807 = vmatpush1.msra.mxu0 0.0
        %2808 = vmatprep.subr.mxu0 0.0
        %2809 = vmatpush1.msra.mxu0 0.0
        %2810 = vmatprep.subr.mxu0 0.0
        %2811 = vmatpush1.msra.mxu0 0.0
        %2812 = vmatprep.subr.mxu0 0.0
        %2813 = vmatpush1.msra.mxu0 0.0
        %2814 = vmatprep.subr.mxu0 0.0
        %2815 = vmatpush1.msra.mxu0 0.0
        %2816 = vmatprep.subr.mxu0 0.0
        %2817 = vmatpush1.msra.mxu0 0.0
        %2818 = vmatprep.subr.mxu0 0.0
        %2819 = vmatpush1.msra.mxu0 0.0
        %2820 = vmatprep.subr.mxu0 0.0
        %2821 = vmatpush1.msra.mxu0 0.0
        %2822 = vmatprep.subr.mxu0 0.0
        %2823 = vmatpush1.msra.mxu0 0.0
        %2824 = vmatprep.subr.mxu0 0.0
        %2825 = vmatpush1.msra.mxu0 0.0
        %2826 = vmatprep.subr.mxu0 0.0
        %2827 = vmatpush1.msra.mxu0 0.0
        %2828 = vmatprep.subr.mxu0 0.0
        %2829 = vmatpush1.msra.mxu0 0.0
        %2830 = vmatprep.subr.mxu0 0.0
        %2831 = vmatpush1.msra.mxu0 0.0
        %2832 = vmatprep.subr.mxu0 0.0
        %2833 = vmatpush1.msra.mxu0 0.0
        %2834 = vmatprep.subr.mxu0 0.0
        %2835 = vmatpush1.msra.mxu0 0.0
        %2836 = vmatprep.subr.mxu0 0.0
        %2837 = vmatpush1.msra.mxu0 0.0
        %2838 = vmatprep.subr.mxu0 0.0
        %2839 = vmatpush1.msra.mxu0 0.0
        %2840 = vmatprep.mubr.f32.mxu0 0.0
        %2841 = vmatmul.mubr.f32.gmra.mrb[0].mxu0 %v2774
        %v2842 = vpop.f32.mrb[0].mxu0
        %v2843 = vadd.f32 %v826, %v2842
        %v2844 = vpop.f32.mrb[0].mxu0
        %2845 = vdwg.mxu0
        %2846 = vxpose.xlu0.b32.start [1/16] %v734, 128
        %2847 = vxpose.xlu0.b32.cont [2/16] %v739, 128
        %2848 = vxpose.xlu0.b32.cont [3/16] 0.0, 128
        %2849 = vxpose.xlu0.b32.cont [4/16] 0.0, 128
        %2850 = vxpose.xlu0.b32.cont [5/16] 0.0, 128
        %2851 = vxpose.xlu0.b32.cont [6/16] 0.0, 128
        %2852 = vxpose.xlu0.b32.cont [7/16] 0.0, 128
        %2853 = vxpose.xlu0.b32.cont [8/16] 0.0, 128
        %2854 = vxpose.xlu0.b32.cont [9/16] 0.0, 128
        %2855 = vxpose.xlu0.b32.cont [10/16] 0.0, 128
        %2856 = vxpose.xlu0.b32.cont [11/16] 0.0, 128
        %2857 = vxpose.xlu0.b32.cont [12/16] 0.0, 128
        %2858 = vxpose.xlu0.b32.cont [13/16] 0.0, 128
        %2859 = vxpose.xlu0.b32.cont [14/16] 0.0, 128
        %2860 = vxpose.xlu0.b32.cont [15/16] 0.0, 128
        %2861 = vxpose.xlu0.b32.end [16/16] 0.0, 128
        %v2862 = vpop.trf.xlu0
        %v2863 = vpop.trf.xlu0
        %v2864 = vpop.trf.xlu0
        %v2865 = vpop.trf.xlu0
        %v2866 = vpop.trf.xlu0
        %v2867 = vpop.trf.xlu0
        %v2868 = vpop.trf.xlu0
        %v2869 = vpop.trf.xlu0
        %v2870 = vpop.trf.xlu0
        %v2871 = vpop.trf.xlu0
        %v2872 = vpop.trf.xlu0
        %v2873 = vpop.trf.xlu0
        %v2874 = vpop.trf.xlu0
        %v2875 = vpop.trf.xlu0
        %v2876 = vpop.trf.xlu0
        %v2877 = vpop.trf.xlu0
        %v2879 = vsel %vm859, %v2862, 0
        %2881 = vmatprep.subr.mxu0 0.0
        %2882 = vmatpush1.msra.mxu0 %v734
        %2883 = vmatprep.subr.mxu0 0.0
        %2884 = vmatpush1.msra.mxu0 %v739
        %2885 = vmatprep.subr.mxu0 0.0
        %2886 = vmatpush1.msra.mxu0 0.0
        %2887 = vmatprep.subr.mxu0 0.0
        %2888 = vmatpush1.msra.mxu0 0.0
        %2889 = vmatprep.subr.mxu0 0.0
        %2890 = vmatpush1.msra.mxu0 0.0
        %2891 = vmatprep.subr.mxu0 0.0
        %2892 = vmatpush1.msra.mxu0 0.0
        %2893 = vmatprep.subr.mxu0 0.0
        %2894 = vmatpush1.msra.mxu0 0.0
        %2895 = vmatprep.subr.mxu0 0.0
        %2896 = vmatpush1.msra.mxu0 0.0
        %2897 = vmatprep.subr.mxu0 0.0
        %2898 = vmatpush1.msra.mxu0 0.0
        %2899 = vmatprep.subr.mxu0 0.0
        %2900 = vmatpush1.msra.mxu0 0.0
        %2901 = vmatprep.subr.mxu0 0.0
        %2902 = vmatpush1.msra.mxu0 0.0
        %2903 = vmatprep.subr.mxu0 0.0
        %2904 = vmatpush1.msra.mxu0 0.0
        %2905 = vmatprep.subr.mxu0 0.0
        %2906 = vmatpush1.msra.mxu0 0.0
        %2907 = vmatprep.subr.mxu0 0.0
        %2908 = vmatpush1.msra.mxu0 0.0
        %2909 = vmatprep.subr.mxu0 0.0
        %2910 = vmatpush1.msra.mxu0 0.0
        %2911 = vmatprep.subr.mxu0 0.0
        %2912 = vmatpush1.msra.mxu0 0.0
        %2913 = vmatprep.subr.mxu0 0.0
        %2914 = vmatpush1.msra.mxu0 0.0
        %2915 = vmatprep.subr.mxu0 0.0
        %2916 = vmatpush1.msra.mxu0 0.0
        %2917 = vmatprep.subr.mxu0 0.0
        %2918 = vmatpush1.msra.mxu0 0.0
        %2919 = vmatprep.subr.mxu0 0.0
        %2920 = vmatpush1.msra.mxu0 0.0
        %2921 = vmatprep.subr.mxu0 0.0
        %2922 = vmatpush1.msra.mxu0 0.0
        %2923 = vmatprep.subr.mxu0 0.0
        %2924 = vmatpush1.msra.mxu0 0.0
        %2925 = vmatprep.subr.mxu0 0.0
        %2926 = vmatpush1.msra.mxu0 0.0
        %2927 = vmatprep.subr.mxu0 0.0
        %2928 = vmatpush1.msra.mxu0 0.0
        %2929 = vmatprep.subr.mxu0 0.0
        %2930 = vmatpush1.msra.mxu0 0.0
        %2931 = vmatprep.subr.mxu0 0.0
        %2932 = vmatpush1.msra.mxu0 0.0
        %2933 = vmatprep.subr.mxu0 0.0
        %2934 = vmatpush1.msra.mxu0 0.0
        %2935 = vmatprep.subr.mxu0 0.0
        %2936 = vmatpush1.msra.mxu0 0.0
        %2937 = vmatprep.subr.mxu0 0.0
        %2938 = vmatpush1.msra.mxu0 0.0
        %2939 = vmatprep.subr.mxu0 0.0
        %2940 = vmatpush1.msra.mxu0 0.0
        %2941 = vmatprep.subr.mxu0 0.0
        %2942 = vmatpush1.msra.mxu0 0.0
        %2943 = vmatprep.subr.mxu0 0.0
        %2944 = vmatpush1.msra.mxu0 0.0
        %2945 = vmatprep.mubr.f32.mxu0 0.0
        %2946 = vmatmul.mubr.f32.gmra.mrb[0].mxu0 %v2879
        %v2947 = vpop.f32.mrb[0].mxu0
        %v2948 = vadd.f32 0.0, %v2947
        %v2949 = vpop.f32.mrb[0].mxu0
        %2950 = vdwg.mxu0
        %v2951 = vmul.f32 %v936, %v2948
        %v2952 = vmul.f32 %v2951, %v943
        %v2953 = vmul.f32 %v2952, 0.25
        %v2954 = vsel %vm947, %v2953, -inf
        %2955 = vmax.xlane.f32.xlu0 %v2954
        %v2956 = vpop.xlane.xlu0 %2955
        %v2957 = vsub.f32 %v2953, %v2956
        %v2958 = vmul.f32 %v2957, 1.442695
        %v2959 = vpow.pop %v2958
        %v2960 = vsel %vm947, %v2959, 0.0
        %2961 = vadd.xlane.f32.xlu0 %v2960
        %v2962 = vpop.xlane.xlu0 %2961
        %v2963 = vrcp.pop %v2962
        %v2964 = vmul.f32 %v2959, %v2963
        %2965 = vmatprep.subr.mxu0 0.0
        %2966 = vmatpush1.msra.mxu0 %v813
        %2967 = vmatprep.subr.mxu0 0.0
        %2968 = vmatpush1.msra.mxu0 %v814
        %2969 = vmatprep.subr.mxu0 0.0
        %2970 = vmatpush1.msra.mxu0 0.0
        %2971 = vmatprep.subr.mxu0 0.0
        %2972 = vmatpush1.msra.mxu0 0.0
        %2973 = vmatprep.subr.mxu0 0.0
        %2974 = vmatpush1.msra.mxu0 0.0
        %2975 = vmatprep.subr.mxu0 0.0
        %2976 = vmatpush1.msra.mxu0 0.0
        %2977 = vmatprep.subr.mxu0 0.0
        %2978 = vmatpush1.msra.mxu0 0.0
        %2979 = vmatprep.subr.mxu0 0.0
        %2980 = vmatpush1.msra.mxu0 0.0
        %2981 = vmatprep.subr.mxu0 0.0
        %2982 = vmatpush1.msra.mxu0 0.0
        %2983 = vmatprep.subr.mxu0 0.0
        %2984 = vmatpush1.msra.mxu0 0.0
        %2985 = vmatprep.subr.mxu0 0.0
        %2986 = vmatpush1.msra.mxu0 0.0
        %2987 = vmatprep.subr.mxu0 0.0
        %2988 = vmatpush1.msra.mxu0 0.0
        %2989 = vmatprep.subr.mxu0 0.0
        %2990 = vmatpush1.msra.mxu0 0.0
        %2991 = vmatprep.subr.mxu0 0.0
        %2992 = vmatpush1.msra.mxu0 0.0
        %2993 = vmatprep.subr.mxu0 0.0
        %2994 = vmatpush1.msra.mxu0 0.0
        %2995 = vmatprep.subr.mxu0 0.0
        %2996 = vmatpush1.msra.mxu0 0.0
        %2997 = vmatprep.subr.mxu0 0.0
        %2998 = vmatpush1.msra.mxu0 0.0
        %2999 = vmatprep.subr.mxu0 0.0
        %3000 = vmatpush1.msra.mxu0 0.0
        %3001 = vmatprep.subr.mxu0 0.0
        %3002 = vmatpush1.msra.mxu0 0.0
        %3003 = vmatprep.subr.mxu0 0.0
        %3004 = vmatpush1.msra.mxu0 0.0
        %3005 = vmatprep.subr.mxu0 0.0
        %3006 = vmatpush1.msra.mxu0 0.0
        %3007 = vmatprep.subr.mxu0 0.0
        %3008 = vmatpush1.msra.mxu0 0.0
        %3009 = vmatprep.subr.mxu0 0.0
        %3010 = vmatpush1.msra.mxu0 0.0
        %3011 = vmatprep.subr.mxu0 0.0
        %3012 = vmatpush1.msra.mxu0 0.0
        %3013 = vmatprep.subr.mxu0 0.0
        %3014 = vmatpush1.msra.mxu0 0.0
        %3015 = vmatprep.subr.mxu0 0.0
        %3016 = vmatpush1.msra.mxu0 0.0
        %3017 = vmatprep.subr.mxu0 0.0
        %3018 = vmatpush1.msra.mxu0 0.0
        %3019 = vmatprep.subr.mxu0 0.0
        %3020 = vmatpush1.msra.mxu0 0.0
        %3021 = vmatprep.subr.mxu0 0.0
        %3022 = vmatpush1.msra.mxu0 0.0
        %3023 = vmatprep.subr.mxu0 0.0
        %3024 = vmatpush1.msra.mxu0 0.0
        %3025 = vmatprep.subr.mxu0 0.0
        %3026 = vmatpush1.msra.mxu0 0.0
        %3027 = vmatprep.subr.mxu0 0.0
        %3028 = vmatpush1.msra.mxu0 0.0
        %3029 = vmatprep.mubr.f32.mxu0 0.0
        %3030 = vmatmul.mubr.f32.gmra.mrb[0].mxu0 %v2879
        %v3031 = vpop.f32.mrb[0].mxu0
        %v3032 = vadd.f32 0.0, %v3031
        %v3033 = vpop.f32.mrb[0].mxu0
        %3034 = vdwg.mxu0
        %3035 = vxpose.xlu0.b32.start [1/16] %v2964, 128
        %3036 = vxpose.xlu0.b32.cont [2/16] 0.0, 128
        %3037 = vxpose.xlu0.b32.cont [3/16] 0.0, 128
        %3038 = vxpose.xlu0.b32.cont [4/16] 0.0, 128
        %3039 = vxpose.xlu0.b32.cont [5/16] 0.0, 128
        %3040 = vxpose.xlu0.b32.cont [6/16] 0.0, 128
        %3041 = vxpose.xlu0.b32.cont [7/16] 0.0, 128
        %3042 = vxpose.xlu0.b32.cont [8/16] 0.0, 128
        %3043 = vxpose.xlu0.b32.cont [9/16] 0.0, 128
        %3044 = vxpose.xlu0.b32.cont [10/16] 0.0, 128
        %3045 = vxpose.xlu0.b32.cont [11/16] 0.0, 128
        %3046 = vxpose.xlu0.b32.cont [12/16] 0.0, 128
        %3047 = vxpose.xlu0.b32.cont [13/16] 0.0, 128
        %3048 = vxpose.xlu0.b32.cont [14/16] 0.0, 128
        %3049 = vxpose.xlu0.b32.cont [15/16] 0.0, 128
        %3050 = vxpose.xlu0.b32.end [16/16] 0.0, 128
        %v3051 = vpop.trf.xlu0
        %v3052 = vpop.trf.xlu0
        %v3053 = vpop.trf.xlu0
        %v3054 = vpop.trf.xlu0
        %v3055 = vpop.trf.xlu0
        %v3056 = vpop.trf.xlu0
        %v3057 = vpop.trf.xlu0
        %v3058 = vpop.trf.xlu0
        %v3059 = vpop.trf.xlu0
        %v3060 = vpop.trf.xlu0
        %v3061 = vpop.trf.xlu0
        %v3062 = vpop.trf.xlu0
        %v3063 = vpop.trf.xlu0
        %v3064 = vpop.trf.xlu0
        %v3065 = vpop.trf.xlu0
        %v3066 = vpop.trf.xlu0
        %v3068 = vsel %vm947, %v3051, 0
        %3070 = vmatprep.subr.mxu0 0.0
        %3071 = vmatpush1.msra.mxu0 1.0
        %3072 = vmatprep.subr.mxu0 0.0
        %3073 = vmatpush1.msra.mxu0 0.0
        %3074 = vmatprep.subr.mxu0 0.0
        %3075 = vmatpush1.msra.mxu0 0.0
        %3076 = vmatprep.subr.mxu0 0.0
        %3077 = vmatpush1.msra.mxu0 0.0
        %3078 = vmatprep.subr.mxu0 0.0
        %3079 = vmatpush1.msra.mxu0 0.0
        %3080 = vmatprep.subr.mxu0 0.0
        %3081 = vmatpush1.msra.mxu0 0.0
        %3082 = vmatprep.subr.mxu0 0.0
        %3083 = vmatpush1.msra.mxu0 0.0
        %3084 = vmatprep.subr.mxu0 0.0
        %3085 = vmatpush1.msra.mxu0 0.0
        %3086 = vmatprep.subr.mxu0 0.0
        %3087 = vmatpush1.msra.mxu0 0.0
        %3088 = vmatprep.subr.mxu0 0.0
        %3089 = vmatpush1.msra.mxu0 0.0
        %3090 = vmatprep.subr.mxu0 0.0
        %3091 = vmatpush1.msra.mxu0 0.0
        %3092 = vmatprep.subr.mxu0 0.0
        %3093 = vmatpush1.msra.mxu0 0.0
        %3094 = vmatprep.subr.mxu0 0.0
        %3095 = vmatpush1.msra.mxu0 0.0
        %3096 = vmatprep.subr.mxu0 0.0
        %3097 = vmatpush1.msra.mxu0 0.0
        %3098 = vmatprep.subr.mxu0 0.0
        %3099 = vmatpush1.msra.mxu0 0.0
        %3100 = vmatprep.subr.mxu0 0.0
        %3101 = vmatpush1.msra.mxu0 0.0
        %3102 = vmatprep.subr.mxu0 0.0
        %3103 = vmatpush1.msra.mxu0 0.0
        %3104 = vmatprep.subr.mxu0 0.0
        %3105 = vmatpush1.msra.mxu0 0.0
        %3106 = vmatprep.subr.mxu0 0.0
        %3107 = vmatpush1.msra.mxu0 0.0
        %3108 = vmatprep.subr.mxu0 0.0
        %3109 = vmatpush1.msra.mxu0 0.0
        %3110 = vmatprep.subr.mxu0 0.0
        %3111 = vmatpush1.msra.mxu0 0.0
        %3112 = vmatprep.subr.mxu0 0.0
        %3113 = vmatpush1.msra.mxu0 0.0
        %3114 = vmatprep.subr.mxu0 0.0
        %3115 = vmatpush1.msra.mxu0 0.0
        %3116 = vmatprep.subr.mxu0 0.0
        %3117 = vmatpush1.msra.mxu0 0.0
        %3118 = vmatprep.subr.mxu0 0.0
        %3119 = vmatpush1.msra.mxu0 0.0
        %3120 = vmatprep.subr.mxu0 0.0
        %3121 = vmatpush1.msra.mxu0 0.0
        %3122 = vmatprep.subr.mxu0 0.0
        %3123 = vmatpush1.msra.mxu0 0.0
        %3124 = vmatprep.subr.mxu0 0.0
        %3125 = vmatpush1.msra.mxu0 0.0
        %3126 = vmatprep.subr.mxu0 0.0
        %3127 = vmatpush1.msra.mxu0 0.0
        %3128 = vmatprep.subr.mxu0 0.0
        %3129 = vmatpush1.msra.mxu0 0.0
        %3130 = vmatprep.subr.mxu0 0.0
        %3131 = vmatpush1.msra.mxu0 0.0
        %3132 = vmatprep.subr.mxu0 0.0
        %3133 = vmatpush1.msra.mxu0 0.0
        %3134 = vmatprep.mubr.f32.mxu0 0.0
        %3135 = vmatmul.mubr.f32.gmra.mrb[0].mxu0 %v3068
        %v3136 = vpop.f32.mrb[0].mxu0
        %v3137 = vadd.f32 0.0, %v3136
        %v3138 = vpop.f32.mrb[0].mxu0
        %3139 = vdwg.mxu0
        %v3140 = vsel %vm947, %v2964, 0.0
        %v3141 = vrot.slane %v3140, 4
        %v3142 = vadd.f32 %v3140, %v3141
        %v3143 = vrot.slane %v3142, 2
        %v3144 = vadd.f32 %v3142, %v3143
        %v3145 = vrot.slane %v3144, 1
        %v3146 = vadd.f32 %v3144, %v3145
        %v3147 = vrsqrt.pop %v3137
        %v3148 = vmul.f32 %v3137, %v3147
        %vm3149 = vcmp.eq.f32.partialorder %v3137, inf
        %v3150 = vsel %vm3149, %v3137, %v3148
        %vm3151 = vcmp.eq.f32.partialorder %v3137, 0.0
        %v3152 = vand.u32 %v3137, 2147483648
        %v3153 = vsel %vm3151, %v3152, %v3150
        %v3154 = vrcp.pop %v3153
        %v3155 = vmul.f32 1.0, %v3154
        %v3156 = vrsqrt.pop %v3146
        %v3157 = vmul.f32 %v3146, %v3156
        %vm3158 = vcmp.eq.f32.partialorder %v3146, inf
        %v3159 = vsel %vm3158, %v3146, %v3157
        %vm3160 = vcmp.eq.f32.partialorder %v3146, 0.0
        %v3161 = vand.u32 %v3146, 2147483648
        %v3162 = vsel %vm3160, %v3161, %v3159
        %v3163 = vrcp.pop %v3162
        %v3164 = vmul.f32 1.0, %v3163
        %3166 = vset.pattern.permute.xlu0 0
        %3167 = vperm.xlu0 %3166, %v3155
        %v3168 = vpop.permute.xlu0 %3167
        %v3170 = vmul.f32 %v3168, %v2964
        %v3171 = vmul.f32 %v3170, %v3164
        %3172 = vxpose.xlu0.b32.start [1/16] %v3171, 128
        %3173 = vxpose.xlu0.b32.cont [2/16] 0.0, 128
        %3174 = vxpose.xlu0.b32.cont [3/16] 0.0, 128
        %3175 = vxpose.xlu0.b32.cont [4/16] 0.0, 128
        %3176 = vxpose.xlu0.b32.cont [5/16] 0.0, 128
        %3177 = vxpose.xlu0.b32.cont [6/16] 0.0, 128
        %3178 = vxpose.xlu0.b32.cont [7/16] 0.0, 128
        %3179 = vxpose.xlu0.b32.cont [8/16] 0.0, 128
        %3180 = vxpose.xlu0.b32.cont [9/16] 0.0, 128
        %3181 = vxpose.xlu0.b32.cont [10/16] 0.0, 128
        %3182 = vxpose.xlu0.b32.cont [11/16] 0.0, 128
        %3183 = vxpose.xlu0.b32.cont [12/16] 0.0, 128
        %3184 = vxpose.xlu0.b32.cont [13/16] 0.0, 128
        %3185 = vxpose.xlu0.b32.cont [14/16] 0.0, 128
        %3186 = vxpose.xlu0.b32.cont [15/16] 0.0, 128
        %3187 = vxpose.xlu0.b32.end [16/16] 0.0, 128
        %v3188 = vpop.trf.xlu0
        %v3189 = vpop.trf.xlu0
        %v3190 = vpop.trf.xlu0
        %v3191 = vpop.trf.xlu0
        %v3192 = vpop.trf.xlu0
        %v3193 = vpop.trf.xlu0
        %v3194 = vpop.trf.xlu0
        %v3195 = vpop.trf.xlu0
        %v3196 = vpop.trf.xlu0
        %v3197 = vpop.trf.xlu0
        %v3198 = vpop.trf.xlu0
        %v3199 = vpop.trf.xlu0
        %v3200 = vpop.trf.xlu0
        %v3201 = vpop.trf.xlu0
        %v3202 = vpop.trf.xlu0
        %v3203 = vpop.trf.xlu0
        %v3205 = vsel %vm947, %v3188, 0
        %3207 = vmatprep.subr.mxu0 0.0
        %3208 = vmatpush1.msra.mxu0 %v3032
        %3209 = vmatprep.subr.mxu0 0.0
        %3210 = vmatpush1.msra.mxu0 0.0
        %3211 = vmatprep.subr.mxu0 0.0
        %3212 = vmatpush1.msra.mxu0 0.0
        %3213 = vmatprep.subr.mxu0 0.0
        %3214 = vmatpush1.msra.mxu0 0.0
        %3215 = vmatprep.subr.mxu0 0.0
        %3216 = vmatpush1.msra.mxu0 0.0
        %3217 = vmatprep.subr.mxu0 0.0
        %3218 = vmatpush1.msra.mxu0 0.0
        %3219 = vmatprep.subr.mxu0 0.0
        %3220 = vmatpush1.msra.mxu0 0.0
        %3221 = vmatprep.subr.mxu0 0.0
        %3222 = vmatpush1.msra.mxu0 0.0
        %3223 = vmatprep.subr.mxu0 0.0
        %3224 = vmatpush1.msra.mxu0 0.0
        %3225 = vmatprep.subr.mxu0 0.0
        %3226 = vmatpush1.msra.mxu0 0.0
        %3227 = vmatprep.subr.mxu0 0.0
        %3228 = vmatpush1.msra.mxu0 0.0
        %3229 = vmatprep.subr.mxu0 0.0
        %3230 = vmatpush1.msra.mxu0 0.0
        %3231 = vmatprep.subr.mxu0 0.0
        %3232 = vmatpush1.msra.mxu0 0.0
        %3233 = vmatprep.subr.mxu0 0.0
        %3234 = vmatpush1.msra.mxu0 0.0
        %3235 = vmatprep.subr.mxu0 0.0
        %3236 = vmatpush1.msra.mxu0 0.0
        %3237 = vmatprep.subr.mxu0 0.0
        %3238 = vmatpush1.msra.mxu0 0.0
        %3239 = vmatprep.subr.mxu0 0.0
        %3240 = vmatpush1.msra.mxu0 0.0
        %3241 = vmatprep.subr.mxu0 0.0
        %3242 = vmatpush1.msra.mxu0 0.0
        %3243 = vmatprep.subr.mxu0 0.0
        %3244 = vmatpush1.msra.mxu0 0.0
        %3245 = vmatprep.subr.mxu0 0.0
        %3246 = vmatpush1.msra.mxu0 0.0
        %3247 = vmatprep.subr.mxu0 0.0
        %3248 = vmatpush1.msra.mxu0 0.0
        %3249 = vmatprep.subr.mxu0 0.0
        %3250 = vmatpush1.msra.mxu0 0.0
        %3251 = vmatprep.subr.mxu0 0.0
        %3252 = vmatpush1.msra.mxu0 0.0
        %3253 = vmatprep.subr.mxu0 0.0
        %3254 = vmatpush1.msra.mxu0 0.0
        %3255 = vmatprep.subr.mxu0 0.0
        %3256 = vmatpush1.msra.mxu0 0.0
        %3257 = vmatprep.subr.mxu0 0.0
        %3258 = vmatpush1.msra.mxu0 0.0
        %3259 = vmatprep.subr.mxu0 0.0
        %3260 = vmatpush1.msra.mxu0 0.0
        %3261 = vmatprep.subr.mxu0 0.0
        %3262 = vmatpush1.msra.mxu0 0.0
        %3263 = vmatprep.subr.mxu0 0.0
        %3264 = vmatpush1.msra.mxu0 0.0
        %3265 = vmatprep.subr.mxu0 0.0
        %3266 = vmatpush1.msra.mxu0 0.0
        %3267 = vmatprep.subr.mxu0 0.0
        %3268 = vmatpush1.msra.mxu0 0.0
        %3269 = vmatprep.subr.mxu0 0.0
        %3270 = vmatpush1.msra.mxu0 0.0
        %3271 = vmatprep.mubr.f32.mxu0 0.0
        %3272 = vmatmul.mubr.f32.gmra.mrb[0].mxu0 %v3205
        %v3273 = vpop.f32.mrb[0].mxu0
        %v3274 = vadd.f32 %v1170, %v3273
        %v3275 = vpop.f32.mrb[0].mxu0
        %3276 = vdwg.mxu0
        %v3277 = vsel %vm1277, %v3274, 0.0
        %v3278 = vrot.slane %v3277, 4
        %v3279 = vadd.f32 %v3277, %v3278
        %v3280 = vrot.slane %v3279, 2
        %v3281 = vadd.f32 %v3279, %v3280
        %v3282 = vrot.slane %v3281, 1
        %v3283 = vadd.f32 %v3281, %v3282
        %v3284 = vmul.f32 %v3283, %v1285
        %v3286 = vsel %vm947, %v796, 0
        %v3289 = vsel %vm947, %v797, 0
        %3291 = vmatprep.subr.mxu0 0.0
        %3292 = vmatpush1.xpose.msra.mxu0 %v3286
        %3293 = vmatprep.subr.mxu0 0.0
        %3294 = vmatpush1.xpose.msra.mxu0 %v3289
        %3295 = vmatprep.subr.mxu0 0.0
        %3296 = vmatpush1.xpose.msra.mxu0 0.0
        %3297 = vmatprep.subr.mxu0 0.0
        %3298 = vmatpush1.xpose.msra.mxu0 0.0
        %3299 = vmatprep.subr.mxu0 0.0
        %3300 = vmatpush1.xpose.msra.mxu0 0.0
        %3301 = vmatprep.subr.mxu0 0.0
        %3302 = vmatpush1.xpose.msra.mxu0 0.0
        %3303 = vmatprep.subr.mxu0 0.0
        %3304 = vmatpush1.xpose.msra.mxu0 0.0
        %3305 = vmatprep.subr.mxu0 0.0
        %3306 = vmatpush1.xpose.msra.mxu0 0.0
        %3307 = vmatprep.subr.mxu0 0.0
        %3308 = vmatpush1.xpose.msra.mxu0 0.0
        %3309 = vmatprep.subr.mxu0 0.0
        %3310 = vmatpush1.xpose.msra.mxu0 0.0
        %3311 = vmatprep.subr.mxu0 0.0
        %3312 = vmatpush1.xpose.msra.mxu0 0.0
        %3313 = vmatprep.subr.mxu0 0.0
        %3314 = vmatpush1.xpose.msra.mxu0 0.0
        %3315 = vmatprep.subr.mxu0 0.0
        %3316 = vmatpush1.xpose.msra.mxu0 0.0
        %3317 = vmatprep.subr.mxu0 0.0
        %3318 = vmatpush1.xpose.msra.mxu0 0.0
        %3319 = vmatprep.subr.mxu0 0.0
        %3320 = vmatpush1.xpose.msra.mxu0 0.0
        %3321 = vmatprep.subr.mxu0 0.0
        %3322 = vmatpush1.xpose.msra.mxu0 0.0
        %3323 = vmatprep.subr.mxu0 0.0
        %3324 = vmatpush1.xpose.msra.mxu0 0.0
        %3325 = vmatprep.subr.mxu0 0.0
        %3326 = vmatpush1.xpose.msra.mxu0 0.0
        %3327 = vmatprep.subr.mxu0 0.0
        %3328 = vmatpush1.xpose.msra.mxu0 0.0
        %3329 = vmatprep.subr.mxu0 0.0
        %3330 = vmatpush1.xpose.msra.mxu0 0.0
        %3331 = vmatprep.subr.mxu0 0.0
        %3332 = vmatpush1.xpose.msra.mxu0 0.0
        %3333 = vmatprep.subr.mxu0 0.0
        %3334 = vmatpush1.xpose.msra.mxu0 0.0
        %3335 = vmatprep.subr.mxu0 0.0
        %3336 = vmatpush1.xpose.msra.mxu0 0.0
        %3337 = vmatprep.subr.mxu0 0.0
        %3338 = vmatpush1.xpose.msra.mxu0 0.0
        %3339 = vmatprep.subr.mxu0 0.0
        %3340 = vmatpush1.xpose.msra.mxu0 0.0
        %3341 = vmatprep.subr.mxu0 0.0
        %3342 = vmatpush1.xpose.msra.mxu0 0.0
        %3343 = vmatprep.subr.mxu0 0.0
        %3344 = vmatpush1.xpose.msra.mxu0 0.0
        %3345 = vmatprep.subr.mxu0 0.0
        %3346 = vmatpush1.xpose.msra.mxu0 0.0
        %3347 = vmatprep.subr.mxu0 0.0
        %3348 = vmatpush1.xpose.msra.mxu0 0.0
        %3349 = vmatprep.subr.mxu0 0.0
        %3350 = vmatpush1.xpose.msra.mxu0 0.0
        %3351 = vmatprep.subr.mxu0 0.0
        %3352 = vmatpush1.xpose.msra.mxu0 0.0
        %3353 = vmatprep.subr.mxu0 0.0
        %3354 = vmatpush1.xpose.msra.mxu0 0.0
        %3355 = vmatprep.mubr.f32.mxu0 0.0
        %3356 = vmatmul.mubr.f32.gmra.mrb[0].mxu0 %v3286
        %v3357 = vpop.f32.mrb[0].mxu0
        %v3358 = vadd.f32 0.0, %v3357
        %v3359 = vpop.f32.mrb[0].mxu0
        %3360 = vmatprep.mubr.f32.mxu0 0.0
        %3361 = vmatmul.mubr.f32.gmra.mrb[0].mxu0 %v3289
        %v3362 = vpop.f32.mrb[0].mxu0
        %v3363 = vadd.f32 0.0, %v3362
        %v3364 = vpop.f32.mrb[0].mxu0
        %3365 = vdwg.mxu0
        %v3366 = vmul.f32 %v1371, %v3358
        %v3367 = vmul.f32 %v1376, %v3363
        %v3368 = vmul.f32 %v3366, %v1384
        %v3369 = vmul.f32 %v3367, %v1384
        %v3370 = vmul.f32 %v3368, 0.35355338
        %v3371 = vmul.f32 %v3369, 0.35355338
        %v3372 = vsel %vm859, %v3370, -inf
        %3373 = vmax.xlane.f32.xlu0 %v3372
        %v3374 = vpop.xlane.xlu0 %3373
        %v3375 = vsel %vm859, %v3371, -inf
        %3376 = vmax.xlane.f32.xlu0 %v3375
        %v3377 = vpop.xlane.xlu0 %3376
        %v3378 = vsub.f32 %v3370, %v3374
        %v3379 = vsub.f32 %v3371, %v3377
        %v3380 = vmul.f32 %v3378, 1.442695
        %v3381 = vpow.pop %v3380
        %v3382 = vmul.f32 %v3379, 1.442695
        %v3383 = vpow.pop %v3382
        %v3384 = vsel %vm859, %v3381, 0.0
        %3385 = vadd.xlane.f32.xlu0 %v3384
        %v3386 = vpop.xlane.xlu0 %3385
        %v3387 = vsel %vm859, %v3383, 0.0
        %3388 = vadd.xlane.f32.xlu0 %v3387
        %v3389 = vpop.xlane.xlu0 %3388
        %v3390 = vrcp.pop %v3386
        %v3391 = vmul.f32 %v3381, %v3390
        %v3392 = vrcp.pop %v3389
        %v3393 = vmul.f32 %v3383, %v3392
        %3394 = vmatprep.subr.mxu0 0.0
        %3395 = vmatpush1.msra.mxu0 %v816
        %3396 = vmatprep.subr.mxu0 0.0
        %3397 = vmatpush1.msra.mxu0 0.0
        %3398 = vmatprep.subr.mxu0 0.0
        %3399 = vmatpush1.msra.mxu0 0.0
        %3400 = vmatprep.subr.mxu0 0.0
        %3401 = vmatpush1.msra.mxu0 0.0
        %3402 = vmatprep.subr.mxu0 0.0
        %3403 = vmatpush1.msra.mxu0 0.0
        %3404 = vmatprep.subr.mxu0 0.0
        %3405 = vmatpush1.msra.mxu0 0.0
        %3406 = vmatprep.subr.mxu0 0.0
        %3407 = vmatpush1.msra.mxu0 0.0
        %3408 = vmatprep.subr.mxu0 0.0
        %3409 = vmatpush1.msra.mxu0 0.0
        %3410 = vmatprep.subr.mxu0 0.0
        %3411 = vmatpush1.msra.mxu0 0.0
        %3412 = vmatprep.subr.mxu0 0.0
        %3413 = vmatpush1.msra.mxu0 0.0
        %3414 = vmatprep.subr.mxu0 0.0
        %3415 = vmatpush1.msra.mxu0 0.0
        %3416 = vmatprep.subr.mxu0 0.0
        %3417 = vmatpush1.msra.mxu0 0.0
        %3418 = vmatprep.subr.mxu0 0.0
        %3419 = vmatpush1.msra.mxu0 0.0
        %3420 = vmatprep.subr.mxu0 0.0
        %3421 = vmatpush1.msra.mxu0 0.0
        %3422 = vmatprep.subr.mxu0 0.0
        %3423 = vmatpush1.msra.mxu0 0.0
        %3424 = vmatprep.subr.mxu0 0.0
        %3425 = vmatpush1.msra.mxu0 0.0
        %3426 = vmatprep.subr.mxu0 0.0
        %3427 = vmatpush1.msra.mxu0 0.0
        %3428 = vmatprep.subr.mxu0 0.0
        %3429 = vmatpush1.msra.mxu0 0.0
        %3430 = vmatprep.subr.mxu0 0.0
        %3431 = vmatpush1.msra.mxu0 0.0
        %3432 = vmatprep.subr.mxu0 0.0
        %3433 = vmatpush1.msra.mxu0 0.0
        %3434 = vmatprep.subr.mxu0 0.0
        %3435 = vmatpush1.msra.mxu0 0.0
        %3436 = vmatprep.subr.mxu0 0.0
        %3437 = vmatpush1.msra.mxu0 0.0
        %3438 = vmatprep.subr.mxu0 0.0
        %3439 = vmatpush1.msra.mxu0 0.0
        %3440 = vmatprep.subr.mxu0 0.0
        %3441 = vmatpush1.msra.mxu0 0.0
        %3442 = vmatprep.subr.mxu0 0.0
        %3443 = vmatpush1.msra.mxu0 0.0
        %3444 = vmatprep.subr.mxu0 0.0
        %3445 = vmatpush1.msra.mxu0 0.0
        %3446 = vmatprep.subr.mxu0 0.0
        %3447 = vmatpush1.msra.mxu0 0.0
        %3448 = vmatprep.subr.mxu0 0.0
        %3449 = vmatpush1.msra.mxu0 0.0
        %3450 = vmatprep.subr.mxu0 0.0
        %3451 = vmatpush1.msra.mxu0 0.0
        %3452 = vmatprep.subr.mxu0 0.0
        %3453 = vmatpush1.msra.mxu0 0.0
        %3454 = vmatprep.subr.mxu0 0.0
        %3455 = vmatpush1.msra.mxu0 0.0
        %3456 = vmatprep.subr.mxu0 0.0
        %3457 = vmatpush1.msra.mxu0 0.0
        %3458 = vmatprep.mubr.f32.mxu0 0.0
        %3459 = vmatmul.mubr.f32.gmra.mrb[0].mxu0 %v3286
        %v3460 = vpop.f32.mrb[0].mxu0
        %v3461 = vadd.f32 0.0, %v3460
        %v3462 = vpop.f32.mrb[0].mxu0
        %3463 = vmatprep.mubr.f32.mxu0 0.0
        %3464 = vmatmul.mubr.f32.gmra.mrb[0].mxu0 %v3289
        %v3465 = vpop.f32.mrb[0].mxu0
        %v3466 = vadd.f32 0.0, %v3465
        %v3467 = vpop.f32.mrb[0].mxu0
        %3468 = vdwg.mxu0
        %3469 = vxpose.xlu0.b32.start [1/16] %v3391, 128
        %3470 = vxpose.xlu0.b32.cont [2/16] %v3393, 128
        %3471 = vxpose.xlu0.b32.cont [3/16] 0.0, 128
        %3472 = vxpose.xlu0.b32.cont [4/16] 0.0, 128
        %3473 = vxpose.xlu0.b32.cont [5/16] 0.0, 128
        %3474 = vxpose.xlu0.b32.cont [6/16] 0.0, 128
        %3475 = vxpose.xlu0.b32.cont [7/16] 0.0, 128
        %3476 = vxpose.xlu0.b32.cont [8/16] 0.0, 128
        %3477 = vxpose.xlu0.b32.cont [9/16] 0.0, 128
        %3478 = vxpose.xlu0.b32.cont [10/16] 0.0, 128
        %3479 = vxpose.xlu0.b32.cont [11/16] 0.0, 128
        %3480 = vxpose.xlu0.b32.cont [12/16] 0.0, 128
        %3481 = vxpose.xlu0.b32.cont [13/16] 0.0, 128
        %3482 = vxpose.xlu0.b32.cont [14/16] 0.0, 128
        %3483 = vxpose.xlu0.b32.cont [15/16] 0.0, 128
        %3484 = vxpose.xlu0.b32.end [16/16] 0.0, 128
        %v3485 = vpop.trf.xlu0
        %v3486 = vpop.trf.xlu0
        %v3487 = vpop.trf.xlu0
        %v3488 = vpop.trf.xlu0
        %v3489 = vpop.trf.xlu0
        %v3490 = vpop.trf.xlu0
        %v3491 = vpop.trf.xlu0
        %v3492 = vpop.trf.xlu0
        %v3493 = vpop.trf.xlu0
        %v3494 = vpop.trf.xlu0
        %v3495 = vpop.trf.xlu0
        %v3496 = vpop.trf.xlu0
        %v3497 = vpop.trf.xlu0
        %v3498 = vpop.trf.xlu0
        %v3499 = vpop.trf.xlu0
        %v3500 = vpop.trf.xlu0
        %v3502 = vsel %vm859, %v3485, 0
        %v3505 = vsel %vm859, %v3486, 0
        %3507 = vmatprep.subr.mxu0 0.0
        %3508 = vmatpush1.msra.mxu0 1.0
        %3509 = vmatprep.subr.mxu0 0.0
        %3510 = vmatpush1.msra.mxu0 1.0
        %3511 = vmatprep.subr.mxu0 0.0
        %3512 = vmatpush1.msra.mxu0 0.0
        %3513 = vmatprep.subr.mxu0 0.0
        %3514 = vmatpush1.msra.mxu0 0.0
        %3515 = vmatprep.subr.mxu0 0.0
        %3516 = vmatpush1.msra.mxu0 0.0
        %3517 = vmatprep.subr.mxu0 0.0
        %3518 = vmatpush1.msra.mxu0 0.0
        %3519 = vmatprep.subr.mxu0 0.0
        %3520 = vmatpush1.msra.mxu0 0.0
        %3521 = vmatprep.subr.mxu0 0.0
        %3522 = vmatpush1.msra.mxu0 0.0
        %3523 = vmatprep.subr.mxu0 0.0
        %3524 = vmatpush1.msra.mxu0 0.0
        %3525 = vmatprep.subr.mxu0 0.0
        %3526 = vmatpush1.msra.mxu0 0.0
        %3527 = vmatprep.subr.mxu0 0.0
        %3528 = vmatpush1.msra.mxu0 0.0
        %3529 = vmatprep.subr.mxu0 0.0
        %3530 = vmatpush1.msra.mxu0 0.0
        %3531 = vmatprep.subr.mxu0 0.0
        %3532 = vmatpush1.msra.mxu0 0.0
        %3533 = vmatprep.subr.mxu0 0.0
        %3534 = vmatpush1.msra.mxu0 0.0
        %3535 = vmatprep.subr.mxu0 0.0
        %3536 = vmatpush1.msra.mxu0 0.0
        %3537 = vmatprep.subr.mxu0 0.0
        %3538 = vmatpush1.msra.mxu0 0.0
        %3539 = vmatprep.subr.mxu0 0.0
        %3540 = vmatpush1.msra.mxu0 0.0
        %3541 = vmatprep.subr.mxu0 0.0
        %3542 = vmatpush1.msra.mxu0 0.0
        %3543 = vmatprep.subr.mxu0 0.0
        %3544 = vmatpush1.msra.mxu0 0.0
        %3545 = vmatprep.subr.mxu0 0.0
        %3546 = vmatpush1.msra.mxu0 0.0
        %3547 = vmatprep.subr.mxu0 0.0
        %3548 = vmatpush1.msra.mxu0 0.0
        %3549 = vmatprep.subr.mxu0 0.0
        %3550 = vmatpush1.msra.mxu0 0.0
        %3551 = vmatprep.subr.mxu0 0.0
        %3552 = vmatpush1.msra.mxu0 0.0
        %3553 = vmatprep.subr.mxu0 0.0
        %3554 = vmatpush1.msra.mxu0 0.0
        %3555 = vmatprep.subr.mxu0 0.0
        %3556 = vmatpush1.msra.mxu0 0.0
        %3557 = vmatprep.subr.mxu0 0.0
        %3558 = vmatpush1.msra.mxu0 0.0
        %3559 = vmatprep.subr.mxu0 0.0
        %3560 = vmatpush1.msra.mxu0 0.0
        %3561 = vmatprep.subr.mxu0 0.0
        %3562 = vmatpush1.msra.mxu0 0.0
        %3563 = vmatprep.subr.mxu0 0.0
        %3564 = vmatpush1.msra.mxu0 0.0
        %3565 = vmatprep.subr.mxu0 0.0
        %3566 = vmatpush1.msra.mxu0 0.0
        %3567 = vmatprep.subr.mxu0 0.0
        %3568 = vmatpush1.msra.mxu0 0.0
        %3569 = vmatprep.subr.mxu0 0.0
        %3570 = vmatpush1.msra.mxu0 0.0
        %3571 = vmatprep.mubr.f32.mxu0 0.0
        %3572 = vmatmul.mubr.f32.gmra.mrb[0].mxu0 %v3502
        %v3573 = vpop.f32.mrb[0].mxu0
        %v3574 = vadd.f32 0.0, %v3573
        %v3575 = vpop.f32.mrb[0].mxu0
        %3576 = vmatprep.mubr.f32.mxu0 0.0
        %3577 = vmatmul.mubr.f32.gmra.mrb[0].mxu0 %v3505
        %v3578 = vpop.f32.mrb[0].mxu0
        %v3579 = vadd.f32 0.0, %v3578
        %v3580 = vpop.f32.mrb[0].mxu0
        %3581 = vdwg.mxu0
        %v3582 = vsel %vm859, %v3391, 0.0
        %v3583 = vsel %vm859, %v3393, 0.0
        %v3584 = vadd.f32 %v3582, %v3583
        %v3585 = vrot.slane %v3584, 4
        %v3586 = vadd.f32 %v3584, %v3585
        %v3587 = vrot.slane %v3586, 2
        %v3588 = vadd.f32 %v3586, %v3587
        %v3589 = vrot.slane %v3588, 1
        %v3590 = vadd.f32 %v3588, %v3589
        %v3591 = vrsqrt.pop %v3574
        %v3592 = vmul.f32 %v3574, %v3591
        %vm3593 = vcmp.eq.f32.partialorder %v3574, inf
        %v3594 = vsel %vm3593, %v3574, %v3592
        %vm3595 = vcmp.eq.f32.partialorder %v3574, 0.0
        %v3596 = vand.u32 %v3574, 2147483648
        %v3597 = vsel %vm3595, %v3596, %v3594
        %v3598 = vrsqrt.pop %v3579
        %v3599 = vmul.f32 %v3579, %v3598
        %vm3600 = vcmp.eq.f32.partialorder %v3579, inf
        %v3601 = vsel %vm3600, %v3579, %v3599
        %vm3602 = vcmp.eq.f32.partialorder %v3579, 0.0
        %v3603 = vand.u32 %v3579, 2147483648
        %v3604 = vsel %vm3602, %v3603, %v3601
        %v3605 = vrcp.pop %v3597
        %v3606 = vmul.f32 1.0, %v3605
        %v3607 = vrcp.pop %v3604
        %v3608 = vmul.f32 1.0, %v3607
        %v3609 = vrsqrt.pop %v3590
        %v3610 = vmul.f32 %v3590, %v3609
        %vm3611 = vcmp.eq.f32.partialorder %v3590, inf
        %v3612 = vsel %vm3611, %v3590, %v3610
        %vm3613 = vcmp.eq.f32.partialorder %v3590, 0.0
        %v3614 = vand.u32 %v3590, 2147483648
        %v3615 = vsel %vm3613, %v3614, %v3612
        %v3616 = vrcp.pop %v3615
        %v3617 = vmul.f32 1.0, %v3616
        %3619 = vset.pattern.permute.xlu0 0
        %3620 = vperm.xlu0 %3619, %v3606
        %v3621 = vpop.permute.xlu0 %3620
        %3624 = vset.pattern.permute.xlu0 0
        %3625 = vperm.xlu0 %3624, %v3608
        %v3626 = vpop.permute.xlu0 %3625
        %v3628 = vmul.f32 %v3621, %v3391
        %v3629 = vmul.f32 %v3626, %v3393
        %v3630 = vmul.f32 %v3628, %v3617
        %v3631 = vmul.f32 %v3629, %v3617
        %3632 = vxpose.xlu0.b32.start [1/16] %v3630, 128
        %3633 = vxpose.xlu0.b32.cont [2/16] %v3631, 128
        %3634 = vxpose.xlu0.b32.cont [3/16] 0.0, 128
        %3635 = vxpose.xlu0.b32.cont [4/16] 0.0, 128
        %3636 = vxpose.xlu0.b32.cont [5/16] 0.0, 128
        %3637 = vxpose.xlu0.b32.cont [6/16] 0.0, 128
        %3638 = vxpose.xlu0.b32.cont [7/16] 0.0, 128
        %3639 = vxpose.xlu0.b32.cont [8/16] 0.0, 128
        %3640 = vxpose.xlu0.b32.cont [9/16] 0.0, 128
        %3641 = vxpose.xlu0.b32.cont [10/16] 0.0, 128
        %3642 = vxpose.xlu0.b32.cont [11/16] 0.0, 128
        %3643 = vxpose.xlu0.b32.cont [12/16] 0.0, 128
        %3644 = vxpose.xlu0.b32.cont [13/16] 0.0, 128
        %3645 = vxpose.xlu0.b32.cont [14/16] 0.0, 128
        %3646 = vxpose.xlu0.b32.cont [15/16] 0.0, 128
        %3647 = vxpose.xlu0.b32.end [16/16] 0.0, 128
        %v3648 = vpop.trf.xlu0
        %v3649 = vpop.trf.xlu0
        %v3650 = vpop.trf.xlu0
        %v3651 = vpop.trf.xlu0
        %v3652 = vpop.trf.xlu0
        %v3653 = vpop.trf.xlu0
        %v3654 = vpop.trf.xlu0
        %v3655 = vpop.trf.xlu0
        %v3656 = vpop.trf.xlu0
        %v3657 = vpop.trf.xlu0
        %v3658 = vpop.trf.xlu0
        %v3659 = vpop.trf.xlu0
        %v3660 = vpop.trf.xlu0
        %v3661 = vpop.trf.xlu0
        %v3662 = vpop.trf.xlu0
        %v3663 = vpop.trf.xlu0
        %v3665 = vsel %vm859, %v3648, 0
        %v3668 = vsel %vm859, %v3649, 0
        %3670 = vmatprep.subr.mxu0 0.0
        %3671 = vmatpush1.msra.mxu0 %v3461
        %3672 = vmatprep.subr.mxu0 0.0
        %3673 = vmatpush1.msra.mxu0 %v3466
        %3674 = vmatprep.subr.mxu0 0.0
        %3675 = vmatpush1.msra.mxu0 0.0
        %3676 = vmatprep.subr.mxu0 0.0
        %3677 = vmatpush1.msra.mxu0 0.0
        %3678 = vmatprep.subr.mxu0 0.0
        %3679 = vmatpush1.msra.mxu0 0.0
        %3680 = vmatprep.subr.mxu0 0.0
        %3681 = vmatpush1.msra.mxu0 0.0
        %3682 = vmatprep.subr.mxu0 0.0
        %3683 = vmatpush1.msra.mxu0 0.0
        %3684 = vmatprep.subr.mxu0 0.0
        %3685 = vmatpush1.msra.mxu0 0.0
        %3686 = vmatprep.subr.mxu0 0.0
        %3687 = vmatpush1.msra.mxu0 0.0
        %3688 = vmatprep.subr.mxu0 0.0
        %3689 = vmatpush1.msra.mxu0 0.0
        %3690 = vmatprep.subr.mxu0 0.0
        %3691 = vmatpush1.msra.mxu0 0.0
        %3692 = vmatprep.subr.mxu0 0.0
        %3693 = vmatpush1.msra.mxu0 0.0
        %3694 = vmatprep.subr.mxu0 0.0
        %3695 = vmatpush1.msra.mxu0 0.0
        %3696 = vmatprep.subr.mxu0 0.0
        %3697 = vmatpush1.msra.mxu0 0.0
        %3698 = vmatprep.subr.mxu0 0.0
        %3699 = vmatpush1.msra.mxu0 0.0
        %3700 = vmatprep.subr.mxu0 0.0
        %3701 = vmatpush1.msra.mxu0 0.0
        %3702 = vmatprep.subr.mxu0 0.0
        %3703 = vmatpush1.msra.mxu0 0.0
        %3704 = vmatprep.subr.mxu0 0.0
        %3705 = vmatpush1.msra.mxu0 0.0
        %3706 = vmatprep.subr.mxu0 0.0
        %3707 = vmatpush1.msra.mxu0 0.0
        %3708 = vmatprep.subr.mxu0 0.0
        %3709 = vmatpush1.msra.mxu0 0.0
        %3710 = vmatprep.subr.mxu0 0.0
        %3711 = vmatpush1.msra.mxu0 0.0
        %3712 = vmatprep.subr.mxu0 0.0
        %3713 = vmatpush1.msra.mxu0 0.0
        %3714 = vmatprep.subr.mxu0 0.0
        %3715 = vmatpush1.msra.mxu0 0.0
        %3716 = vmatprep.subr.mxu0 0.0
        %3717 = vmatpush1.msra.mxu0 0.0
        %3718 = vmatprep.subr.mxu0 0.0
        %3719 = vmatpush1.msra.mxu0 0.0
        %3720 = vmatprep.subr.mxu0 0.0
        %3721 = vmatpush1.msra.mxu0 0.0
        %3722 = vmatprep.subr.mxu0 0.0
        %3723 = vmatpush1.msra.mxu0 0.0
        %3724 = vmatprep.subr.mxu0 0.0
        %3725 = vmatpush1.msra.mxu0 0.0
        %3726 = vmatprep.subr.mxu0 0.0
        %3727 = vmatpush1.msra.mxu0 0.0
        %3728 = vmatprep.subr.mxu0 0.0
        %3729 = vmatpush1.msra.mxu0 0.0
        %3730 = vmatprep.subr.mxu0 0.0
        %3731 = vmatpush1.msra.mxu0 0.0
        %3732 = vmatprep.subr.mxu0 0.0
        %3733 = vmatpush1.msra.mxu0 0.0
        %3734 = vmatprep.mubr.f32.mxu0 0.0
        %3735 = vmatmul.mubr.f32.gmra.mrb[0].mxu0 %v3665
        %v3736 = vpop.f32.mrb[0].mxu0
        %v3737 = vadd.f32 %v1654, %v3736
        %v3738 = vpop.f32.mrb[0].mxu0
        %3739 = vmatprep.mubr.f32.mxu0 0.0
        %3740 = vmatmul.mubr.f32.gmra.mrb[0].mxu0 %v3668
        %v3741 = vpop.f32.mrb[0].mxu0
        %v3742 = vadd.f32 %v1654, %v3741
        %v3743 = vpop.f32.mrb[0].mxu0
        %3744 = vdwg.mxu0
        %v3745 = vsel %vm1277, %v3737, 0.0
        %v3746 = vsel %vm1277, %v3742, 0.0
        %v3747 = vadd.f32 %v3745, %v3746
        %v3748 = vrot.slane %v3747, 4
        %v3749 = vadd.f32 %v3747, %v3748
        %v3750 = vrot.slane %v3749, 2
        %v3751 = vadd.f32 %v3749, %v3750
        %v3752 = vrot.slane %v3751, 1
        %v3753 = vadd.f32 %v3751, %v3752
        %v3754 = vmul.f32 %v3753, %v1778
        %3756 = vrot.lane.b32.xlu0 %v3754, 32
        %v3757 = vpop.permute.xlu0 %3756
        %v3759 = vsel %vm1277, %v3284, %v3757
        %v3761 = vsel %vm1785, %v3759, 0
        %3763 = vmatprep.subr.mxu0 0.0
        %3764 = vmatpush1.msra.mxu0 %v818
        %3765 = vmatprep.subr.mxu0 0.0
        %3766 = vmatpush1.msra.mxu0 %v819
        %3767 = vmatprep.subr.mxu0 0.0
        %3768 = vmatpush1.msra.mxu0 %v820
        %3769 = vmatprep.subr.mxu0 0.0
        %3770 = vmatpush1.msra.mxu0 %v821
        %3771 = vmatprep.subr.mxu0 0.0
        %3772 = vmatpush1.msra.mxu0 %v822
        %3773 = vmatprep.subr.mxu0 0.0
        %3774 = vmatpush1.msra.mxu0 %v823
        %3775 = vmatprep.subr.mxu0 0.0
        %3776 = vmatpush1.msra.mxu0 %v824
        %3777 = vmatprep.subr.mxu0 0.0
        %3778 = vmatpush1.msra.mxu0 %v825
        %3779 = vmatprep.subr.mxu0 0.0
        %3780 = vmatpush1.msra.mxu0 0.0
        %3781 = vmatprep.subr.mxu0 0.0
        %3782 = vmatpush1.msra.mxu0 0.0
        %3783 = vmatprep.subr.mxu0 0.0
        %3784 = vmatpush1.msra.mxu0 0.0
        %3785 = vmatprep.subr.mxu0 0.0
        %3786 = vmatpush1.msra.mxu0 0.0
        %3787 = vmatprep.subr.mxu0 0.0
        %3788 = vmatpush1.msra.mxu0 0.0
        %3789 = vmatprep.subr.mxu0 0.0
        %3790 = vmatpush1.msra.mxu0 0.0
        %3791 = vmatprep.subr.mxu0 0.0
        %3792 = vmatpush1.msra.mxu0 0.0
        %3793 = vmatprep.subr.mxu0 0.0
        %3794 = vmatpush1.msra.mxu0 0.0
        %3795 = vmatprep.subr.mxu0 0.0
        %3796 = vmatpush1.msra.mxu0 0.0
        %3797 = vmatprep.subr.mxu0 0.0
        %3798 = vmatpush1.msra.mxu0 0.0
        %3799 = vmatprep.subr.mxu0 0.0
        %3800 = vmatpush1.msra.mxu0 0.0
        %3801 = vmatprep.subr.mxu0 0.0
        %3802 = vmatpush1.msra.mxu0 0.0
        %3803 = vmatprep.subr.mxu0 0.0
        %3804 = vmatpush1.msra.mxu0 0.0
        %3805 = vmatprep.subr.mxu0 0.0
        %3806 = vmatpush1.msra.mxu0 0.0
        %3807 = vmatprep.subr.mxu0 0.0
        %3808 = vmatpush1.msra.mxu0 0.0
        %3809 = vmatprep.subr.mxu0 0.0
        %3810 = vmatpush1.msra.mxu0 0.0
        %3811 = vmatprep.subr.mxu0 0.0
        %3812 = vmatpush1.msra.mxu0 0.0
        %3813 = vmatprep.subr.mxu0 0.0
        %3814 = vmatpush1.msra.mxu0 0.0
        %3815 = vmatprep.subr.mxu0 0.0
        %3816 = vmatpush1.msra.mxu0 0.0
        %3817 = vmatprep.subr.mxu0 0.0
        %3818 = vmatpush1.msra.mxu0 0.0
        %3819 = vmatprep.subr.mxu0 0.0
        %3820 = vmatpush1.msra.mxu0 0.0
        %3821 = vmatprep.subr.mxu0 0.0
        %3822 = vmatpush1.msra.mxu0 0.0
        %3823 = vmatprep.subr.mxu0 0.0
        %3824 = vmatpush1.msra.mxu0 0.0
        %3825 = vmatprep.subr.mxu0 0.0
        %3826 = vmatpush1.msra.mxu0 0.0
        %3827 = vmatprep.mubr.f32.mxu0 0.0
        %3828 = vmatmul.mubr.f32.gmra.mrb[0].mxu0 %v3761
        %v3829 = vpop.f32.mrb[0].mxu0
        %v3830 = vadd.f32 %v826, %v3829
        %v3831 = vpop.f32.mrb[0].mxu0
        %3832 = vdwg.mxu0
        %3833 = vxpose.xlu0.b32.start [1/16] %v744, 128
        %3834 = vxpose.xlu0.b32.cont [2/16] %v749, 128
        %3835 = vxpose.xlu0.b32.cont [3/16] 0.0, 128
        %3836 = vxpose.xlu0.b32.cont [4/16] 0.0, 128
        %3837 = vxpose.xlu0.b32.cont [5/16] 0.0, 128
        %3838 = vxpose.xlu0.b32.cont [6/16] 0.0, 128
        %3839 = vxpose.xlu0.b32.cont [7/16] 0.0, 128
        %3840 = vxpose.xlu0.b32.cont [8/16] 0.0, 128
        %3841 = vxpose.xlu0.b32.cont [9/16] 0.0, 128
        %3842 = vxpose.xlu0.b32.cont [10/16] 0.0, 128
        %3843 = vxpose.xlu0.b32.cont [11/16] 0.0, 128
        %3844 = vxpose.xlu0.b32.cont [12/16] 0.0, 128
        %3845 = vxpose.xlu0.b32.cont [13/16] 0.0, 128
        %3846 = vxpose.xlu0.b32.cont [14/16] 0.0, 128
        %3847 = vxpose.xlu0.b32.cont [15/16] 0.0, 128
        %3848 = vxpose.xlu0.b32.end [16/16] 0.0, 128
        %v3849 = vpop.trf.xlu0
        %v3850 = vpop.trf.xlu0
        %v3851 = vpop.trf.xlu0
        %v3852 = vpop.trf.xlu0
        %v3853 = vpop.trf.xlu0
        %v3854 = vpop.trf.xlu0
        %v3855 = vpop.trf.xlu0
        %v3856 = vpop.trf.xlu0
        %v3857 = vpop.trf.xlu0
        %v3858 = vpop.trf.xlu0
        %v3859 = vpop.trf.xlu0
        %v3860 = vpop.trf.xlu0
        %v3861 = vpop.trf.xlu0
        %v3862 = vpop.trf.xlu0
        %v3863 = vpop.trf.xlu0
        %v3864 = vpop.trf.xlu0
        %v3866 = vsel %vm859, %v3849, 0
        %3868 = vmatprep.subr.mxu0 0.0
        %3869 = vmatpush1.msra.mxu0 %v744
        %3870 = vmatprep.subr.mxu0 0.0
        %3871 = vmatpush1.msra.mxu0 %v749
        %3872 = vmatprep.subr.mxu0 0.0
        %3873 = vmatpush1.msra.mxu0 0.0
        %3874 = vmatprep.subr.mxu0 0.0
        %3875 = vmatpush1.msra.mxu0 0.0
        %3876 = vmatprep.subr.mxu0 0.0
        %3877 = vmatpush1.msra.mxu0 0.0
        %3878 = vmatprep.subr.mxu0 0.0
        %3879 = vmatpush1.msra.mxu0 0.0
        %3880 = vmatprep.subr.mxu0 0.0
        %3881 = vmatpush1.msra.mxu0 0.0
        %3882 = vmatprep.subr.mxu0 0.0
        %3883 = vmatpush1.msra.mxu0 0.0
        %3884 = vmatprep.subr.mxu0 0.0
        %3885 = vmatpush1.msra.mxu0 0.0
        %3886 = vmatprep.subr.mxu0 0.0
        %3887 = vmatpush1.msra.mxu0 0.0
        %3888 = vmatprep.subr.mxu0 0.0
        %3889 = vmatpush1.msra.mxu0 0.0
        %3890 = vmatprep.subr.mxu0 0.0
        %3891 = vmatpush1.msra.mxu0 0.0
        %3892 = vmatprep.subr.mxu0 0.0
        %3893 = vmatpush1.msra.mxu0 0.0
        %3894 = vmatprep.subr.mxu0 0.0
        %3895 = vmatpush1.msra.mxu0 0.0
        %3896 = vmatprep.subr.mxu0 0.0
        %3897 = vmatpush1.msra.mxu0 0.0
        %3898 = vmatprep.subr.mxu0 0.0
        %3899 = vmatpush1.msra.mxu0 0.0
        %3900 = vmatprep.subr.mxu0 0.0
        %3901 = vmatpush1.msra.mxu0 0.0
        %3902 = vmatprep.subr.mxu0 0.0
        %3903 = vmatpush1.msra.mxu0 0.0
        %3904 = vmatprep.subr.mxu0 0.0
        %3905 = vmatpush1.msra.mxu0 0.0
        %3906 = vmatprep.subr.mxu0 0.0
        %3907 = vmatpush1.msra.mxu0 0.0
        %3908 = vmatprep.subr.mxu0 0.0
        %3909 = vmatpush1.msra.mxu0 0.0
        %3910 = vmatprep.subr.mxu0 0.0
        %3911 = vmatpush1.msra.mxu0 0.0
        %3912 = vmatprep.subr.mxu0 0.0
        %3913 = vmatpush1.msra.mxu0 0.0
        %3914 = vmatprep.subr.mxu0 0.0
        %3915 = vmatpush1.msra.mxu0 0.0
        %3916 = vmatprep.subr.mxu0 0.0
        %3917 = vmatpush1.msra.mxu0 0.0
        %3918 = vmatprep.subr.mxu0 0.0
        %3919 = vmatpush1.msra.mxu0 0.0
        %3920 = vmatprep.subr.mxu0 0.0
        %3921 = vmatpush1.msra.mxu0 0.0
        %3922 = vmatprep.subr.mxu0 0.0
        %3923 = vmatpush1.msra.mxu0 0.0
        %3924 = vmatprep.subr.mxu0 0.0
        %3925 = vmatpush1.msra.mxu0 0.0
        %3926 = vmatprep.subr.mxu0 0.0
        %3927 = vmatpush1.msra.mxu0 0.0
        %3928 = vmatprep.subr.mxu0 0.0
        %3929 = vmatpush1.msra.mxu0 0.0
        %3930 = vmatprep.subr.mxu0 0.0
        %3931 = vmatpush1.msra.mxu0 0.0
        %3932 = vmatprep.mubr.f32.mxu0 0.0
        %3933 = vmatmul.mubr.f32.gmra.mrb[0].mxu0 %v3866
        %v3934 = vpop.f32.mrb[0].mxu0
        %v3935 = vadd.f32 0.0, %v3934
        %v3936 = vpop.f32.mrb[0].mxu0
        %3937 = vdwg.mxu0
        %v3938 = vmul.f32 %v936, %v3935
        %v3939 = vmul.f32 %v3938, %v943
        %v3940 = vmul.f32 %v3939, 0.25
        %v3941 = vsel %vm947, %v3940, -inf
        %3942 = vmax.xlane.f32.xlu0 %v3941
        %v3943 = vpop.xlane.xlu0 %3942
        %v3944 = vsub.f32 %v3940, %v3943
        %v3945 = vmul.f32 %v3944, 1.442695
        %v3946 = vpow.pop %v3945
        %v3947 = vsel %vm947, %v3946, 0.0
        %3948 = vadd.xlane.f32.xlu0 %v3947
        %v3949 = vpop.xlane.xlu0 %3948
        %v3950 = vrcp.pop %v3949
        %v3951 = vmul.f32 %v3946, %v3950
        %3952 = vmatprep.subr.mxu0 0.0
        %3953 = vmatpush1.msra.mxu0 %v813
        %3954 = vmatprep.subr.mxu0 0.0
        %3955 = vmatpush1.msra.mxu0 %v814
        %3956 = vmatprep.subr.mxu0 0.0
        %3957 = vmatpush1.msra.mxu0 0.0
        %3958 = vmatprep.subr.mxu0 0.0
        %3959 = vmatpush1.msra.mxu0 0.0
        %3960 = vmatprep.subr.mxu0 0.0
        %3961 = vmatpush1.msra.mxu0 0.0
        %3962 = vmatprep.subr.mxu0 0.0
        %3963 = vmatpush1.msra.mxu0 0.0
        %3964 = vmatprep.subr.mxu0 0.0
        %3965 = vmatpush1.msra.mxu0 0.0
        %3966 = vmatprep.subr.mxu0 0.0
        %3967 = vmatpush1.msra.mxu0 0.0
        %3968 = vmatprep.subr.mxu0 0.0
        %3969 = vmatpush1.msra.mxu0 0.0
        %3970 = vmatprep.subr.mxu0 0.0
        %3971 = vmatpush1.msra.mxu0 0.0
        %3972 = vmatprep.subr.mxu0 0.0
        %3973 = vmatpush1.msra.mxu0 0.0
        %3974 = vmatprep.subr.mxu0 0.0
        %3975 = vmatpush1.msra.mxu0 0.0
        %3976 = vmatprep.subr.mxu0 0.0
        %3977 = vmatpush1.msra.mxu0 0.0
        %3978 = vmatprep.subr.mxu0 0.0
        %3979 = vmatpush1.msra.mxu0 0.0
        %3980 = vmatprep.subr.mxu0 0.0
        %3981 = vmatpush1.msra.mxu0 0.0
        %3982 = vmatprep.subr.mxu0 0.0
        %3983 = vmatpush1.msra.mxu0 0.0
        %3984 = vmatprep.subr.mxu0 0.0
        %3985 = vmatpush1.msra.mxu0 0.0
        %3986 = vmatprep.subr.mxu0 0.0
        %3987 = vmatpush1.msra.mxu0 0.0
        %3988 = vmatprep.subr.mxu0 0.0
        %3989 = vmatpush1.msra.mxu0 0.0
        %3990 = vmatprep.subr.mxu0 0.0
        %3991 = vmatpush1.msra.mxu0 0.0
        %3992 = vmatprep.subr.mxu0 0.0
        %3993 = vmatpush1.msra.mxu0 0.0
        %3994 = vmatprep.subr.mxu0 0.0
        %3995 = vmatpush1.msra.mxu0 0.0
        %3996 = vmatprep.subr.mxu0 0.0
        %3997 = vmatpush1.msra.mxu0 0.0
        %3998 = vmatprep.subr.mxu0 0.0
        %3999 = vmatpush1.msra.mxu0 0.0
        %4000 = vmatprep.subr.mxu0 0.0
        %4001 = vmatpush1.msra.mxu0 0.0
        %4002 = vmatprep.subr.mxu0 0.0
        %4003 = vmatpush1.msra.mxu0 0.0
        %4004 = vmatprep.subr.mxu0 0.0
        %4005 = vmatpush1.msra.mxu0 0.0
        %4006 = vmatprep.subr.mxu0 0.0
        %4007 = vmatpush1.msra.mxu0 0.0
        %4008 = vmatprep.subr.mxu0 0.0
        %4009 = vmatpush1.msra.mxu0 0.0
        %4010 = vmatprep.subr.mxu0 0.0
        %4011 = vmatpush1.msra.mxu0 0.0
        %4012 = vmatprep.subr.mxu0 0.0
        %4013 = vmatpush1.msra.mxu0 0.0
        %4014 = vmatprep.subr.mxu0 0.0
        %4015 = vmatpush1.msra.mxu0 0.0
        %4016 = vmatprep.mubr.f32.mxu0 0.0
        %4017 = vmatmul.mubr.f32.gmra.mrb[0].mxu0 %v3866
        %v4018 = vpop.f32.mrb[0].mxu0
        %v4019 = vadd.f32 0.0, %v4018
        %v4020 = vpop.f32.mrb[0].mxu0
        %4021 = vdwg.mxu0
        %4022 = vxpose.xlu0.b32.start [1/16] %v3951, 128
        %4023 = vxpose.xlu0.b32.cont [2/16] 0.0, 128
        %4024 = vxpose.xlu0.b32.cont [3/16] 0.0, 128
        %4025 = vxpose.xlu0.b32.cont [4/16] 0.0, 128
        %4026 = vxpose.xlu0.b32.cont [5/16] 0.0, 128
        %4027 = vxpose.xlu0.b32.cont [6/16] 0.0, 128
        %4028 = vxpose.xlu0.b32.cont [7/16] 0.0, 128
        %4029 = vxpose.xlu0.b32.cont [8/16] 0.0, 128
        %4030 = vxpose.xlu0.b32.cont [9/16] 0.0, 128
        %4031 = vxpose.xlu0.b32.cont [10/16] 0.0, 128
        %4032 = vxpose.xlu0.b32.cont [11/16] 0.0, 128
        %4033 = vxpose.xlu0.b32.cont [12/16] 0.0, 128
        %4034 = vxpose.xlu0.b32.cont [13/16] 0.0, 128
        %4035 = vxpose.xlu0.b32.cont [14/16] 0.0, 128
        %4036 = vxpose.xlu0.b32.cont [15/16] 0.0, 128
        %4037 = vxpose.xlu0.b32.end [16/16] 0.0, 128
        %v4038 = vpop.trf.xlu0
        %v4039 = vpop.trf.xlu0
        %v4040 = vpop.trf.xlu0
        %v4041 = vpop.trf.xlu0
        %v4042 = vpop.trf.xlu0
        %v4043 = vpop.trf.xlu0
        %v4044 = vpop.trf.xlu0
        %v4045 = vpop.trf.xlu0
        %v4046 = vpop.trf.xlu0
        %v4047 = vpop.trf.xlu0
        %v4048 = vpop.trf.xlu0
        %v4049 = vpop.trf.xlu0
        %v4050 = vpop.trf.xlu0
        %v4051 = vpop.trf.xlu0
        %v4052 = vpop.trf.xlu0
        %v4053 = vpop.trf.xlu0
        %v4055 = vsel %vm947, %v4038, 0
        %4057 = vmatprep.subr.mxu0 0.0
        %4058 = vmatpush1.msra.mxu0 1.0
        %4059 = vmatprep.subr.mxu0 0.0
        %4060 = vmatpush1.msra.mxu0 0.0
        %4061 = vmatprep.subr.mxu0 0.0
        %4062 = vmatpush1.msra.mxu0 0.0
        %4063 = vmatprep.subr.mxu0 0.0
        %4064 = vmatpush1.msra.mxu0 0.0
        %4065 = vmatprep.subr.mxu0 0.0
        %4066 = vmatpush1.msra.mxu0 0.0
        %4067 = vmatprep.subr.mxu0 0.0
        %4068 = vmatpush1.msra.mxu0 0.0
        %4069 = vmatprep.subr.mxu0 0.0
        %4070 = vmatpush1.msra.mxu0 0.0
        %4071 = vmatprep.subr.mxu0 0.0
        %4072 = vmatpush1.msra.mxu0 0.0
        %4073 = vmatprep.subr.mxu0 0.0
        %4074 = vmatpush1.msra.mxu0 0.0
        %4075 = vmatprep.subr.mxu0 0.0
        %4076 = vmatpush1.msra.mxu0 0.0
        %4077 = vmatprep.subr.mxu0 0.0
        %4078 = vmatpush1.msra.mxu0 0.0
        %4079 = vmatprep.subr.mxu0 0.0
        %4080 = vmatpush1.msra.mxu0 0.0
        %4081 = vmatprep.subr.mxu0 0.0
        %4082 = vmatpush1.msra.mxu0 0.0
        %4083 = vmatprep.subr.mxu0 0.0
        %4084 = vmatpush1.msra.mxu0 0.0
        %4085 = vmatprep.subr.mxu0 0.0
        %4086 = vmatpush1.msra.mxu0 0.0
        %4087 = vmatprep.subr.mxu0 0.0
        %4088 = vmatpush1.msra.mxu0 0.0
        %4089 = vmatprep.subr.mxu0 0.0
        %4090 = vmatpush1.msra.mxu0 0.0
        %4091 = vmatprep.subr.mxu0 0.0
        %4092 = vmatpush1.msra.mxu0 0.0
        %4093 = vmatprep.subr.mxu0 0.0
        %4094 = vmatpush1.msra.mxu0 0.0
        %4095 = vmatprep.subr.mxu0 0.0
        %4096 = vmatpush1.msra.mxu0 0.0
        %4097 = vmatprep.subr.mxu0 0.0
        %4098 = vmatpush1.msra.mxu0 0.0
        %4099 = vmatprep.subr.mxu0 0.0
        %4100 = vmatpush1.msra.mxu0 0.0
        %4101 = vmatprep.subr.mxu0 0.0
        %4102 = vmatpush1.msra.mxu0 0.0
        %4103 = vmatprep.subr.mxu0 0.0
        %4104 = vmatpush1.msra.mxu0 0.0
        %4105 = vmatprep.subr.mxu0 0.0
        %4106 = vmatpush1.msra.mxu0 0.0
        %4107 = vmatprep.subr.mxu0 0.0
        %4108 = vmatpush1.msra.mxu0 0.0
        %4109 = vmatprep.subr.mxu0 0.0
        %4110 = vmatpush1.msra.mxu0 0.0
        %4111 = vmatprep.subr.mxu0 0.0
        %4112 = vmatpush1.msra.mxu0 0.0
        %4113 = vmatprep.subr.mxu0 0.0
        %4114 = vmatpush1.msra.mxu0 0.0
        %4115 = vmatprep.subr.mxu0 0.0
        %4116 = vmatpush1.msra.mxu0 0.0
        %4117 = vmatprep.subr.mxu0 0.0
        %4118 = vmatpush1.msra.mxu0 0.0
        %4119 = vmatprep.subr.mxu0 0.0
        %4120 = vmatpush1.msra.mxu0 0.0
        %4121 = vmatprep.mubr.f32.mxu0 0.0
        %4122 = vmatmul.mubr.f32.gmra.mrb[0].mxu0 %v4055
        %v4123 = vpop.f32.mrb[0].mxu0
        %v4124 = vadd.f32 0.0, %v4123
        %v4125 = vpop.f32.mrb[0].mxu0
        %4126 = vdwg.mxu0
        %v4127 = vsel %vm947, %v3951, 0.0
        %v4128 = vrot.slane %v4127, 4
        %v4129 = vadd.f32 %v4127, %v4128
        %v4130 = vrot.slane %v4129, 2
        %v4131 = vadd.f32 %v4129, %v4130
        %v4132 = vrot.slane %v4131, 1
        %v4133 = vadd.f32 %v4131, %v4132
        %v4134 = vrsqrt.pop %v4124
        %v4135 = vmul.f32 %v4124, %v4134
        %vm4136 = vcmp.eq.f32.partialorder %v4124, inf
        %v4137 = vsel %vm4136, %v4124, %v4135
        %vm4138 = vcmp.eq.f32.partialorder %v4124, 0.0
        %v4139 = vand.u32 %v4124, 2147483648
        %v4140 = vsel %vm4138, %v4139, %v4137
        %v4141 = vrcp.pop %v4140
        %v4142 = vmul.f32 1.0, %v4141
        %v4143 = vrsqrt.pop %v4133
        %v4144 = vmul.f32 %v4133, %v4143
        %vm4145 = vcmp.eq.f32.partialorder %v4133, inf
        %v4146 = vsel %vm4145, %v4133, %v4144
        %vm4147 = vcmp.eq.f32.partialorder %v4133, 0.0
        %v4148 = vand.u32 %v4133, 2147483648
        %v4149 = vsel %vm4147, %v4148, %v4146
        %v4150 = vrcp.pop %v4149
        %v4151 = vmul.f32 1.0, %v4150
        %4153 = vset.pattern.permute.xlu0 0
        %4154 = vperm.xlu0 %4153, %v4142
        %v4155 = vpop.permute.xlu0 %4154
        %v4157 = vmul.f32 %v4155, %v3951
        %v4158 = vmul.f32 %v4157, %v4151
        %4159 = vxpose.xlu0.b32.start [1/16] %v4158, 128
        %4160 = vxpose.xlu0.b32.cont [2/16] 0.0, 128
        %4161 = vxpose.xlu0.b32.cont [3/16] 0.0, 128
        %4162 = vxpose.xlu0.b32.cont [4/16] 0.0, 128
        %4163 = vxpose.xlu0.b32.cont [5/16] 0.0, 128
        %4164 = vxpose.xlu0.b32.cont [6/16] 0.0, 128
        %4165 = vxpose.xlu0.b32.cont [7/16] 0.0, 128
        %4166 = vxpose.xlu0.b32.cont [8/16] 0.0, 128
        %4167 = vxpose.xlu0.b32.cont [9/16] 0.0, 128
        %4168 = vxpose.xlu0.b32.cont [10/16] 0.0, 128
        %4169 = vxpose.xlu0.b32.cont [11/16] 0.0, 128
        %4170 = vxpose.xlu0.b32.cont [12/16] 0.0, 128
        %4171 = vxpose.xlu0.b32.cont [13/16] 0.0, 128
        %4172 = vxpose.xlu0.b32.cont [14/16] 0.0, 128
        %4173 = vxpose.xlu0.b32.cont [15/16] 0.0, 128
        %4174 = vxpose.xlu0.b32.end [16/16] 0.0, 128
        %v4175 = vpop.trf.xlu0
        %v4176 = vpop.trf.xlu0
        %v4177 = vpop.trf.xlu0
        %v4178 = vpop.trf.xlu0
        %v4179 = vpop.trf.xlu0
        %v4180 = vpop.trf.xlu0
        %v4181 = vpop.trf.xlu0
        %v4182 = vpop.trf.xlu0
        %v4183 = vpop.trf.xlu0
        %v4184 = vpop.trf.xlu0
        %v4185 = vpop.trf.xlu0
        %v4186 = vpop.trf.xlu0
        %v4187 = vpop.trf.xlu0
        %v4188 = vpop.trf.xlu0
        %v4189 = vpop.trf.xlu0
        %v4190 = vpop.trf.xlu0
        %v4192 = vsel %vm947, %v4175, 0
        %4194 = vmatprep.subr.mxu0 0.0
        %4195 = vmatpush1.msra.mxu0 %v4019
        %4196 = vmatprep.subr.mxu0 0.0
        %4197 = vmatpush1.msra.mxu0 0.0
        %4198 = vmatprep.subr.mxu0 0.0
        %4199 = vmatpush1.msra.mxu0 0.0
        %4200 = vmatprep.subr.mxu0 0.0
        %4201 = vmatpush1.msra.mxu0 0.0
        %4202 = vmatprep.subr.mxu0 0.0
        %4203 = vmatpush1.msra.mxu0 0.0
        %4204 = vmatprep.subr.mxu0 0.0
        %4205 = vmatpush1.msra.mxu0 0.0
        %4206 = vmatprep.subr.mxu0 0.0
        %4207 = vmatpush1.msra.mxu0 0.0
        %4208 = vmatprep.subr.mxu0 0.0
        %4209 = vmatpush1.msra.mxu0 0.0
        %4210 = vmatprep.subr.mxu0 0.0
        %4211 = vmatpush1.msra.mxu0 0.0
        %4212 = vmatprep.subr.mxu0 0.0
        %4213 = vmatpush1.msra.mxu0 0.0
        %4214 = vmatprep.subr.mxu0 0.0
        %4215 = vmatpush1.msra.mxu0 0.0
        %4216 = vmatprep.subr.mxu0 0.0
        %4217 = vmatpush1.msra.mxu0 0.0
        %4218 = vmatprep.subr.mxu0 0.0
        %4219 = vmatpush1.msra.mxu0 0.0
        %4220 = vmatprep.subr.mxu0 0.0
        %4221 = vmatpush1.msra.mxu0 0.0
        %4222 = vmatprep.subr.mxu0 0.0
        %4223 = vmatpush1.msra.mxu0 0.0
        %4224 = vmatprep.subr.mxu0 0.0
        %4225 = vmatpush1.msra.mxu0 0.0
        %4226 = vmatprep.subr.mxu0 0.0
        %4227 = vmatpush1.msra.mxu0 0.0
        %4228 = vmatprep.subr.mxu0 0.0
        %4229 = vmatpush1.msra.mxu0 0.0
        %4230 = vmatprep.subr.mxu0 0.0
        %4231 = vmatpush1.msra.mxu0 0.0
        %4232 = vmatprep.subr.mxu0 0.0
        %4233 = vmatpush1.msra.mxu0 0.0
        %4234 = vmatprep.subr.mxu0 0.0
        %4235 = vmatpush1.msra.mxu0 0.0
        %4236 = vmatprep.subr.mxu0 0.0
        %4237 = vmatpush1.msra.mxu0 0.0
        %4238 = vmatprep.subr.mxu0 0.0
        %4239 = vmatpush1.msra.mxu0 0.0
        %4240 = vmatprep.subr.mxu0 0.0
        %4241 = vmatpush1.msra.mxu0 0.0
        %4242 = vmatprep.subr.mxu0 0.0
        %4243 = vmatpush1.msra.mxu0 0.0
        %4244 = vmatprep.subr.mxu0 0.0
        %4245 = vmatpush1.msra.mxu0 0.0
        %4246 = vmatprep.subr.mxu0 0.0
        %4247 = vmatpush1.msra.mxu0 0.0
        %4248 = vmatprep.subr.mxu0 0.0
        %4249 = vmatpush1.msra.mxu0 0.0
        %4250 = vmatprep.subr.mxu0 0.0
        %4251 = vmatpush1.msra.mxu0 0.0
        %4252 = vmatprep.subr.mxu0 0.0
        %4253 = vmatpush1.msra.mxu0 0.0
        %4254 = vmatprep.subr.mxu0 0.0
        %4255 = vmatpush1.msra.mxu0 0.0
        %4256 = vmatprep.subr.mxu0 0.0
        %4257 = vmatpush1.msra.mxu0 0.0
        %4258 = vmatprep.mubr.f32.mxu0 0.0
        %4259 = vmatmul.mubr.f32.gmra.mrb[0].mxu0 %v4192
        %v4260 = vpop.f32.mrb[0].mxu0
        %v4261 = vadd.f32 %v1170, %v4260
        %v4262 = vpop.f32.mrb[0].mxu0
        %4263 = vdwg.mxu0
        %v4264 = vsel %vm1277, %v4261, 0.0
        %v4265 = vrot.slane %v4264, 4
        %v4266 = vadd.f32 %v4264, %v4265
        %v4267 = vrot.slane %v4266, 2
        %v4268 = vadd.f32 %v4266, %v4267
        %v4269 = vrot.slane %v4268, 1
        %v4270 = vadd.f32 %v4268, %v4269
        %v4271 = vmul.f32 %v4270, %v1285
        %v4273 = vsel %vm947, %v798, 0
        %v4276 = vsel %vm947, %v799, 0
        %4278 = vmatprep.subr.mxu0 0.0
        %4279 = vmatpush1.xpose.msra.mxu0 %v4273
        %4280 = vmatprep.subr.mxu0 0.0
        %4281 = vmatpush1.xpose.msra.mxu0 %v4276
        %4282 = vmatprep.subr.mxu0 0.0
        %4283 = vmatpush1.xpose.msra.mxu0 0.0
        %4284 = vmatprep.subr.mxu0 0.0
        %4285 = vmatpush1.xpose.msra.mxu0 0.0
        %4286 = vmatprep.subr.mxu0 0.0
        %4287 = vmatpush1.xpose.msra.mxu0 0.0
        %4288 = vmatprep.subr.mxu0 0.0
        %4289 = vmatpush1.xpose.msra.mxu0 0.0
        %4290 = vmatprep.subr.mxu0 0.0
        %4291 = vmatpush1.xpose.msra.mxu0 0.0
        %4292 = vmatprep.subr.mxu0 0.0
        %4293 = vmatpush1.xpose.msra.mxu0 0.0
        %4294 = vmatprep.subr.mxu0 0.0
        %4295 = vmatpush1.xpose.msra.mxu0 0.0
        %4296 = vmatprep.subr.mxu0 0.0
        %4297 = vmatpush1.xpose.msra.mxu0 0.0
        %4298 = vmatprep.subr.mxu0 0.0
        %4299 = vmatpush1.xpose.msra.mxu0 0.0
        %4300 = vmatprep.subr.mxu0 0.0
        %4301 = vmatpush1.xpose.msra.mxu0 0.0
        %4302 = vmatprep.subr.mxu0 0.0
        %4303 = vmatpush1.xpose.msra.mxu0 0.0
        %4304 = vmatprep.subr.mxu0 0.0
        %4305 = vmatpush1.xpose.msra.mxu0 0.0
        %4306 = vmatprep.subr.mxu0 0.0
        %4307 = vmatpush1.xpose.msra.mxu0 0.0
        %4308 = vmatprep.subr.mxu0 0.0
        %4309 = vmatpush1.xpose.msra.mxu0 0.0
        %4310 = vmatprep.subr.mxu0 0.0
        %4311 = vmatpush1.xpose.msra.mxu0 0.0
        %4312 = vmatprep.subr.mxu0 0.0
        %4313 = vmatpush1.xpose.msra.mxu0 0.0
        %4314 = vmatprep.subr.mxu0 0.0
        %4315 = vmatpush1.xpose.msra.mxu0 0.0
        %4316 = vmatprep.subr.mxu0 0.0
        %4317 = vmatpush1.xpose.msra.mxu0 0.0
        %4318 = vmatprep.subr.mxu0 0.0
        %4319 = vmatpush1.xpose.msra.mxu0 0.0
        %4320 = vmatprep.subr.mxu0 0.0
        %4321 = vmatpush1.xpose.msra.mxu0 0.0
        %4322 = vmatprep.subr.mxu0 0.0
        %4323 = vmatpush1.xpose.msra.mxu0 0.0
        %4324 = vmatprep.subr.mxu0 0.0
        %4325 = vmatpush1.xpose.msra.mxu0 0.0
        %4326 = vmatprep.subr.mxu0 0.0
        %4327 = vmatpush1.xpose.msra.mxu0 0.0
        %4328 = vmatprep.subr.mxu0 0.0
        %4329 = vmatpush1.xpose.msra.mxu0 0.0
        %4330 = vmatprep.subr.mxu0 0.0
        %4331 = vmatpush1.xpose.msra.mxu0 0.0
        %4332 = vmatprep.subr.mxu0 0.0
        %4333 = vmatpush1.xpose.msra.mxu0 0.0
        %4334 = vmatprep.subr.mxu0 0.0
        %4335 = vmatpush1.xpose.msra.mxu0 0.0
        %4336 = vmatprep.subr.mxu0 0.0
        %4337 = vmatpush1.xpose.msra.mxu0 0.0
        %4338 = vmatprep.subr.mxu0 0.0
        %4339 = vmatpush1.xpose.msra.mxu0 0.0
        %4340 = vmatprep.subr.mxu0 0.0
        %4341 = vmatpush1.xpose.msra.mxu0 0.0
        %4342 = vmatprep.mubr.f32.mxu0 0.0
        %4343 = vmatmul.mubr.f32.gmra.mrb[0].mxu0 %v4273
        %v4344 = vpop.f32.mrb[0].mxu0
        %v4345 = vadd.f32 0.0, %v4344
        %v4346 = vpop.f32.mrb[0].mxu0
        %4347 = vmatprep.mubr.f32.mxu0 0.0
        %4348 = vmatmul.mubr.f32.gmra.mrb[0].mxu0 %v4276
        %v4349 = vpop.f32.mrb[0].mxu0
        %v4350 = vadd.f32 0.0, %v4349
        %v4351 = vpop.f32.mrb[0].mxu0
        %4352 = vdwg.mxu0
        %v4353 = vmul.f32 %v1371, %v4345
        %v4354 = vmul.f32 %v1376, %v4350
        %v4355 = vmul.f32 %v4353, %v1384
        %v4356 = vmul.f32 %v4354, %v1384
        %v4357 = vmul.f32 %v4355, 0.35355338
        %v4358 = vmul.f32 %v4356, 0.35355338
        %v4359 = vsel %vm859, %v4357, -inf
        %4360 = vmax.xlane.f32.xlu0 %v4359
        %v4361 = vpop.xlane.xlu0 %4360
        %v4362 = vsel %vm859, %v4358, -inf
        %4363 = vmax.xlane.f32.xlu0 %v4362
        %v4364 = vpop.xlane.xlu0 %4363
        %v4365 = vsub.f32 %v4357, %v4361
        %v4366 = vsub.f32 %v4358, %v4364
        %v4367 = vmul.f32 %v4365, 1.442695
        %v4368 = vpow.pop %v4367
        %v4369 = vmul.f32 %v4366, 1.442695
        %v4370 = vpow.pop %v4369
        %v4371 = vsel %vm859, %v4368, 0.0
        %4372 = vadd.xlane.f32.xlu0 %v4371
        %v4373 = vpop.xlane.xlu0 %4372
        %v4374 = vsel %vm859, %v4370, 0.0
        %4375 = vadd.xlane.f32.xlu0 %v4374
        %v4376 = vpop.xlane.xlu0 %4375
        %v4377 = vrcp.pop %v4373
        %v4378 = vmul.f32 %v4368, %v4377
        %v4379 = vrcp.pop %v4376
        %v4380 = vmul.f32 %v4370, %v4379
        %4381 = vmatprep.subr.mxu0 0.0
        %4382 = vmatpush1.msra.mxu0 %v816
        %4383 = vmatprep.subr.mxu0 0.0
        %4384 = vmatpush1.msra.mxu0 0.0
        %4385 = vmatprep.subr.mxu0 0.0
        %4386 = vmatpush1.msra.mxu0 0.0
        %4387 = vmatprep.subr.mxu0 0.0
        %4388 = vmatpush1.msra.mxu0 0.0
        %4389 = vmatprep.subr.mxu0 0.0
        %4390 = vmatpush1.msra.mxu0 0.0
        %4391 = vmatprep.subr.mxu0 0.0
        %4392 = vmatpush1.msra.mxu0 0.0
        %4393 = vmatprep.subr.mxu0 0.0
        %4394 = vmatpush1.msra.mxu0 0.0
        %4395 = vmatprep.subr.mxu0 0.0
        %4396 = vmatpush1.msra.mxu0 0.0
        %4397 = vmatprep.subr.mxu0 0.0
        %4398 = vmatpush1.msra.mxu0 0.0
        %4399 = vmatprep.subr.mxu0 0.0
        %4400 = vmatpush1.msra.mxu0 0.0
        %4401 = vmatprep.subr.mxu0 0.0
        %4402 = vmatpush1.msra.mxu0 0.0
        %4403 = vmatprep.subr.mxu0 0.0
        %4404 = vmatpush1.msra.mxu0 0.0
        %4405 = vmatprep.subr.mxu0 0.0
        %4406 = vmatpush1.msra.mxu0 0.0
        %4407 = vmatprep.subr.mxu0 0.0
        %4408 = vmatpush1.msra.mxu0 0.0
        %4409 = vmatprep.subr.mxu0 0.0
        %4410 = vmatpush1.msra.mxu0 0.0
        %4411 = vmatprep.subr.mxu0 0.0
        %4412 = vmatpush1.msra.mxu0 0.0
        %4413 = vmatprep.subr.mxu0 0.0
        %4414 = vmatpush1.msra.mxu0 0.0
        %4415 = vmatprep.subr.mxu0 0.0
        %4416 = vmatpush1.msra.mxu0 0.0
        %4417 = vmatprep.subr.mxu0 0.0
        %4418 = vmatpush1.msra.mxu0 0.0
        %4419 = vmatprep.subr.mxu0 0.0
        %4420 = vmatpush1.msra.mxu0 0.0
        %4421 = vmatprep.subr.mxu0 0.0
        %4422 = vmatpush1.msra.mxu0 0.0
        %4423 = vmatprep.subr.mxu0 0.0
        %4424 = vmatpush1.msra.mxu0 0.0
        %4425 = vmatprep.subr.mxu0 0.0
        %4426 = vmatpush1.msra.mxu0 0.0
        %4427 = vmatprep.subr.mxu0 0.0
        %4428 = vmatpush1.msra.mxu0 0.0
        %4429 = vmatprep.subr.mxu0 0.0
        %4430 = vmatpush1.msra.mxu0 0.0
        %4431 = vmatprep.subr.mxu0 0.0
        %4432 = vmatpush1.msra.mxu0 0.0
        %4433 = vmatprep.subr.mxu0 0.0
        %4434 = vmatpush1.msra.mxu0 0.0
        %4435 = vmatprep.subr.mxu0 0.0
        %4436 = vmatpush1.msra.mxu0 0.0
        %4437 = vmatprep.subr.mxu0 0.0
        %4438 = vmatpush1.msra.mxu0 0.0
        %4439 = vmatprep.subr.mxu0 0.0
        %4440 = vmatpush1.msra.mxu0 0.0
        %4441 = vmatprep.subr.mxu0 0.0
        %4442 = vmatpush1.msra.mxu0 0.0
        %4443 = vmatprep.subr.mxu0 0.0
        %4444 = vmatpush1.msra.mxu0 0.0
        %4445 = vmatprep.mubr.f32.mxu0 0.0
        %4446 = vmatmul.mubr.f32.gmra.mrb[0].mxu0 %v4273
        %v4447 = vpop.f32.mrb[0].mxu0
        %v4448 = vadd.f32 0.0, %v4447
        %v4449 = vpop.f32.mrb[0].mxu0
        %4450 = vmatprep.mubr.f32.mxu0 0.0
        %4451 = vmatmul.mubr.f32.gmra.mrb[0].mxu0 %v4276
        %v4452 = vpop.f32.mrb[0].mxu0
        %v4453 = vadd.f32 0.0, %v4452
        %v4454 = vpop.f32.mrb[0].mxu0
        %4455 = vdwg.mxu0
        %4456 = vxpose.xlu0.b32.start [1/16] %v4378, 128
        %4457 = vxpose.xlu0.b32.cont [2/16] %v4380, 128
        %4458 = vxpose.xlu0.b32.cont [3/16] 0.0, 128
        %4459 = vxpose.xlu0.b32.cont [4/16] 0.0, 128
        %4460 = vxpose.xlu0.b32.cont [5/16] 0.0, 128
        %4461 = vxpose.xlu0.b32.cont [6/16] 0.0, 128
        %4462 = vxpose.xlu0.b32.cont [7/16] 0.0, 128
        %4463 = vxpose.xlu0.b32.cont [8/16] 0.0, 128
        %4464 = vxpose.xlu0.b32.cont [9/16] 0.0, 128
        %4465 = vxpose.xlu0.b32.cont [10/16] 0.0, 128
        %4466 = vxpose.xlu0.b32.cont [11/16] 0.0, 128
        %4467 = vxpose.xlu0.b32.cont [12/16] 0.0, 128
        %4468 = vxpose.xlu0.b32.cont [13/16] 0.0, 128
        %4469 = vxpose.xlu0.b32.cont [14/16] 0.0, 128
        %4470 = vxpose.xlu0.b32.cont [15/16] 0.0, 128
        %4471 = vxpose.xlu0.b32.end [16/16] 0.0, 128
        %v4472 = vpop.trf.xlu0
        %v4473 = vpop.trf.xlu0
        %v4474 = vpop.trf.xlu0
        %v4475 = vpop.trf.xlu0
        %v4476 = vpop.trf.xlu0
        %v4477 = vpop.trf.xlu0
        %v4478 = vpop.trf.xlu0
        %v4479 = vpop.trf.xlu0
        %v4480 = vpop.trf.xlu0
        %v4481 = vpop.trf.xlu0
        %v4482 = vpop.trf.xlu0
        %v4483 = vpop.trf.xlu0
        %v4484 = vpop.trf.xlu0
        %v4485 = vpop.trf.xlu0
        %v4486 = vpop.trf.xlu0
        %v4487 = vpop.trf.xlu0
        %v4489 = vsel %vm859, %v4472, 0
        %v4492 = vsel %vm859, %v4473, 0
        %4494 = vmatprep.subr.mxu0 0.0
        %4495 = vmatpush1.msra.mxu0 1.0
        %4496 = vmatprep.subr.mxu0 0.0
        %4497 = vmatpush1.msra.mxu0 1.0
        %4498 = vmatprep.subr.mxu0 0.0
        %4499 = vmatpush1.msra.mxu0 0.0
        %4500 = vmatprep.subr.mxu0 0.0
        %4501 = vmatpush1.msra.mxu0 0.0
        %4502 = vmatprep.subr.mxu0 0.0
        %4503 = vmatpush1.msra.mxu0 0.0
        %4504 = vmatprep.subr.mxu0 0.0
        %4505 = vmatpush1.msra.mxu0 0.0
        %4506 = vmatprep.subr.mxu0 0.0
        %4507 = vmatpush1.msra.mxu0 0.0
        %4508 = vmatprep.subr.mxu0 0.0
        %4509 = vmatpush1.msra.mxu0 0.0
        %4510 = vmatprep.subr.mxu0 0.0
        %4511 = vmatpush1.msra.mxu0 0.0
        %4512 = vmatprep.subr.mxu0 0.0
        %4513 = vmatpush1.msra.mxu0 0.0
        %4514 = vmatprep.subr.mxu0 0.0
        %4515 = vmatpush1.msra.mxu0 0.0
        %4516 = vmatprep.subr.mxu0 0.0
        %4517 = vmatpush1.msra.mxu0 0.0
        %4518 = vmatprep.subr.mxu0 0.0
        %4519 = vmatpush1.msra.mxu0 0.0
        %4520 = vmatprep.subr.mxu0 0.0
        %4521 = vmatpush1.msra.mxu0 0.0
        %4522 = vmatprep.subr.mxu0 0.0
        %4523 = vmatpush1.msra.mxu0 0.0
        %4524 = vmatprep.subr.mxu0 0.0
        %4525 = vmatpush1.msra.mxu0 0.0
        %4526 = vmatprep.subr.mxu0 0.0
        %4527 = vmatpush1.msra.mxu0 0.0
        %4528 = vmatprep.subr.mxu0 0.0
        %4529 = vmatpush1.msra.mxu0 0.0
        %4530 = vmatprep.subr.mxu0 0.0
        %4531 = vmatpush1.msra.mxu0 0.0
        %4532 = vmatprep.subr.mxu0 0.0
        %4533 = vmatpush1.msra.mxu0 0.0
        %4534 = vmatprep.subr.mxu0 0.0
        %4535 = vmatpush1.msra.mxu0 0.0
        %4536 = vmatprep.subr.mxu0 0.0
        %4537 = vmatpush1.msra.mxu0 0.0
        %4538 = vmatprep.subr.mxu0 0.0
        %4539 = vmatpush1.msra.mxu0 0.0
        %4540 = vmatprep.subr.mxu0 0.0
        %4541 = vmatpush1.msra.mxu0 0.0
        %4542 = vmatprep.subr.mxu0 0.0
        %4543 = vmatpush1.msra.mxu0 0.0
        %4544 = vmatprep.subr.mxu0 0.0
        %4545 = vmatpush1.msra.mxu0 0.0
        %4546 = vmatprep.subr.mxu0 0.0
        %4547 = vmatpush1.msra.mxu0 0.0
        %4548 = vmatprep.subr.mxu0 0.0
        %4549 = vmatpush1.msra.mxu0 0.0
        %4550 = vmatprep.subr.mxu0 0.0
        %4551 = vmatpush1.msra.mxu0 0.0
        %4552 = vmatprep.subr.mxu0 0.0
        %4553 = vmatpush1.msra.mxu0 0.0
        %4554 = vmatprep.subr.mxu0 0.0
        %4555 = vmatpush1.msra.mxu0 0.0
        %4556 = vmatprep.subr.mxu0 0.0
        %4557 = vmatpush1.msra.mxu0 0.0
        %4558 = vmatprep.mubr.f32.mxu0 0.0
        %4559 = vmatmul.mubr.f32.gmra.mrb[0].mxu0 %v4489
        %v4560 = vpop.f32.mrb[0].mxu0
        %v4561 = vadd.f32 0.0, %v4560
        %v4562 = vpop.f32.mrb[0].mxu0
        %4563 = vmatprep.mubr.f32.mxu0 0.0
        %4564 = vmatmul.mubr.f32.gmra.mrb[0].mxu0 %v4492
        %v4565 = vpop.f32.mrb[0].mxu0
        %v4566 = vadd.f32 0.0, %v4565
        %v4567 = vpop.f32.mrb[0].mxu0
        %4568 = vdwg.mxu0
        %v4569 = vsel %vm859, %v4378, 0.0
        %v4570 = vsel %vm859, %v4380, 0.0
        %v4571 = vadd.f32 %v4569, %v4570
        %v4572 = vrot.slane %v4571, 4
        %v4573 = vadd.f32 %v4571, %v4572
        %v4574 = vrot.slane %v4573, 2
        %v4575 = vadd.f32 %v4573, %v4574
        %v4576 = vrot.slane %v4575, 1
        %v4577 = vadd.f32 %v4575, %v4576
        %v4578 = vrsqrt.pop %v4561
        %v4579 = vmul.f32 %v4561, %v4578
        %vm4580 = vcmp.eq.f32.partialorder %v4561, inf
        %v4581 = vsel %vm4580, %v4561, %v4579
        %vm4582 = vcmp.eq.f32.partialorder %v4561, 0.0
        %v4583 = vand.u32 %v4561, 2147483648
        %v4584 = vsel %vm4582, %v4583, %v4581
        %v4585 = vrsqrt.pop %v4566
        %v4586 = vmul.f32 %v4566, %v4585
        %vm4587 = vcmp.eq.f32.partialorder %v4566, inf
        %v4588 = vsel %vm4587, %v4566, %v4586
        %vm4589 = vcmp.eq.f32.partialorder %v4566, 0.0
        %v4590 = vand.u32 %v4566, 2147483648
        %v4591 = vsel %vm4589, %v4590, %v4588
        %v4592 = vrcp.pop %v4584
        %v4593 = vmul.f32 1.0, %v4592
        %v4594 = vrcp.pop %v4591
        %v4595 = vmul.f32 1.0, %v4594
        %v4596 = vrsqrt.pop %v4577
        %v4597 = vmul.f32 %v4577, %v4596
        %vm4598 = vcmp.eq.f32.partialorder %v4577, inf
        %v4599 = vsel %vm4598, %v4577, %v4597
        %vm4600 = vcmp.eq.f32.partialorder %v4577, 0.0
        %v4601 = vand.u32 %v4577, 2147483648
        %v4602 = vsel %vm4600, %v4601, %v4599
        %v4603 = vrcp.pop %v4602
        %v4604 = vmul.f32 1.0, %v4603
        %4606 = vset.pattern.permute.xlu0 0
        %4607 = vperm.xlu0 %4606, %v4593
        %v4608 = vpop.permute.xlu0 %4607
        %4611 = vset.pattern.permute.xlu0 0
        %4612 = vperm.xlu0 %4611, %v4595
        %v4613 = vpop.permute.xlu0 %4612
        %v4615 = vmul.f32 %v4608, %v4378
        %v4616 = vmul.f32 %v4613, %v4380
        %v4617 = vmul.f32 %v4615, %v4604
        %v4618 = vmul.f32 %v4616, %v4604
        %4619 = vxpose.xlu0.b32.start [1/16] %v4617, 128
        %4620 = vxpose.xlu0.b32.cont [2/16] %v4618, 128
        %4621 = vxpose.xlu0.b32.cont [3/16] 0.0, 128
        %4622 = vxpose.xlu0.b32.cont [4/16] 0.0, 128
        %4623 = vxpose.xlu0.b32.cont [5/16] 0.0, 128
        %4624 = vxpose.xlu0.b32.cont [6/16] 0.0, 128
        %4625 = vxpose.xlu0.b32.cont [7/16] 0.0, 128
        %4626 = vxpose.xlu0.b32.cont [8/16] 0.0, 128
        %4627 = vxpose.xlu0.b32.cont [9/16] 0.0, 128
        %4628 = vxpose.xlu0.b32.cont [10/16] 0.0, 128
        %4629 = vxpose.xlu0.b32.cont [11/16] 0.0, 128
        %4630 = vxpose.xlu0.b32.cont [12/16] 0.0, 128
        %4631 = vxpose.xlu0.b32.cont [13/16] 0.0, 128
        %4632 = vxpose.xlu0.b32.cont [14/16] 0.0, 128
        %4633 = vxpose.xlu0.b32.cont [15/16] 0.0, 128
        %4634 = vxpose.xlu0.b32.end [16/16] 0.0, 128
        %v4635 = vpop.trf.xlu0
        %v4636 = vpop.trf.xlu0
        %v4637 = vpop.trf.xlu0
        %v4638 = vpop.trf.xlu0
        %v4639 = vpop.trf.xlu0
        %v4640 = vpop.trf.xlu0
        %v4641 = vpop.trf.xlu0
        %v4642 = vpop.trf.xlu0
        %v4643 = vpop.trf.xlu0
        %v4644 = vpop.trf.xlu0
        %v4645 = vpop.trf.xlu0
        %v4646 = vpop.trf.xlu0
        %v4647 = vpop.trf.xlu0
        %v4648 = vpop.trf.xlu0
        %v4649 = vpop.trf.xlu0
        %v4650 = vpop.trf.xlu0
        %v4652 = vsel %vm859, %v4635, 0
        %v4655 = vsel %vm859, %v4636, 0
        %4657 = vmatprep.subr.mxu0 0.0
        %4658 = vmatpush1.msra.mxu0 %v4448
        %4659 = vmatprep.subr.mxu0 0.0
        %4660 = vmatpush1.msra.mxu0 %v4453
        %4661 = vmatprep.subr.mxu0 0.0
        %4662 = vmatpush1.msra.mxu0 0.0
        %4663 = vmatprep.subr.mxu0 0.0
        %4664 = vmatpush1.msra.mxu0 0.0
        %4665 = vmatprep.subr.mxu0 0.0
        %4666 = vmatpush1.msra.mxu0 0.0
        %4667 = vmatprep.subr.mxu0 0.0
        %4668 = vmatpush1.msra.mxu0 0.0
        %4669 = vmatprep.subr.mxu0 0.0
        %4670 = vmatpush1.msra.mxu0 0.0
        %4671 = vmatprep.subr.mxu0 0.0
        %4672 = vmatpush1.msra.mxu0 0.0
        %4673 = vmatprep.subr.mxu0 0.0
        %4674 = vmatpush1.msra.mxu0 0.0
        %4675 = vmatprep.subr.mxu0 0.0
        %4676 = vmatpush1.msra.mxu0 0.0
        %4677 = vmatprep.subr.mxu0 0.0
        %4678 = vmatpush1.msra.mxu0 0.0
        %4679 = vmatprep.subr.mxu0 0.0
        %4680 = vmatpush1.msra.mxu0 0.0
        %4681 = vmatprep.subr.mxu0 0.0
        %4682 = vmatpush1.msra.mxu0 0.0
        %4683 = vmatprep.subr.mxu0 0.0
        %4684 = vmatpush1.msra.mxu0 0.0
        %4685 = vmatprep.subr.mxu0 0.0
        %4686 = vmatpush1.msra.mxu0 0.0
        %4687 = vmatprep.subr.mxu0 0.0
        %4688 = vmatpush1.msra.mxu0 0.0
        %4689 = vmatprep.subr.mxu0 0.0
        %4690 = vmatpush1.msra.mxu0 0.0
        %4691 = vmatprep.subr.mxu0 0.0
        %4692 = vmatpush1.msra.mxu0 0.0
        %4693 = vmatprep.subr.mxu0 0.0
        %4694 = vmatpush1.msra.mxu0 0.0
        %4695 = vmatprep.subr.mxu0 0.0
        %4696 = vmatpush1.msra.mxu0 0.0
        %4697 = vmatprep.subr.mxu0 0.0
        %4698 = vmatpush1.msra.mxu0 0.0
        %4699 = vmatprep.subr.mxu0 0.0
        %4700 = vmatpush1.msra.mxu0 0.0
        %4701 = vmatprep.subr.mxu0 0.0
        %4702 = vmatpush1.msra.mxu0 0.0
        %4703 = vmatprep.subr.mxu0 0.0
        %4704 = vmatpush1.msra.mxu0 0.0
        %4705 = vmatprep.subr.mxu0 0.0
        %4706 = vmatpush1.msra.mxu0 0.0
        %4707 = vmatprep.subr.mxu0 0.0
        %4708 = vmatpush1.msra.mxu0 0.0
        %4709 = vmatprep.subr.mxu0 0.0
        %4710 = vmatpush1.msra.mxu0 0.0
        %4711 = vmatprep.subr.mxu0 0.0
        %4712 = vmatpush1.msra.mxu0 0.0
        %4713 = vmatprep.subr.mxu0 0.0
        %4714 = vmatpush1.msra.mxu0 0.0
        %4715 = vmatprep.subr.mxu0 0.0
        %4716 = vmatpush1.msra.mxu0 0.0
        %4717 = vmatprep.subr.mxu0 0.0
        %4718 = vmatpush1.msra.mxu0 0.0
        %4719 = vmatprep.subr.mxu0 0.0
        %4720 = vmatpush1.msra.mxu0 0.0
        %4721 = vmatprep.mubr.f32.mxu0 0.0
        %4722 = vmatmul.mubr.f32.gmra.mrb[0].mxu0 %v4652
        %v4723 = vpop.f32.mrb[0].mxu0
        %v4724 = vadd.f32 %v1654, %v4723
        %v4725 = vpop.f32.mrb[0].mxu0
        %4726 = vmatprep.mubr.f32.mxu0 0.0
        %4727 = vmatmul.mubr.f32.gmra.mrb[0].mxu0 %v4655
        %v4728 = vpop.f32.mrb[0].mxu0
        %v4729 = vadd.f32 %v1654, %v4728
        %v4730 = vpop.f32.mrb[0].mxu0
        %4731 = vdwg.mxu0
        %v4732 = vsel %vm1277, %v4724, 0.0
        %v4733 = vsel %vm1277, %v4729, 0.0
        %v4734 = vadd.f32 %v4732, %v4733
        %v4735 = vrot.slane %v4734, 4
        %v4736 = vadd.f32 %v4734, %v4735
        %v4737 = vrot.slane %v4736, 2
        %v4738 = vadd.f32 %v4736, %v4737
        %v4739 = vrot.slane %v4738, 1
        %v4740 = vadd.f32 %v4738, %v4739
        %v4741 = vmul.f32 %v4740, %v1778
        %4743 = vrot.lane.b32.xlu0 %v4741, 32
        %v4744 = vpop.permute.xlu0 %4743
        %v4746 = vsel %vm1277, %v4271, %v4744
        %v4748 = vsel %vm1785, %v4746, 0
        %4750 = vmatprep.subr.mxu0 0.0
        %4751 = vmatpush1.msra.mxu0 %v818
        %4752 = vmatprep.subr.mxu0 0.0
        %4753 = vmatpush1.msra.mxu0 %v819
        %4754 = vmatprep.subr.mxu0 0.0
        %4755 = vmatpush1.msra.mxu0 %v820
        %4756 = vmatprep.subr.mxu0 0.0
        %4757 = vmatpush1.msra.mxu0 %v821
        %4758 = vmatprep.subr.mxu0 0.0
        %4759 = vmatpush1.msra.mxu0 %v822
        %4760 = vmatprep.subr.mxu0 0.0
        %4761 = vmatpush1.msra.mxu0 %v823
        %4762 = vmatprep.subr.mxu0 0.0
        %4763 = vmatpush1.msra.mxu0 %v824
        %4764 = vmatprep.subr.mxu0 0.0
        %4765 = vmatpush1.msra.mxu0 %v825
        %4766 = vmatprep.subr.mxu0 0.0
        %4767 = vmatpush1.msra.mxu0 0.0
        %4768 = vmatprep.subr.mxu0 0.0
        %4769 = vmatpush1.msra.mxu0 0.0
        %4770 = vmatprep.subr.mxu0 0.0
        %4771 = vmatpush1.msra.mxu0 0.0
        %4772 = vmatprep.subr.mxu0 0.0
        %4773 = vmatpush1.msra.mxu0 0.0
        %4774 = vmatprep.subr.mxu0 0.0
        %4775 = vmatpush1.msra.mxu0 0.0
        %4776 = vmatprep.subr.mxu0 0.0
        %4777 = vmatpush1.msra.mxu0 0.0
        %4778 = vmatprep.subr.mxu0 0.0
        %4779 = vmatpush1.msra.mxu0 0.0
        %4780 = vmatprep.subr.mxu0 0.0
        %4781 = vmatpush1.msra.mxu0 0.0
        %4782 = vmatprep.subr.mxu0 0.0
        %4783 = vmatpush1.msra.mxu0 0.0
        %4784 = vmatprep.subr.mxu0 0.0
        %4785 = vmatpush1.msra.mxu0 0.0
        %4786 = vmatprep.subr.mxu0 0.0
        %4787 = vmatpush1.msra.mxu0 0.0
        %4788 = vmatprep.subr.mxu0 0.0
        %4789 = vmatpush1.msra.mxu0 0.0
        %4790 = vmatprep.subr.mxu0 0.0
        %4791 = vmatpush1.msra.mxu0 0.0
        %4792 = vmatprep.subr.mxu0 0.0
        %4793 = vmatpush1.msra.mxu0 0.0
        %4794 = vmatprep.subr.mxu0 0.0
        %4795 = vmatpush1.msra.mxu0 0.0
        %4796 = vmatprep.subr.mxu0 0.0
        %4797 = vmatpush1.msra.mxu0 0.0
        %4798 = vmatprep.subr.mxu0 0.0
        %4799 = vmatpush1.msra.mxu0 0.0
        %4800 = vmatprep.subr.mxu0 0.0
        %4801 = vmatpush1.msra.mxu0 0.0
        %4802 = vmatprep.subr.mxu0 0.0
        %4803 = vmatpush1.msra.mxu0 0.0
        %4804 = vmatprep.subr.mxu0 0.0
        %4805 = vmatpush1.msra.mxu0 0.0
        %4806 = vmatprep.subr.mxu0 0.0
        %4807 = vmatpush1.msra.mxu0 0.0
        %4808 = vmatprep.subr.mxu0 0.0
        %4809 = vmatpush1.msra.mxu0 0.0
        %4810 = vmatprep.subr.mxu0 0.0
        %4811 = vmatpush1.msra.mxu0 0.0
        %4812 = vmatprep.subr.mxu0 0.0
        %4813 = vmatpush1.msra.mxu0 0.0
        %4814 = vmatprep.mubr.f32.mxu0 0.0
        %4815 = vmatmul.mubr.f32.gmra.mrb[0].mxu0 %v4748
        %v4816 = vpop.f32.mrb[0].mxu0
        %v4817 = vadd.f32 %v826, %v4816
        %v4818 = vpop.f32.mrb[0].mxu0
        %4819 = vdwg.mxu0
        %4820 = vxpose.xlu0.b32.start [1/16] %v754, 128
        %4821 = vxpose.xlu0.b32.cont [2/16] %v759, 128
        %4822 = vxpose.xlu0.b32.cont [3/16] 0.0, 128
        %4823 = vxpose.xlu0.b32.cont [4/16] 0.0, 128
        %4824 = vxpose.xlu0.b32.cont [5/16] 0.0, 128
        %4825 = vxpose.xlu0.b32.cont [6/16] 0.0, 128
        %4826 = vxpose.xlu0.b32.cont [7/16] 0.0, 128
        %4827 = vxpose.xlu0.b32.cont [8/16] 0.0, 128
        %4828 = vxpose.xlu0.b32.cont [9/16] 0.0, 128
        %4829 = vxpose.xlu0.b32.cont [10/16] 0.0, 128
        %4830 = vxpose.xlu0.b32.cont [11/16] 0.0, 128
        %4831 = vxpose.xlu0.b32.cont [12/16] 0.0, 128
        %4832 = vxpose.xlu0.b32.cont [13/16] 0.0, 128
        %4833 = vxpose.xlu0.b32.cont [14/16] 0.0, 128
        %4834 = vxpose.xlu0.b32.cont [15/16] 0.0, 128
        %4835 = vxpose.xlu0.b32.end [16/16] 0.0, 128
        %v4836 = vpop.trf.xlu0
        %v4837 = vpop.trf.xlu0
        %v4838 = vpop.trf.xlu0
        %v4839 = vpop.trf.xlu0
        %v4840 = vpop.trf.xlu0
        %v4841 = vpop.trf.xlu0
        %v4842 = vpop.trf.xlu0
        %v4843 = vpop.trf.xlu0
        %v4844 = vpop.trf.xlu0
        %v4845 = vpop.trf.xlu0
        %v4846 = vpop.trf.xlu0
        %v4847 = vpop.trf.xlu0
        %v4848 = vpop.trf.xlu0
        %v4849 = vpop.trf.xlu0
        %v4850 = vpop.trf.xlu0
        %v4851 = vpop.trf.xlu0
        %v4853 = vsel %vm859, %v4836, 0
        %4855 = vmatprep.subr.mxu0 0.0
        %4856 = vmatpush1.msra.mxu0 %v754
        %4857 = vmatprep.subr.mxu0 0.0
        %4858 = vmatpush1.msra.mxu0 %v759
        %4859 = vmatprep.subr.mxu0 0.0
        %4860 = vmatpush1.msra.mxu0 0.0
        %4861 = vmatprep.subr.mxu0 0.0
        %4862 = vmatpush1.msra.mxu0 0.0
        %4863 = vmatprep.subr.mxu0 0.0
        %4864 = vmatpush1.msra.mxu0 0.0
        %4865 = vmatprep.subr.mxu0 0.0
        %4866 = vmatpush1.msra.mxu0 0.0
        %4867 = vmatprep.subr.mxu0 0.0
        %4868 = vmatpush1.msra.mxu0 0.0
        %4869 = vmatprep.subr.mxu0 0.0
        %4870 = vmatpush1.msra.mxu0 0.0
        %4871 = vmatprep.subr.mxu0 0.0
        %4872 = vmatpush1.msra.mxu0 0.0
        %4873 = vmatprep.subr.mxu0 0.0
        %4874 = vmatpush1.msra.mxu0 0.0
        %4875 = vmatprep.subr.mxu0 0.0
        %4876 = vmatpush1.msra.mxu0 0.0
        %4877 = vmatprep.subr.mxu0 0.0
        %4878 = vmatpush1.msra.mxu0 0.0
        %4879 = vmatprep.subr.mxu0 0.0
        %4880 = vmatpush1.msra.mxu0 0.0
        %4881 = vmatprep.subr.mxu0 0.0
        %4882 = vmatpush1.msra.mxu0 0.0
        %4883 = vmatprep.subr.mxu0 0.0
        %4884 = vmatpush1.msra.mxu0 0.0
        %4885 = vmatprep.subr.mxu0 0.0
        %4886 = vmatpush1.msra.mxu0 0.0
        %4887 = vmatprep.subr.mxu0 0.0
        %4888 = vmatpush1.msra.mxu0 0.0
        %4889 = vmatprep.subr.mxu0 0.0
        %4890 = vmatpush1.msra.mxu0 0.0
        %4891 = vmatprep.subr.mxu0 0.0
        %4892 = vmatpush1.msra.mxu0 0.0
        %4893 = vmatprep.subr.mxu0 0.0
        %4894 = vmatpush1.msra.mxu0 0.0
        %4895 = vmatprep.subr.mxu0 0.0
        %4896 = vmatpush1.msra.mxu0 0.0
        %4897 = vmatprep.subr.mxu0 0.0
        %4898 = vmatpush1.msra.mxu0 0.0
        %4899 = vmatprep.subr.mxu0 0.0
        %4900 = vmatpush1.msra.mxu0 0.0
        %4901 = vmatprep.subr.mxu0 0.0
        %4902 = vmatpush1.msra.mxu0 0.0
        %4903 = vmatprep.subr.mxu0 0.0
        %4904 = vmatpush1.msra.mxu0 0.0
        %4905 = vmatprep.subr.mxu0 0.0
        %4906 = vmatpush1.msra.mxu0 0.0
        %4907 = vmatprep.subr.mxu0 0.0
        %4908 = vmatpush1.msra.mxu0 0.0
        %4909 = vmatprep.subr.mxu0 0.0
        %4910 = vmatpush1.msra.mxu0 0.0
        %4911 = vmatprep.subr.mxu0 0.0
        %4912 = vmatpush1.msra.mxu0 0.0
        %4913 = vmatprep.subr.mxu0 0.0
        %4914 = vmatpush1.msra.mxu0 0.0
        %4915 = vmatprep.subr.mxu0 0.0
        %4916 = vmatpush1.msra.mxu0 0.0
        %4917 = vmatprep.subr.mxu0 0.0
        %4918 = vmatpush1.msra.mxu0 0.0
        %4919 = vmatprep.mubr.f32.mxu0 0.0
        %4920 = vmatmul.mubr.f32.gmra.mrb[0].mxu0 %v4853
        %v4921 = vpop.f32.mrb[0].mxu0
        %v4922 = vadd.f32 0.0, %v4921
        %v4923 = vpop.f32.mrb[0].mxu0
        %4924 = vdwg.mxu0
        %v4925 = vmul.f32 %v936, %v4922
        %v4926 = vmul.f32 %v4925, %v943
        %v4927 = vmul.f32 %v4926, 0.25
        %v4928 = vsel %vm947, %v4927, -inf
        %4929 = vmax.xlane.f32.xlu0 %v4928
        %v4930 = vpop.xlane.xlu0 %4929
        %v4931 = vsub.f32 %v4927, %v4930
        %v4932 = vmul.f32 %v4931, 1.442695
        %v4933 = vpow.pop %v4932
        %v4934 = vsel %vm947, %v4933, 0.0
        %4935 = vadd.xlane.f32.xlu0 %v4934
        %v4936 = vpop.xlane.xlu0 %4935
        %v4937 = vrcp.pop %v4936
        %v4938 = vmul.f32 %v4933, %v4937
        %4939 = vmatprep.subr.mxu0 0.0
        %4940 = vmatpush1.msra.mxu0 %v813
        %4941 = vmatprep.subr.mxu0 0.0
        %4942 = vmatpush1.msra.mxu0 %v814
        %4943 = vmatprep.subr.mxu0 0.0
        %4944 = vmatpush1.msra.mxu0 0.0
        %4945 = vmatprep.subr.mxu0 0.0
        %4946 = vmatpush1.msra.mxu0 0.0
        %4947 = vmatprep.subr.mxu0 0.0
        %4948 = vmatpush1.msra.mxu0 0.0
        %4949 = vmatprep.subr.mxu0 0.0
        %4950 = vmatpush1.msra.mxu0 0.0
        %4951 = vmatprep.subr.mxu0 0.0
        %4952 = vmatpush1.msra.mxu0 0.0
        %4953 = vmatprep.subr.mxu0 0.0
        %4954 = vmatpush1.msra.mxu0 0.0
        %4955 = vmatprep.subr.mxu0 0.0
        %4956 = vmatpush1.msra.mxu0 0.0
        %4957 = vmatprep.subr.mxu0 0.0
        %4958 = vmatpush1.msra.mxu0 0.0
        %4959 = vmatprep.subr.mxu0 0.0
        %4960 = vmatpush1.msra.mxu0 0.0
        %4961 = vmatprep.subr.mxu0 0.0
        %4962 = vmatpush1.msra.mxu0 0.0
        %4963 = vmatprep.subr.mxu0 0.0
        %4964 = vmatpush1.msra.mxu0 0.0
        %4965 = vmatprep.subr.mxu0 0.0
        %4966 = vmatpush1.msra.mxu0 0.0
        %4967 = vmatprep.subr.mxu0 0.0
        %4968 = vmatpush1.msra.mxu0 0.0
        %4969 = vmatprep.subr.mxu0 0.0
        %4970 = vmatpush1.msra.mxu0 0.0
        %4971 = vmatprep.subr.mxu0 0.0
        %4972 = vmatpush1.msra.mxu0 0.0
        %4973 = vmatprep.subr.mxu0 0.0
        %4974 = vmatpush1.msra.mxu0 0.0
        %4975 = vmatprep.subr.mxu0 0.0
        %4976 = vmatpush1.msra.mxu0 0.0
        %4977 = vmatprep.subr.mxu0 0.0
        %4978 = vmatpush1.msra.mxu0 0.0
        %4979 = vmatprep.subr.mxu0 0.0
        %4980 = vmatpush1.msra.mxu0 0.0
        %4981 = vmatprep.subr.mxu0 0.0
        %4982 = vmatpush1.msra.mxu0 0.0
        %4983 = vmatprep.subr.mxu0 0.0
        %4984 = vmatpush1.msra.mxu0 0.0
        %4985 = vmatprep.subr.mxu0 0.0
        %4986 = vmatpush1.msra.mxu0 0.0
        %4987 = vmatprep.subr.mxu0 0.0
        %4988 = vmatpush1.msra.mxu0 0.0
        %4989 = vmatprep.subr.mxu0 0.0
        %4990 = vmatpush1.msra.mxu0 0.0
        %4991 = vmatprep.subr.mxu0 0.0
        %4992 = vmatpush1.msra.mxu0 0.0
        %4993 = vmatprep.subr.mxu0 0.0
        %4994 = vmatpush1.msra.mxu0 0.0
        %4995 = vmatprep.subr.mxu0 0.0
        %4996 = vmatpush1.msra.mxu0 0.0
        %4997 = vmatprep.subr.mxu0 0.0
        %4998 = vmatpush1.msra.mxu0 0.0
        %4999 = vmatprep.subr.mxu0 0.0
        %5000 = vmatpush1.msra.mxu0 0.0
        %5001 = vmatprep.subr.mxu0 0.0
        %5002 = vmatpush1.msra.mxu0 0.0
        %5003 = vmatprep.mubr.f32.mxu0 0.0
        %5004 = vmatmul.mubr.f32.gmra.mrb[0].mxu0 %v4853
        %v5005 = vpop.f32.mrb[0].mxu0
        %v5006 = vadd.f32 0.0, %v5005
        %v5007 = vpop.f32.mrb[0].mxu0
        %5008 = vdwg.mxu0
        %5009 = vxpose.xlu0.b32.start [1/16] %v4938, 128
        %5010 = vxpose.xlu0.b32.cont [2/16] 0.0, 128
        %5011 = vxpose.xlu0.b32.cont [3/16] 0.0, 128
        %5012 = vxpose.xlu0.b32.cont [4/16] 0.0, 128
        %5013 = vxpose.xlu0.b32.cont [5/16] 0.0, 128
        %5014 = vxpose.xlu0.b32.cont [6/16] 0.0, 128
        %5015 = vxpose.xlu0.b32.cont [7/16] 0.0, 128
        %5016 = vxpose.xlu0.b32.cont [8/16] 0.0, 128
        %5017 = vxpose.xlu0.b32.cont [9/16] 0.0, 128
        %5018 = vxpose.xlu0.b32.cont [10/16] 0.0, 128
        %5019 = vxpose.xlu0.b32.cont [11/16] 0.0, 128
        %5020 = vxpose.xlu0.b32.cont [12/16] 0.0, 128
        %5021 = vxpose.xlu0.b32.cont [13/16] 0.0, 128
        %5022 = vxpose.xlu0.b32.cont [14/16] 0.0, 128
        %5023 = vxpose.xlu0.b32.cont [15/16] 0.0, 128
        %5024 = vxpose.xlu0.b32.end [16/16] 0.0, 128
        %v5025 = vpop.trf.xlu0
        %v5026 = vpop.trf.xlu0
        %v5027 = vpop.trf.xlu0
        %v5028 = vpop.trf.xlu0
        %v5029 = vpop.trf.xlu0
        %v5030 = vpop.trf.xlu0
        %v5031 = vpop.trf.xlu0
        %v5032 = vpop.trf.xlu0
        %v5033 = vpop.trf.xlu0
        %v5034 = vpop.trf.xlu0
        %v5035 = vpop.trf.xlu0
        %v5036 = vpop.trf.xlu0
        %v5037 = vpop.trf.xlu0
        %v5038 = vpop.trf.xlu0
        %v5039 = vpop.trf.xlu0
        %v5040 = vpop.trf.xlu0
        %v5042 = vsel %vm947, %v5025, 0
        %5044 = vmatprep.subr.mxu0 0.0
        %5045 = vmatpush1.msra.mxu0 1.0
        %5046 = vmatprep.subr.mxu0 0.0
        %5047 = vmatpush1.msra.mxu0 0.0
        %5048 = vmatprep.subr.mxu0 0.0
        %5049 = vmatpush1.msra.mxu0 0.0
        %5050 = vmatprep.subr.mxu0 0.0
        %5051 = vmatpush1.msra.mxu0 0.0
        %5052 = vmatprep.subr.mxu0 0.0
        %5053 = vmatpush1.msra.mxu0 0.0
        %5054 = vmatprep.subr.mxu0 0.0
        %5055 = vmatpush1.msra.mxu0 0.0
        %5056 = vmatprep.subr.mxu0 0.0
        %5057 = vmatpush1.msra.mxu0 0.0
        %5058 = vmatprep.subr.mxu0 0.0
        %5059 = vmatpush1.msra.mxu0 0.0
        %5060 = vmatprep.subr.mxu0 0.0
        %5061 = vmatpush1.msra.mxu0 0.0
        %5062 = vmatprep.subr.mxu0 0.0
        %5063 = vmatpush1.msra.mxu0 0.0
        %5064 = vmatprep.subr.mxu0 0.0
        %5065 = vmatpush1.msra.mxu0 0.0
        %5066 = vmatprep.subr.mxu0 0.0
        %5067 = vmatpush1.msra.mxu0 0.0
        %5068 = vmatprep.subr.mxu0 0.0
        %5069 = vmatpush1.msra.mxu0 0.0
        %5070 = vmatprep.subr.mxu0 0.0
        %5071 = vmatpush1.msra.mxu0 0.0
        %5072 = vmatprep.subr.mxu0 0.0
        %5073 = vmatpush1.msra.mxu0 0.0
        %5074 = vmatprep.subr.mxu0 0.0
        %5075 = vmatpush1.msra.mxu0 0.0
        %5076 = vmatprep.subr.mxu0 0.0
        %5077 = vmatpush1.msra.mxu0 0.0
        %5078 = vmatprep.subr.mxu0 0.0
        %5079 = vmatpush1.msra.mxu0 0.0
        %5080 = vmatprep.subr.mxu0 0.0
        %5081 = vmatpush1.msra.mxu0 0.0
        %5082 = vmatprep.subr.mxu0 0.0
        %5083 = vmatpush1.msra.mxu0 0.0
        %5084 = vmatprep.subr.mxu0 0.0
        %5085 = vmatpush1.msra.mxu0 0.0
        %5086 = vmatprep.subr.mxu0 0.0
        %5087 = vmatpush1.msra.mxu0 0.0
        %5088 = vmatprep.subr.mxu0 0.0
        %5089 = vmatpush1.msra.mxu0 0.0
        %5090 = vmatprep.subr.mxu0 0.0
        %5091 = vmatpush1.msra.mxu0 0.0
        %5092 = vmatprep.subr.mxu0 0.0
        %5093 = vmatpush1.msra.mxu0 0.0
        %5094 = vmatprep.subr.mxu0 0.0
        %5095 = vmatpush1.msra.mxu0 0.0
        %5096 = vmatprep.subr.mxu0 0.0
        %5097 = vmatpush1.msra.mxu0 0.0
        %5098 = vmatprep.subr.mxu0 0.0
        %5099 = vmatpush1.msra.mxu0 0.0
        %5100 = vmatprep.subr.mxu0 0.0
        %5101 = vmatpush1.msra.mxu0 0.0
        %5102 = vmatprep.subr.mxu0 0.0
        %5103 = vmatpush1.msra.mxu0 0.0
        %5104 = vmatprep.subr.mxu0 0.0
        %5105 = vmatpush1.msra.mxu0 0.0
        %5106 = vmatprep.subr.mxu0 0.0
        %5107 = vmatpush1.msra.mxu0 0.0
        %5108 = vmatprep.mubr.f32.mxu0 0.0
        %5109 = vmatmul.mubr.f32.gmra.mrb[0].mxu0 %v5042
        %v5110 = vpop.f32.mrb[0].mxu0
        %v5111 = vadd.f32 0.0, %v5110
        %v5112 = vpop.f32.mrb[0].mxu0
        %5113 = vdwg.mxu0
        %v5114 = vsel %vm947, %v4938, 0.0
        %v5115 = vrot.slane %v5114, 4
        %v5116 = vadd.f32 %v5114, %v5115
        %v5117 = vrot.slane %v5116, 2
        %v5118 = vadd.f32 %v5116, %v5117
        %v5119 = vrot.slane %v5118, 1
        %v5120 = vadd.f32 %v5118, %v5119
        %v5121 = vrsqrt.pop %v5111
        %v5122 = vmul.f32 %v5111, %v5121
        %vm5123 = vcmp.eq.f32.partialorder %v5111, inf
        %v5124 = vsel %vm5123, %v5111, %v5122
        %vm5125 = vcmp.eq.f32.partialorder %v5111, 0.0
        %v5126 = vand.u32 %v5111, 2147483648
        %v5127 = vsel %vm5125, %v5126, %v5124
        %v5128 = vrcp.pop %v5127
        %v5129 = vmul.f32 1.0, %v5128
        %v5130 = vrsqrt.pop %v5120
        %v5131 = vmul.f32 %v5120, %v5130
        %vm5132 = vcmp.eq.f32.partialorder %v5120, inf
        %v5133 = vsel %vm5132, %v5120, %v5131
        %vm5134 = vcmp.eq.f32.partialorder %v5120, 0.0
        %v5135 = vand.u32 %v5120, 2147483648
        %v5136 = vsel %vm5134, %v5135, %v5133
        %v5137 = vrcp.pop %v5136
        %v5138 = vmul.f32 1.0, %v5137
        %5140 = vset.pattern.permute.xlu0 0
        %5141 = vperm.xlu0 %5140, %v5129
        %v5142 = vpop.permute.xlu0 %5141
        %v5144 = vmul.f32 %v5142, %v4938
        %v5145 = vmul.f32 %v5144, %v5138
        %5146 = vxpose.xlu0.b32.start [1/16] %v5145, 128
        %5147 = vxpose.xlu0.b32.cont [2/16] 0.0, 128
        %5148 = vxpose.xlu0.b32.cont [3/16] 0.0, 128
        %5149 = vxpose.xlu0.b32.cont [4/16] 0.0, 128
        %5150 = vxpose.xlu0.b32.cont [5/16] 0.0, 128
        %5151 = vxpose.xlu0.b32.cont [6/16] 0.0, 128
        %5152 = vxpose.xlu0.b32.cont [7/16] 0.0, 128
        %5153 = vxpose.xlu0.b32.cont [8/16] 0.0, 128
        %5154 = vxpose.xlu0.b32.cont [9/16] 0.0, 128
        %5155 = vxpose.xlu0.b32.cont [10/16] 0.0, 128
        %5156 = vxpose.xlu0.b32.cont [11/16] 0.0, 128
        %5157 = vxpose.xlu0.b32.cont [12/16] 0.0, 128
        %5158 = vxpose.xlu0.b32.cont [13/16] 0.0, 128
        %5159 = vxpose.xlu0.b32.cont [14/16] 0.0, 128
        %5160 = vxpose.xlu0.b32.cont [15/16] 0.0, 128
        %5161 = vxpose.xlu0.b32.end [16/16] 0.0, 128
        %v5162 = vpop.trf.xlu0
        %v5163 = vpop.trf.xlu0
        %v5164 = vpop.trf.xlu0
        %v5165 = vpop.trf.xlu0
        %v5166 = vpop.trf.xlu0
        %v5167 = vpop.trf.xlu0
        %v5168 = vpop.trf.xlu0
        %v5169 = vpop.trf.xlu0
        %v5170 = vpop.trf.xlu0
        %v5171 = vpop.trf.xlu0
        %v5172 = vpop.trf.xlu0
        %v5173 = vpop.trf.xlu0
        %v5174 = vpop.trf.xlu0
        %v5175 = vpop.trf.xlu0
        %v5176 = vpop.trf.xlu0
        %v5177 = vpop.trf.xlu0
        %v5179 = vsel %vm947, %v5162, 0
        %5181 = vmatprep.subr.mxu0 0.0
        %5182 = vmatpush1.msra.mxu0 %v5006
        %5183 = vmatprep.subr.mxu0 0.0
        %5184 = vmatpush1.msra.mxu0 0.0
        %5185 = vmatprep.subr.mxu0 0.0
        %5186 = vmatpush1.msra.mxu0 0.0
        %5187 = vmatprep.subr.mxu0 0.0
        %5188 = vmatpush1.msra.mxu0 0.0
        %5189 = vmatprep.subr.mxu0 0.0
        %5190 = vmatpush1.msra.mxu0 0.0
        %5191 = vmatprep.subr.mxu0 0.0
        %5192 = vmatpush1.msra.mxu0 0.0
        %5193 = vmatprep.subr.mxu0 0.0
        %5194 = vmatpush1.msra.mxu0 0.0
        %5195 = vmatprep.subr.mxu0 0.0
        %5196 = vmatpush1.msra.mxu0 0.0
        %5197 = vmatprep.subr.mxu0 0.0
        %5198 = vmatpush1.msra.mxu0 0.0
        %5199 = vmatprep.subr.mxu0 0.0
        %5200 = vmatpush1.msra.mxu0 0.0
        %5201 = vmatprep.subr.mxu0 0.0
        %5202 = vmatpush1.msra.mxu0 0.0
        %5203 = vmatprep.subr.mxu0 0.0
        %5204 = vmatpush1.msra.mxu0 0.0
        %5205 = vmatprep.subr.mxu0 0.0
        %5206 = vmatpush1.msra.mxu0 0.0
        %5207 = vmatprep.subr.mxu0 0.0
        %5208 = vmatpush1.msra.mxu0 0.0
        %5209 = vmatprep.subr.mxu0 0.0
        %5210 = vmatpush1.msra.mxu0 0.0
        %5211 = vmatprep.subr.mxu0 0.0
        %5212 = vmatpush1.msra.mxu0 0.0
        %5213 = vmatprep.subr.mxu0 0.0
        %5214 = vmatpush1.msra.mxu0 0.0
        %5215 = vmatprep.subr.mxu0 0.0
        %5216 = vmatpush1.msra.mxu0 0.0
        %5217 = vmatprep.subr.mxu0 0.0
        %5218 = vmatpush1.msra.mxu0 0.0
        %5219 = vmatprep.subr.mxu0 0.0
        %5220 = vmatpush1.msra.mxu0 0.0
        %5221 = vmatprep.subr.mxu0 0.0
        %5222 = vmatpush1.msra.mxu0 0.0
        %5223 = vmatprep.subr.mxu0 0.0
        %5224 = vmatpush1.msra.mxu0 0.0
        %5225 = vmatprep.subr.mxu0 0.0
        %5226 = vmatpush1.msra.mxu0 0.0
        %5227 = vmatprep.subr.mxu0 0.0
        %5228 = vmatpush1.msra.mxu0 0.0
        %5229 = vmatprep.subr.mxu0 0.0
        %5230 = vmatpush1.msra.mxu0 0.0
        %5231 = vmatprep.subr.mxu0 0.0
        %5232 = vmatpush1.msra.mxu0 0.0
        %5233 = vmatprep.subr.mxu0 0.0
        %5234 = vmatpush1.msra.mxu0 0.0
        %5235 = vmatprep.subr.mxu0 0.0
        %5236 = vmatpush1.msra.mxu0 0.0
        %5237 = vmatprep.subr.mxu0 0.0
        %5238 = vmatpush1.msra.mxu0 0.0
        %5239 = vmatprep.subr.mxu0 0.0
        %5240 = vmatpush1.msra.mxu0 0.0
        %5241 = vmatprep.subr.mxu0 0.0
        %5242 = vmatpush1.msra.mxu0 0.0
        %5243 = vmatprep.subr.mxu0 0.0
        %5244 = vmatpush1.msra.mxu0 0.0
        %5245 = vmatprep.mubr.f32.mxu0 0.0
        %5246 = vmatmul.mubr.f32.gmra.mrb[0].mxu0 %v5179
        %v5247 = vpop.f32.mrb[0].mxu0
        %v5248 = vadd.f32 %v1170, %v5247
        %v5249 = vpop.f32.mrb[0].mxu0
        %5250 = vdwg.mxu0
        %v5251 = vsel %vm1277, %v5248, 0.0
        %v5252 = vrot.slane %v5251, 4
        %v5253 = vadd.f32 %v5251, %v5252
        %v5254 = vrot.slane %v5253, 2
        %v5255 = vadd.f32 %v5253, %v5254
        %v5256 = vrot.slane %v5255, 1
        %v5257 = vadd.f32 %v5255, %v5256
        %v5258 = vmul.f32 %v5257, %v1285
        %v5260 = vsel %vm947, %v800, 0
        %v5263 = vsel %vm947, %v801, 0
        %5265 = vmatprep.subr.mxu0 0.0
        %5266 = vmatpush1.xpose.msra.mxu0 %v5260
        %5267 = vmatprep.subr.mxu0 0.0
        %5268 = vmatpush1.xpose.msra.mxu0 %v5263
        %5269 = vmatprep.subr.mxu0 0.0
        %5270 = vmatpush1.xpose.msra.mxu0 0.0
        %5271 = vmatprep.subr.mxu0 0.0
        %5272 = vmatpush1.xpose.msra.mxu0 0.0
        %5273 = vmatprep.subr.mxu0 0.0
        %5274 = vmatpush1.xpose.msra.mxu0 0.0
        %5275 = vmatprep.subr.mxu0 0.0
        %5276 = vmatpush1.xpose.msra.mxu0 0.0
        %5277 = vmatprep.subr.mxu0 0.0
        %5278 = vmatpush1.xpose.msra.mxu0 0.0
        %5279 = vmatprep.subr.mxu0 0.0
        %5280 = vmatpush1.xpose.msra.mxu0 0.0
        %5281 = vmatprep.subr.mxu0 0.0
        %5282 = vmatpush1.xpose.msra.mxu0 0.0
        %5283 = vmatprep.subr.mxu0 0.0
        %5284 = vmatpush1.xpose.msra.mxu0 0.0
        %5285 = vmatprep.subr.mxu0 0.0
        %5286 = vmatpush1.xpose.msra.mxu0 0.0
        %5287 = vmatprep.subr.mxu0 0.0
        %5288 = vmatpush1.xpose.msra.mxu0 0.0
        %5289 = vmatprep.subr.mxu0 0.0
        %5290 = vmatpush1.xpose.msra.mxu0 0.0
        %5291 = vmatprep.subr.mxu0 0.0
        %5292 = vmatpush1.xpose.msra.mxu0 0.0
        %5293 = vmatprep.subr.mxu0 0.0
        %5294 = vmatpush1.xpose.msra.mxu0 0.0
        %5295 = vmatprep.subr.mxu0 0.0
        %5296 = vmatpush1.xpose.msra.mxu0 0.0
        %5297 = vmatprep.subr.mxu0 0.0
        %5298 = vmatpush1.xpose.msra.mxu0 0.0
        %5299 = vmatprep.subr.mxu0 0.0
        %5300 = vmatpush1.xpose.msra.mxu0 0.0
        %5301 = vmatprep.subr.mxu0 0.0
        %5302 = vmatpush1.xpose.msra.mxu0 0.0
        %5303 = vmatprep.subr.mxu0 0.0
        %5304 = vmatpush1.xpose.msra.mxu0 0.0
        %5305 = vmatprep.subr.mxu0 0.0
        %5306 = vmatpush1.xpose.msra.mxu0 0.0
        %5307 = vmatprep.subr.mxu0 0.0
        %5308 = vmatpush1.xpose.msra.mxu0 0.0
        %5309 = vmatprep.subr.mxu0 0.0
        %5310 = vmatpush1.xpose.msra.mxu0 0.0
        %5311 = vmatprep.subr.mxu0 0.0
        %5312 = vmatpush1.xpose.msra.mxu0 0.0
        %5313 = vmatprep.subr.mxu0 0.0
        %5314 = vmatpush1.xpose.msra.mxu0 0.0
        %5315 = vmatprep.subr.mxu0 0.0
        %5316 = vmatpush1.xpose.msra.mxu0 0.0
        %5317 = vmatprep.subr.mxu0 0.0
        %5318 = vmatpush1.xpose.msra.mxu0 0.0
        %5319 = vmatprep.subr.mxu0 0.0
        %5320 = vmatpush1.xpose.msra.mxu0 0.0
        %5321 = vmatprep.subr.mxu0 0.0
        %5322 = vmatpush1.xpose.msra.mxu0 0.0
        %5323 = vmatprep.subr.mxu0 0.0
        %5324 = vmatpush1.xpose.msra.mxu0 0.0
        %5325 = vmatprep.subr.mxu0 0.0
        %5326 = vmatpush1.xpose.msra.mxu0 0.0
        %5327 = vmatprep.subr.mxu0 0.0
        %5328 = vmatpush1.xpose.msra.mxu0 0.0
        %5329 = vmatprep.mubr.f32.mxu0 0.0
        %5330 = vmatmul.mubr.f32.gmra.mrb[0].mxu0 %v5260
        %v5331 = vpop.f32.mrb[0].mxu0
        %v5332 = vadd.f32 0.0, %v5331
        %v5333 = vpop.f32.mrb[0].mxu0
        %5334 = vmatprep.mubr.f32.mxu0 0.0
        %5335 = vmatmul.mubr.f32.gmra.mrb[0].mxu0 %v5263
        %v5336 = vpop.f32.mrb[0].mxu0
        %v5337 = vadd.f32 0.0, %v5336
        %v5338 = vpop.f32.mrb[0].mxu0
        %5339 = vdwg.mxu0
        %v5340 = vmul.f32 %v1371, %v5332
        %v5341 = vmul.f32 %v1376, %v5337
        %v5342 = vmul.f32 %v5340, %v1384
        %v5343 = vmul.f32 %v5341, %v1384
        %v5344 = vmul.f32 %v5342, 0.35355338
        %v5345 = vmul.f32 %v5343, 0.35355338
        %v5346 = vsel %vm859, %v5344, -inf
        %5347 = vmax.xlane.f32.xlu0 %v5346
        %v5348 = vpop.xlane.xlu0 %5347
        %v5349 = vsel %vm859, %v5345, -inf
        %5350 = vmax.xlane.f32.xlu0 %v5349
        %v5351 = vpop.xlane.xlu0 %5350
        %v5352 = vsub.f32 %v5344, %v5348
        %v5353 = vsub.f32 %v5345, %v5351
        %v5354 = vmul.f32 %v5352, 1.442695
        %v5355 = vpow.pop %v5354
        %v5356 = vmul.f32 %v5353, 1.442695
        %v5357 = vpow.pop %v5356
        %v5358 = vsel %vm859, %v5355, 0.0
        %5359 = vadd.xlane.f32.xlu0 %v5358
        %v5360 = vpop.xlane.xlu0 %5359
        %v5361 = vsel %vm859, %v5357, 0.0
        %5362 = vadd.xlane.f32.xlu0 %v5361
        %v5363 = vpop.xlane.xlu0 %5362
        %v5364 = vrcp.pop %v5360
        %v5365 = vmul.f32 %v5355, %v5364
        %v5366 = vrcp.pop %v5363
        %v5367 = vmul.f32 %v5357, %v5366
        %5368 = vmatprep.subr.mxu0 0.0
        %5369 = vmatpush1.msra.mxu0 %v816
        %5370 = vmatprep.subr.mxu0 0.0
        %5371 = vmatpush1.msra.mxu0 0.0
        %5372 = vmatprep.subr.mxu0 0.0
        %5373 = vmatpush1.msra.mxu0 0.0
        %5374 = vmatprep.subr.mxu0 0.0
        %5375 = vmatpush1.msra.mxu0 0.0
        %5376 = vmatprep.subr.mxu0 0.0
        %5377 = vmatpush1.msra.mxu0 0.0
        %5378 = vmatprep.subr.mxu0 0.0
        %5379 = vmatpush1.msra.mxu0 0.0
        %5380 = vmatprep.subr.mxu0 0.0
        %5381 = vmatpush1.msra.mxu0 0.0
        %5382 = vmatprep.subr.mxu0 0.0
        %5383 = vmatpush1.msra.mxu0 0.0
        %5384 = vmatprep.subr.mxu0 0.0
        %5385 = vmatpush1.msra.mxu0 0.0
        %5386 = vmatprep.subr.mxu0 0.0
        %5387 = vmatpush1.msra.mxu0 0.0
        %5388 = vmatprep.subr.mxu0 0.0
        %5389 = vmatpush1.msra.mxu0 0.0
        %5390 = vmatprep.subr.mxu0 0.0
        %5391 = vmatpush1.msra.mxu0 0.0
        %5392 = vmatprep.subr.mxu0 0.0
        %5393 = vmatpush1.msra.mxu0 0.0
        %5394 = vmatprep.subr.mxu0 0.0
        %5395 = vmatpush1.msra.mxu0 0.0
        %5396 = vmatprep.subr.mxu0 0.0
        %5397 = vmatpush1.msra.mxu0 0.0
        %5398 = vmatprep.subr.mxu0 0.0
        %5399 = vmatpush1.msra.mxu0 0.0
        %5400 = vmatprep.subr.mxu0 0.0
        %5401 = vmatpush1.msra.mxu0 0.0
        %5402 = vmatprep.subr.mxu0 0.0
        %5403 = vmatpush1.msra.mxu0 0.0
        %5404 = vmatprep.subr.mxu0 0.0
        %5405 = vmatpush1.msra.mxu0 0.0
        %5406 = vmatprep.subr.mxu0 0.0
        %5407 = vmatpush1.msra.mxu0 0.0
        %5408 = vmatprep.subr.mxu0 0.0
        %5409 = vmatpush1.msra.mxu0 0.0
        %5410 = vmatprep.subr.mxu0 0.0
        %5411 = vmatpush1.msra.mxu0 0.0
        %5412 = vmatprep.subr.mxu0 0.0
        %5413 = vmatpush1.msra.mxu0 0.0
        %5414 = vmatprep.subr.mxu0 0.0
        %5415 = vmatpush1.msra.mxu0 0.0
        %5416 = vmatprep.subr.mxu0 0.0
        %5417 = vmatpush1.msra.mxu0 0.0
        %5418 = vmatprep.subr.mxu0 0.0
        %5419 = vmatpush1.msra.mxu0 0.0
        %5420 = vmatprep.subr.mxu0 0.0
        %5421 = vmatpush1.msra.mxu0 0.0
        %5422 = vmatprep.subr.mxu0 0.0
        %5423 = vmatpush1.msra.mxu0 0.0
        %5424 = vmatprep.subr.mxu0 0.0
        %5425 = vmatpush1.msra.mxu0 0.0
        %5426 = vmatprep.subr.mxu0 0.0
        %5427 = vmatpush1.msra.mxu0 0.0
        %5428 = vmatprep.subr.mxu0 0.0
        %5429 = vmatpush1.msra.mxu0 0.0
        %5430 = vmatprep.subr.mxu0 0.0
        %5431 = vmatpush1.msra.mxu0 0.0
        %5432 = vmatprep.mubr.f32.mxu0 0.0
        %5433 = vmatmul.mubr.f32.gmra.mrb[0].mxu0 %v5260
        %v5434 = vpop.f32.mrb[0].mxu0
        %v5435 = vadd.f32 0.0, %v5434
        %v5436 = vpop.f32.mrb[0].mxu0
        %5437 = vmatprep.mubr.f32.mxu0 0.0
        %5438 = vmatmul.mubr.f32.gmra.mrb[0].mxu0 %v5263
        %v5439 = vpop.f32.mrb[0].mxu0
        %v5440 = vadd.f32 0.0, %v5439
        %v5441 = vpop.f32.mrb[0].mxu0
        %5442 = vdwg.mxu0
        %5443 = vxpose.xlu0.b32.start [1/16] %v5365, 128
        %5444 = vxpose.xlu0.b32.cont [2/16] %v5367, 128
        %5445 = vxpose.xlu0.b32.cont [3/16] 0.0, 128
        %5446 = vxpose.xlu0.b32.cont [4/16] 0.0, 128
        %5447 = vxpose.xlu0.b32.cont [5/16] 0.0, 128
        %5448 = vxpose.xlu0.b32.cont [6/16] 0.0, 128
        %5449 = vxpose.xlu0.b32.cont [7/16] 0.0, 128
        %5450 = vxpose.xlu0.b32.cont [8/16] 0.0, 128
        %5451 = vxpose.xlu0.b32.cont [9/16] 0.0, 128
        %5452 = vxpose.xlu0.b32.cont [10/16] 0.0, 128
        %5453 = vxpose.xlu0.b32.cont [11/16] 0.0, 128
        %5454 = vxpose.xlu0.b32.cont [12/16] 0.0, 128
        %5455 = vxpose.xlu0.b32.cont [13/16] 0.0, 128
        %5456 = vxpose.xlu0.b32.cont [14/16] 0.0, 128
        %5457 = vxpose.xlu0.b32.cont [15/16] 0.0, 128
        %5458 = vxpose.xlu0.b32.end [16/16] 0.0, 128
        %v5459 = vpop.trf.xlu0
        %v5460 = vpop.trf.xlu0
        %v5461 = vpop.trf.xlu0
        %v5462 = vpop.trf.xlu0
        %v5463 = vpop.trf.xlu0
        %v5464 = vpop.trf.xlu0
        %v5465 = vpop.trf.xlu0
        %v5466 = vpop.trf.xlu0
        %v5467 = vpop.trf.xlu0
        %v5468 = vpop.trf.xlu0
        %v5469 = vpop.trf.xlu0
        %v5470 = vpop.trf.xlu0
        %v5471 = vpop.trf.xlu0
        %v5472 = vpop.trf.xlu0
        %v5473 = vpop.trf.xlu0
        %v5474 = vpop.trf.xlu0
        %v5476 = vsel %vm859, %v5459, 0
        %v5479 = vsel %vm859, %v5460, 0
        %5481 = vmatprep.subr.mxu0 0.0
        %5482 = vmatpush1.msra.mxu0 1.0
        %5483 = vmatprep.subr.mxu0 0.0
        %5484 = vmatpush1.msra.mxu0 1.0
        %5485 = vmatprep.subr.mxu0 0.0
        %5486 = vmatpush1.msra.mxu0 0.0
        %5487 = vmatprep.subr.mxu0 0.0
        %5488 = vmatpush1.msra.mxu0 0.0
        %5489 = vmatprep.subr.mxu0 0.0
        %5490 = vmatpush1.msra.mxu0 0.0
        %5491 = vmatprep.subr.mxu0 0.0
        %5492 = vmatpush1.msra.mxu0 0.0
        %5493 = vmatprep.subr.mxu0 0.0
        %5494 = vmatpush1.msra.mxu0 0.0
        %5495 = vmatprep.subr.mxu0 0.0
        %5496 = vmatpush1.msra.mxu0 0.0
        %5497 = vmatprep.subr.mxu0 0.0
        %5498 = vmatpush1.msra.mxu0 0.0
        %5499 = vmatprep.subr.mxu0 0.0
        %5500 = vmatpush1.msra.mxu0 0.0
        %5501 = vmatprep.subr.mxu0 0.0
        %5502 = vmatpush1.msra.mxu0 0.0
        %5503 = vmatprep.subr.mxu0 0.0
        %5504 = vmatpush1.msra.mxu0 0.0
        %5505 = vmatprep.subr.mxu0 0.0
        %5506 = vmatpush1.msra.mxu0 0.0
        %5507 = vmatprep.subr.mxu0 0.0
        %5508 = vmatpush1.msra.mxu0 0.0
        %5509 = vmatprep.subr.mxu0 0.0
        %5510 = vmatpush1.msra.mxu0 0.0
        %5511 = vmatprep.subr.mxu0 0.0
        %5512 = vmatpush1.msra.mxu0 0.0
        %5513 = vmatprep.subr.mxu0 0.0
        %5514 = vmatpush1.msra.mxu0 0.0
        %5515 = vmatprep.subr.mxu0 0.0
        %5516 = vmatpush1.msra.mxu0 0.0
        %5517 = vmatprep.subr.mxu0 0.0
        %5518 = vmatpush1.msra.mxu0 0.0
        %5519 = vmatprep.subr.mxu0 0.0
        %5520 = vmatpush1.msra.mxu0 0.0
        %5521 = vmatprep.subr.mxu0 0.0
        %5522 = vmatpush1.msra.mxu0 0.0
        %5523 = vmatprep.subr.mxu0 0.0
        %5524 = vmatpush1.msra.mxu0 0.0
        %5525 = vmatprep.subr.mxu0 0.0
        %5526 = vmatpush1.msra.mxu0 0.0
        %5527 = vmatprep.subr.mxu0 0.0
        %5528 = vmatpush1.msra.mxu0 0.0
        %5529 = vmatprep.subr.mxu0 0.0
        %5530 = vmatpush1.msra.mxu0 0.0
        %5531 = vmatprep.subr.mxu0 0.0
        %5532 = vmatpush1.msra.mxu0 0.0
        %5533 = vmatprep.subr.mxu0 0.0
        %5534 = vmatpush1.msra.mxu0 0.0
        %5535 = vmatprep.subr.mxu0 0.0
        %5536 = vmatpush1.msra.mxu0 0.0
        %5537 = vmatprep.subr.mxu0 0.0
        %5538 = vmatpush1.msra.mxu0 0.0
        %5539 = vmatprep.subr.mxu0 0.0
        %5540 = vmatpush1.msra.mxu0 0.0
        %5541 = vmatprep.subr.mxu0 0.0
        %5542 = vmatpush1.msra.mxu0 0.0
        %5543 = vmatprep.subr.mxu0 0.0
        %5544 = vmatpush1.msra.mxu0 0.0
        %5545 = vmatprep.mubr.f32.mxu0 0.0
        %5546 = vmatmul.mubr.f32.gmra.mrb[0].mxu0 %v5476
        %v5547 = vpop.f32.mrb[0].mxu0
        %v5548 = vadd.f32 0.0, %v5547
        %v5549 = vpop.f32.mrb[0].mxu0
        %5550 = vmatprep.mubr.f32.mxu0 0.0
        %5551 = vmatmul.mubr.f32.gmra.mrb[0].mxu0 %v5479
        %v5552 = vpop.f32.mrb[0].mxu0
        %v5553 = vadd.f32 0.0, %v5552
        %v5554 = vpop.f32.mrb[0].mxu0
        %5555 = vdwg.mxu0
        %v5556 = vsel %vm859, %v5365, 0.0
        %v5557 = vsel %vm859, %v5367, 0.0
        %v5558 = vadd.f32 %v5556, %v5557
        %v5559 = vrot.slane %v5558, 4
        %v5560 = vadd.f32 %v5558, %v5559
        %v5561 = vrot.slane %v5560, 2
        %v5562 = vadd.f32 %v5560, %v5561
        %v5563 = vrot.slane %v5562, 1
        %v5564 = vadd.f32 %v5562, %v5563
        %v5565 = vrsqrt.pop %v5548
        %v5566 = vmul.f32 %v5548, %v5565
        %vm5567 = vcmp.eq.f32.partialorder %v5548, inf
        %v5568 = vsel %vm5567, %v5548, %v5566
        %vm5569 = vcmp.eq.f32.partialorder %v5548, 0.0
        %v5570 = vand.u32 %v5548, 2147483648
        %v5571 = vsel %vm5569, %v5570, %v5568
        %v5572 = vrsqrt.pop %v5553
        %v5573 = vmul.f32 %v5553, %v5572
        %vm5574 = vcmp.eq.f32.partialorder %v5553, inf
        %v5575 = vsel %vm5574, %v5553, %v5573
        %vm5576 = vcmp.eq.f32.partialorder %v5553, 0.0
        %v5577 = vand.u32 %v5553, 2147483648
        %v5578 = vsel %vm5576, %v5577, %v5575
        %v5579 = vrcp.pop %v5571
        %v5580 = vmul.f32 1.0, %v5579
        %v5581 = vrcp.pop %v5578
        %v5582 = vmul.f32 1.0, %v5581
        %v5583 = vrsqrt.pop %v5564
        %v5584 = vmul.f32 %v5564, %v5583
        %vm5585 = vcmp.eq.f32.partialorder %v5564, inf
        %v5586 = vsel %vm5585, %v5564, %v5584
        %vm5587 = vcmp.eq.f32.partialorder %v5564, 0.0
        %v5588 = vand.u32 %v5564, 2147483648
        %v5589 = vsel %vm5587, %v5588, %v5586
        %v5590 = vrcp.pop %v5589
        %v5591 = vmul.f32 1.0, %v5590
        %5593 = vset.pattern.permute.xlu0 0
        %5594 = vperm.xlu0 %5593, %v5580
        %v5595 = vpop.permute.xlu0 %5594
        %5598 = vset.pattern.permute.xlu0 0
        %5599 = vperm.xlu0 %5598, %v5582
        %v5600 = vpop.permute.xlu0 %5599
        %v5602 = vmul.f32 %v5595, %v5365
        %v5603 = vmul.f32 %v5600, %v5367
        %v5604 = vmul.f32 %v5602, %v5591
        %v5605 = vmul.f32 %v5603, %v5591
        %5606 = vxpose.xlu0.b32.start [1/16] %v5604, 128
        %5607 = vxpose.xlu0.b32.cont [2/16] %v5605, 128
        %5608 = vxpose.xlu0.b32.cont [3/16] 0.0, 128
        %5609 = vxpose.xlu0.b32.cont [4/16] 0.0, 128
        %5610 = vxpose.xlu0.b32.cont [5/16] 0.0, 128
        %5611 = vxpose.xlu0.b32.cont [6/16] 0.0, 128
        %5612 = vxpose.xlu0.b32.cont [7/16] 0.0, 128
        %5613 = vxpose.xlu0.b32.cont [8/16] 0.0, 128
        %5614 = vxpose.xlu0.b32.cont [9/16] 0.0, 128
        %5615 = vxpose.xlu0.b32.cont [10/16] 0.0, 128
        %5616 = vxpose.xlu0.b32.cont [11/16] 0.0, 128
        %5617 = vxpose.xlu0.b32.cont [12/16] 0.0, 128
        %5618 = vxpose.xlu0.b32.cont [13/16] 0.0, 128
        %5619 = vxpose.xlu0.b32.cont [14/16] 0.0, 128
        %5620 = vxpose.xlu0.b32.cont [15/16] 0.0, 128
        %5621 = vxpose.xlu0.b32.end [16/16] 0.0, 128
        %v5622 = vpop.trf.xlu0
        %v5623 = vpop.trf.xlu0
        %v5624 = vpop.trf.xlu0
        %v5625 = vpop.trf.xlu0
        %v5626 = vpop.trf.xlu0
        %v5627 = vpop.trf.xlu0
        %v5628 = vpop.trf.xlu0
        %v5629 = vpop.trf.xlu0
        %v5630 = vpop.trf.xlu0
        %v5631 = vpop.trf.xlu0
        %v5632 = vpop.trf.xlu0
        %v5633 = vpop.trf.xlu0
        %v5634 = vpop.trf.xlu0
        %v5635 = vpop.trf.xlu0
        %v5636 = vpop.trf.xlu0
        %v5637 = vpop.trf.xlu0
        %v5639 = vsel %vm859, %v5622, 0
        %v5642 = vsel %vm859, %v5623, 0
        %5644 = vmatprep.subr.mxu0 0.0
        %5645 = vmatpush1.msra.mxu0 %v5435
        %5646 = vmatprep.subr.mxu0 0.0
        %5647 = vmatpush1.msra.mxu0 %v5440
        %5648 = vmatprep.subr.mxu0 0.0
        %5649 = vmatpush1.msra.mxu0 0.0
        %5650 = vmatprep.subr.mxu0 0.0
        %5651 = vmatpush1.msra.mxu0 0.0
        %5652 = vmatprep.subr.mxu0 0.0
        %5653 = vmatpush1.msra.mxu0 0.0
        %5654 = vmatprep.subr.mxu0 0.0
        %5655 = vmatpush1.msra.mxu0 0.0
        %5656 = vmatprep.subr.mxu0 0.0
        %5657 = vmatpush1.msra.mxu0 0.0
        %5658 = vmatprep.subr.mxu0 0.0
        %5659 = vmatpush1.msra.mxu0 0.0
        %5660 = vmatprep.subr.mxu0 0.0
        %5661 = vmatpush1.msra.mxu0 0.0
        %5662 = vmatprep.subr.mxu0 0.0
        %5663 = vmatpush1.msra.mxu0 0.0
        %5664 = vmatprep.subr.mxu0 0.0
        %5665 = vmatpush1.msra.mxu0 0.0
        %5666 = vmatprep.subr.mxu0 0.0
        %5667 = vmatpush1.msra.mxu0 0.0
        %5668 = vmatprep.subr.mxu0 0.0
        %5669 = vmatpush1.msra.mxu0 0.0
        %5670 = vmatprep.subr.mxu0 0.0
        %5671 = vmatpush1.msra.mxu0 0.0
        %5672 = vmatprep.subr.mxu0 0.0
        %5673 = vmatpush1.msra.mxu0 0.0
        %5674 = vmatprep.subr.mxu0 0.0
        %5675 = vmatpush1.msra.mxu0 0.0
        %5676 = vmatprep.subr.mxu0 0.0
        %5677 = vmatpush1.msra.mxu0 0.0
        %5678 = vmatprep.subr.mxu0 0.0
        %5679 = vmatpush1.msra.mxu0 0.0
        %5680 = vmatprep.subr.mxu0 0.0
        %5681 = vmatpush1.msra.mxu0 0.0
        %5682 = vmatprep.subr.mxu0 0.0
        %5683 = vmatpush1.msra.mxu0 0.0
        %5684 = vmatprep.subr.mxu0 0.0
        %5685 = vmatpush1.msra.mxu0 0.0
        %5686 = vmatprep.subr.mxu0 0.0
        %5687 = vmatpush1.msra.mxu0 0.0
        %5688 = vmatprep.subr.mxu0 0.0
        %5689 = vmatpush1.msra.mxu0 0.0
        %5690 = vmatprep.subr.mxu0 0.0
        %5691 = vmatpush1.msra.mxu0 0.0
        %5692 = vmatprep.subr.mxu0 0.0
        %5693 = vmatpush1.msra.mxu0 0.0
        %5694 = vmatprep.subr.mxu0 0.0
        %5695 = vmatpush1.msra.mxu0 0.0
        %5696 = vmatprep.subr.mxu0 0.0
        %5697 = vmatpush1.msra.mxu0 0.0
        %5698 = vmatprep.subr.mxu0 0.0
        %5699 = vmatpush1.msra.mxu0 0.0
        %5700 = vmatprep.subr.mxu0 0.0
        %5701 = vmatpush1.msra.mxu0 0.0
        %5702 = vmatprep.subr.mxu0 0.0
        %5703 = vmatpush1.msra.mxu0 0.0
        %5704 = vmatprep.subr.mxu0 0.0
        %5705 = vmatpush1.msra.mxu0 0.0
        %5706 = vmatprep.subr.mxu0 0.0
        %5707 = vmatpush1.msra.mxu0 0.0
        %5708 = vmatprep.mubr.f32.mxu0 0.0
        %5709 = vmatmul.mubr.f32.gmra.mrb[0].mxu0 %v5639
        %v5710 = vpop.f32.mrb[0].mxu0
        %v5711 = vadd.f32 %v1654, %v5710
        %v5712 = vpop.f32.mrb[0].mxu0
        %5713 = vmatprep.mubr.f32.mxu0 0.0
        %5714 = vmatmul.mubr.f32.gmra.mrb[0].mxu0 %v5642
        %v5715 = vpop.f32.mrb[0].mxu0
        %v5716 = vadd.f32 %v1654, %v5715
        %v5717 = vpop.f32.mrb[0].mxu0
        %5718 = vdwg.mxu0
        %v5719 = vsel %vm1277, %v5711, 0.0
        %v5720 = vsel %vm1277, %v5716, 0.0
        %v5721 = vadd.f32 %v5719, %v5720
        %v5722 = vrot.slane %v5721, 4
        %v5723 = vadd.f32 %v5721, %v5722
        %v5724 = vrot.slane %v5723, 2
        %v5725 = vadd.f32 %v5723, %v5724
        %v5726 = vrot.slane %v5725, 1
        %v5727 = vadd.f32 %v5725, %v5726
        %v5728 = vmul.f32 %v5727, %v1778
        %5730 = vrot.lane.b32.xlu0 %v5728, 32
        %v5731 = vpop.permute.xlu0 %5730
        %v5733 = vsel %vm1277, %v5258, %v5731
        %v5735 = vsel %vm1785, %v5733, 0
        %5737 = vmatprep.subr.mxu0 0.0
        %5738 = vmatpush1.msra.mxu0 %v818
        %5739 = vmatprep.subr.mxu0 0.0
        %5740 = vmatpush1.msra.mxu0 %v819
        %5741 = vmatprep.subr.mxu0 0.0
        %5742 = vmatpush1.msra.mxu0 %v820
        %5743 = vmatprep.subr.mxu0 0.0
        %5744 = vmatpush1.msra.mxu0 %v821
        %5745 = vmatprep.subr.mxu0 0.0
        %5746 = vmatpush1.msra.mxu0 %v822
        %5747 = vmatprep.subr.mxu0 0.0
        %5748 = vmatpush1.msra.mxu0 %v823
        %5749 = vmatprep.subr.mxu0 0.0
        %5750 = vmatpush1.msra.mxu0 %v824
        %5751 = vmatprep.subr.mxu0 0.0
        %5752 = vmatpush1.msra.mxu0 %v825
        %5753 = vmatprep.subr.mxu0 0.0
        %5754 = vmatpush1.msra.mxu0 0.0
        %5755 = vmatprep.subr.mxu0 0.0
        %5756 = vmatpush1.msra.mxu0 0.0
        %5757 = vmatprep.subr.mxu0 0.0
        %5758 = vmatpush1.msra.mxu0 0.0
        %5759 = vmatprep.subr.mxu0 0.0
        %5760 = vmatpush1.msra.mxu0 0.0
        %5761 = vmatprep.subr.mxu0 0.0
        %5762 = vmatpush1.msra.mxu0 0.0
        %5763 = vmatprep.subr.mxu0 0.0
        %5764 = vmatpush1.msra.mxu0 0.0
        %5765 = vmatprep.subr.mxu0 0.0
        %5766 = vmatpush1.msra.mxu0 0.0
        %5767 = vmatprep.subr.mxu0 0.0
        %5768 = vmatpush1.msra.mxu0 0.0
        %5769 = vmatprep.subr.mxu0 0.0
        %5770 = vmatpush1.msra.mxu0 0.0
        %5771 = vmatprep.subr.mxu0 0.0
        %5772 = vmatpush1.msra.mxu0 0.0
        %5773 = vmatprep.subr.mxu0 0.0
        %5774 = vmatpush1.msra.mxu0 0.0
        %5775 = vmatprep.subr.mxu0 0.0
        %5776 = vmatpush1.msra.mxu0 0.0
        %5777 = vmatprep.subr.mxu0 0.0
        %5778 = vmatpush1.msra.mxu0 0.0
        %5779 = vmatprep.subr.mxu0 0.0
        %5780 = vmatpush1.msra.mxu0 0.0
        %5781 = vmatprep.subr.mxu0 0.0
        %5782 = vmatpush1.msra.mxu0 0.0
        %5783 = vmatprep.subr.mxu0 0.0
        %5784 = vmatpush1.msra.mxu0 0.0
        %5785 = vmatprep.subr.mxu0 0.0
        %5786 = vmatpush1.msra.mxu0 0.0
        %5787 = vmatprep.subr.mxu0 0.0
        %5788 = vmatpush1.msra.mxu0 0.0
        %5789 = vmatprep.subr.mxu0 0.0
        %5790 = vmatpush1.msra.mxu0 0.0
        %5791 = vmatprep.subr.mxu0 0.0
        %5792 = vmatpush1.msra.mxu0 0.0
        %5793 = vmatprep.subr.mxu0 0.0
        %5794 = vmatpush1.msra.mxu0 0.0
        %5795 = vmatprep.subr.mxu0 0.0
        %5796 = vmatpush1.msra.mxu0 0.0
        %5797 = vmatprep.subr.mxu0 0.0
        %5798 = vmatpush1.msra.mxu0 0.0
        %5799 = vmatprep.subr.mxu0 0.0
        %5800 = vmatpush1.msra.mxu0 0.0
        %5801 = vmatprep.mubr.f32.mxu0 0.0
        %5802 = vmatmul.mubr.f32.gmra.mrb[0].mxu0 %v5735
        %v5803 = vpop.f32.mrb[0].mxu0
        %v5804 = vadd.f32 %v826, %v5803
        %v5805 = vpop.f32.mrb[0].mxu0
        %5806 = vdwg.mxu0
        %5807 = vxpose.xlu0.b32.start [1/16] %v764, 128
        %5808 = vxpose.xlu0.b32.cont [2/16] %v769, 128
        %5809 = vxpose.xlu0.b32.cont [3/16] 0.0, 128
        %5810 = vxpose.xlu0.b32.cont [4/16] 0.0, 128
        %5811 = vxpose.xlu0.b32.cont [5/16] 0.0, 128
        %5812 = vxpose.xlu0.b32.cont [6/16] 0.0, 128
        %5813 = vxpose.xlu0.b32.cont [7/16] 0.0, 128
        %5814 = vxpose.xlu0.b32.cont [8/16] 0.0, 128
        %5815 = vxpose.xlu0.b32.cont [9/16] 0.0, 128
        %5816 = vxpose.xlu0.b32.cont [10/16] 0.0, 128
        %5817 = vxpose.xlu0.b32.cont [11/16] 0.0, 128
        %5818 = vxpose.xlu0.b32.cont [12/16] 0.0, 128
        %5819 = vxpose.xlu0.b32.cont [13/16] 0.0, 128
        %5820 = vxpose.xlu0.b32.cont [14/16] 0.0, 128
        %5821 = vxpose.xlu0.b32.cont [15/16] 0.0, 128
        %5822 = vxpose.xlu0.b32.end [16/16] 0.0, 128
        %v5823 = vpop.trf.xlu0
        %v5824 = vpop.trf.xlu0
        %v5825 = vpop.trf.xlu0
        %v5826 = vpop.trf.xlu0
        %v5827 = vpop.trf.xlu0
        %v5828 = vpop.trf.xlu0
        %v5829 = vpop.trf.xlu0
        %v5830 = vpop.trf.xlu0
        %v5831 = vpop.trf.xlu0
        %v5832 = vpop.trf.xlu0
        %v5833 = vpop.trf.xlu0
        %v5834 = vpop.trf.xlu0
        %v5835 = vpop.trf.xlu0
        %v5836 = vpop.trf.xlu0
        %v5837 = vpop.trf.xlu0
        %v5838 = vpop.trf.xlu0
        %v5840 = vsel %vm859, %v5823, 0
        %5842 = vmatprep.subr.mxu0 0.0
        %5843 = vmatpush1.msra.mxu0 %v764
        %5844 = vmatprep.subr.mxu0 0.0
        %5845 = vmatpush1.msra.mxu0 %v769
        %5846 = vmatprep.subr.mxu0 0.0
        %5847 = vmatpush1.msra.mxu0 0.0
        %5848 = vmatprep.subr.mxu0 0.0
        %5849 = vmatpush1.msra.mxu0 0.0
        %5850 = vmatprep.subr.mxu0 0.0
        %5851 = vmatpush1.msra.mxu0 0.0
        %5852 = vmatprep.subr.mxu0 0.0
        %5853 = vmatpush1.msra.mxu0 0.0
        %5854 = vmatprep.subr.mxu0 0.0
        %5855 = vmatpush1.msra.mxu0 0.0
        %5856 = vmatprep.subr.mxu0 0.0
        %5857 = vmatpush1.msra.mxu0 0.0
        %5858 = vmatprep.subr.mxu0 0.0
        %5859 = vmatpush1.msra.mxu0 0.0
        %5860 = vmatprep.subr.mxu0 0.0
        %5861 = vmatpush1.msra.mxu0 0.0
        %5862 = vmatprep.subr.mxu0 0.0
        %5863 = vmatpush1.msra.mxu0 0.0
        %5864 = vmatprep.subr.mxu0 0.0
        %5865 = vmatpush1.msra.mxu0 0.0
        %5866 = vmatprep.subr.mxu0 0.0
        %5867 = vmatpush1.msra.mxu0 0.0
        %5868 = vmatprep.subr.mxu0 0.0
        %5869 = vmatpush1.msra.mxu0 0.0
        %5870 = vmatprep.subr.mxu0 0.0
        %5871 = vmatpush1.msra.mxu0 0.0
        %5872 = vmatprep.subr.mxu0 0.0
        %5873 = vmatpush1.msra.mxu0 0.0
        %5874 = vmatprep.subr.mxu0 0.0
        %5875 = vmatpush1.msra.mxu0 0.0
        %5876 = vmatprep.subr.mxu0 0.0
        %5877 = vmatpush1.msra.mxu0 0.0
        %5878 = vmatprep.subr.mxu0 0.0
        %5879 = vmatpush1.msra.mxu0 0.0
        %5880 = vmatprep.subr.mxu0 0.0
        %5881 = vmatpush1.msra.mxu0 0.0
        %5882 = vmatprep.subr.mxu0 0.0
        %5883 = vmatpush1.msra.mxu0 0.0
        %5884 = vmatprep.subr.mxu0 0.0
        %5885 = vmatpush1.msra.mxu0 0.0
        %5886 = vmatprep.subr.mxu0 0.0
        %5887 = vmatpush1.msra.mxu0 0.0
        %5888 = vmatprep.subr.mxu0 0.0
        %5889 = vmatpush1.msra.mxu0 0.0
        %5890 = vmatprep.subr.mxu0 0.0
        %5891 = vmatpush1.msra.mxu0 0.0
        %5892 = vmatprep.subr.mxu0 0.0
        %5893 = vmatpush1.msra.mxu0 0.0
        %5894 = vmatprep.subr.mxu0 0.0
        %5895 = vmatpush1.msra.mxu0 0.0
        %5896 = vmatprep.subr.mxu0 0.0
        %5897 = vmatpush1.msra.mxu0 0.0
        %5898 = vmatprep.subr.mxu0 0.0
        %5899 = vmatpush1.msra.mxu0 0.0
        %5900 = vmatprep.subr.mxu0 0.0
        %5901 = vmatpush1.msra.mxu0 0.0
        %5902 = vmatprep.subr.mxu0 0.0
        %5903 = vmatpush1.msra.mxu0 0.0
        %5904 = vmatprep.subr.mxu0 0.0
        %5905 = vmatpush1.msra.mxu0 0.0
        %5906 = vmatprep.mubr.f32.mxu0 0.0
        %5907 = vmatmul.mubr.f32.gmra.mrb[0].mxu0 %v5840
        %v5908 = vpop.f32.mrb[0].mxu0
        %v5909 = vadd.f32 0.0, %v5908
        %v5910 = vpop.f32.mrb[0].mxu0
        %5911 = vdwg.mxu0
        %v5912 = vmul.f32 %v936, %v5909
        %v5913 = vmul.f32 %v5912, %v943
        %v5914 = vmul.f32 %v5913, 0.25
        %v5915 = vsel %vm947, %v5914, -inf
        %5916 = vmax.xlane.f32.xlu0 %v5915
        %v5917 = vpop.xlane.xlu0 %5916
        %v5918 = vsub.f32 %v5914, %v5917
        %v5919 = vmul.f32 %v5918, 1.442695
        %v5920 = vpow.pop %v5919
        %v5921 = vsel %vm947, %v5920, 0.0
        %5922 = vadd.xlane.f32.xlu0 %v5921
        %v5923 = vpop.xlane.xlu0 %5922
        %v5924 = vrcp.pop %v5923
        %v5925 = vmul.f32 %v5920, %v5924
        %5926 = vmatprep.subr.mxu0 0.0
        %5927 = vmatpush1.msra.mxu0 %v813
        %5928 = vmatprep.subr.mxu0 0.0
        %5929 = vmatpush1.msra.mxu0 %v814
        %5930 = vmatprep.subr.mxu0 0.0
        %5931 = vmatpush1.msra.mxu0 0.0
        %5932 = vmatprep.subr.mxu0 0.0
        %5933 = vmatpush1.msra.mxu0 0.0
        %5934 = vmatprep.subr.mxu0 0.0
        %5935 = vmatpush1.msra.mxu0 0.0
        %5936 = vmatprep.subr.mxu0 0.0
        %5937 = vmatpush1.msra.mxu0 0.0
        %5938 = vmatprep.subr.mxu0 0.0
        %5939 = vmatpush1.msra.mxu0 0.0
        %5940 = vmatprep.subr.mxu0 0.0
        %5941 = vmatpush1.msra.mxu0 0.0
        %5942 = vmatprep.subr.mxu0 0.0
        %5943 = vmatpush1.msra.mxu0 0.0
        %5944 = vmatprep.subr.mxu0 0.0
        %5945 = vmatpush1.msra.mxu0 0.0
        %5946 = vmatprep.subr.mxu0 0.0
        %5947 = vmatpush1.msra.mxu0 0.0
        %5948 = vmatprep.subr.mxu0 0.0
        %5949 = vmatpush1.msra.mxu0 0.0
        %5950 = vmatprep.subr.mxu0 0.0
        %5951 = vmatpush1.msra.mxu0 0.0
        %5952 = vmatprep.subr.mxu0 0.0
        %5953 = vmatpush1.msra.mxu0 0.0
        %5954 = vmatprep.subr.mxu0 0.0
        %5955 = vmatpush1.msra.mxu0 0.0
        %5956 = vmatprep.subr.mxu0 0.0
        %5957 = vmatpush1.msra.mxu0 0.0
        %5958 = vmatprep.subr.mxu0 0.0
        %5959 = vmatpush1.msra.mxu0 0.0
        %5960 = vmatprep.subr.mxu0 0.0
        %5961 = vmatpush1.msra.mxu0 0.0
        %5962 = vmatprep.subr.mxu0 0.0
        %5963 = vmatpush1.msra.mxu0 0.0
        %5964 = vmatprep.subr.mxu0 0.0
        %5965 = vmatpush1.msra.mxu0 0.0
        %5966 = vmatprep.subr.mxu0 0.0
        %5967 = vmatpush1.msra.mxu0 0.0
        %5968 = vmatprep.subr.mxu0 0.0
        %5969 = vmatpush1.msra.mxu0 0.0
        %5970 = vmatprep.subr.mxu0 0.0
        %5971 = vmatpush1.msra.mxu0 0.0
        %5972 = vmatprep.subr.mxu0 0.0
        %5973 = vmatpush1.msra.mxu0 0.0
        %5974 = vmatprep.subr.mxu0 0.0
        %5975 = vmatpush1.msra.mxu0 0.0
        %5976 = vmatprep.subr.mxu0 0.0
        %5977 = vmatpush1.msra.mxu0 0.0
        %5978 = vmatprep.subr.mxu0 0.0
        %5979 = vmatpush1.msra.mxu0 0.0
        %5980 = vmatprep.subr.mxu0 0.0
        %5981 = vmatpush1.msra.mxu0 0.0
        %5982 = vmatprep.subr.mxu0 0.0
        %5983 = vmatpush1.msra.mxu0 0.0
        %5984 = vmatprep.subr.mxu0 0.0
        %5985 = vmatpush1.msra.mxu0 0.0
        %5986 = vmatprep.subr.mxu0 0.0
        %5987 = vmatpush1.msra.mxu0 0.0
        %5988 = vmatprep.subr.mxu0 0.0
        %5989 = vmatpush1.msra.mxu0 0.0
        %5990 = vmatprep.mubr.f32.mxu0 0.0
        %5991 = vmatmul.mubr.f32.gmra.mrb[0].mxu0 %v5840
        %v5992 = vpop.f32.mrb[0].mxu0
        %v5993 = vadd.f32 0.0, %v5992
        %v5994 = vpop.f32.mrb[0].mxu0
        %5995 = vdwg.mxu0
        %5996 = vxpose.xlu0.b32.start [1/16] %v5925, 128
        %5997 = vxpose.xlu0.b32.cont [2/16] 0.0, 128
        %5998 = vxpose.xlu0.b32.cont [3/16] 0.0, 128
        %5999 = vxpose.xlu0.b32.cont [4/16] 0.0, 128
        %6000 = vxpose.xlu0.b32.cont [5/16] 0.0, 128
        %6001 = vxpose.xlu0.b32.cont [6/16] 0.0, 128
        %6002 = vxpose.xlu0.b32.cont [7/16] 0.0, 128
        %6003 = vxpose.xlu0.b32.cont [8/16] 0.0, 128
        %6004 = vxpose.xlu0.b32.cont [9/16] 0.0, 128
        %6005 = vxpose.xlu0.b32.cont [10/16] 0.0, 128
        %6006 = vxpose.xlu0.b32.cont [11/16] 0.0, 128
        %6007 = vxpose.xlu0.b32.cont [12/16] 0.0, 128
        %6008 = vxpose.xlu0.b32.cont [13/16] 0.0, 128
        %6009 = vxpose.xlu0.b32.cont [14/16] 0.0, 128
        %6010 = vxpose.xlu0.b32.cont [15/16] 0.0, 128
        %6011 = vxpose.xlu0.b32.end [16/16] 0.0, 128
        %v6012 = vpop.trf.xlu0
        %v6013 = vpop.trf.xlu0
        %v6014 = vpop.trf.xlu0
        %v6015 = vpop.trf.xlu0
        %v6016 = vpop.trf.xlu0
        %v6017 = vpop.trf.xlu0
        %v6018 = vpop.trf.xlu0
        %v6019 = vpop.trf.xlu0
        %v6020 = vpop.trf.xlu0
        %v6021 = vpop.trf.xlu0
        %v6022 = vpop.trf.xlu0
        %v6023 = vpop.trf.xlu0
        %v6024 = vpop.trf.xlu0
        %v6025 = vpop.trf.xlu0
        %v6026 = vpop.trf.xlu0
        %v6027 = vpop.trf.xlu0
        %v6029 = vsel %vm947, %v6012, 0
        %6031 = vmatprep.subr.mxu0 0.0
        %6032 = vmatpush1.msra.mxu0 1.0
        %6033 = vmatprep.subr.mxu0 0.0
        %6034 = vmatpush1.msra.mxu0 0.0
        %6035 = vmatprep.subr.mxu0 0.0
        %6036 = vmatpush1.msra.mxu0 0.0
        %6037 = vmatprep.subr.mxu0 0.0
        %6038 = vmatpush1.msra.mxu0 0.0
        %6039 = vmatprep.subr.mxu0 0.0
        %6040 = vmatpush1.msra.mxu0 0.0
        %6041 = vmatprep.subr.mxu0 0.0
        %6042 = vmatpush1.msra.mxu0 0.0
        %6043 = vmatprep.subr.mxu0 0.0
        %6044 = vmatpush1.msra.mxu0 0.0
        %6045 = vmatprep.subr.mxu0 0.0
        %6046 = vmatpush1.msra.mxu0 0.0
        %6047 = vmatprep.subr.mxu0 0.0
        %6048 = vmatpush1.msra.mxu0 0.0
        %6049 = vmatprep.subr.mxu0 0.0
        %6050 = vmatpush1.msra.mxu0 0.0
        %6051 = vmatprep.subr.mxu0 0.0
        %6052 = vmatpush1.msra.mxu0 0.0
        %6053 = vmatprep.subr.mxu0 0.0
        %6054 = vmatpush1.msra.mxu0 0.0
        %6055 = vmatprep.subr.mxu0 0.0
        %6056 = vmatpush1.msra.mxu0 0.0
        %6057 = vmatprep.subr.mxu0 0.0
        %6058 = vmatpush1.msra.mxu0 0.0
        %6059 = vmatprep.subr.mxu0 0.0
        %6060 = vmatpush1.msra.mxu0 0.0
        %6061 = vmatprep.subr.mxu0 0.0
        %6062 = vmatpush1.msra.mxu0 0.0
        %6063 = vmatprep.subr.mxu0 0.0
        %6064 = vmatpush1.msra.mxu0 0.0
        %6065 = vmatprep.subr.mxu0 0.0
        %6066 = vmatpush1.msra.mxu0 0.0
        %6067 = vmatprep.subr.mxu0 0.0
        %6068 = vmatpush1.msra.mxu0 0.0
        %6069 = vmatprep.subr.mxu0 0.0
        %6070 = vmatpush1.msra.mxu0 0.0
        %6071 = vmatprep.subr.mxu0 0.0
        %6072 = vmatpush1.msra.mxu0 0.0
        %6073 = vmatprep.subr.mxu0 0.0
        %6074 = vmatpush1.msra.mxu0 0.0
        %6075 = vmatprep.subr.mxu0 0.0
        %6076 = vmatpush1.msra.mxu0 0.0
        %6077 = vmatprep.subr.mxu0 0.0
        %6078 = vmatpush1.msra.mxu0 0.0
        %6079 = vmatprep.subr.mxu0 0.0
        %6080 = vmatpush1.msra.mxu0 0.0
        %6081 = vmatprep.subr.mxu0 0.0
        %6082 = vmatpush1.msra.mxu0 0.0
        %6083 = vmatprep.subr.mxu0 0.0
        %6084 = vmatpush1.msra.mxu0 0.0
        %6085 = vmatprep.subr.mxu0 0.0
        %6086 = vmatpush1.msra.mxu0 0.0
        %6087 = vmatprep.subr.mxu0 0.0
        %6088 = vmatpush1.msra.mxu0 0.0
        %6089 = vmatprep.subr.mxu0 0.0
        %6090 = vmatpush1.msra.mxu0 0.0
        %6091 = vmatprep.subr.mxu0 0.0
        %6092 = vmatpush1.msra.mxu0 0.0
        %6093 = vmatprep.subr.mxu0 0.0
        %6094 = vmatpush1.msra.mxu0 0.0
        %6095 = vmatprep.mubr.f32.mxu0 0.0
        %6096 = vmatmul.mubr.f32.gmra.mrb[0].mxu0 %v6029
        %v6097 = vpop.f32.mrb[0].mxu0
        %v6098 = vadd.f32 0.0, %v6097
        %v6099 = vpop.f32.mrb[0].mxu0
        %6100 = vdwg.mxu0
        %v6101 = vsel %vm947, %v5925, 0.0
        %v6102 = vrot.slane %v6101, 4
        %v6103 = vadd.f32 %v6101, %v6102
        %v6104 = vrot.slane %v6103, 2
        %v6105 = vadd.f32 %v6103, %v6104
        %v6106 = vrot.slane %v6105, 1
        %v6107 = vadd.f32 %v6105, %v6106
        %v6108 = vrsqrt.pop %v6098
        %v6109 = vmul.f32 %v6098, %v6108
        %vm6110 = vcmp.eq.f32.partialorder %v6098, inf
        %v6111 = vsel %vm6110, %v6098, %v6109
        %vm6112 = vcmp.eq.f32.partialorder %v6098, 0.0
        %v6113 = vand.u32 %v6098, 2147483648
        %v6114 = vsel %vm6112, %v6113, %v6111
        %v6115 = vrcp.pop %v6114
        %v6116 = vmul.f32 1.0, %v6115
        %v6117 = vrsqrt.pop %v6107
        %v6118 = vmul.f32 %v6107, %v6117
        %vm6119 = vcmp.eq.f32.partialorder %v6107, inf
        %v6120 = vsel %vm6119, %v6107, %v6118
        %vm6121 = vcmp.eq.f32.partialorder %v6107, 0.0
        %v6122 = vand.u32 %v6107, 2147483648
        %v6123 = vsel %vm6121, %v6122, %v6120
        %v6124 = vrcp.pop %v6123
        %v6125 = vmul.f32 1.0, %v6124
        %6127 = vset.pattern.permute.xlu0 0
        %6128 = vperm.xlu0 %6127, %v6116
        %v6129 = vpop.permute.xlu0 %6128
        %v6131 = vmul.f32 %v6129, %v5925
        %v6132 = vmul.f32 %v6131, %v6125
        %6133 = vxpose.xlu0.b32.start [1/16] %v6132, 128
        %6134 = vxpose.xlu0.b32.cont [2/16] 0.0, 128
        %6135 = vxpose.xlu0.b32.cont [3/16] 0.0, 128
        %6136 = vxpose.xlu0.b32.cont [4/16] 0.0, 128
        %6137 = vxpose.xlu0.b32.cont [5/16] 0.0, 128
        %6138 = vxpose.xlu0.b32.cont [6/16] 0.0, 128
        %6139 = vxpose.xlu0.b32.cont [7/16] 0.0, 128
        %6140 = vxpose.xlu0.b32.cont [8/16] 0.0, 128
        %6141 = vxpose.xlu0.b32.cont [9/16] 0.0, 128
        %6142 = vxpose.xlu0.b32.cont [10/16] 0.0, 128
        %6143 = vxpose.xlu0.b32.cont [11/16] 0.0, 128
        %6144 = vxpose.xlu0.b32.cont [12/16] 0.0, 128
        %6145 = vxpose.xlu0.b32.cont [13/16] 0.0, 128
        %6146 = vxpose.xlu0.b32.cont [14/16] 0.0, 128
        %6147 = vxpose.xlu0.b32.cont [15/16] 0.0, 128
        %6148 = vxpose.xlu0.b32.end [16/16] 0.0, 128
        %v6149 = vpop.trf.xlu0
        %v6150 = vpop.trf.xlu0
        %v6151 = vpop.trf.xlu0
        %v6152 = vpop.trf.xlu0
        %v6153 = vpop.trf.xlu0
        %v6154 = vpop.trf.xlu0
        %v6155 = vpop.trf.xlu0
        %v6156 = vpop.trf.xlu0
        %v6157 = vpop.trf.xlu0
        %v6158 = vpop.trf.xlu0
        %v6159 = vpop.trf.xlu0
        %v6160 = vpop.trf.xlu0
        %v6161 = vpop.trf.xlu0
        %v6162 = vpop.trf.xlu0
        %v6163 = vpop.trf.xlu0
        %v6164 = vpop.trf.xlu0
        %v6166 = vsel %vm947, %v6149, 0
        %6168 = vmatprep.subr.mxu0 0.0
        %6169 = vmatpush1.msra.mxu0 %v5993
        %6170 = vmatprep.subr.mxu0 0.0
        %6171 = vmatpush1.msra.mxu0 0.0
        %6172 = vmatprep.subr.mxu0 0.0
        %6173 = vmatpush1.msra.mxu0 0.0
        %6174 = vmatprep.subr.mxu0 0.0
        %6175 = vmatpush1.msra.mxu0 0.0
        %6176 = vmatprep.subr.mxu0 0.0
        %6177 = vmatpush1.msra.mxu0 0.0
        %6178 = vmatprep.subr.mxu0 0.0
        %6179 = vmatpush1.msra.mxu0 0.0
        %6180 = vmatprep.subr.mxu0 0.0
        %6181 = vmatpush1.msra.mxu0 0.0
        %6182 = vmatprep.subr.mxu0 0.0
        %6183 = vmatpush1.msra.mxu0 0.0
        %6184 = vmatprep.subr.mxu0 0.0
        %6185 = vmatpush1.msra.mxu0 0.0
        %6186 = vmatprep.subr.mxu0 0.0
        %6187 = vmatpush1.msra.mxu0 0.0
        %6188 = vmatprep.subr.mxu0 0.0
        %6189 = vmatpush1.msra.mxu0 0.0
        %6190 = vmatprep.subr.mxu0 0.0
        %6191 = vmatpush1.msra.mxu0 0.0
        %6192 = vmatprep.subr.mxu0 0.0
        %6193 = vmatpush1.msra.mxu0 0.0
        %6194 = vmatprep.subr.mxu0 0.0
        %6195 = vmatpush1.msra.mxu0 0.0
        %6196 = vmatprep.subr.mxu0 0.0
        %6197 = vmatpush1.msra.mxu0 0.0
        %6198 = vmatprep.subr.mxu0 0.0
        %6199 = vmatpush1.msra.mxu0 0.0
        %6200 = vmatprep.subr.mxu0 0.0
        %6201 = vmatpush1.msra.mxu0 0.0
        %6202 = vmatprep.subr.mxu0 0.0
        %6203 = vmatpush1.msra.mxu0 0.0
        %6204 = vmatprep.subr.mxu0 0.0
        %6205 = vmatpush1.msra.mxu0 0.0
        %6206 = vmatprep.subr.mxu0 0.0
        %6207 = vmatpush1.msra.mxu0 0.0
        %6208 = vmatprep.subr.mxu0 0.0
        %6209 = vmatpush1.msra.mxu0 0.0
        %6210 = vmatprep.subr.mxu0 0.0
        %6211 = vmatpush1.msra.mxu0 0.0
        %6212 = vmatprep.subr.mxu0 0.0
        %6213 = vmatpush1.msra.mxu0 0.0
        %6214 = vmatprep.subr.mxu0 0.0
        %6215 = vmatpush1.msra.mxu0 0.0
        %6216 = vmatprep.subr.mxu0 0.0
        %6217 = vmatpush1.msra.mxu0 0.0
        %6218 = vmatprep.subr.mxu0 0.0
        %6219 = vmatpush1.msra.mxu0 0.0
        %6220 = vmatprep.subr.mxu0 0.0
        %6221 = vmatpush1.msra.mxu0 0.0
        %6222 = vmatprep.subr.mxu0 0.0
        %6223 = vmatpush1.msra.mxu0 0.0
        %6224 = vmatprep.subr.mxu0 0.0
        %6225 = vmatpush1.msra.mxu0 0.0
        %6226 = vmatprep.subr.mxu0 0.0
        %6227 = vmatpush1.msra.mxu0 0.0
        %6228 = vmatprep.subr.mxu0 0.0
        %6229 = vmatpush1.msra.mxu0 0.0
        %6230 = vmatprep.subr.mxu0 0.0
        %6231 = vmatpush1.msra.mxu0 0.0
        %6232 = vmatprep.mubr.f32.mxu0 0.0
        %6233 = vmatmul.mubr.f32.gmra.mrb[0].mxu0 %v6166
        %v6234 = vpop.f32.mrb[0].mxu0
        %v6235 = vadd.f32 %v1170, %v6234
        %v6236 = vpop.f32.mrb[0].mxu0
        %6237 = vdwg.mxu0
        %v6238 = vsel %vm1277, %v6235, 0.0
        %v6239 = vrot.slane %v6238, 4
        %v6240 = vadd.f32 %v6238, %v6239
        %v6241 = vrot.slane %v6240, 2
        %v6242 = vadd.f32 %v6240, %v6241
        %v6243 = vrot.slane %v6242, 1
        %v6244 = vadd.f32 %v6242, %v6243
        %v6245 = vmul.f32 %v6244, %v1285
        %v6247 = vsel %vm947, %v802, 0
        %v6250 = vsel %vm947, %v803, 0
        %6252 = vmatprep.subr.mxu0 0.0
        %6253 = vmatpush1.xpose.msra.mxu0 %v6247
        %6254 = vmatprep.subr.mxu0 0.0
        %6255 = vmatpush1.xpose.msra.mxu0 %v6250
        %6256 = vmatprep.subr.mxu0 0.0
        %6257 = vmatpush1.xpose.msra.mxu0 0.0
        %6258 = vmatprep.subr.mxu0 0.0
        %6259 = vmatpush1.xpose.msra.mxu0 0.0
        %6260 = vmatprep.subr.mxu0 0.0
        %6261 = vmatpush1.xpose.msra.mxu0 0.0
        %6262 = vmatprep.subr.mxu0 0.0
        %6263 = vmatpush1.xpose.msra.mxu0 0.0
        %6264 = vmatprep.subr.mxu0 0.0
        %6265 = vmatpush1.xpose.msra.mxu0 0.0
        %6266 = vmatprep.subr.mxu0 0.0
        %6267 = vmatpush1.xpose.msra.mxu0 0.0
        %6268 = vmatprep.subr.mxu0 0.0
        %6269 = vmatpush1.xpose.msra.mxu0 0.0
        %6270 = vmatprep.subr.mxu0 0.0
        %6271 = vmatpush1.xpose.msra.mxu0 0.0
        %6272 = vmatprep.subr.mxu0 0.0
        %6273 = vmatpush1.xpose.msra.mxu0 0.0
        %6274 = vmatprep.subr.mxu0 0.0
        %6275 = vmatpush1.xpose.msra.mxu0 0.0
        %6276 = vmatprep.subr.mxu0 0.0
        %6277 = vmatpush1.xpose.msra.mxu0 0.0
        %6278 = vmatprep.subr.mxu0 0.0
        %6279 = vmatpush1.xpose.msra.mxu0 0.0
        %6280 = vmatprep.subr.mxu0 0.0
        %6281 = vmatpush1.xpose.msra.mxu0 0.0
        %6282 = vmatprep.subr.mxu0 0.0
        %6283 = vmatpush1.xpose.msra.mxu0 0.0
        %6284 = vmatprep.subr.mxu0 0.0
        %6285 = vmatpush1.xpose.msra.mxu0 0.0
        %6286 = vmatprep.subr.mxu0 0.0
        %6287 = vmatpush1.xpose.msra.mxu0 0.0
        %6288 = vmatprep.subr.mxu0 0.0
        %6289 = vmatpush1.xpose.msra.mxu0 0.0
        %6290 = vmatprep.subr.mxu0 0.0
        %6291 = vmatpush1.xpose.msra.mxu0 0.0
        %6292 = vmatprep.subr.mxu0 0.0
        %6293 = vmatpush1.xpose.msra.mxu0 0.0
        %6294 = vmatprep.subr.mxu0 0.0
        %6295 = vmatpush1.xpose.msra.mxu0 0.0
        %6296 = vmatprep.subr.mxu0 0.0
        %6297 = vmatpush1.xpose.msra.mxu0 0.0
        %6298 = vmatprep.subr.mxu0 0.0
        %6299 = vmatpush1.xpose.msra.mxu0 0.0
        %6300 = vmatprep.subr.mxu0 0.0
        %6301 = vmatpush1.xpose.msra.mxu0 0.0
        %6302 = vmatprep.subr.mxu0 0.0
        %6303 = vmatpush1.xpose.msra.mxu0 0.0
        %6304 = vmatprep.subr.mxu0 0.0
        %6305 = vmatpush1.xpose.msra.mxu0 0.0
        %6306 = vmatprep.subr.mxu0 0.0
        %6307 = vmatpush1.xpose.msra.mxu0 0.0
        %6308 = vmatprep.subr.mxu0 0.0
        %6309 = vmatpush1.xpose.msra.mxu0 0.0
        %6310 = vmatprep.subr.mxu0 0.0
        %6311 = vmatpush1.xpose.msra.mxu0 0.0
        %6312 = vmatprep.subr.mxu0 0.0
        %6313 = vmatpush1.xpose.msra.mxu0 0.0
        %6314 = vmatprep.subr.mxu0 0.0
        %6315 = vmatpush1.xpose.msra.mxu0 0.0
        %6316 = vmatprep.mubr.f32.mxu0 0.0
        %6317 = vmatmul.mubr.f32.gmra.mrb[0].mxu0 %v6247
        %v6318 = vpop.f32.mrb[0].mxu0
        %v6319 = vadd.f32 0.0, %v6318
        %v6320 = vpop.f32.mrb[0].mxu0
        %6321 = vmatprep.mubr.f32.mxu0 0.0
        %6322 = vmatmul.mubr.f32.gmra.mrb[0].mxu0 %v6250
        %v6323 = vpop.f32.mrb[0].mxu0
        %v6324 = vadd.f32 0.0, %v6323
        %v6325 = vpop.f32.mrb[0].mxu0
        %6326 = vdwg.mxu0
        %v6327 = vmul.f32 %v1371, %v6319
        %v6328 = vmul.f32 %v1376, %v6324
        %v6329 = vmul.f32 %v6327, %v1384
        %v6330 = vmul.f32 %v6328, %v1384
        %v6331 = vmul.f32 %v6329, 0.35355338
        %v6332 = vmul.f32 %v6330, 0.35355338
        %v6333 = vsel %vm859, %v6331, -inf
        %6334 = vmax.xlane.f32.xlu0 %v6333
        %v6335 = vpop.xlane.xlu0 %6334
        %v6336 = vsel %vm859, %v6332, -inf
        %6337 = vmax.xlane.f32.xlu0 %v6336
        %v6338 = vpop.xlane.xlu0 %6337
        %v6339 = vsub.f32 %v6331, %v6335
        %v6340 = vsub.f32 %v6332, %v6338
        %v6341 = vmul.f32 %v6339, 1.442695
        %v6342 = vpow.pop %v6341
        %v6343 = vmul.f32 %v6340, 1.442695
        %v6344 = vpow.pop %v6343
        %v6345 = vsel %vm859, %v6342, 0.0
        %6346 = vadd.xlane.f32.xlu0 %v6345
        %v6347 = vpop.xlane.xlu0 %6346
        %v6348 = vsel %vm859, %v6344, 0.0
        %6349 = vadd.xlane.f32.xlu0 %v6348
        %v6350 = vpop.xlane.xlu0 %6349
        %v6351 = vrcp.pop %v6347
        %v6352 = vmul.f32 %v6342, %v6351
        %v6353 = vrcp.pop %v6350
        %v6354 = vmul.f32 %v6344, %v6353
        %6355 = vmatprep.subr.mxu0 0.0
        %6356 = vmatpush1.msra.mxu0 %v816
        %6357 = vmatprep.subr.mxu0 0.0
        %6358 = vmatpush1.msra.mxu0 0.0
        %6359 = vmatprep.subr.mxu0 0.0
        %6360 = vmatpush1.msra.mxu0 0.0
        %6361 = vmatprep.subr.mxu0 0.0
        %6362 = vmatpush1.msra.mxu0 0.0
        %6363 = vmatprep.subr.mxu0 0.0
        %6364 = vmatpush1.msra.mxu0 0.0
        %6365 = vmatprep.subr.mxu0 0.0
        %6366 = vmatpush1.msra.mxu0 0.0
        %6367 = vmatprep.subr.mxu0 0.0
        %6368 = vmatpush1.msra.mxu0 0.0
        %6369 = vmatprep.subr.mxu0 0.0
        %6370 = vmatpush1.msra.mxu0 0.0
        %6371 = vmatprep.subr.mxu0 0.0
        %6372 = vmatpush1.msra.mxu0 0.0
        %6373 = vmatprep.subr.mxu0 0.0
        %6374 = vmatpush1.msra.mxu0 0.0
        %6375 = vmatprep.subr.mxu0 0.0
        %6376 = vmatpush1.msra.mxu0 0.0
        %6377 = vmatprep.subr.mxu0 0.0
        %6378 = vmatpush1.msra.mxu0 0.0
        %6379 = vmatprep.subr.mxu0 0.0
        %6380 = vmatpush1.msra.mxu0 0.0
        %6381 = vmatprep.subr.mxu0 0.0
        %6382 = vmatpush1.msra.mxu0 0.0
        %6383 = vmatprep.subr.mxu0 0.0
        %6384 = vmatpush1.msra.mxu0 0.0
        %6385 = vmatprep.subr.mxu0 0.0
        %6386 = vmatpush1.msra.mxu0 0.0
        %6387 = vmatprep.subr.mxu0 0.0
        %6388 = vmatpush1.msra.mxu0 0.0
        %6389 = vmatprep.subr.mxu0 0.0
        %6390 = vmatpush1.msra.mxu0 0.0
        %6391 = vmatprep.subr.mxu0 0.0
        %6392 = vmatpush1.msra.mxu0 0.0
        %6393 = vmatprep.subr.mxu0 0.0
        %6394 = vmatpush1.msra.mxu0 0.0
        %6395 = vmatprep.subr.mxu0 0.0
        %6396 = vmatpush1.msra.mxu0 0.0
        %6397 = vmatprep.subr.mxu0 0.0
        %6398 = vmatpush1.msra.mxu0 0.0
        %6399 = vmatprep.subr.mxu0 0.0
        %6400 = vmatpush1.msra.mxu0 0.0
        %6401 = vmatprep.subr.mxu0 0.0
        %6402 = vmatpush1.msra.mxu0 0.0
        %6403 = vmatprep.subr.mxu0 0.0
        %6404 = vmatpush1.msra.mxu0 0.0
        %6405 = vmatprep.subr.mxu0 0.0
        %6406 = vmatpush1.msra.mxu0 0.0
        %6407 = vmatprep.subr.mxu0 0.0
        %6408 = vmatpush1.msra.mxu0 0.0
        %6409 = vmatprep.subr.mxu0 0.0
        %6410 = vmatpush1.msra.mxu0 0.0
        %6411 = vmatprep.subr.mxu0 0.0
        %6412 = vmatpush1.msra.mxu0 0.0
        %6413 = vmatprep.subr.mxu0 0.0
        %6414 = vmatpush1.msra.mxu0 0.0
        %6415 = vmatprep.subr.mxu0 0.0
        %6416 = vmatpush1.msra.mxu0 0.0
        %6417 = vmatprep.subr.mxu0 0.0
        %6418 = vmatpush1.msra.mxu0 0.0
        %6419 = vmatprep.mubr.f32.mxu0 0.0
        %6420 = vmatmul.mubr.f32.gmra.mrb[0].mxu0 %v6247
        %v6421 = vpop.f32.mrb[0].mxu0
        %v6422 = vadd.f32 0.0, %v6421
        %v6423 = vpop.f32.mrb[0].mxu0
        %6424 = vmatprep.mubr.f32.mxu0 0.0
        %6425 = vmatmul.mubr.f32.gmra.mrb[0].mxu0 %v6250
        %v6426 = vpop.f32.mrb[0].mxu0
        %v6427 = vadd.f32 0.0, %v6426
        %v6428 = vpop.f32.mrb[0].mxu0
        %6429 = vdwg.mxu0
        %6430 = vxpose.xlu0.b32.start [1/16] %v6352, 128
        %6431 = vxpose.xlu0.b32.cont [2/16] %v6354, 128
        %6432 = vxpose.xlu0.b32.cont [3/16] 0.0, 128
        %6433 = vxpose.xlu0.b32.cont [4/16] 0.0, 128
        %6434 = vxpose.xlu0.b32.cont [5/16] 0.0, 128
        %6435 = vxpose.xlu0.b32.cont [6/16] 0.0, 128
        %6436 = vxpose.xlu0.b32.cont [7/16] 0.0, 128
        %6437 = vxpose.xlu0.b32.cont [8/16] 0.0, 128
        %6438 = vxpose.xlu0.b32.cont [9/16] 0.0, 128
        %6439 = vxpose.xlu0.b32.cont [10/16] 0.0, 128
        %6440 = vxpose.xlu0.b32.cont [11/16] 0.0, 128
        %6441 = vxpose.xlu0.b32.cont [12/16] 0.0, 128
        %6442 = vxpose.xlu0.b32.cont [13/16] 0.0, 128
        %6443 = vxpose.xlu0.b32.cont [14/16] 0.0, 128
        %6444 = vxpose.xlu0.b32.cont [15/16] 0.0, 128
        %6445 = vxpose.xlu0.b32.end [16/16] 0.0, 128
        %v6446 = vpop.trf.xlu0
        %v6447 = vpop.trf.xlu0
        %v6448 = vpop.trf.xlu0
        %v6449 = vpop.trf.xlu0
        %v6450 = vpop.trf.xlu0
        %v6451 = vpop.trf.xlu0
        %v6452 = vpop.trf.xlu0
        %v6453 = vpop.trf.xlu0
        %v6454 = vpop.trf.xlu0
        %v6455 = vpop.trf.xlu0
        %v6456 = vpop.trf.xlu0
        %v6457 = vpop.trf.xlu0
        %v6458 = vpop.trf.xlu0
        %v6459 = vpop.trf.xlu0
        %v6460 = vpop.trf.xlu0
        %v6461 = vpop.trf.xlu0
        %v6463 = vsel %vm859, %v6446, 0
        %v6466 = vsel %vm859, %v6447, 0
        %6468 = vmatprep.subr.mxu0 0.0
        %6469 = vmatpush1.msra.mxu0 1.0
        %6470 = vmatprep.subr.mxu0 0.0
        %6471 = vmatpush1.msra.mxu0 1.0
        %6472 = vmatprep.subr.mxu0 0.0
        %6473 = vmatpush1.msra.mxu0 0.0
        %6474 = vmatprep.subr.mxu0 0.0
        %6475 = vmatpush1.msra.mxu0 0.0
        %6476 = vmatprep.subr.mxu0 0.0
        %6477 = vmatpush1.msra.mxu0 0.0
        %6478 = vmatprep.subr.mxu0 0.0
        %6479 = vmatpush1.msra.mxu0 0.0
        %6480 = vmatprep.subr.mxu0 0.0
        %6481 = vmatpush1.msra.mxu0 0.0
        %6482 = vmatprep.subr.mxu0 0.0
        %6483 = vmatpush1.msra.mxu0 0.0
        %6484 = vmatprep.subr.mxu0 0.0
        %6485 = vmatpush1.msra.mxu0 0.0
        %6486 = vmatprep.subr.mxu0 0.0
        %6487 = vmatpush1.msra.mxu0 0.0
        %6488 = vmatprep.subr.mxu0 0.0
        %6489 = vmatpush1.msra.mxu0 0.0
        %6490 = vmatprep.subr.mxu0 0.0
        %6491 = vmatpush1.msra.mxu0 0.0
        %6492 = vmatprep.subr.mxu0 0.0
        %6493 = vmatpush1.msra.mxu0 0.0
        %6494 = vmatprep.subr.mxu0 0.0
        %6495 = vmatpush1.msra.mxu0 0.0
        %6496 = vmatprep.subr.mxu0 0.0
        %6497 = vmatpush1.msra.mxu0 0.0
        %6498 = vmatprep.subr.mxu0 0.0
        %6499 = vmatpush1.msra.mxu0 0.0
        %6500 = vmatprep.subr.mxu0 0.0
        %6501 = vmatpush1.msra.mxu0 0.0
        %6502 = vmatprep.subr.mxu0 0.0
        %6503 = vmatpush1.msra.mxu0 0.0
        %6504 = vmatprep.subr.mxu0 0.0
        %6505 = vmatpush1.msra.mxu0 0.0
        %6506 = vmatprep.subr.mxu0 0.0
        %6507 = vmatpush1.msra.mxu0 0.0
        %6508 = vmatprep.subr.mxu0 0.0
        %6509 = vmatpush1.msra.mxu0 0.0
        %6510 = vmatprep.subr.mxu0 0.0
        %6511 = vmatpush1.msra.mxu0 0.0
        %6512 = vmatprep.subr.mxu0 0.0
        %6513 = vmatpush1.msra.mxu0 0.0
        %6514 = vmatprep.subr.mxu0 0.0
        %6515 = vmatpush1.msra.mxu0 0.0
        %6516 = vmatprep.subr.mxu0 0.0
        %6517 = vmatpush1.msra.mxu0 0.0
        %6518 = vmatprep.subr.mxu0 0.0
        %6519 = vmatpush1.msra.mxu0 0.0
        %6520 = vmatprep.subr.mxu0 0.0
        %6521 = vmatpush1.msra.mxu0 0.0
        %6522 = vmatprep.subr.mxu0 0.0
        %6523 = vmatpush1.msra.mxu0 0.0
        %6524 = vmatprep.subr.mxu0 0.0
        %6525 = vmatpush1.msra.mxu0 0.0
        %6526 = vmatprep.subr.mxu0 0.0
        %6527 = vmatpush1.msra.mxu0 0.0
        %6528 = vmatprep.subr.mxu0 0.0
        %6529 = vmatpush1.msra.mxu0 0.0
        %6530 = vmatprep.subr.mxu0 0.0
        %6531 = vmatpush1.msra.mxu0 0.0
        %6532 = vmatprep.mubr.f32.mxu0 0.0
        %6533 = vmatmul.mubr.f32.gmra.mrb[0].mxu0 %v6463
        %v6534 = vpop.f32.mrb[0].mxu0
        %v6535 = vadd.f32 0.0, %v6534
        %v6536 = vpop.f32.mrb[0].mxu0
        %6537 = vmatprep.mubr.f32.mxu0 0.0
        %6538 = vmatmul.mubr.f32.gmra.mrb[0].mxu0 %v6466
        %v6539 = vpop.f32.mrb[0].mxu0
        %v6540 = vadd.f32 0.0, %v6539
        %v6541 = vpop.f32.mrb[0].mxu0
        %6542 = vdwg.mxu0
        %v6543 = vsel %vm859, %v6352, 0.0
        %v6544 = vsel %vm859, %v6354, 0.0
        %v6545 = vadd.f32 %v6543, %v6544
        %v6546 = vrot.slane %v6545, 4
        %v6547 = vadd.f32 %v6545, %v6546
        %v6548 = vrot.slane %v6547, 2
        %v6549 = vadd.f32 %v6547, %v6548
        %v6550 = vrot.slane %v6549, 1
        %v6551 = vadd.f32 %v6549, %v6550
        %v6552 = vrsqrt.pop %v6535
        %v6553 = vmul.f32 %v6535, %v6552
        %vm6554 = vcmp.eq.f32.partialorder %v6535, inf
        %v6555 = vsel %vm6554, %v6535, %v6553
        %vm6556 = vcmp.eq.f32.partialorder %v6535, 0.0
        %v6557 = vand.u32 %v6535, 2147483648
        %v6558 = vsel %vm6556, %v6557, %v6555
        %v6559 = vrsqrt.pop %v6540
        %v6560 = vmul.f32 %v6540, %v6559
        %vm6561 = vcmp.eq.f32.partialorder %v6540, inf
        %v6562 = vsel %vm6561, %v6540, %v6560
        %vm6563 = vcmp.eq.f32.partialorder %v6540, 0.0
        %v6564 = vand.u32 %v6540, 2147483648
        %v6565 = vsel %vm6563, %v6564, %v6562
        %v6566 = vrcp.pop %v6558
        %v6567 = vmul.f32 1.0, %v6566
        %v6568 = vrcp.pop %v6565
        %v6569 = vmul.f32 1.0, %v6568
        %v6570 = vrsqrt.pop %v6551
        %v6571 = vmul.f32 %v6551, %v6570
        %vm6572 = vcmp.eq.f32.partialorder %v6551, inf
        %v6573 = vsel %vm6572, %v6551, %v6571
        %vm6574 = vcmp.eq.f32.partialorder %v6551, 0.0
        %v6575 = vand.u32 %v6551, 2147483648
        %v6576 = vsel %vm6574, %v6575, %v6573
        %v6577 = vrcp.pop %v6576
        %v6578 = vmul.f32 1.0, %v6577
        %6580 = vset.pattern.permute.xlu0 0
        %6581 = vperm.xlu0 %6580, %v6567
        %v6582 = vpop.permute.xlu0 %6581
        %6585 = vset.pattern.permute.xlu0 0
        %6586 = vperm.xlu0 %6585, %v6569
        %v6587 = vpop.permute.xlu0 %6586
        %v6589 = vmul.f32 %v6582, %v6352
        %v6590 = vmul.f32 %v6587, %v6354
        %v6591 = vmul.f32 %v6589, %v6578
        %v6592 = vmul.f32 %v6590, %v6578
        %6593 = vxpose.xlu0.b32.start [1/16] %v6591, 128
        %6594 = vxpose.xlu0.b32.cont [2/16] %v6592, 128
        %6595 = vxpose.xlu0.b32.cont [3/16] 0.0, 128
        %6596 = vxpose.xlu0.b32.cont [4/16] 0.0, 128
        %6597 = vxpose.xlu0.b32.cont [5/16] 0.0, 128
        %6598 = vxpose.xlu0.b32.cont [6/16] 0.0, 128
        %6599 = vxpose.xlu0.b32.cont [7/16] 0.0, 128
        %6600 = vxpose.xlu0.b32.cont [8/16] 0.0, 128
        %6601 = vxpose.xlu0.b32.cont [9/16] 0.0, 128
        %6602 = vxpose.xlu0.b32.cont [10/16] 0.0, 128
        %6603 = vxpose.xlu0.b32.cont [11/16] 0.0, 128
        %6604 = vxpose.xlu0.b32.cont [12/16] 0.0, 128
        %6605 = vxpose.xlu0.b32.cont [13/16] 0.0, 128
        %6606 = vxpose.xlu0.b32.cont [14/16] 0.0, 128
        %6607 = vxpose.xlu0.b32.cont [15/16] 0.0, 128
        %6608 = vxpose.xlu0.b32.end [16/16] 0.0, 128
        %v6609 = vpop.trf.xlu0
        %v6610 = vpop.trf.xlu0
        %v6611 = vpop.trf.xlu0
        %v6612 = vpop.trf.xlu0
        %v6613 = vpop.trf.xlu0
        %v6614 = vpop.trf.xlu0
        %v6615 = vpop.trf.xlu0
        %v6616 = vpop.trf.xlu0
        %v6617 = vpop.trf.xlu0
        %v6618 = vpop.trf.xlu0
        %v6619 = vpop.trf.xlu0
        %v6620 = vpop.trf.xlu0
        %v6621 = vpop.trf.xlu0
        %v6622 = vpop.trf.xlu0
        %v6623 = vpop.trf.xlu0
        %v6624 = vpop.trf.xlu0
        %v6626 = vsel %vm859, %v6609, 0
        %v6629 = vsel %vm859, %v6610, 0
        %6631 = vmatprep.subr.mxu0 0.0
        %6632 = vmatpush1.msra.mxu0 %v6422
        %6633 = vmatprep.subr.mxu0 0.0
        %6634 = vmatpush1.msra.mxu0 %v6427
        %6635 = vmatprep.subr.mxu0 0.0
        %6636 = vmatpush1.msra.mxu0 0.0
        %6637 = vmatprep.subr.mxu0 0.0
        %6638 = vmatpush1.msra.mxu0 0.0
        %6639 = vmatprep.subr.mxu0 0.0
        %6640 = vmatpush1.msra.mxu0 0.0
        %6641 = vmatprep.subr.mxu0 0.0
        %6642 = vmatpush1.msra.mxu0 0.0
        %6643 = vmatprep.subr.mxu0 0.0
        %6644 = vmatpush1.msra.mxu0 0.0
        %6645 = vmatprep.subr.mxu0 0.0
        %6646 = vmatpush1.msra.mxu0 0.0
        %6647 = vmatprep.subr.mxu0 0.0
        %6648 = vmatpush1.msra.mxu0 0.0
        %6649 = vmatprep.subr.mxu0 0.0
        %6650 = vmatpush1.msra.mxu0 0.0
        %6651 = vmatprep.subr.mxu0 0.0
        %6652 = vmatpush1.msra.mxu0 0.0
        %6653 = vmatprep.subr.mxu0 0.0
        %6654 = vmatpush1.msra.mxu0 0.0
        %6655 = vmatprep.subr.mxu0 0.0
        %6656 = vmatpush1.msra.mxu0 0.0
        %6657 = vmatprep.subr.mxu0 0.0
        %6658 = vmatpush1.msra.mxu0 0.0
        %6659 = vmatprep.subr.mxu0 0.0
        %6660 = vmatpush1.msra.mxu0 0.0
        %6661 = vmatprep.subr.mxu0 0.0
        %6662 = vmatpush1.msra.mxu0 0.0
        %6663 = vmatprep.subr.mxu0 0.0
        %6664 = vmatpush1.msra.mxu0 0.0
        %6665 = vmatprep.subr.mxu0 0.0
        %6666 = vmatpush1.msra.mxu0 0.0
        %6667 = vmatprep.subr.mxu0 0.0
        %6668 = vmatpush1.msra.mxu0 0.0
        %6669 = vmatprep.subr.mxu0 0.0
        %6670 = vmatpush1.msra.mxu0 0.0
        %6671 = vmatprep.subr.mxu0 0.0
        %6672 = vmatpush1.msra.mxu0 0.0
        %6673 = vmatprep.subr.mxu0 0.0
        %6674 = vmatpush1.msra.mxu0 0.0
        %6675 = vmatprep.subr.mxu0 0.0
        %6676 = vmatpush1.msra.mxu0 0.0
        %6677 = vmatprep.subr.mxu0 0.0
        %6678 = vmatpush1.msra.mxu0 0.0
        %6679 = vmatprep.subr.mxu0 0.0
        %6680 = vmatpush1.msra.mxu0 0.0
        %6681 = vmatprep.subr.mxu0 0.0
        %6682 = vmatpush1.msra.mxu0 0.0
        %6683 = vmatprep.subr.mxu0 0.0
        %6684 = vmatpush1.msra.mxu0 0.0
        %6685 = vmatprep.subr.mxu0 0.0
        %6686 = vmatpush1.msra.mxu0 0.0
        %6687 = vmatprep.subr.mxu0 0.0
        %6688 = vmatpush1.msra.mxu0 0.0
        %6689 = vmatprep.subr.mxu0 0.0
        %6690 = vmatpush1.msra.mxu0 0.0
        %6691 = vmatprep.subr.mxu0 0.0
        %6692 = vmatpush1.msra.mxu0 0.0
        %6693 = vmatprep.subr.mxu0 0.0
        %6694 = vmatpush1.msra.mxu0 0.0
        %6695 = vmatprep.mubr.f32.mxu0 0.0
        %6696 = vmatmul.mubr.f32.gmra.mrb[0].mxu0 %v6626
        %v6697 = vpop.f32.mrb[0].mxu0
        %v6698 = vadd.f32 %v1654, %v6697
        %v6699 = vpop.f32.mrb[0].mxu0
        %6700 = vmatprep.mubr.f32.mxu0 0.0
        %6701 = vmatmul.mubr.f32.gmra.mrb[0].mxu0 %v6629
        %v6702 = vpop.f32.mrb[0].mxu0
        %v6703 = vadd.f32 %v1654, %v6702
        %v6704 = vpop.f32.mrb[0].mxu0
        %6705 = vdwg.mxu0
        %v6706 = vsel %vm1277, %v6698, 0.0
        %v6707 = vsel %vm1277, %v6703, 0.0
        %v6708 = vadd.f32 %v6706, %v6707
        %v6709 = vrot.slane %v6708, 4
        %v6710 = vadd.f32 %v6708, %v6709
        %v6711 = vrot.slane %v6710, 2
        %v6712 = vadd.f32 %v6710, %v6711
        %v6713 = vrot.slane %v6712, 1
        %v6714 = vadd.f32 %v6712, %v6713
        %v6715 = vmul.f32 %v6714, %v1778
        %6717 = vrot.lane.b32.xlu0 %v6715, 32
        %v6718 = vpop.permute.xlu0 %6717
        %v6720 = vsel %vm1277, %v6245, %v6718
        %v6722 = vsel %vm1785, %v6720, 0
        %6724 = vmatprep.subr.mxu0 0.0
        %6725 = vmatpush1.msra.mxu0 %v818
        %6726 = vmatprep.subr.mxu0 0.0
        %6727 = vmatpush1.msra.mxu0 %v819
        %6728 = vmatprep.subr.mxu0 0.0
        %6729 = vmatpush1.msra.mxu0 %v820
        %6730 = vmatprep.subr.mxu0 0.0
        %6731 = vmatpush1.msra.mxu0 %v821
        %6732 = vmatprep.subr.mxu0 0.0
        %6733 = vmatpush1.msra.mxu0 %v822
        %6734 = vmatprep.subr.mxu0 0.0
        %6735 = vmatpush1.msra.mxu0 %v823
        %6736 = vmatprep.subr.mxu0 0.0
        %6737 = vmatpush1.msra.mxu0 %v824
        %6738 = vmatprep.subr.mxu0 0.0
        %6739 = vmatpush1.msra.mxu0 %v825
        %6740 = vmatprep.subr.mxu0 0.0
        %6741 = vmatpush1.msra.mxu0 0.0
        %6742 = vmatprep.subr.mxu0 0.0
        %6743 = vmatpush1.msra.mxu0 0.0
        %6744 = vmatprep.subr.mxu0 0.0
        %6745 = vmatpush1.msra.mxu0 0.0
        %6746 = vmatprep.subr.mxu0 0.0
        %6747 = vmatpush1.msra.mxu0 0.0
        %6748 = vmatprep.subr.mxu0 0.0
        %6749 = vmatpush1.msra.mxu0 0.0
        %6750 = vmatprep.subr.mxu0 0.0
        %6751 = vmatpush1.msra.mxu0 0.0
        %6752 = vmatprep.subr.mxu0 0.0
        %6753 = vmatpush1.msra.mxu0 0.0
        %6754 = vmatprep.subr.mxu0 0.0
        %6755 = vmatpush1.msra.mxu0 0.0
        %6756 = vmatprep.subr.mxu0 0.0
        %6757 = vmatpush1.msra.mxu0 0.0
        %6758 = vmatprep.subr.mxu0 0.0
        %6759 = vmatpush1.msra.mxu0 0.0
        %6760 = vmatprep.subr.mxu0 0.0
        %6761 = vmatpush1.msra.mxu0 0.0
        %6762 = vmatprep.subr.mxu0 0.0
        %6763 = vmatpush1.msra.mxu0 0.0
        %6764 = vmatprep.subr.mxu0 0.0
        %6765 = vmatpush1.msra.mxu0 0.0
        %6766 = vmatprep.subr.mxu0 0.0
        %6767 = vmatpush1.msra.mxu0 0.0
        %6768 = vmatprep.subr.mxu0 0.0
        %6769 = vmatpush1.msra.mxu0 0.0
        %6770 = vmatprep.subr.mxu0 0.0
        %6771 = vmatpush1.msra.mxu0 0.0
        %6772 = vmatprep.subr.mxu0 0.0
        %6773 = vmatpush1.msra.mxu0 0.0
        %6774 = vmatprep.subr.mxu0 0.0
        %6775 = vmatpush1.msra.mxu0 0.0
        %6776 = vmatprep.subr.mxu0 0.0
        %6777 = vmatpush1.msra.mxu0 0.0
        %6778 = vmatprep.subr.mxu0 0.0
        %6779 = vmatpush1.msra.mxu0 0.0
        %6780 = vmatprep.subr.mxu0 0.0
        %6781 = vmatpush1.msra.mxu0 0.0
        %6782 = vmatprep.subr.mxu0 0.0
        %6783 = vmatpush1.msra.mxu0 0.0
        %6784 = vmatprep.subr.mxu0 0.0
        %6785 = vmatpush1.msra.mxu0 0.0
        %6786 = vmatprep.subr.mxu0 0.0
        %6787 = vmatpush1.msra.mxu0 0.0
        %6788 = vmatprep.mubr.f32.mxu0 0.0
        %6789 = vmatmul.mubr.f32.gmra.mrb[0].mxu0 %v6722
        %v6790 = vpop.f32.mrb[0].mxu0
        %v6791 = vadd.f32 %v826, %v6790
        %v6792 = vpop.f32.mrb[0].mxu0
        %6793 = vdwg.mxu0
        %6794 = vxpose.xlu0.b32.start [1/16] %v774, 128
        %6795 = vxpose.xlu0.b32.cont [2/16] %v779, 128
        %6796 = vxpose.xlu0.b32.cont [3/16] 0.0, 128
        %6797 = vxpose.xlu0.b32.cont [4/16] 0.0, 128
        %6798 = vxpose.xlu0.b32.cont [5/16] 0.0, 128
        %6799 = vxpose.xlu0.b32.cont [6/16] 0.0, 128
        %6800 = vxpose.xlu0.b32.cont [7/16] 0.0, 128
        %6801 = vxpose.xlu0.b32.cont [8/16] 0.0, 128
        %6802 = vxpose.xlu0.b32.cont [9/16] 0.0, 128
        %6803 = vxpose.xlu0.b32.cont [10/16] 0.0, 128
        %6804 = vxpose.xlu0.b32.cont [11/16] 0.0, 128
        %6805 = vxpose.xlu0.b32.cont [12/16] 0.0, 128
        %6806 = vxpose.xlu0.b32.cont [13/16] 0.0, 128
        %6807 = vxpose.xlu0.b32.cont [14/16] 0.0, 128
        %6808 = vxpose.xlu0.b32.cont [15/16] 0.0, 128
        %6809 = vxpose.xlu0.b32.end [16/16] 0.0, 128
        %v6810 = vpop.trf.xlu0
        %v6811 = vpop.trf.xlu0
        %v6812 = vpop.trf.xlu0
        %v6813 = vpop.trf.xlu0
        %v6814 = vpop.trf.xlu0
        %v6815 = vpop.trf.xlu0
        %v6816 = vpop.trf.xlu0
        %v6817 = vpop.trf.xlu0
        %v6818 = vpop.trf.xlu0
        %v6819 = vpop.trf.xlu0
        %v6820 = vpop.trf.xlu0
        %v6821 = vpop.trf.xlu0
        %v6822 = vpop.trf.xlu0
        %v6823 = vpop.trf.xlu0
        %v6824 = vpop.trf.xlu0
        %v6825 = vpop.trf.xlu0
        %v6827 = vsel %vm859, %v6810, 0
        %6829 = vmatprep.subr.mxu0 0.0
        %6830 = vmatpush1.msra.mxu0 %v774
        %6831 = vmatprep.subr.mxu0 0.0
        %6832 = vmatpush1.msra.mxu0 %v779
        %6833 = vmatprep.subr.mxu0 0.0
        %6834 = vmatpush1.msra.mxu0 0.0
        %6835 = vmatprep.subr.mxu0 0.0
        %6836 = vmatpush1.msra.mxu0 0.0
        %6837 = vmatprep.subr.mxu0 0.0
        %6838 = vmatpush1.msra.mxu0 0.0
        %6839 = vmatprep.subr.mxu0 0.0
        %6840 = vmatpush1.msra.mxu0 0.0
        %6841 = vmatprep.subr.mxu0 0.0
        %6842 = vmatpush1.msra.mxu0 0.0
        %6843 = vmatprep.subr.mxu0 0.0
        %6844 = vmatpush1.msra.mxu0 0.0
        %6845 = vmatprep.subr.mxu0 0.0
        %6846 = vmatpush1.msra.mxu0 0.0
        %6847 = vmatprep.subr.mxu0 0.0
        %6848 = vmatpush1.msra.mxu0 0.0
        %6849 = vmatprep.subr.mxu0 0.0
        %6850 = vmatpush1.msra.mxu0 0.0
        %6851 = vmatprep.subr.mxu0 0.0
        %6852 = vmatpush1.msra.mxu0 0.0
        %6853 = vmatprep.subr.mxu0 0.0
        %6854 = vmatpush1.msra.mxu0 0.0
        %6855 = vmatprep.subr.mxu0 0.0
        %6856 = vmatpush1.msra.mxu0 0.0
        %6857 = vmatprep.subr.mxu0 0.0
        %6858 = vmatpush1.msra.mxu0 0.0
        %6859 = vmatprep.subr.mxu0 0.0
        %6860 = vmatpush1.msra.mxu0 0.0
        %6861 = vmatprep.subr.mxu0 0.0
        %6862 = vmatpush1.msra.mxu0 0.0
        %6863 = vmatprep.subr.mxu0 0.0
        %6864 = vmatpush1.msra.mxu0 0.0
        %6865 = vmatprep.subr.mxu0 0.0
        %6866 = vmatpush1.msra.mxu0 0.0
        %6867 = vmatprep.subr.mxu0 0.0
        %6868 = vmatpush1.msra.mxu0 0.0
        %6869 = vmatprep.subr.mxu0 0.0
        %6870 = vmatpush1.msra.mxu0 0.0
        %6871 = vmatprep.subr.mxu0 0.0
        %6872 = vmatpush1.msra.mxu0 0.0
        %6873 = vmatprep.subr.mxu0 0.0
        %6874 = vmatpush1.msra.mxu0 0.0
        %6875 = vmatprep.subr.mxu0 0.0
        %6876 = vmatpush1.msra.mxu0 0.0
        %6877 = vmatprep.subr.mxu0 0.0
        %6878 = vmatpush1.msra.mxu0 0.0
        %6879 = vmatprep.subr.mxu0 0.0
        %6880 = vmatpush1.msra.mxu0 0.0
        %6881 = vmatprep.subr.mxu0 0.0
        %6882 = vmatpush1.msra.mxu0 0.0
        %6883 = vmatprep.subr.mxu0 0.0
        %6884 = vmatpush1.msra.mxu0 0.0
        %6885 = vmatprep.subr.mxu0 0.0
        %6886 = vmatpush1.msra.mxu0 0.0
        %6887 = vmatprep.subr.mxu0 0.0
        %6888 = vmatpush1.msra.mxu0 0.0
        %6889 = vmatprep.subr.mxu0 0.0
        %6890 = vmatpush1.msra.mxu0 0.0
        %6891 = vmatprep.subr.mxu0 0.0
        %6892 = vmatpush1.msra.mxu0 0.0
        %6893 = vmatprep.mubr.f32.mxu0 0.0
        %6894 = vmatmul.mubr.f32.gmra.mrb[0].mxu0 %v6827
        %v6895 = vpop.f32.mrb[0].mxu0
        %v6896 = vadd.f32 0.0, %v6895
        %v6897 = vpop.f32.mrb[0].mxu0
        %6898 = vdwg.mxu0
        %v6899 = vmul.f32 %v936, %v6896
        %v6900 = vmul.f32 %v6899, %v943
        %v6901 = vmul.f32 %v6900, 0.25
        %v6902 = vsel %vm947, %v6901, -inf
        %6903 = vmax.xlane.f32.xlu0 %v6902
        %v6904 = vpop.xlane.xlu0 %6903
        %v6905 = vsub.f32 %v6901, %v6904
        %v6906 = vmul.f32 %v6905, 1.442695
        %v6907 = vpow.pop %v6906
        %v6908 = vsel %vm947, %v6907, 0.0
        %6909 = vadd.xlane.f32.xlu0 %v6908
        %v6910 = vpop.xlane.xlu0 %6909
        %v6911 = vrcp.pop %v6910
        %v6912 = vmul.f32 %v6907, %v6911
        %6913 = vmatprep.subr.mxu0 0.0
        %6914 = vmatpush1.msra.mxu0 %v813
        %6915 = vmatprep.subr.mxu0 0.0
        %6916 = vmatpush1.msra.mxu0 %v814
        %6917 = vmatprep.subr.mxu0 0.0
        %6918 = vmatpush1.msra.mxu0 0.0
        %6919 = vmatprep.subr.mxu0 0.0
        %6920 = vmatpush1.msra.mxu0 0.0
        %6921 = vmatprep.subr.mxu0 0.0
        %6922 = vmatpush1.msra.mxu0 0.0
        %6923 = vmatprep.subr.mxu0 0.0
        %6924 = vmatpush1.msra.mxu0 0.0
        %6925 = vmatprep.subr.mxu0 0.0
        %6926 = vmatpush1.msra.mxu0 0.0
        %6927 = vmatprep.subr.mxu0 0.0
        %6928 = vmatpush1.msra.mxu0 0.0
        %6929 = vmatprep.subr.mxu0 0.0
        %6930 = vmatpush1.msra.mxu0 0.0
        %6931 = vmatprep.subr.mxu0 0.0
        %6932 = vmatpush1.msra.mxu0 0.0
        %6933 = vmatprep.subr.mxu0 0.0
        %6934 = vmatpush1.msra.mxu0 0.0
        %6935 = vmatprep.subr.mxu0 0.0
        %6936 = vmatpush1.msra.mxu0 0.0
        %6937 = vmatprep.subr.mxu0 0.0
        %6938 = vmatpush1.msra.mxu0 0.0
        %6939 = vmatprep.subr.mxu0 0.0
        %6940 = vmatpush1.msra.mxu0 0.0
        %6941 = vmatprep.subr.mxu0 0.0
        %6942 = vmatpush1.msra.mxu0 0.0
        %6943 = vmatprep.subr.mxu0 0.0
        %6944 = vmatpush1.msra.mxu0 0.0
        %6945 = vmatprep.subr.mxu0 0.0
        %6946 = vmatpush1.msra.mxu0 0.0
        %6947 = vmatprep.subr.mxu0 0.0
        %6948 = vmatpush1.msra.mxu0 0.0
        %6949 = vmatprep.subr.mxu0 0.0
        %6950 = vmatpush1.msra.mxu0 0.0
        %6951 = vmatprep.subr.mxu0 0.0
        %6952 = vmatpush1.msra.mxu0 0.0
        %6953 = vmatprep.subr.mxu0 0.0
        %6954 = vmatpush1.msra.mxu0 0.0
        %6955 = vmatprep.subr.mxu0 0.0
        %6956 = vmatpush1.msra.mxu0 0.0
        %6957 = vmatprep.subr.mxu0 0.0
        %6958 = vmatpush1.msra.mxu0 0.0
        %6959 = vmatprep.subr.mxu0 0.0
        %6960 = vmatpush1.msra.mxu0 0.0
        %6961 = vmatprep.subr.mxu0 0.0
        %6962 = vmatpush1.msra.mxu0 0.0
        %6963 = vmatprep.subr.mxu0 0.0
        %6964 = vmatpush1.msra.mxu0 0.0
        %6965 = vmatprep.subr.mxu0 0.0
        %6966 = vmatpush1.msra.mxu0 0.0
        %6967 = vmatprep.subr.mxu0 0.0
        %6968 = vmatpush1.msra.mxu0 0.0
        %6969 = vmatprep.subr.mxu0 0.0
        %6970 = vmatpush1.msra.mxu0 0.0
        %6971 = vmatprep.subr.mxu0 0.0
        %6972 = vmatpush1.msra.mxu0 0.0
        %6973 = vmatprep.subr.mxu0 0.0
        %6974 = vmatpush1.msra.mxu0 0.0
        %6975 = vmatprep.subr.mxu0 0.0
        %6976 = vmatpush1.msra.mxu0 0.0
        %6977 = vmatprep.mubr.f32.mxu0 0.0
        %6978 = vmatmul.mubr.f32.gmra.mrb[0].mxu0 %v6827
        %v6979 = vpop.f32.mrb[0].mxu0
        %v6980 = vadd.f32 0.0, %v6979
        %v6981 = vpop.f32.mrb[0].mxu0
        %6982 = vdwg.mxu0
        %6983 = vxpose.xlu0.b32.start [1/16] %v6912, 128
        %6984 = vxpose.xlu0.b32.cont [2/16] 0.0, 128
        %6985 = vxpose.xlu0.b32.cont [3/16] 0.0, 128
        %6986 = vxpose.xlu0.b32.cont [4/16] 0.0, 128
        %6987 = vxpose.xlu0.b32.cont [5/16] 0.0, 128
        %6988 = vxpose.xlu0.b32.cont [6/16] 0.0, 128
        %6989 = vxpose.xlu0.b32.cont [7/16] 0.0, 128
        %6990 = vxpose.xlu0.b32.cont [8/16] 0.0, 128
        %6991 = vxpose.xlu0.b32.cont [9/16] 0.0, 128
        %6992 = vxpose.xlu0.b32.cont [10/16] 0.0, 128
        %6993 = vxpose.xlu0.b32.cont [11/16] 0.0, 128
        %6994 = vxpose.xlu0.b32.cont [12/16] 0.0, 128
        %6995 = vxpose.xlu0.b32.cont [13/16] 0.0, 128
        %6996 = vxpose.xlu0.b32.cont [14/16] 0.0, 128
        %6997 = vxpose.xlu0.b32.cont [15/16] 0.0, 128
        %6998 = vxpose.xlu0.b32.end [16/16] 0.0, 128
        %v6999 = vpop.trf.xlu0
        %v7000 = vpop.trf.xlu0
        %v7001 = vpop.trf.xlu0
        %v7002 = vpop.trf.xlu0
        %v7003 = vpop.trf.xlu0
        %v7004 = vpop.trf.xlu0
        %v7005 = vpop.trf.xlu0
        %v7006 = vpop.trf.xlu0
        %v7007 = vpop.trf.xlu0
        %v7008 = vpop.trf.xlu0
        %v7009 = vpop.trf.xlu0
        %v7010 = vpop.trf.xlu0
        %v7011 = vpop.trf.xlu0
        %v7012 = vpop.trf.xlu0
        %v7013 = vpop.trf.xlu0
        %v7014 = vpop.trf.xlu0
        %v7016 = vsel %vm947, %v6999, 0
        %7018 = vmatprep.subr.mxu0 0.0
        %7019 = vmatpush1.msra.mxu0 1.0
        %7020 = vmatprep.subr.mxu0 0.0
        %7021 = vmatpush1.msra.mxu0 0.0
        %7022 = vmatprep.subr.mxu0 0.0
        %7023 = vmatpush1.msra.mxu0 0.0
        %7024 = vmatprep.subr.mxu0 0.0
        %7025 = vmatpush1.msra.mxu0 0.0
        %7026 = vmatprep.subr.mxu0 0.0
        %7027 = vmatpush1.msra.mxu0 0.0
        %7028 = vmatprep.subr.mxu0 0.0
        %7029 = vmatpush1.msra.mxu0 0.0
        %7030 = vmatprep.subr.mxu0 0.0
        %7031 = vmatpush1.msra.mxu0 0.0
        %7032 = vmatprep.subr.mxu0 0.0
        %7033 = vmatpush1.msra.mxu0 0.0
        %7034 = vmatprep.subr.mxu0 0.0
        %7035 = vmatpush1.msra.mxu0 0.0
        %7036 = vmatprep.subr.mxu0 0.0
        %7037 = vmatpush1.msra.mxu0 0.0
        %7038 = vmatprep.subr.mxu0 0.0
        %7039 = vmatpush1.msra.mxu0 0.0
        %7040 = vmatprep.subr.mxu0 0.0
        %7041 = vmatpush1.msra.mxu0 0.0
        %7042 = vmatprep.subr.mxu0 0.0
        %7043 = vmatpush1.msra.mxu0 0.0
        %7044 = vmatprep.subr.mxu0 0.0
        %7045 = vmatpush1.msra.mxu0 0.0
        %7046 = vmatprep.subr.mxu0 0.0
        %7047 = vmatpush1.msra.mxu0 0.0
        %7048 = vmatprep.subr.mxu0 0.0
        %7049 = vmatpush1.msra.mxu0 0.0
        %7050 = vmatprep.subr.mxu0 0.0
        %7051 = vmatpush1.msra.mxu0 0.0
        %7052 = vmatprep.subr.mxu0 0.0
        %7053 = vmatpush1.msra.mxu0 0.0
        %7054 = vmatprep.subr.mxu0 0.0
        %7055 = vmatpush1.msra.mxu0 0.0
        %7056 = vmatprep.subr.mxu0 0.0
        %7057 = vmatpush1.msra.mxu0 0.0
        %7058 = vmatprep.subr.mxu0 0.0
        %7059 = vmatpush1.msra.mxu0 0.0
        %7060 = vmatprep.subr.mxu0 0.0
        %7061 = vmatpush1.msra.mxu0 0.0
        %7062 = vmatprep.subr.mxu0 0.0
        %7063 = vmatpush1.msra.mxu0 0.0
        %7064 = vmatprep.subr.mxu0 0.0
        %7065 = vmatpush1.msra.mxu0 0.0
        %7066 = vmatprep.subr.mxu0 0.0
        %7067 = vmatpush1.msra.mxu0 0.0
        %7068 = vmatprep.subr.mxu0 0.0
        %7069 = vmatpush1.msra.mxu0 0.0
        %7070 = vmatprep.subr.mxu0 0.0
        %7071 = vmatpush1.msra.mxu0 0.0
        %7072 = vmatprep.subr.mxu0 0.0
        %7073 = vmatpush1.msra.mxu0 0.0
        %7074 = vmatprep.subr.mxu0 0.0
        %7075 = vmatpush1.msra.mxu0 0.0
        %7076 = vmatprep.subr.mxu0 0.0
        %7077 = vmatpush1.msra.mxu0 0.0
        %7078 = vmatprep.subr.mxu0 0.0
        %7079 = vmatpush1.msra.mxu0 0.0
        %7080 = vmatprep.subr.mxu0 0.0
        %7081 = vmatpush1.msra.mxu0 0.0
        %7082 = vmatprep.mubr.f32.mxu0 0.0
        %7083 = vmatmul.mubr.f32.gmra.mrb[0].mxu0 %v7016
        %v7084 = vpop.f32.mrb[0].mxu0
        %v7085 = vadd.f32 0.0, %v7084
        %v7086 = vpop.f32.mrb[0].mxu0
        %7087 = vdwg.mxu0
        %v7088 = vsel %vm947, %v6912, 0.0
        %v7089 = vrot.slane %v7088, 4
        %v7090 = vadd.f32 %v7088, %v7089
        %v7091 = vrot.slane %v7090, 2
        %v7092 = vadd.f32 %v7090, %v7091
        %v7093 = vrot.slane %v7092, 1
        %v7094 = vadd.f32 %v7092, %v7093
        %v7095 = vrsqrt.pop %v7085
        %v7096 = vmul.f32 %v7085, %v7095
        %vm7097 = vcmp.eq.f32.partialorder %v7085, inf
        %v7098 = vsel %vm7097, %v7085, %v7096
        %vm7099 = vcmp.eq.f32.partialorder %v7085, 0.0
        %v7100 = vand.u32 %v7085, 2147483648
        %v7101 = vsel %vm7099, %v7100, %v7098
        %v7102 = vrcp.pop %v7101
        %v7103 = vmul.f32 1.0, %v7102
        %v7104 = vrsqrt.pop %v7094
        %v7105 = vmul.f32 %v7094, %v7104
        %vm7106 = vcmp.eq.f32.partialorder %v7094, inf
        %v7107 = vsel %vm7106, %v7094, %v7105
        %vm7108 = vcmp.eq.f32.partialorder %v7094, 0.0
        %v7109 = vand.u32 %v7094, 2147483648
        %v7110 = vsel %vm7108, %v7109, %v7107
        %v7111 = vrcp.pop %v7110
        %v7112 = vmul.f32 1.0, %v7111
        %7114 = vset.pattern.permute.xlu0 0
        %7115 = vperm.xlu0 %7114, %v7103
        %v7116 = vpop.permute.xlu0 %7115
        %v7118 = vmul.f32 %v7116, %v6912
        %v7119 = vmul.f32 %v7118, %v7112
        %7120 = vxpose.xlu0.b32.start [1/16] %v7119, 128
        %7121 = vxpose.xlu0.b32.cont [2/16] 0.0, 128
        %7122 = vxpose.xlu0.b32.cont [3/16] 0.0, 128
        %7123 = vxpose.xlu0.b32.cont [4/16] 0.0, 128
        %7124 = vxpose.xlu0.b32.cont [5/16] 0.0, 128
        %7125 = vxpose.xlu0.b32.cont [6/16] 0.0, 128
        %7126 = vxpose.xlu0.b32.cont [7/16] 0.0, 128
        %7127 = vxpose.xlu0.b32.cont [8/16] 0.0, 128
        %7128 = vxpose.xlu0.b32.cont [9/16] 0.0, 128
        %7129 = vxpose.xlu0.b32.cont [10/16] 0.0, 128
        %7130 = vxpose.xlu0.b32.cont [11/16] 0.0, 128
        %7131 = vxpose.xlu0.b32.cont [12/16] 0.0, 128
        %7132 = vxpose.xlu0.b32.cont [13/16] 0.0, 128
        %7133 = vxpose.xlu0.b32.cont [14/16] 0.0, 128
        %7134 = vxpose.xlu0.b32.cont [15/16] 0.0, 128
        %7135 = vxpose.xlu0.b32.end [16/16] 0.0, 128
        %v7136 = vpop.trf.xlu0
        %v7137 = vpop.trf.xlu0
        %v7138 = vpop.trf.xlu0
        %v7139 = vpop.trf.xlu0
        %v7140 = vpop.trf.xlu0
        %v7141 = vpop.trf.xlu0
        %v7142 = vpop.trf.xlu0
        %v7143 = vpop.trf.xlu0
        %v7144 = vpop.trf.xlu0
        %v7145 = vpop.trf.xlu0
        %v7146 = vpop.trf.xlu0
        %v7147 = vpop.trf.xlu0
        %v7148 = vpop.trf.xlu0
        %v7149 = vpop.trf.xlu0
        %v7150 = vpop.trf.xlu0
        %v7151 = vpop.trf.xlu0
        %v7153 = vsel %vm947, %v7136, 0
        %7155 = vmatprep.subr.mxu0 0.0
        %7156 = vmatpush1.msra.mxu0 %v6980
        %7157 = vmatprep.subr.mxu0 0.0
        %7158 = vmatpush1.msra.mxu0 0.0
        %7159 = vmatprep.subr.mxu0 0.0
        %7160 = vmatpush1.msra.mxu0 0.0
        %7161 = vmatprep.subr.mxu0 0.0
        %7162 = vmatpush1.msra.mxu0 0.0
        %7163 = vmatprep.subr.mxu0 0.0
        %7164 = vmatpush1.msra.mxu0 0.0
        %7165 = vmatprep.subr.mxu0 0.0
        %7166 = vmatpush1.msra.mxu0 0.0
        %7167 = vmatprep.subr.mxu0 0.0
        %7168 = vmatpush1.msra.mxu0 0.0
        %7169 = vmatprep.subr.mxu0 0.0
        %7170 = vmatpush1.msra.mxu0 0.0
        %7171 = vmatprep.subr.mxu0 0.0
        %7172 = vmatpush1.msra.mxu0 0.0
        %7173 = vmatprep.subr.mxu0 0.0
        %7174 = vmatpush1.msra.mxu0 0.0
        %7175 = vmatprep.subr.mxu0 0.0
        %7176 = vmatpush1.msra.mxu0 0.0
        %7177 = vmatprep.subr.mxu0 0.0
        %7178 = vmatpush1.msra.mxu0 0.0
        %7179 = vmatprep.subr.mxu0 0.0
        %7180 = vmatpush1.msra.mxu0 0.0
        %7181 = vmatprep.subr.mxu0 0.0
        %7182 = vmatpush1.msra.mxu0 0.0
        %7183 = vmatprep.subr.mxu0 0.0
        %7184 = vmatpush1.msra.mxu0 0.0
        %7185 = vmatprep.subr.mxu0 0.0
        %7186 = vmatpush1.msra.mxu0 0.0
        %7187 = vmatprep.subr.mxu0 0.0
        %7188 = vmatpush1.msra.mxu0 0.0
        %7189 = vmatprep.subr.mxu0 0.0
        %7190 = vmatpush1.msra.mxu0 0.0
        %7191 = vmatprep.subr.mxu0 0.0
        %7192 = vmatpush1.msra.mxu0 0.0
        %7193 = vmatprep.subr.mxu0 0.0
        %7194 = vmatpush1.msra.mxu0 0.0
        %7195 = vmatprep.subr.mxu0 0.0
        %7196 = vmatpush1.msra.mxu0 0.0
        %7197 = vmatprep.subr.mxu0 0.0
        %7198 = vmatpush1.msra.mxu0 0.0
        %7199 = vmatprep.subr.mxu0 0.0
        %7200 = vmatpush1.msra.mxu0 0.0
        %7201 = vmatprep.subr.mxu0 0.0
        %7202 = vmatpush1.msra.mxu0 0.0
        %7203 = vmatprep.subr.mxu0 0.0
        %7204 = vmatpush1.msra.mxu0 0.0
        %7205 = vmatprep.subr.mxu0 0.0
        %7206 = vmatpush1.msra.mxu0 0.0
        %7207 = vmatprep.subr.mxu0 0.0
        %7208 = vmatpush1.msra.mxu0 0.0
        %7209 = vmatprep.subr.mxu0 0.0
        %7210 = vmatpush1.msra.mxu0 0.0
        %7211 = vmatprep.subr.mxu0 0.0
        %7212 = vmatpush1.msra.mxu0 0.0
        %7213 = vmatprep.subr.mxu0 0.0
        %7214 = vmatpush1.msra.mxu0 0.0
        %7215 = vmatprep.subr.mxu0 0.0
        %7216 = vmatpush1.msra.mxu0 0.0
        %7217 = vmatprep.subr.mxu0 0.0
        %7218 = vmatpush1.msra.mxu0 0.0
        %7219 = vmatprep.mubr.f32.mxu0 0.0
        %7220 = vmatmul.mubr.f32.gmra.mrb[0].mxu0 %v7153
        %v7221 = vpop.f32.mrb[0].mxu0
        %v7222 = vadd.f32 %v1170, %v7221
        %v7223 = vpop.f32.mrb[0].mxu0
        %7224 = vdwg.mxu0
        %v7225 = vsel %vm1277, %v7222, 0.0
        %v7226 = vrot.slane %v7225, 4
        %v7227 = vadd.f32 %v7225, %v7226
        %v7228 = vrot.slane %v7227, 2
        %v7229 = vadd.f32 %v7227, %v7228
        %v7230 = vrot.slane %v7229, 1
        %v7231 = vadd.f32 %v7229, %v7230
        %v7232 = vmul.f32 %v7231, %v1285
        %v7234 = vsel %vm947, %v804, 0
        %v7237 = vsel %vm947, %v805, 0
        %7239 = vmatprep.subr.mxu0 0.0
        %7240 = vmatpush1.xpose.msra.mxu0 %v7234
        %7241 = vmatprep.subr.mxu0 0.0
        %7242 = vmatpush1.xpose.msra.mxu0 %v7237
        %7243 = vmatprep.subr.mxu0 0.0
        %7244 = vmatpush1.xpose.msra.mxu0 0.0
        %7245 = vmatprep.subr.mxu0 0.0
        %7246 = vmatpush1.xpose.msra.mxu0 0.0
        %7247 = vmatprep.subr.mxu0 0.0
        %7248 = vmatpush1.xpose.msra.mxu0 0.0
        %7249 = vmatprep.subr.mxu0 0.0
        %7250 = vmatpush1.xpose.msra.mxu0 0.0
        %7251 = vmatprep.subr.mxu0 0.0
        %7252 = vmatpush1.xpose.msra.mxu0 0.0
        %7253 = vmatprep.subr.mxu0 0.0
        %7254 = vmatpush1.xpose.msra.mxu0 0.0
        %7255 = vmatprep.subr.mxu0 0.0
        %7256 = vmatpush1.xpose.msra.mxu0 0.0
        %7257 = vmatprep.subr.mxu0 0.0
        %7258 = vmatpush1.xpose.msra.mxu0 0.0
        %7259 = vmatprep.subr.mxu0 0.0
        %7260 = vmatpush1.xpose.msra.mxu0 0.0
        %7261 = vmatprep.subr.mxu0 0.0
        %7262 = vmatpush1.xpose.msra.mxu0 0.0
        %7263 = vmatprep.subr.mxu0 0.0
        %7264 = vmatpush1.xpose.msra.mxu0 0.0
        %7265 = vmatprep.subr.mxu0 0.0
        %7266 = vmatpush1.xpose.msra.mxu0 0.0
        %7267 = vmatprep.subr.mxu0 0.0
        %7268 = vmatpush1.xpose.msra.mxu0 0.0
        %7269 = vmatprep.subr.mxu0 0.0
        %7270 = vmatpush1.xpose.msra.mxu0 0.0
        %7271 = vmatprep.subr.mxu0 0.0
        %7272 = vmatpush1.xpose.msra.mxu0 0.0
        %7273 = vmatprep.subr.mxu0 0.0
        %7274 = vmatpush1.xpose.msra.mxu0 0.0
        %7275 = vmatprep.subr.mxu0 0.0
        %7276 = vmatpush1.xpose.msra.mxu0 0.0
        %7277 = vmatprep.subr.mxu0 0.0
        %7278 = vmatpush1.xpose.msra.mxu0 0.0
        %7279 = vmatprep.subr.mxu0 0.0
        %7280 = vmatpush1.xpose.msra.mxu0 0.0
        %7281 = vmatprep.subr.mxu0 0.0
        %7282 = vmatpush1.xpose.msra.mxu0 0.0
        %7283 = vmatprep.subr.mxu0 0.0
        %7284 = vmatpush1.xpose.msra.mxu0 0.0
        %7285 = vmatprep.subr.mxu0 0.0
        %7286 = vmatpush1.xpose.msra.mxu0 0.0
        %7287 = vmatprep.subr.mxu0 0.0
        %7288 = vmatpush1.xpose.msra.mxu0 0.0
        %7289 = vmatprep.subr.mxu0 0.0
        %7290 = vmatpush1.xpose.msra.mxu0 0.0
        %7291 = vmatprep.subr.mxu0 0.0
        %7292 = vmatpush1.xpose.msra.mxu0 0.0
        %7293 = vmatprep.subr.mxu0 0.0
        %7294 = vmatpush1.xpose.msra.mxu0 0.0
        %7295 = vmatprep.subr.mxu0 0.0
        %7296 = vmatpush1.xpose.msra.mxu0 0.0
        %7297 = vmatprep.subr.mxu0 0.0
        %7298 = vmatpush1.xpose.msra.mxu0 0.0
        %7299 = vmatprep.subr.mxu0 0.0
        %7300 = vmatpush1.xpose.msra.mxu0 0.0
        %7301 = vmatprep.subr.mxu0 0.0
        %7302 = vmatpush1.xpose.msra.mxu0 0.0
        %7303 = vmatprep.mubr.f32.mxu0 0.0
        %7304 = vmatmul.mubr.f32.gmra.mrb[0].mxu0 %v7234
        %v7305 = vpop.f32.mrb[0].mxu0
        %v7306 = vadd.f32 0.0, %v7305
        %v7307 = vpop.f32.mrb[0].mxu0
        %7308 = vmatprep.mubr.f32.mxu0 0.0
        %7309 = vmatmul.mubr.f32.gmra.mrb[0].mxu0 %v7237
        %v7310 = vpop.f32.mrb[0].mxu0
        %v7311 = vadd.f32 0.0, %v7310
        %v7312 = vpop.f32.mrb[0].mxu0
        %7313 = vdwg.mxu0
        %v7314 = vmul.f32 %v1371, %v7306
        %v7315 = vmul.f32 %v1376, %v7311
        %v7316 = vmul.f32 %v7314, %v1384
        %v7317 = vmul.f32 %v7315, %v1384
        %v7318 = vmul.f32 %v7316, 0.35355338
        %v7319 = vmul.f32 %v7317, 0.35355338
        %v7320 = vsel %vm859, %v7318, -inf
        %7321 = vmax.xlane.f32.xlu0 %v7320
        %v7322 = vpop.xlane.xlu0 %7321
        %v7323 = vsel %vm859, %v7319, -inf
        %7324 = vmax.xlane.f32.xlu0 %v7323
        %v7325 = vpop.xlane.xlu0 %7324
        %v7326 = vsub.f32 %v7318, %v7322
        %v7327 = vsub.f32 %v7319, %v7325
        %v7328 = vmul.f32 %v7326, 1.442695
        %v7329 = vpow.pop %v7328
        %v7330 = vmul.f32 %v7327, 1.442695
        %v7331 = vpow.pop %v7330
        %v7332 = vsel %vm859, %v7329, 0.0
        %7333 = vadd.xlane.f32.xlu0 %v7332
        %v7334 = vpop.xlane.xlu0 %7333
        %v7335 = vsel %vm859, %v7331, 0.0
        %7336 = vadd.xlane.f32.xlu0 %v7335
        %v7337 = vpop.xlane.xlu0 %7336
        %v7338 = vrcp.pop %v7334
        %v7339 = vmul.f32 %v7329, %v7338
        %v7340 = vrcp.pop %v7337
        %v7341 = vmul.f32 %v7331, %v7340
        %7342 = vmatprep.subr.mxu0 0.0
        %7343 = vmatpush1.msra.mxu0 %v816
        %7344 = vmatprep.subr.mxu0 0.0
        %7345 = vmatpush1.msra.mxu0 0.0
        %7346 = vmatprep.subr.mxu0 0.0
        %7347 = vmatpush1.msra.mxu0 0.0
        %7348 = vmatprep.subr.mxu0 0.0
        %7349 = vmatpush1.msra.mxu0 0.0
        %7350 = vmatprep.subr.mxu0 0.0
        %7351 = vmatpush1.msra.mxu0 0.0
        %7352 = vmatprep.subr.mxu0 0.0
        %7353 = vmatpush1.msra.mxu0 0.0
        %7354 = vmatprep.subr.mxu0 0.0
        %7355 = vmatpush1.msra.mxu0 0.0
        %7356 = vmatprep.subr.mxu0 0.0
        %7357 = vmatpush1.msra.mxu0 0.0
        %7358 = vmatprep.subr.mxu0 0.0
        %7359 = vmatpush1.msra.mxu0 0.0
        %7360 = vmatprep.subr.mxu0 0.0
        %7361 = vmatpush1.msra.mxu0 0.0
        %7362 = vmatprep.subr.mxu0 0.0
        %7363 = vmatpush1.msra.mxu0 0.0
        %7364 = vmatprep.subr.mxu0 0.0
        %7365 = vmatpush1.msra.mxu0 0.0
        %7366 = vmatprep.subr.mxu0 0.0
        %7367 = vmatpush1.msra.mxu0 0.0
        %7368 = vmatprep.subr.mxu0 0.0
        %7369 = vmatpush1.msra.mxu0 0.0
        %7370 = vmatprep.subr.mxu0 0.0
        %7371 = vmatpush1.msra.mxu0 0.0
        %7372 = vmatprep.subr.mxu0 0.0
        %7373 = vmatpush1.msra.mxu0 0.0
        %7374 = vmatprep.subr.mxu0 0.0
        %7375 = vmatpush1.msra.mxu0 0.0
        %7376 = vmatprep.subr.mxu0 0.0
        %7377 = vmatpush1.msra.mxu0 0.0
        %7378 = vmatprep.subr.mxu0 0.0
        %7379 = vmatpush1.msra.mxu0 0.0
        %7380 = vmatprep.subr.mxu0 0.0
        %7381 = vmatpush1.msra.mxu0 0.0
        %7382 = vmatprep.subr.mxu0 0.0
        %7383 = vmatpush1.msra.mxu0 0.0
        %7384 = vmatprep.subr.mxu0 0.0
        %7385 = vmatpush1.msra.mxu0 0.0
        %7386 = vmatprep.subr.mxu0 0.0
        %7387 = vmatpush1.msra.mxu0 0.0
        %7388 = vmatprep.subr.mxu0 0.0
        %7389 = vmatpush1.msra.mxu0 0.0
        %7390 = vmatprep.subr.mxu0 0.0
        %7391 = vmatpush1.msra.mxu0 0.0
        %7392 = vmatprep.subr.mxu0 0.0
        %7393 = vmatpush1.msra.mxu0 0.0
        %7394 = vmatprep.subr.mxu0 0.0
        %7395 = vmatpush1.msra.mxu0 0.0
        %7396 = vmatprep.subr.mxu0 0.0
        %7397 = vmatpush1.msra.mxu0 0.0
        %7398 = vmatprep.subr.mxu0 0.0
        %7399 = vmatpush1.msra.mxu0 0.0
        %7400 = vmatprep.subr.mxu0 0.0
        %7401 = vmatpush1.msra.mxu0 0.0
        %7402 = vmatprep.subr.mxu0 0.0
        %7403 = vmatpush1.msra.mxu0 0.0
        %7404 = vmatprep.subr.mxu0 0.0
        %7405 = vmatpush1.msra.mxu0 0.0
        %7406 = vmatprep.mubr.f32.mxu0 0.0
        %7407 = vmatmul.mubr.f32.gmra.mrb[0].mxu0 %v7234
        %v7408 = vpop.f32.mrb[0].mxu0
        %v7409 = vadd.f32 0.0, %v7408
        %v7410 = vpop.f32.mrb[0].mxu0
        %7411 = vmatprep.mubr.f32.mxu0 0.0
        %7412 = vmatmul.mubr.f32.gmra.mrb[0].mxu0 %v7237
        %v7413 = vpop.f32.mrb[0].mxu0
        %v7414 = vadd.f32 0.0, %v7413
        %v7415 = vpop.f32.mrb[0].mxu0
        %7416 = vdwg.mxu0
        %7417 = vxpose.xlu0.b32.start [1/16] %v7339, 128
        %7418 = vxpose.xlu0.b32.cont [2/16] %v7341, 128
        %7419 = vxpose.xlu0.b32.cont [3/16] 0.0, 128
        %7420 = vxpose.xlu0.b32.cont [4/16] 0.0, 128
        %7421 = vxpose.xlu0.b32.cont [5/16] 0.0, 128
        %7422 = vxpose.xlu0.b32.cont [6/16] 0.0, 128
        %7423 = vxpose.xlu0.b32.cont [7/16] 0.0, 128
        %7424 = vxpose.xlu0.b32.cont [8/16] 0.0, 128
        %7425 = vxpose.xlu0.b32.cont [9/16] 0.0, 128
        %7426 = vxpose.xlu0.b32.cont [10/16] 0.0, 128
        %7427 = vxpose.xlu0.b32.cont [11/16] 0.0, 128
        %7428 = vxpose.xlu0.b32.cont [12/16] 0.0, 128
        %7429 = vxpose.xlu0.b32.cont [13/16] 0.0, 128
        %7430 = vxpose.xlu0.b32.cont [14/16] 0.0, 128
        %7431 = vxpose.xlu0.b32.cont [15/16] 0.0, 128
        %7432 = vxpose.xlu0.b32.end [16/16] 0.0, 128
        %v7433 = vpop.trf.xlu0
        %v7434 = vpop.trf.xlu0
        %v7435 = vpop.trf.xlu0
        %v7436 = vpop.trf.xlu0
        %v7437 = vpop.trf.xlu0
        %v7438 = vpop.trf.xlu0
        %v7439 = vpop.trf.xlu0
        %v7440 = vpop.trf.xlu0
        %v7441 = vpop.trf.xlu0
        %v7442 = vpop.trf.xlu0
        %v7443 = vpop.trf.xlu0
        %v7444 = vpop.trf.xlu0
        %v7445 = vpop.trf.xlu0
        %v7446 = vpop.trf.xlu0
        %v7447 = vpop.trf.xlu0
        %v7448 = vpop.trf.xlu0
        %v7450 = vsel %vm859, %v7433, 0
        %v7453 = vsel %vm859, %v7434, 0
        %7455 = vmatprep.subr.mxu0 0.0
        %7456 = vmatpush1.msra.mxu0 1.0
        %7457 = vmatprep.subr.mxu0 0.0
        %7458 = vmatpush1.msra.mxu0 1.0
        %7459 = vmatprep.subr.mxu0 0.0
        %7460 = vmatpush1.msra.mxu0 0.0
        %7461 = vmatprep.subr.mxu0 0.0
        %7462 = vmatpush1.msra.mxu0 0.0
        %7463 = vmatprep.subr.mxu0 0.0
        %7464 = vmatpush1.msra.mxu0 0.0
        %7465 = vmatprep.subr.mxu0 0.0
        %7466 = vmatpush1.msra.mxu0 0.0
        %7467 = vmatprep.subr.mxu0 0.0
        %7468 = vmatpush1.msra.mxu0 0.0
        %7469 = vmatprep.subr.mxu0 0.0
        %7470 = vmatpush1.msra.mxu0 0.0
        %7471 = vmatprep.subr.mxu0 0.0
        %7472 = vmatpush1.msra.mxu0 0.0
        %7473 = vmatprep.subr.mxu0 0.0
        %7474 = vmatpush1.msra.mxu0 0.0
        %7475 = vmatprep.subr.mxu0 0.0
        %7476 = vmatpush1.msra.mxu0 0.0
        %7477 = vmatprep.subr.mxu0 0.0
        %7478 = vmatpush1.msra.mxu0 0.0
        %7479 = vmatprep.subr.mxu0 0.0
        %7480 = vmatpush1.msra.mxu0 0.0
        %7481 = vmatprep.subr.mxu0 0.0
        %7482 = vmatpush1.msra.mxu0 0.0
        %7483 = vmatprep.subr.mxu0 0.0
        %7484 = vmatpush1.msra.mxu0 0.0
        %7485 = vmatprep.subr.mxu0 0.0
        %7486 = vmatpush1.msra.mxu0 0.0
        %7487 = vmatprep.subr.mxu0 0.0
        %7488 = vmatpush1.msra.mxu0 0.0
        %7489 = vmatprep.subr.mxu0 0.0
        %7490 = vmatpush1.msra.mxu0 0.0
        %7491 = vmatprep.subr.mxu0 0.0
        %7492 = vmatpush1.msra.mxu0 0.0
        %7493 = vmatprep.subr.mxu0 0.0
        %7494 = vmatpush1.msra.mxu0 0.0
        %7495 = vmatprep.subr.mxu0 0.0
        %7496 = vmatpush1.msra.mxu0 0.0
        %7497 = vmatprep.subr.mxu0 0.0
        %7498 = vmatpush1.msra.mxu0 0.0
        %7499 = vmatprep.subr.mxu0 0.0
        %7500 = vmatpush1.msra.mxu0 0.0
        %7501 = vmatprep.subr.mxu0 0.0
        %7502 = vmatpush1.msra.mxu0 0.0
        %7503 = vmatprep.subr.mxu0 0.0
        %7504 = vmatpush1.msra.mxu0 0.0
        %7505 = vmatprep.subr.mxu0 0.0
        %7506 = vmatpush1.msra.mxu0 0.0
        %7507 = vmatprep.subr.mxu0 0.0
        %7508 = vmatpush1.msra.mxu0 0.0
        %7509 = vmatprep.subr.mxu0 0.0
        %7510 = vmatpush1.msra.mxu0 0.0
        %7511 = vmatprep.subr.mxu0 0.0
        %7512 = vmatpush1.msra.mxu0 0.0
        %7513 = vmatprep.subr.mxu0 0.0
        %7514 = vmatpush1.msra.mxu0 0.0
        %7515 = vmatprep.subr.mxu0 0.0
        %7516 = vmatpush1.msra.mxu0 0.0
        %7517 = vmatprep.subr.mxu0 0.0
        %7518 = vmatpush1.msra.mxu0 0.0
        %7519 = vmatprep.mubr.f32.mxu0 0.0
        %7520 = vmatmul.mubr.f32.gmra.mrb[0].mxu0 %v7450
        %v7521 = vpop.f32.mrb[0].mxu0
        %v7522 = vadd.f32 0.0, %v7521
        %v7523 = vpop.f32.mrb[0].mxu0
        %7524 = vmatprep.mubr.f32.mxu0 0.0
        %7525 = vmatmul.mubr.f32.gmra.mrb[0].mxu0 %v7453
        %v7526 = vpop.f32.mrb[0].mxu0
        %v7527 = vadd.f32 0.0, %v7526
        %v7528 = vpop.f32.mrb[0].mxu0
        %7529 = vdwg.mxu0
        %v7530 = vsel %vm859, %v7339, 0.0
        %v7531 = vsel %vm859, %v7341, 0.0
        %v7532 = vadd.f32 %v7530, %v7531
        %v7533 = vrot.slane %v7532, 4
        %v7534 = vadd.f32 %v7532, %v7533
        %v7535 = vrot.slane %v7534, 2
        %v7536 = vadd.f32 %v7534, %v7535
        %v7537 = vrot.slane %v7536, 1
        %v7538 = vadd.f32 %v7536, %v7537
        %v7539 = vrsqrt.pop %v7522
        %v7540 = vmul.f32 %v7522, %v7539
        %vm7541 = vcmp.eq.f32.partialorder %v7522, inf
        %v7542 = vsel %vm7541, %v7522, %v7540
        %vm7543 = vcmp.eq.f32.partialorder %v7522, 0.0
        %v7544 = vand.u32 %v7522, 2147483648
        %v7545 = vsel %vm7543, %v7544, %v7542
        %v7546 = vrsqrt.pop %v7527
        %v7547 = vmul.f32 %v7527, %v7546
        %vm7548 = vcmp.eq.f32.partialorder %v7527, inf
        %v7549 = vsel %vm7548, %v7527, %v7547
        %vm7550 = vcmp.eq.f32.partialorder %v7527, 0.0
        %v7551 = vand.u32 %v7527, 2147483648
        %v7552 = vsel %vm7550, %v7551, %v7549
        %v7553 = vrcp.pop %v7545
        %v7554 = vmul.f32 1.0, %v7553
        %v7555 = vrcp.pop %v7552
        %v7556 = vmul.f32 1.0, %v7555
        %v7557 = vrsqrt.pop %v7538
        %v7558 = vmul.f32 %v7538, %v7557
        %vm7559 = vcmp.eq.f32.partialorder %v7538, inf
        %v7560 = vsel %vm7559, %v7538, %v7558
        %vm7561 = vcmp.eq.f32.partialorder %v7538, 0.0
        %v7562 = vand.u32 %v7538, 2147483648
        %v7563 = vsel %vm7561, %v7562, %v7560
        %v7564 = vrcp.pop %v7563
        %v7565 = vmul.f32 1.0, %v7564
        %7567 = vset.pattern.permute.xlu0 0
        %7568 = vperm.xlu0 %7567, %v7554
        %v7569 = vpop.permute.xlu0 %7568
        %7572 = vset.pattern.permute.xlu0 0
        %7573 = vperm.xlu0 %7572, %v7556
        %v7574 = vpop.permute.xlu0 %7573
        %v7576 = vmul.f32 %v7569, %v7339
        %v7577 = vmul.f32 %v7574, %v7341
        %v7578 = vmul.f32 %v7576, %v7565
        %v7579 = vmul.f32 %v7577, %v7565
        %7580 = vxpose.xlu0.b32.start [1/16] %v7578, 128
        %7581 = vxpose.xlu0.b32.cont [2/16] %v7579, 128
        %7582 = vxpose.xlu0.b32.cont [3/16] 0.0, 128
        %7583 = vxpose.xlu0.b32.cont [4/16] 0.0, 128
        %7584 = vxpose.xlu0.b32.cont [5/16] 0.0, 128
        %7585 = vxpose.xlu0.b32.cont [6/16] 0.0, 128
        %7586 = vxpose.xlu0.b32.cont [7/16] 0.0, 128
        %7587 = vxpose.xlu0.b32.cont [8/16] 0.0, 128
        %7588 = vxpose.xlu0.b32.cont [9/16] 0.0, 128
        %7589 = vxpose.xlu0.b32.cont [10/16] 0.0, 128
        %7590 = vxpose.xlu0.b32.cont [11/16] 0.0, 128
        %7591 = vxpose.xlu0.b32.cont [12/16] 0.0, 128
        %7592 = vxpose.xlu0.b32.cont [13/16] 0.0, 128
        %7593 = vxpose.xlu0.b32.cont [14/16] 0.0, 128
        %7594 = vxpose.xlu0.b32.cont [15/16] 0.0, 128
        %7595 = vxpose.xlu0.b32.end [16/16] 0.0, 128
        %v7596 = vpop.trf.xlu0
        %v7597 = vpop.trf.xlu0
        %v7598 = vpop.trf.xlu0
        %v7599 = vpop.trf.xlu0
        %v7600 = vpop.trf.xlu0
        %v7601 = vpop.trf.xlu0
        %v7602 = vpop.trf.xlu0
        %v7603 = vpop.trf.xlu0
        %v7604 = vpop.trf.xlu0
        %v7605 = vpop.trf.xlu0
        %v7606 = vpop.trf.xlu0
        %v7607 = vpop.trf.xlu0
        %v7608 = vpop.trf.xlu0
        %v7609 = vpop.trf.xlu0
        %v7610 = vpop.trf.xlu0
        %v7611 = vpop.trf.xlu0
        %v7613 = vsel %vm859, %v7596, 0
        %v7616 = vsel %vm859, %v7597, 0
        %7618 = vmatprep.subr.mxu0 0.0
        %7619 = vmatpush1.msra.mxu0 %v7409
        %7620 = vmatprep.subr.mxu0 0.0
        %7621 = vmatpush1.msra.mxu0 %v7414
        %7622 = vmatprep.subr.mxu0 0.0
        %7623 = vmatpush1.msra.mxu0 0.0
        %7624 = vmatprep.subr.mxu0 0.0
        %7625 = vmatpush1.msra.mxu0 0.0
        %7626 = vmatprep.subr.mxu0 0.0
        %7627 = vmatpush1.msra.mxu0 0.0
        %7628 = vmatprep.subr.mxu0 0.0
        %7629 = vmatpush1.msra.mxu0 0.0
        %7630 = vmatprep.subr.mxu0 0.0
        %7631 = vmatpush1.msra.mxu0 0.0
        %7632 = vmatprep.subr.mxu0 0.0
        %7633 = vmatpush1.msra.mxu0 0.0
        %7634 = vmatprep.subr.mxu0 0.0
        %7635 = vmatpush1.msra.mxu0 0.0
        %7636 = vmatprep.subr.mxu0 0.0
        %7637 = vmatpush1.msra.mxu0 0.0
        %7638 = vmatprep.subr.mxu0 0.0
        %7639 = vmatpush1.msra.mxu0 0.0
        %7640 = vmatprep.subr.mxu0 0.0
        %7641 = vmatpush1.msra.mxu0 0.0
        %7642 = vmatprep.subr.mxu0 0.0
        %7643 = vmatpush1.msra.mxu0 0.0
        %7644 = vmatprep.subr.mxu0 0.0
        %7645 = vmatpush1.msra.mxu0 0.0
        %7646 = vmatprep.subr.mxu0 0.0
        %7647 = vmatpush1.msra.mxu0 0.0
        %7648 = vmatprep.subr.mxu0 0.0
        %7649 = vmatpush1.msra.mxu0 0.0
        %7650 = vmatprep.subr.mxu0 0.0
        %7651 = vmatpush1.msra.mxu0 0.0
        %7652 = vmatprep.subr.mxu0 0.0
        %7653 = vmatpush1.msra.mxu0 0.0
        %7654 = vmatprep.subr.mxu0 0.0
        %7655 = vmatpush1.msra.mxu0 0.0
        %7656 = vmatprep.subr.mxu0 0.0
        %7657 = vmatpush1.msra.mxu0 0.0
        %7658 = vmatprep.subr.mxu0 0.0
        %7659 = vmatpush1.msra.mxu0 0.0
        %7660 = vmatprep.subr.mxu0 0.0
        %7661 = vmatpush1.msra.mxu0 0.0
        %7662 = vmatprep.subr.mxu0 0.0
        %7663 = vmatpush1.msra.mxu0 0.0
        %7664 = vmatprep.subr.mxu0 0.0
        %7665 = vmatpush1.msra.mxu0 0.0
        %7666 = vmatprep.subr.mxu0 0.0
        %7667 = vmatpush1.msra.mxu0 0.0
        %7668 = vmatprep.subr.mxu0 0.0
        %7669 = vmatpush1.msra.mxu0 0.0
        %7670 = vmatprep.subr.mxu0 0.0
        %7671 = vmatpush1.msra.mxu0 0.0
        %7672 = vmatprep.subr.mxu0 0.0
        %7673 = vmatpush1.msra.mxu0 0.0
        %7674 = vmatprep.subr.mxu0 0.0
        %7675 = vmatpush1.msra.mxu0 0.0
        %7676 = vmatprep.subr.mxu0 0.0
        %7677 = vmatpush1.msra.mxu0 0.0
        %7678 = vmatprep.subr.mxu0 0.0
        %7679 = vmatpush1.msra.mxu0 0.0
        %7680 = vmatprep.subr.mxu0 0.0
        %7681 = vmatpush1.msra.mxu0 0.0
        %7682 = vmatprep.mubr.f32.mxu0 0.0
        %7683 = vmatmul.mubr.f32.gmra.mrb[0].mxu0 %v7613
        %v7684 = vpop.f32.mrb[0].mxu0
        %v7685 = vadd.f32 %v1654, %v7684
        %v7686 = vpop.f32.mrb[0].mxu0
        %7687 = vmatprep.mubr.f32.mxu0 0.0
        %7688 = vmatmul.mubr.f32.gmra.mrb[0].mxu0 %v7616
        %v7689 = vpop.f32.mrb[0].mxu0
        %v7690 = vadd.f32 %v1654, %v7689
        %v7691 = vpop.f32.mrb[0].mxu0
        %7692 = vdwg.mxu0
        %v7693 = vsel %vm1277, %v7685, 0.0
        %v7694 = vsel %vm1277, %v7690, 0.0
        %v7695 = vadd.f32 %v7693, %v7694
        %v7696 = vrot.slane %v7695, 4
        %v7697 = vadd.f32 %v7695, %v7696
        %v7698 = vrot.slane %v7697, 2
        %v7699 = vadd.f32 %v7697, %v7698
        %v7700 = vrot.slane %v7699, 1
        %v7701 = vadd.f32 %v7699, %v7700
        %v7702 = vmul.f32 %v7701, %v1778
        %7704 = vrot.lane.b32.xlu0 %v7702, 32
        %v7705 = vpop.permute.xlu0 %7704
        %v7707 = vsel %vm1277, %v7232, %v7705
        %v7709 = vsel %vm1785, %v7707, 0
        %7711 = vmatprep.subr.mxu0 0.0
        %7712 = vmatpush1.msra.mxu0 %v818
        %7713 = vmatprep.subr.mxu0 0.0
        %7714 = vmatpush1.msra.mxu0 %v819
        %7715 = vmatprep.subr.mxu0 0.0
        %7716 = vmatpush1.msra.mxu0 %v820
        %7717 = vmatprep.subr.mxu0 0.0
        %7718 = vmatpush1.msra.mxu0 %v821
        %7719 = vmatprep.subr.mxu0 0.0
        %7720 = vmatpush1.msra.mxu0 %v822
        %7721 = vmatprep.subr.mxu0 0.0
        %7722 = vmatpush1.msra.mxu0 %v823
        %7723 = vmatprep.subr.mxu0 0.0
        %7724 = vmatpush1.msra.mxu0 %v824
        %7725 = vmatprep.subr.mxu0 0.0
        %7726 = vmatpush1.msra.mxu0 %v825
        %7727 = vmatprep.subr.mxu0 0.0
        %7728 = vmatpush1.msra.mxu0 0.0
        %7729 = vmatprep.subr.mxu0 0.0
        %7730 = vmatpush1.msra.mxu0 0.0
        %7731 = vmatprep.subr.mxu0 0.0
        %7732 = vmatpush1.msra.mxu0 0.0
        %7733 = vmatprep.subr.mxu0 0.0
        %7734 = vmatpush1.msra.mxu0 0.0
        %7735 = vmatprep.subr.mxu0 0.0
        %7736 = vmatpush1.msra.mxu0 0.0
        %7737 = vmatprep.subr.mxu0 0.0
        %7738 = vmatpush1.msra.mxu0 0.0
        %7739 = vmatprep.subr.mxu0 0.0
        %7740 = vmatpush1.msra.mxu0 0.0
        %7741 = vmatprep.subr.mxu0 0.0
        %7742 = vmatpush1.msra.mxu0 0.0
        %7743 = vmatprep.subr.mxu0 0.0
        %7744 = vmatpush1.msra.mxu0 0.0
        %7745 = vmatprep.subr.mxu0 0.0
        %7746 = vmatpush1.msra.mxu0 0.0
        %7747 = vmatprep.subr.mxu0 0.0
        %7748 = vmatpush1.msra.mxu0 0.0
        %7749 = vmatprep.subr.mxu0 0.0
        %7750 = vmatpush1.msra.mxu0 0.0
        %7751 = vmatprep.subr.mxu0 0.0
        %7752 = vmatpush1.msra.mxu0 0.0
        %7753 = vmatprep.subr.mxu0 0.0
        %7754 = vmatpush1.msra.mxu0 0.0
        %7755 = vmatprep.subr.mxu0 0.0
        %7756 = vmatpush1.msra.mxu0 0.0
        %7757 = vmatprep.subr.mxu0 0.0
        %7758 = vmatpush1.msra.mxu0 0.0
        %7759 = vmatprep.subr.mxu0 0.0
        %7760 = vmatpush1.msra.mxu0 0.0
        %7761 = vmatprep.subr.mxu0 0.0
        %7762 = vmatpush1.msra.mxu0 0.0
        %7763 = vmatprep.subr.mxu0 0.0
        %7764 = vmatpush1.msra.mxu0 0.0
        %7765 = vmatprep.subr.mxu0 0.0
        %7766 = vmatpush1.msra.mxu0 0.0
        %7767 = vmatprep.subr.mxu0 0.0
        %7768 = vmatpush1.msra.mxu0 0.0
        %7769 = vmatprep.subr.mxu0 0.0
        %7770 = vmatpush1.msra.mxu0 0.0
        %7771 = vmatprep.subr.mxu0 0.0
        %7772 = vmatpush1.msra.mxu0 0.0
        %7773 = vmatprep.subr.mxu0 0.0
        %7774 = vmatpush1.msra.mxu0 0.0
        %7775 = vmatprep.mubr.f32.mxu0 0.0
        %7776 = vmatmul.mubr.f32.gmra.mrb[0].mxu0 %v7709
        %v7777 = vpop.f32.mrb[0].mxu0
        %v7778 = vadd.f32 %v826, %v7777
        %v7779 = vpop.f32.mrb[0].mxu0
        %7780 = vdwg.mxu0
        %7781 = vxpose.xlu0.b32.start [1/16] %v784, 128
        %7782 = vxpose.xlu0.b32.cont [2/16] %v789, 128
        %7783 = vxpose.xlu0.b32.cont [3/16] 0.0, 128
        %7784 = vxpose.xlu0.b32.cont [4/16] 0.0, 128
        %7785 = vxpose.xlu0.b32.cont [5/16] 0.0, 128
        %7786 = vxpose.xlu0.b32.cont [6/16] 0.0, 128
        %7787 = vxpose.xlu0.b32.cont [7/16] 0.0, 128
        %7788 = vxpose.xlu0.b32.cont [8/16] 0.0, 128
        %7789 = vxpose.xlu0.b32.cont [9/16] 0.0, 128
        %7790 = vxpose.xlu0.b32.cont [10/16] 0.0, 128
        %7791 = vxpose.xlu0.b32.cont [11/16] 0.0, 128
        %7792 = vxpose.xlu0.b32.cont [12/16] 0.0, 128
        %7793 = vxpose.xlu0.b32.cont [13/16] 0.0, 128
        %7794 = vxpose.xlu0.b32.cont [14/16] 0.0, 128
        %7795 = vxpose.xlu0.b32.cont [15/16] 0.0, 128
        %7796 = vxpose.xlu0.b32.end [16/16] 0.0, 128
        %v7797 = vpop.trf.xlu0
        %v7798 = vpop.trf.xlu0
        %v7799 = vpop.trf.xlu0
        %v7800 = vpop.trf.xlu0
        %v7801 = vpop.trf.xlu0
        %v7802 = vpop.trf.xlu0
        %v7803 = vpop.trf.xlu0
        %v7804 = vpop.trf.xlu0
        %v7805 = vpop.trf.xlu0
        %v7806 = vpop.trf.xlu0
        %v7807 = vpop.trf.xlu0
        %v7808 = vpop.trf.xlu0
        %v7809 = vpop.trf.xlu0
        %v7810 = vpop.trf.xlu0
        %v7811 = vpop.trf.xlu0
        %v7812 = vpop.trf.xlu0
        %v7814 = vsel %vm859, %v7797, 0
        %7816 = vmatprep.subr.mxu0 0.0
        %7817 = vmatpush1.msra.mxu0 %v784
        %7818 = vmatprep.subr.mxu0 0.0
        %7819 = vmatpush1.msra.mxu0 %v789
        %7820 = vmatprep.subr.mxu0 0.0
        %7821 = vmatpush1.msra.mxu0 0.0
        %7822 = vmatprep.subr.mxu0 0.0
        %7823 = vmatpush1.msra.mxu0 0.0
        %7824 = vmatprep.subr.mxu0 0.0
        %7825 = vmatpush1.msra.mxu0 0.0
        %7826 = vmatprep.subr.mxu0 0.0
        %7827 = vmatpush1.msra.mxu0 0.0
        %7828 = vmatprep.subr.mxu0 0.0
        %7829 = vmatpush1.msra.mxu0 0.0
        %7830 = vmatprep.subr.mxu0 0.0
        %7831 = vmatpush1.msra.mxu0 0.0
        %7832 = vmatprep.subr.mxu0 0.0
        %7833 = vmatpush1.msra.mxu0 0.0
        %7834 = vmatprep.subr.mxu0 0.0
        %7835 = vmatpush1.msra.mxu0 0.0
        %7836 = vmatprep.subr.mxu0 0.0
        %7837 = vmatpush1.msra.mxu0 0.0
        %7838 = vmatprep.subr.mxu0 0.0
        %7839 = vmatpush1.msra.mxu0 0.0
        %7840 = vmatprep.subr.mxu0 0.0
        %7841 = vmatpush1.msra.mxu0 0.0
        %7842 = vmatprep.subr.mxu0 0.0
        %7843 = vmatpush1.msra.mxu0 0.0
        %7844 = vmatprep.subr.mxu0 0.0
        %7845 = vmatpush1.msra.mxu0 0.0
        %7846 = vmatprep.subr.mxu0 0.0
        %7847 = vmatpush1.msra.mxu0 0.0
        %7848 = vmatprep.subr.mxu0 0.0
        %7849 = vmatpush1.msra.mxu0 0.0
        %7850 = vmatprep.subr.mxu0 0.0
        %7851 = vmatpush1.msra.mxu0 0.0
        %7852 = vmatprep.subr.mxu0 0.0
        %7853 = vmatpush1.msra.mxu0 0.0
        %7854 = vmatprep.subr.mxu0 0.0
        %7855 = vmatpush1.msra.mxu0 0.0
        %7856 = vmatprep.subr.mxu0 0.0
        %7857 = vmatpush1.msra.mxu0 0.0
        %7858 = vmatprep.subr.mxu0 0.0
        %7859 = vmatpush1.msra.mxu0 0.0
        %7860 = vmatprep.subr.mxu0 0.0
        %7861 = vmatpush1.msra.mxu0 0.0
        %7862 = vmatprep.subr.mxu0 0.0
        %7863 = vmatpush1.msra.mxu0 0.0
        %7864 = vmatprep.subr.mxu0 0.0
        %7865 = vmatpush1.msra.mxu0 0.0
        %7866 = vmatprep.subr.mxu0 0.0
        %7867 = vmatpush1.msra.mxu0 0.0
        %7868 = vmatprep.subr.mxu0 0.0
        %7869 = vmatpush1.msra.mxu0 0.0
        %7870 = vmatprep.subr.mxu0 0.0
        %7871 = vmatpush1.msra.mxu0 0.0
        %7872 = vmatprep.subr.mxu0 0.0
        %7873 = vmatpush1.msra.mxu0 0.0
        %7874 = vmatprep.subr.mxu0 0.0
        %7875 = vmatpush1.msra.mxu0 0.0
        %7876 = vmatprep.subr.mxu0 0.0
        %7877 = vmatpush1.msra.mxu0 0.0
        %7878 = vmatprep.subr.mxu0 0.0
        %7879 = vmatpush1.msra.mxu0 0.0
        %7880 = vmatprep.mubr.f32.mxu0 0.0
        %7881 = vmatmul.mubr.f32.gmra.mrb[0].mxu0 %v7814
        %v7882 = vpop.f32.mrb[0].mxu0
        %v7883 = vadd.f32 0.0, %v7882
        %v7884 = vpop.f32.mrb[0].mxu0
        %7885 = vdwg.mxu0
        %v7886 = vmul.f32 %v936, %v7883
        %v7887 = vmul.f32 %v7886, %v943
        %v7888 = vmul.f32 %v7887, 0.25
        %v7889 = vsel %vm947, %v7888, -inf
        %7890 = vmax.xlane.f32.xlu0 %v7889
        %v7891 = vpop.xlane.xlu0 %7890
        %v7892 = vsub.f32 %v7888, %v7891
        %v7893 = vmul.f32 %v7892, 1.442695
        %v7894 = vpow.pop %v7893
        %v7895 = vsel %vm947, %v7894, 0.0
        %7896 = vadd.xlane.f32.xlu0 %v7895
        %v7897 = vpop.xlane.xlu0 %7896
        %v7898 = vrcp.pop %v7897
        %v7899 = vmul.f32 %v7894, %v7898
        %7900 = vmatprep.subr.mxu0 0.0
        %7901 = vmatpush1.msra.mxu0 %v813
        %7902 = vmatprep.subr.mxu0 0.0
        %7903 = vmatpush1.msra.mxu0 %v814
        %7904 = vmatprep.subr.mxu0 0.0
        %7905 = vmatpush1.msra.mxu0 0.0
        %7906 = vmatprep.subr.mxu0 0.0
        %7907 = vmatpush1.msra.mxu0 0.0
        %7908 = vmatprep.subr.mxu0 0.0
        %7909 = vmatpush1.msra.mxu0 0.0
        %7910 = vmatprep.subr.mxu0 0.0
        %7911 = vmatpush1.msra.mxu0 0.0
        %7912 = vmatprep.subr.mxu0 0.0
        %7913 = vmatpush1.msra.mxu0 0.0
        %7914 = vmatprep.subr.mxu0 0.0
        %7915 = vmatpush1.msra.mxu0 0.0
        %7916 = vmatprep.subr.mxu0 0.0
        %7917 = vmatpush1.msra.mxu0 0.0
        %7918 = vmatprep.subr.mxu0 0.0
        %7919 = vmatpush1.msra.mxu0 0.0
        %7920 = vmatprep.subr.mxu0 0.0
        %7921 = vmatpush1.msra.mxu0 0.0
        %7922 = vmatprep.subr.mxu0 0.0
        %7923 = vmatpush1.msra.mxu0 0.0
        %7924 = vmatprep.subr.mxu0 0.0
        %7925 = vmatpush1.msra.mxu0 0.0
        %7926 = vmatprep.subr.mxu0 0.0
        %7927 = vmatpush1.msra.mxu0 0.0
        %7928 = vmatprep.subr.mxu0 0.0
        %7929 = vmatpush1.msra.mxu0 0.0
        %7930 = vmatprep.subr.mxu0 0.0
        %7931 = vmatpush1.msra.mxu0 0.0
        %7932 = vmatprep.subr.mxu0 0.0
        %7933 = vmatpush1.msra.mxu0 0.0
        %7934 = vmatprep.subr.mxu0 0.0
        %7935 = vmatpush1.msra.mxu0 0.0
        %7936 = vmatprep.subr.mxu0 0.0
        %7937 = vmatpush1.msra.mxu0 0.0
        %7938 = vmatprep.subr.mxu0 0.0
        %7939 = vmatpush1.msra.mxu0 0.0
        %7940 = vmatprep.subr.mxu0 0.0
        %7941 = vmatpush1.msra.mxu0 0.0
        %7942 = vmatprep.subr.mxu0 0.0
        %7943 = vmatpush1.msra.mxu0 0.0
        %7944 = vmatprep.subr.mxu0 0.0
        %7945 = vmatpush1.msra.mxu0 0.0
        %7946 = vmatprep.subr.mxu0 0.0
        %7947 = vmatpush1.msra.mxu0 0.0
        %7948 = vmatprep.subr.mxu0 0.0
        %7949 = vmatpush1.msra.mxu0 0.0
        %7950 = vmatprep.subr.mxu0 0.0
        %7951 = vmatpush1.msra.mxu0 0.0
        %7952 = vmatprep.subr.mxu0 0.0
        %7953 = vmatpush1.msra.mxu0 0.0
        %7954 = vmatprep.subr.mxu0 0.0
        %7955 = vmatpush1.msra.mxu0 0.0
        %7956 = vmatprep.subr.mxu0 0.0
        %7957 = vmatpush1.msra.mxu0 0.0
        %7958 = vmatprep.subr.mxu0 0.0
        %7959 = vmatpush1.msra.mxu0 0.0
        %7960 = vmatprep.subr.mxu0 0.0
        %7961 = vmatpush1.msra.mxu0 0.0
        %7962 = vmatprep.subr.mxu0 0.0
        %7963 = vmatpush1.msra.mxu0 0.0
        %7964 = vmatprep.mubr.f32.mxu0 0.0
        %7965 = vmatmul.mubr.f32.gmra.mrb[0].mxu0 %v7814
        %v7966 = vpop.f32.mrb[0].mxu0
        %v7967 = vadd.f32 0.0, %v7966
        %v7968 = vpop.f32.mrb[0].mxu0
        %7969 = vdwg.mxu0
        %7970 = vxpose.xlu0.b32.start [1/16] %v7899, 128
        %7971 = vxpose.xlu0.b32.cont [2/16] 0.0, 128
        %7972 = vxpose.xlu0.b32.cont [3/16] 0.0, 128
        %7973 = vxpose.xlu0.b32.cont [4/16] 0.0, 128
        %7974 = vxpose.xlu0.b32.cont [5/16] 0.0, 128
        %7975 = vxpose.xlu0.b32.cont [6/16] 0.0, 128
        %7976 = vxpose.xlu0.b32.cont [7/16] 0.0, 128
        %7977 = vxpose.xlu0.b32.cont [8/16] 0.0, 128
        %7978 = vxpose.xlu0.b32.cont [9/16] 0.0, 128
        %7979 = vxpose.xlu0.b32.cont [10/16] 0.0, 128
        %7980 = vxpose.xlu0.b32.cont [11/16] 0.0, 128
        %7981 = vxpose.xlu0.b32.cont [12/16] 0.0, 128
        %7982 = vxpose.xlu0.b32.cont [13/16] 0.0, 128
        %7983 = vxpose.xlu0.b32.cont [14/16] 0.0, 128
        %7984 = vxpose.xlu0.b32.cont [15/16] 0.0, 128
        %7985 = vxpose.xlu0.b32.end [16/16] 0.0, 128
        %v7986 = vpop.trf.xlu0
        %v7987 = vpop.trf.xlu0
        %v7988 = vpop.trf.xlu0
        %v7989 = vpop.trf.xlu0
        %v7990 = vpop.trf.xlu0
        %v7991 = vpop.trf.xlu0
        %v7992 = vpop.trf.xlu0
        %v7993 = vpop.trf.xlu0
        %v7994 = vpop.trf.xlu0
        %v7995 = vpop.trf.xlu0
        %v7996 = vpop.trf.xlu0
        %v7997 = vpop.trf.xlu0
        %v7998 = vpop.trf.xlu0
        %v7999 = vpop.trf.xlu0
        %v8000 = vpop.trf.xlu0
        %v8001 = vpop.trf.xlu0
        %v8003 = vsel %vm947, %v7986, 0
        %8005 = vmatprep.subr.mxu0 0.0
        %8006 = vmatpush1.msra.mxu0 1.0
        %8007 = vmatprep.subr.mxu0 0.0
        %8008 = vmatpush1.msra.mxu0 0.0
        %8009 = vmatprep.subr.mxu0 0.0
        %8010 = vmatpush1.msra.mxu0 0.0
        %8011 = vmatprep.subr.mxu0 0.0
        %8012 = vmatpush1.msra.mxu0 0.0
        %8013 = vmatprep.subr.mxu0 0.0
        %8014 = vmatpush1.msra.mxu0 0.0
        %8015 = vmatprep.subr.mxu0 0.0
        %8016 = vmatpush1.msra.mxu0 0.0
        %8017 = vmatprep.subr.mxu0 0.0
        %8018 = vmatpush1.msra.mxu0 0.0
        %8019 = vmatprep.subr.mxu0 0.0
        %8020 = vmatpush1.msra.mxu0 0.0
        %8021 = vmatprep.subr.mxu0 0.0
        %8022 = vmatpush1.msra.mxu0 0.0
        %8023 = vmatprep.subr.mxu0 0.0
        %8024 = vmatpush1.msra.mxu0 0.0
        %8025 = vmatprep.subr.mxu0 0.0
        %8026 = vmatpush1.msra.mxu0 0.0
        %8027 = vmatprep.subr.mxu0 0.0
        %8028 = vmatpush1.msra.mxu0 0.0
        %8029 = vmatprep.subr.mxu0 0.0
        %8030 = vmatpush1.msra.mxu0 0.0
        %8031 = vmatprep.subr.mxu0 0.0
        %8032 = vmatpush1.msra.mxu0 0.0
        %8033 = vmatprep.subr.mxu0 0.0
        %8034 = vmatpush1.msra.mxu0 0.0
        %8035 = vmatprep.subr.mxu0 0.0
        %8036 = vmatpush1.msra.mxu0 0.0
        %8037 = vmatprep.subr.mxu0 0.0
        %8038 = vmatpush1.msra.mxu0 0.0
        %8039 = vmatprep.subr.mxu0 0.0
        %8040 = vmatpush1.msra.mxu0 0.0
        %8041 = vmatprep.subr.mxu0 0.0
        %8042 = vmatpush1.msra.mxu0 0.0
        %8043 = vmatprep.subr.mxu0 0.0
        %8044 = vmatpush1.msra.mxu0 0.0
        %8045 = vmatprep.subr.mxu0 0.0
        %8046 = vmatpush1.msra.mxu0 0.0
        %8047 = vmatprep.subr.mxu0 0.0
        %8048 = vmatpush1.msra.mxu0 0.0
        %8049 = vmatprep.subr.mxu0 0.0
        %8050 = vmatpush1.msra.mxu0 0.0
        %8051 = vmatprep.subr.mxu0 0.0
        %8052 = vmatpush1.msra.mxu0 0.0
        %8053 = vmatprep.subr.mxu0 0.0
        %8054 = vmatpush1.msra.mxu0 0.0
        %8055 = vmatprep.subr.mxu0 0.0
        %8056 = vmatpush1.msra.mxu0 0.0
        %8057 = vmatprep.subr.mxu0 0.0
        %8058 = vmatpush1.msra.mxu0 0.0
        %8059 = vmatprep.subr.mxu0 0.0
        %8060 = vmatpush1.msra.mxu0 0.0
        %8061 = vmatprep.subr.mxu0 0.0
        %8062 = vmatpush1.msra.mxu0 0.0
        %8063 = vmatprep.subr.mxu0 0.0
        %8064 = vmatpush1.msra.mxu0 0.0
        %8065 = vmatprep.subr.mxu0 0.0
        %8066 = vmatpush1.msra.mxu0 0.0
        %8067 = vmatprep.subr.mxu0 0.0
        %8068 = vmatpush1.msra.mxu0 0.0
        %8069 = vmatprep.mubr.f32.mxu0 0.0
        %8070 = vmatmul.mubr.f32.gmra.mrb[0].mxu0 %v8003
        %v8071 = vpop.f32.mrb[0].mxu0
        %v8072 = vadd.f32 0.0, %v8071
        %v8073 = vpop.f32.mrb[0].mxu0
        %8074 = vdwg.mxu0
        %v8075 = vsel %vm947, %v7899, 0.0
        %v8076 = vrot.slane %v8075, 4
        %v8077 = vadd.f32 %v8075, %v8076
        %v8078 = vrot.slane %v8077, 2
        %v8079 = vadd.f32 %v8077, %v8078
        %v8080 = vrot.slane %v8079, 1
        %v8081 = vadd.f32 %v8079, %v8080
        %v8082 = vrsqrt.pop %v8072
        %v8083 = vmul.f32 %v8072, %v8082
        %vm8084 = vcmp.eq.f32.partialorder %v8072, inf
        %v8085 = vsel %vm8084, %v8072, %v8083
        %vm8086 = vcmp.eq.f32.partialorder %v8072, 0.0
        %v8087 = vand.u32 %v8072, 2147483648
        %v8088 = vsel %vm8086, %v8087, %v8085
        %v8089 = vrcp.pop %v8088
        %v8090 = vmul.f32 1.0, %v8089
        %v8091 = vrsqrt.pop %v8081
        %v8092 = vmul.f32 %v8081, %v8091
        %vm8093 = vcmp.eq.f32.partialorder %v8081, inf
        %v8094 = vsel %vm8093, %v8081, %v8092
        %vm8095 = vcmp.eq.f32.partialorder %v8081, 0.0
        %v8096 = vand.u32 %v8081, 2147483648
        %v8097 = vsel %vm8095, %v8096, %v8094
        %v8098 = vrcp.pop %v8097
        %v8099 = vmul.f32 1.0, %v8098
        %8101 = vset.pattern.permute.xlu0 0
        %8102 = vperm.xlu0 %8101, %v8090
        %v8103 = vpop.permute.xlu0 %8102
        %v8105 = vmul.f32 %v8103, %v7899
        %v8106 = vmul.f32 %v8105, %v8099
        %8107 = vxpose.xlu0.b32.start [1/16] %v8106, 128
        %8108 = vxpose.xlu0.b32.cont [2/16] 0.0, 128
        %8109 = vxpose.xlu0.b32.cont [3/16] 0.0, 128
        %8110 = vxpose.xlu0.b32.cont [4/16] 0.0, 128
        %8111 = vxpose.xlu0.b32.cont [5/16] 0.0, 128
        %8112 = vxpose.xlu0.b32.cont [6/16] 0.0, 128
        %8113 = vxpose.xlu0.b32.cont [7/16] 0.0, 128
        %8114 = vxpose.xlu0.b32.cont [8/16] 0.0, 128
        %8115 = vxpose.xlu0.b32.cont [9/16] 0.0, 128
        %8116 = vxpose.xlu0.b32.cont [10/16] 0.0, 128
        %8117 = vxpose.xlu0.b32.cont [11/16] 0.0, 128
        %8118 = vxpose.xlu0.b32.cont [12/16] 0.0, 128
        %8119 = vxpose.xlu0.b32.cont [13/16] 0.0, 128
        %8120 = vxpose.xlu0.b32.cont [14/16] 0.0, 128
        %8121 = vxpose.xlu0.b32.cont [15/16] 0.0, 128
        %8122 = vxpose.xlu0.b32.end [16/16] 0.0, 128
        %v8123 = vpop.trf.xlu0
        %v8124 = vpop.trf.xlu0
        %v8125 = vpop.trf.xlu0
        %v8126 = vpop.trf.xlu0
        %v8127 = vpop.trf.xlu0
        %v8128 = vpop.trf.xlu0
        %v8129 = vpop.trf.xlu0
        %v8130 = vpop.trf.xlu0
        %v8131 = vpop.trf.xlu0
        %v8132 = vpop.trf.xlu0
        %v8133 = vpop.trf.xlu0
        %v8134 = vpop.trf.xlu0
        %v8135 = vpop.trf.xlu0
        %v8136 = vpop.trf.xlu0
        %v8137 = vpop.trf.xlu0
        %v8138 = vpop.trf.xlu0
        %v8140 = vsel %vm947, %v8123, 0
        %8142 = vmatprep.subr.mxu0 0.0
        %8143 = vmatpush1.msra.mxu0 %v7967
        %8144 = vmatprep.subr.mxu0 0.0
        %8145 = vmatpush1.msra.mxu0 0.0
        %8146 = vmatprep.subr.mxu0 0.0
        %8147 = vmatpush1.msra.mxu0 0.0
        %8148 = vmatprep.subr.mxu0 0.0
        %8149 = vmatpush1.msra.mxu0 0.0
        %8150 = vmatprep.subr.mxu0 0.0
        %8151 = vmatpush1.msra.mxu0 0.0
        %8152 = vmatprep.subr.mxu0 0.0
        %8153 = vmatpush1.msra.mxu0 0.0
        %8154 = vmatprep.subr.mxu0 0.0
        %8155 = vmatpush1.msra.mxu0 0.0
        %8156 = vmatprep.subr.mxu0 0.0
        %8157 = vmatpush1.msra.mxu0 0.0
        %8158 = vmatprep.subr.mxu0 0.0
        %8159 = vmatpush1.msra.mxu0 0.0
        %8160 = vmatprep.subr.mxu0 0.0
        %8161 = vmatpush1.msra.mxu0 0.0
        %8162 = vmatprep.subr.mxu0 0.0
        %8163 = vmatpush1.msra.mxu0 0.0
        %8164 = vmatprep.subr.mxu0 0.0
        %8165 = vmatpush1.msra.mxu0 0.0
        %8166 = vmatprep.subr.mxu0 0.0
        %8167 = vmatpush1.msra.mxu0 0.0
        %8168 = vmatprep.subr.mxu0 0.0
        %8169 = vmatpush1.msra.mxu0 0.0
        %8170 = vmatprep.subr.mxu0 0.0
        %8171 = vmatpush1.msra.mxu0 0.0
        %8172 = vmatprep.subr.mxu0 0.0
        %8173 = vmatpush1.msra.mxu0 0.0
        %8174 = vmatprep.subr.mxu0 0.0
        %8175 = vmatpush1.msra.mxu0 0.0
        %8176 = vmatprep.subr.mxu0 0.0
        %8177 = vmatpush1.msra.mxu0 0.0
        %8178 = vmatprep.subr.mxu0 0.0
        %8179 = vmatpush1.msra.mxu0 0.0
        %8180 = vmatprep.subr.mxu0 0.0
        %8181 = vmatpush1.msra.mxu0 0.0
        %8182 = vmatprep.subr.mxu0 0.0
        %8183 = vmatpush1.msra.mxu0 0.0
        %8184 = vmatprep.subr.mxu0 0.0
        %8185 = vmatpush1.msra.mxu0 0.0
        %8186 = vmatprep.subr.mxu0 0.0
        %8187 = vmatpush1.msra.mxu0 0.0
        %8188 = vmatprep.subr.mxu0 0.0
        %8189 = vmatpush1.msra.mxu0 0.0
        %8190 = vmatprep.subr.mxu0 0.0
        %8191 = vmatpush1.msra.mxu0 0.0
        %8192 = vmatprep.subr.mxu0 0.0
        %8193 = vmatpush1.msra.mxu0 0.0
        %8194 = vmatprep.subr.mxu0 0.0
        %8195 = vmatpush1.msra.mxu0 0.0
        %8196 = vmatprep.subr.mxu0 0.0
        %8197 = vmatpush1.msra.mxu0 0.0
        %8198 = vmatprep.subr.mxu0 0.0
        %8199 = vmatpush1.msra.mxu0 0.0
        %8200 = vmatprep.subr.mxu0 0.0
        %8201 = vmatpush1.msra.mxu0 0.0
        %8202 = vmatprep.subr.mxu0 0.0
        %8203 = vmatpush1.msra.mxu0 0.0
        %8204 = vmatprep.subr.mxu0 0.0
        %8205 = vmatpush1.msra.mxu0 0.0
        %8206 = vmatprep.mubr.f32.mxu0 0.0
        %8207 = vmatmul.mubr.f32.gmra.mrb[0].mxu0 %v8140
        %v8208 = vpop.f32.mrb[0].mxu0
        %v8209 = vadd.f32 %v1170, %v8208
        %v8210 = vpop.f32.mrb[0].mxu0
        %8211 = vdwg.mxu0
        %v8212 = vsel %vm1277, %v8209, 0.0
        %v8213 = vrot.slane %v8212, 4
        %v8214 = vadd.f32 %v8212, %v8213
        %v8215 = vrot.slane %v8214, 2
        %v8216 = vadd.f32 %v8214, %v8215
        %v8217 = vrot.slane %v8216, 1
        %v8218 = vadd.f32 %v8216, %v8217
        %v8219 = vmul.f32 %v8218, %v1285
        %v8221 = vsel %vm947, %v806, 0
        %v8224 = vsel %vm947, %v807, 0
        %8226 = vmatprep.subr.mxu0 0.0
        %8227 = vmatpush1.xpose.msra.mxu0 %v8221
        %8228 = vmatprep.subr.mxu0 0.0
        %8229 = vmatpush1.xpose.msra.mxu0 %v8224
        %8230 = vmatprep.subr.mxu0 0.0
        %8231 = vmatpush1.xpose.msra.mxu0 0.0
        %8232 = vmatprep.subr.mxu0 0.0
        %8233 = vmatpush1.xpose.msra.mxu0 0.0
        %8234 = vmatprep.subr.mxu0 0.0
        %8235 = vmatpush1.xpose.msra.mxu0 0.0
        %8236 = vmatprep.subr.mxu0 0.0
        %8237 = vmatpush1.xpose.msra.mxu0 0.0
        %8238 = vmatprep.subr.mxu0 0.0
        %8239 = vmatpush1.xpose.msra.mxu0 0.0
        %8240 = vmatprep.subr.mxu0 0.0
        %8241 = vmatpush1.xpose.msra.mxu0 0.0
        %8242 = vmatprep.subr.mxu0 0.0
        %8243 = vmatpush1.xpose.msra.mxu0 0.0
        %8244 = vmatprep.subr.mxu0 0.0
        %8245 = vmatpush1.xpose.msra.mxu0 0.0
        %8246 = vmatprep.subr.mxu0 0.0
        %8247 = vmatpush1.xpose.msra.mxu0 0.0
        %8248 = vmatprep.subr.mxu0 0.0
        %8249 = vmatpush1.xpose.msra.mxu0 0.0
        %8250 = vmatprep.subr.mxu0 0.0
        %8251 = vmatpush1.xpose.msra.mxu0 0.0
        %8252 = vmatprep.subr.mxu0 0.0
        %8253 = vmatpush1.xpose.msra.mxu0 0.0
        %8254 = vmatprep.subr.mxu0 0.0
        %8255 = vmatpush1.xpose.msra.mxu0 0.0
        %8256 = vmatprep.subr.mxu0 0.0
        %8257 = vmatpush1.xpose.msra.mxu0 0.0
        %8258 = vmatprep.subr.mxu0 0.0
        %8259 = vmatpush1.xpose.msra.mxu0 0.0
        %8260 = vmatprep.subr.mxu0 0.0
        %8261 = vmatpush1.xpose.msra.mxu0 0.0
        %8262 = vmatprep.subr.mxu0 0.0
        %8263 = vmatpush1.xpose.msra.mxu0 0.0
        %8264 = vmatprep.subr.mxu0 0.0
        %8265 = vmatpush1.xpose.msra.mxu0 0.0
        %8266 = vmatprep.subr.mxu0 0.0
        %8267 = vmatpush1.xpose.msra.mxu0 0.0
        %8268 = vmatprep.subr.mxu0 0.0
        %8269 = vmatpush1.xpose.msra.mxu0 0.0
        %8270 = vmatprep.subr.mxu0 0.0
        %8271 = vmatpush1.xpose.msra.mxu0 0.0
        %8272 = vmatprep.subr.mxu0 0.0
        %8273 = vmatpush1.xpose.msra.mxu0 0.0
        %8274 = vmatprep.subr.mxu0 0.0
        %8275 = vmatpush1.xpose.msra.mxu0 0.0
        %8276 = vmatprep.subr.mxu0 0.0
        %8277 = vmatpush1.xpose.msra.mxu0 0.0
        %8278 = vmatprep.subr.mxu0 0.0
        %8279 = vmatpush1.xpose.msra.mxu0 0.0
        %8280 = vmatprep.subr.mxu0 0.0
        %8281 = vmatpush1.xpose.msra.mxu0 0.0
        %8282 = vmatprep.subr.mxu0 0.0
        %8283 = vmatpush1.xpose.msra.mxu0 0.0
        %8284 = vmatprep.subr.mxu0 0.0
        %8285 = vmatpush1.xpose.msra.mxu0 0.0
        %8286 = vmatprep.subr.mxu0 0.0
        %8287 = vmatpush1.xpose.msra.mxu0 0.0
        %8288 = vmatprep.subr.mxu0 0.0
        %8289 = vmatpush1.xpose.msra.mxu0 0.0
        %8290 = vmatprep.mubr.f32.mxu0 0.0
        %8291 = vmatmul.mubr.f32.gmra.mrb[0].mxu0 %v8221
        %v8292 = vpop.f32.mrb[0].mxu0
        %v8293 = vadd.f32 0.0, %v8292
        %v8294 = vpop.f32.mrb[0].mxu0
        %8295 = vmatprep.mubr.f32.mxu0 0.0
        %8296 = vmatmul.mubr.f32.gmra.mrb[0].mxu0 %v8224
        %v8297 = vpop.f32.mrb[0].mxu0
        %v8298 = vadd.f32 0.0, %v8297
        %v8299 = vpop.f32.mrb[0].mxu0
        %8300 = vdwg.mxu0
        %v8301 = vmul.f32 %v1371, %v8293
        %v8302 = vmul.f32 %v1376, %v8298
        %v8303 = vmul.f32 %v8301, %v1384
        %v8304 = vmul.f32 %v8302, %v1384
        %v8305 = vmul.f32 %v8303, 0.35355338
        %v8306 = vmul.f32 %v8304, 0.35355338
        %v8307 = vsel %vm859, %v8305, -inf
        %8308 = vmax.xlane.f32.xlu0 %v8307
        %v8309 = vpop.xlane.xlu0 %8308
        %v8310 = vsel %vm859, %v8306, -inf
        %8311 = vmax.xlane.f32.xlu0 %v8310
        %v8312 = vpop.xlane.xlu0 %8311
        %v8313 = vsub.f32 %v8305, %v8309
        %v8314 = vsub.f32 %v8306, %v8312
        %v8315 = vmul.f32 %v8313, 1.442695
        %v8316 = vpow.pop %v8315
        %v8317 = vmul.f32 %v8314, 1.442695
        %v8318 = vpow.pop %v8317
        %v8319 = vsel %vm859, %v8316, 0.0
        %8320 = vadd.xlane.f32.xlu0 %v8319
        %v8321 = vpop.xlane.xlu0 %8320
        %v8322 = vsel %vm859, %v8318, 0.0
        %8323 = vadd.xlane.f32.xlu0 %v8322
        %v8324 = vpop.xlane.xlu0 %8323
        %v8325 = vrcp.pop %v8321
        %v8326 = vmul.f32 %v8316, %v8325
        %v8327 = vrcp.pop %v8324
        %v8328 = vmul.f32 %v8318, %v8327
        %8329 = vmatprep.subr.mxu0 0.0
        %8330 = vmatpush1.msra.mxu0 %v816
        %8331 = vmatprep.subr.mxu0 0.0
        %8332 = vmatpush1.msra.mxu0 0.0
        %8333 = vmatprep.subr.mxu0 0.0
        %8334 = vmatpush1.msra.mxu0 0.0
        %8335 = vmatprep.subr.mxu0 0.0
        %8336 = vmatpush1.msra.mxu0 0.0
        %8337 = vmatprep.subr.mxu0 0.0
        %8338 = vmatpush1.msra.mxu0 0.0
        %8339 = vmatprep.subr.mxu0 0.0
        %8340 = vmatpush1.msra.mxu0 0.0
        %8341 = vmatprep.subr.mxu0 0.0
        %8342 = vmatpush1.msra.mxu0 0.0
        %8343 = vmatprep.subr.mxu0 0.0
        %8344 = vmatpush1.msra.mxu0 0.0
        %8345 = vmatprep.subr.mxu0 0.0
        %8346 = vmatpush1.msra.mxu0 0.0
        %8347 = vmatprep.subr.mxu0 0.0
        %8348 = vmatpush1.msra.mxu0 0.0
        %8349 = vmatprep.subr.mxu0 0.0
        %8350 = vmatpush1.msra.mxu0 0.0
        %8351 = vmatprep.subr.mxu0 0.0
        %8352 = vmatpush1.msra.mxu0 0.0
        %8353 = vmatprep.subr.mxu0 0.0
        %8354 = vmatpush1.msra.mxu0 0.0
        %8355 = vmatprep.subr.mxu0 0.0
        %8356 = vmatpush1.msra.mxu0 0.0
        %8357 = vmatprep.subr.mxu0 0.0
        %8358 = vmatpush1.msra.mxu0 0.0
        %8359 = vmatprep.subr.mxu0 0.0
        %8360 = vmatpush1.msra.mxu0 0.0
        %8361 = vmatprep.subr.mxu0 0.0
        %8362 = vmatpush1.msra.mxu0 0.0
        %8363 = vmatprep.subr.mxu0 0.0
        %8364 = vmatpush1.msra.mxu0 0.0
        %8365 = vmatprep.subr.mxu0 0.0
        %8366 = vmatpush1.msra.mxu0 0.0
        %8367 = vmatprep.subr.mxu0 0.0
        %8368 = vmatpush1.msra.mxu0 0.0
        %8369 = vmatprep.subr.mxu0 0.0
        %8370 = vmatpush1.msra.mxu0 0.0
        %8371 = vmatprep.subr.mxu0 0.0
        %8372 = vmatpush1.msra.mxu0 0.0
        %8373 = vmatprep.subr.mxu0 0.0
        %8374 = vmatpush1.msra.mxu0 0.0
        %8375 = vmatprep.subr.mxu0 0.0
        %8376 = vmatpush1.msra.mxu0 0.0
        %8377 = vmatprep.subr.mxu0 0.0
        %8378 = vmatpush1.msra.mxu0 0.0
        %8379 = vmatprep.subr.mxu0 0.0
        %8380 = vmatpush1.msra.mxu0 0.0
        %8381 = vmatprep.subr.mxu0 0.0
        %8382 = vmatpush1.msra.mxu0 0.0
        %8383 = vmatprep.subr.mxu0 0.0
        %8384 = vmatpush1.msra.mxu0 0.0
        %8385 = vmatprep.subr.mxu0 0.0
        %8386 = vmatpush1.msra.mxu0 0.0
        %8387 = vmatprep.subr.mxu0 0.0
        %8388 = vmatpush1.msra.mxu0 0.0
        %8389 = vmatprep.subr.mxu0 0.0
        %8390 = vmatpush1.msra.mxu0 0.0
        %8391 = vmatprep.subr.mxu0 0.0
        %8392 = vmatpush1.msra.mxu0 0.0
        %8393 = vmatprep.mubr.f32.mxu0 0.0
        %8394 = vmatmul.mubr.f32.gmra.mrb[0].mxu0 %v8221
        %v8395 = vpop.f32.mrb[0].mxu0
        %v8396 = vadd.f32 0.0, %v8395
        %v8397 = vpop.f32.mrb[0].mxu0
        %8398 = vmatprep.mubr.f32.mxu0 0.0
        %8399 = vmatmul.mubr.f32.gmra.mrb[0].mxu0 %v8224
        %v8400 = vpop.f32.mrb[0].mxu0
        %v8401 = vadd.f32 0.0, %v8400
        %v8402 = vpop.f32.mrb[0].mxu0
        %8403 = vdwg.mxu0
        %8404 = vxpose.xlu0.b32.start [1/16] %v8326, 128
        %8405 = vxpose.xlu0.b32.cont [2/16] %v8328, 128
        %8406 = vxpose.xlu0.b32.cont [3/16] 0.0, 128
        %8407 = vxpose.xlu0.b32.cont [4/16] 0.0, 128
        %8408 = vxpose.xlu0.b32.cont [5/16] 0.0, 128
        %8409 = vxpose.xlu0.b32.cont [6/16] 0.0, 128
        %8410 = vxpose.xlu0.b32.cont [7/16] 0.0, 128
        %8411 = vxpose.xlu0.b32.cont [8/16] 0.0, 128
        %8412 = vxpose.xlu0.b32.cont [9/16] 0.0, 128
        %8413 = vxpose.xlu0.b32.cont [10/16] 0.0, 128
        %8414 = vxpose.xlu0.b32.cont [11/16] 0.0, 128
        %8415 = vxpose.xlu0.b32.cont [12/16] 0.0, 128
        %8416 = vxpose.xlu0.b32.cont [13/16] 0.0, 128
        %8417 = vxpose.xlu0.b32.cont [14/16] 0.0, 128
        %8418 = vxpose.xlu0.b32.cont [15/16] 0.0, 128
        %8419 = vxpose.xlu0.b32.end [16/16] 0.0, 128
        %v8420 = vpop.trf.xlu0
        %v8421 = vpop.trf.xlu0
        %v8422 = vpop.trf.xlu0
        %v8423 = vpop.trf.xlu0
        %v8424 = vpop.trf.xlu0
        %v8425 = vpop.trf.xlu0
        %v8426 = vpop.trf.xlu0
        %v8427 = vpop.trf.xlu0
        %v8428 = vpop.trf.xlu0
        %v8429 = vpop.trf.xlu0
        %v8430 = vpop.trf.xlu0
        %v8431 = vpop.trf.xlu0
        %v8432 = vpop.trf.xlu0
        %v8433 = vpop.trf.xlu0
        %v8434 = vpop.trf.xlu0
        %v8435 = vpop.trf.xlu0
        %v8437 = vsel %vm859, %v8420, 0
        %v8440 = vsel %vm859, %v8421, 0
        %8442 = vmatprep.subr.mxu0 0.0
        %8443 = vmatpush1.msra.mxu0 1.0
        %8444 = vmatprep.subr.mxu0 0.0
        %8445 = vmatpush1.msra.mxu0 1.0
        %8446 = vmatprep.subr.mxu0 0.0
        %8447 = vmatpush1.msra.mxu0 0.0
        %8448 = vmatprep.subr.mxu0 0.0
        %8449 = vmatpush1.msra.mxu0 0.0
        %8450 = vmatprep.subr.mxu0 0.0
        %8451 = vmatpush1.msra.mxu0 0.0
        %8452 = vmatprep.subr.mxu0 0.0
        %8453 = vmatpush1.msra.mxu0 0.0
        %8454 = vmatprep.subr.mxu0 0.0
        %8455 = vmatpush1.msra.mxu0 0.0
        %8456 = vmatprep.subr.mxu0 0.0
        %8457 = vmatpush1.msra.mxu0 0.0
        %8458 = vmatprep.subr.mxu0 0.0
        %8459 = vmatpush1.msra.mxu0 0.0
        %8460 = vmatprep.subr.mxu0 0.0
        %8461 = vmatpush1.msra.mxu0 0.0
        %8462 = vmatprep.subr.mxu0 0.0
        %8463 = vmatpush1.msra.mxu0 0.0
        %8464 = vmatprep.subr.mxu0 0.0
        %8465 = vmatpush1.msra.mxu0 0.0
        %8466 = vmatprep.subr.mxu0 0.0
        %8467 = vmatpush1.msra.mxu0 0.0
        %8468 = vmatprep.subr.mxu0 0.0
        %8469 = vmatpush1.msra.mxu0 0.0
        %8470 = vmatprep.subr.mxu0 0.0
        %8471 = vmatpush1.msra.mxu0 0.0
        %8472 = vmatprep.subr.mxu0 0.0
        %8473 = vmatpush1.msra.mxu0 0.0
        %8474 = vmatprep.subr.mxu0 0.0
        %8475 = vmatpush1.msra.mxu0 0.0
        %8476 = vmatprep.subr.mxu0 0.0
        %8477 = vmatpush1.msra.mxu0 0.0
        %8478 = vmatprep.subr.mxu0 0.0
        %8479 = vmatpush1.msra.mxu0 0.0
        %8480 = vmatprep.subr.mxu0 0.0
        %8481 = vmatpush1.msra.mxu0 0.0
        %8482 = vmatprep.subr.mxu0 0.0
        %8483 = vmatpush1.msra.mxu0 0.0
        %8484 = vmatprep.subr.mxu0 0.0
        %8485 = vmatpush1.msra.mxu0 0.0
        %8486 = vmatprep.subr.mxu0 0.0
        %8487 = vmatpush1.msra.mxu0 0.0
        %8488 = vmatprep.subr.mxu0 0.0
        %8489 = vmatpush1.msra.mxu0 0.0
        %8490 = vmatprep.subr.mxu0 0.0
        %8491 = vmatpush1.msra.mxu0 0.0
        %8492 = vmatprep.subr.mxu0 0.0
        %8493 = vmatpush1.msra.mxu0 0.0
        %8494 = vmatprep.subr.mxu0 0.0
        %8495 = vmatpush1.msra.mxu0 0.0
        %8496 = vmatprep.subr.mxu0 0.0
        %8497 = vmatpush1.msra.mxu0 0.0
        %8498 = vmatprep.subr.mxu0 0.0
        %8499 = vmatpush1.msra.mxu0 0.0
        %8500 = vmatprep.subr.mxu0 0.0
        %8501 = vmatpush1.msra.mxu0 0.0
        %8502 = vmatprep.subr.mxu0 0.0
        %8503 = vmatpush1.msra.mxu0 0.0
        %8504 = vmatprep.subr.mxu0 0.0
        %8505 = vmatpush1.msra.mxu0 0.0
        %8506 = vmatprep.mubr.f32.mxu0 0.0
        %8507 = vmatmul.mubr.f32.gmra.mrb[0].mxu0 %v8437
        %v8508 = vpop.f32.mrb[0].mxu0
        %v8509 = vadd.f32 0.0, %v8508
        %v8510 = vpop.f32.mrb[0].mxu0
        %8511 = vmatprep.mubr.f32.mxu0 0.0
        %8512 = vmatmul.mubr.f32.gmra.mrb[0].mxu0 %v8440
        %v8513 = vpop.f32.mrb[0].mxu0
        %v8514 = vadd.f32 0.0, %v8513
        %v8515 = vpop.f32.mrb[0].mxu0
        %8516 = vdwg.mxu0
        %v8517 = vsel %vm859, %v8326, 0.0
        %v8518 = vsel %vm859, %v8328, 0.0
        %v8519 = vadd.f32 %v8517, %v8518
        %v8520 = vrot.slane %v8519, 4
        %v8521 = vadd.f32 %v8519, %v8520
        %v8522 = vrot.slane %v8521, 2
        %v8523 = vadd.f32 %v8521, %v8522
        %v8524 = vrot.slane %v8523, 1
        %v8525 = vadd.f32 %v8523, %v8524
        %v8526 = vrsqrt.pop %v8509
        %v8527 = vmul.f32 %v8509, %v8526
        %vm8528 = vcmp.eq.f32.partialorder %v8509, inf
        %v8529 = vsel %vm8528, %v8509, %v8527
        %vm8530 = vcmp.eq.f32.partialorder %v8509, 0.0
        %v8531 = vand.u32 %v8509, 2147483648
        %v8532 = vsel %vm8530, %v8531, %v8529
        %v8533 = vrsqrt.pop %v8514
        %v8534 = vmul.f32 %v8514, %v8533
        %vm8535 = vcmp.eq.f32.partialorder %v8514, inf
        %v8536 = vsel %vm8535, %v8514, %v8534
        %vm8537 = vcmp.eq.f32.partialorder %v8514, 0.0
        %v8538 = vand.u32 %v8514, 2147483648
        %v8539 = vsel %vm8537, %v8538, %v8536
        %v8540 = vrcp.pop %v8532
        %v8541 = vmul.f32 1.0, %v8540
        %v8542 = vrcp.pop %v8539
        %v8543 = vmul.f32 1.0, %v8542
        %v8544 = vrsqrt.pop %v8525
        %v8545 = vmul.f32 %v8525, %v8544
        %vm8546 = vcmp.eq.f32.partialorder %v8525, inf
        %v8547 = vsel %vm8546, %v8525, %v8545
        %vm8548 = vcmp.eq.f32.partialorder %v8525, 0.0
        %v8549 = vand.u32 %v8525, 2147483648
        %v8550 = vsel %vm8548, %v8549, %v8547
        %v8551 = vrcp.pop %v8550
        %v8552 = vmul.f32 1.0, %v8551
        %8554 = vset.pattern.permute.xlu0 0
        %8555 = vperm.xlu0 %8554, %v8541
        %v8556 = vpop.permute.xlu0 %8555
        %8559 = vset.pattern.permute.xlu0 0
        %8560 = vperm.xlu0 %8559, %v8543
        %v8561 = vpop.permute.xlu0 %8560
        %v8563 = vmul.f32 %v8556, %v8326
        %v8564 = vmul.f32 %v8561, %v8328
        %v8565 = vmul.f32 %v8563, %v8552
        %v8566 = vmul.f32 %v8564, %v8552
        %8567 = vxpose.xlu0.b32.start [1/16] %v8565, 128
        %8568 = vxpose.xlu0.b32.cont [2/16] %v8566, 128
        %8569 = vxpose.xlu0.b32.cont [3/16] 0.0, 128
        %8570 = vxpose.xlu0.b32.cont [4/16] 0.0, 128
        %8571 = vxpose.xlu0.b32.cont [5/16] 0.0, 128
        %8572 = vxpose.xlu0.b32.cont [6/16] 0.0, 128
        %8573 = vxpose.xlu0.b32.cont [7/16] 0.0, 128
        %8574 = vxpose.xlu0.b32.cont [8/16] 0.0, 128
        %8575 = vxpose.xlu0.b32.cont [9/16] 0.0, 128
        %8576 = vxpose.xlu0.b32.cont [10/16] 0.0, 128
        %8577 = vxpose.xlu0.b32.cont [11/16] 0.0, 128
        %8578 = vxpose.xlu0.b32.cont [12/16] 0.0, 128
        %8579 = vxpose.xlu0.b32.cont [13/16] 0.0, 128
        %8580 = vxpose.xlu0.b32.cont [14/16] 0.0, 128
        %8581 = vxpose.xlu0.b32.cont [15/16] 0.0, 128
        %8582 = vxpose.xlu0.b32.end [16/16] 0.0, 128
        %v8583 = vpop.trf.xlu0
        %v8584 = vpop.trf.xlu0
        %v8585 = vpop.trf.xlu0
        %v8586 = vpop.trf.xlu0
        %v8587 = vpop.trf.xlu0
        %v8588 = vpop.trf.xlu0
        %v8589 = vpop.trf.xlu0
        %v8590 = vpop.trf.xlu0
        %v8591 = vpop.trf.xlu0
        %v8592 = vpop.trf.xlu0
        %v8593 = vpop.trf.xlu0
        %v8594 = vpop.trf.xlu0
        %v8595 = vpop.trf.xlu0
        %v8596 = vpop.trf.xlu0
        %v8597 = vpop.trf.xlu0
        %v8598 = vpop.trf.xlu0
        %v8600 = vsel %vm859, %v8583, 0
        %v8603 = vsel %vm859, %v8584, 0
        %8605 = vmatprep.subr.mxu0 0.0
        %8606 = vmatpush1.msra.mxu0 %v8396
        %8607 = vmatprep.subr.mxu0 0.0
        %8608 = vmatpush1.msra.mxu0 %v8401
        %8609 = vmatprep.subr.mxu0 0.0
        %8610 = vmatpush1.msra.mxu0 0.0
        %8611 = vmatprep.subr.mxu0 0.0
        %8612 = vmatpush1.msra.mxu0 0.0
        %8613 = vmatprep.subr.mxu0 0.0
        %8614 = vmatpush1.msra.mxu0 0.0
        %8615 = vmatprep.subr.mxu0 0.0
        %8616 = vmatpush1.msra.mxu0 0.0
        %8617 = vmatprep.subr.mxu0 0.0
        %8618 = vmatpush1.msra.mxu0 0.0
        %8619 = vmatprep.subr.mxu0 0.0
        %8620 = vmatpush1.msra.mxu0 0.0
        %8621 = vmatprep.subr.mxu0 0.0
        %8622 = vmatpush1.msra.mxu0 0.0
        %8623 = vmatprep.subr.mxu0 0.0
        %8624 = vmatpush1.msra.mxu0 0.0
        %8625 = vmatprep.subr.mxu0 0.0
        %8626 = vmatpush1.msra.mxu0 0.0
        %8627 = vmatprep.subr.mxu0 0.0
        %8628 = vmatpush1.msra.mxu0 0.0
        %8629 = vmatprep.subr.mxu0 0.0
        %8630 = vmatpush1.msra.mxu0 0.0
        %8631 = vmatprep.subr.mxu0 0.0
        %8632 = vmatpush1.msra.mxu0 0.0
        %8633 = vmatprep.subr.mxu0 0.0
        %8634 = vmatpush1.msra.mxu0 0.0
        %8635 = vmatprep.subr.mxu0 0.0
        %8636 = vmatpush1.msra.mxu0 0.0
        %8637 = vmatprep.subr.mxu0 0.0
        %8638 = vmatpush1.msra.mxu0 0.0
        %8639 = vmatprep.subr.mxu0 0.0
        %8640 = vmatpush1.msra.mxu0 0.0
        %8641 = vmatprep.subr.mxu0 0.0
        %8642 = vmatpush1.msra.mxu0 0.0
        %8643 = vmatprep.subr.mxu0 0.0
        %8644 = vmatpush1.msra.mxu0 0.0
        %8645 = vmatprep.subr.mxu0 0.0
        %8646 = vmatpush1.msra.mxu0 0.0
        %8647 = vmatprep.subr.mxu0 0.0
        %8648 = vmatpush1.msra.mxu0 0.0
        %8649 = vmatprep.subr.mxu0 0.0
        %8650 = vmatpush1.msra.mxu0 0.0
        %8651 = vmatprep.subr.mxu0 0.0
        %8652 = vmatpush1.msra.mxu0 0.0
        %8653 = vmatprep.subr.mxu0 0.0
        %8654 = vmatpush1.msra.mxu0 0.0
        %8655 = vmatprep.subr.mxu0 0.0
        %8656 = vmatpush1.msra.mxu0 0.0
        %8657 = vmatprep.subr.mxu0 0.0
        %8658 = vmatpush1.msra.mxu0 0.0
        %8659 = vmatprep.subr.mxu0 0.0
        %8660 = vmatpush1.msra.mxu0 0.0
        %8661 = vmatprep.subr.mxu0 0.0
        %8662 = vmatpush1.msra.mxu0 0.0
        %8663 = vmatprep.subr.mxu0 0.0
        %8664 = vmatpush1.msra.mxu0 0.0
        %8665 = vmatprep.subr.mxu0 0.0
        %8666 = vmatpush1.msra.mxu0 0.0
        %8667 = vmatprep.subr.mxu0 0.0
        %8668 = vmatpush1.msra.mxu0 0.0
        %8669 = vmatprep.mubr.f32.mxu0 0.0
        %8670 = vmatmul.mubr.f32.gmra.mrb[0].mxu0 %v8600
        %v8671 = vpop.f32.mrb[0].mxu0
        %v8672 = vadd.f32 %v1654, %v8671
        %v8673 = vpop.f32.mrb[0].mxu0
        %8674 = vmatprep.mubr.f32.mxu0 0.0
        %8675 = vmatmul.mubr.f32.gmra.mrb[0].mxu0 %v8603
        %v8676 = vpop.f32.mrb[0].mxu0
        %v8677 = vadd.f32 %v1654, %v8676
        %v8678 = vpop.f32.mrb[0].mxu0
        %8679 = vdwg.mxu0
        %v8680 = vsel %vm1277, %v8672, 0.0
        %v8681 = vsel %vm1277, %v8677, 0.0
        %v8682 = vadd.f32 %v8680, %v8681
        %v8683 = vrot.slane %v8682, 4
        %v8684 = vadd.f32 %v8682, %v8683
        %v8685 = vrot.slane %v8684, 2
        %v8686 = vadd.f32 %v8684, %v8685
        %v8687 = vrot.slane %v8686, 1
        %v8688 = vadd.f32 %v8686, %v8687
        %v8689 = vmul.f32 %v8688, %v1778
        %8691 = vrot.lane.b32.xlu0 %v8689, 32
        %v8692 = vpop.permute.xlu0 %8691
        %v8694 = vsel %vm1277, %v8219, %v8692
        %v8696 = vsel %vm1785, %v8694, 0
        %8698 = vmatprep.subr.mxu0 0.0
        %8699 = vmatpush1.msra.mxu0 %v818
        %8700 = vmatprep.subr.mxu0 0.0
        %8701 = vmatpush1.msra.mxu0 %v819
        %8702 = vmatprep.subr.mxu0 0.0
        %8703 = vmatpush1.msra.mxu0 %v820
        %8704 = vmatprep.subr.mxu0 0.0
        %8705 = vmatpush1.msra.mxu0 %v821
        %8706 = vmatprep.subr.mxu0 0.0
        %8707 = vmatpush1.msra.mxu0 %v822
        %8708 = vmatprep.subr.mxu0 0.0
        %8709 = vmatpush1.msra.mxu0 %v823
        %8710 = vmatprep.subr.mxu0 0.0
        %8711 = vmatpush1.msra.mxu0 %v824
        %8712 = vmatprep.subr.mxu0 0.0
        %8713 = vmatpush1.msra.mxu0 %v825
        %8714 = vmatprep.subr.mxu0 0.0
        %8715 = vmatpush1.msra.mxu0 0.0
        %8716 = vmatprep.subr.mxu0 0.0
        %8717 = vmatpush1.msra.mxu0 0.0
        %8718 = vmatprep.subr.mxu0 0.0
        %8719 = vmatpush1.msra.mxu0 0.0
        %8720 = vmatprep.subr.mxu0 0.0
        %8721 = vmatpush1.msra.mxu0 0.0
        %8722 = vmatprep.subr.mxu0 0.0
        %8723 = vmatpush1.msra.mxu0 0.0
        %8724 = vmatprep.subr.mxu0 0.0
        %8725 = vmatpush1.msra.mxu0 0.0
        %8726 = vmatprep.subr.mxu0 0.0
        %8727 = vmatpush1.msra.mxu0 0.0
        %8728 = vmatprep.subr.mxu0 0.0
        %8729 = vmatpush1.msra.mxu0 0.0
        %8730 = vmatprep.subr.mxu0 0.0
        %8731 = vmatpush1.msra.mxu0 0.0
        %8732 = vmatprep.subr.mxu0 0.0
        %8733 = vmatpush1.msra.mxu0 0.0
        %8734 = vmatprep.subr.mxu0 0.0
        %8735 = vmatpush1.msra.mxu0 0.0
        %8736 = vmatprep.subr.mxu0 0.0
        %8737 = vmatpush1.msra.mxu0 0.0
        %8738 = vmatprep.subr.mxu0 0.0
        %8739 = vmatpush1.msra.mxu0 0.0
        %8740 = vmatprep.subr.mxu0 0.0
        %8741 = vmatpush1.msra.mxu0 0.0
        %8742 = vmatprep.subr.mxu0 0.0
        %8743 = vmatpush1.msra.mxu0 0.0
        %8744 = vmatprep.subr.mxu0 0.0
        %8745 = vmatpush1.msra.mxu0 0.0
        %8746 = vmatprep.subr.mxu0 0.0
        %8747 = vmatpush1.msra.mxu0 0.0
        %8748 = vmatprep.subr.mxu0 0.0
        %8749 = vmatpush1.msra.mxu0 0.0
        %8750 = vmatprep.subr.mxu0 0.0
        %8751 = vmatpush1.msra.mxu0 0.0
        %8752 = vmatprep.subr.mxu0 0.0
        %8753 = vmatpush1.msra.mxu0 0.0
        %8754 = vmatprep.subr.mxu0 0.0
        %8755 = vmatpush1.msra.mxu0 0.0
        %8756 = vmatprep.subr.mxu0 0.0
        %8757 = vmatpush1.msra.mxu0 0.0
        %8758 = vmatprep.subr.mxu0 0.0
        %8759 = vmatpush1.msra.mxu0 0.0
        %8760 = vmatprep.subr.mxu0 0.0
        %8761 = vmatpush1.msra.mxu0 0.0
        %8762 = vmatprep.mubr.f32.mxu0 0.0
        %8763 = vmatmul.mubr.f32.gmra.mrb[0].mxu0 %v8696
        %v8764 = vpop.f32.mrb[0].mxu0
        %v8765 = vadd.f32 %v826, %v8764
        %v8766 = vpop.f32.mrb[0].mxu0
        %8767 = vdwg.mxu0
        %v8769 = vrot.slane %v2843, 7
        %v8772 = vrot.slane %v3830, 6
        %v8775 = vrot.slane %v4817, 5
        %v8778 = vrot.slane %v5804, 4
        %v8781 = vrot.slane %v6791, 3
        %v8784 = vrot.slane %v7778, 2
        %v8787 = vrot.slane %v8765, 1
        %vm8789 = vcmask 1040384
        %v8790 = vsel %vm8789, %v1856, %v8769
        %vm8791 = vcmask 1041408
        %v8792 = vsel %vm8791, %v8790, %v8772
        %vm8793 = vcmask 1042432
        %v8794 = vsel %vm8793, %v8792, %v8775
        %vm8795 = vcmask 1043456
        %v8796 = vsel %vm8795, %v8794, %v8778
        %vm8797 = vcmask 1044480
        %v8798 = vsel %vm8797, %v8796, %v8781
        %vm8799 = vcmask 1045504
        %v8800 = vsel %vm8799, %v8798, %v8784
        %vm8801 = vcmask 1046528
        %v8802 = vsel %vm8801, %v8800, %v8787
        %8803 = vst.msk [vmem:[%s564] sm:$0xff] %vm947, %v8802
        %8804 = vst.msk [vmem:[%s569] sm:$0xff] %vm947, %v958
        %8805 = vst.msk [vmem:[%s569 + $0x8] sm:$0xff] %vm947, %v1977
        %8806 = vst.msk [vmem:[%s569 + $0x10] sm:$0xff] %vm947, %v2964
        %8807 = vst.msk [vmem:[%s569 + $0x18] sm:$0xff] %vm947, %v3951
        %8808 = vst.msk [vmem:[%s569 + $0x20] sm:$0xff] %vm947, %v4938
        %8809 = vst.msk [vmem:[%s569 + $0x28] sm:$0xff] %vm947, %v5925
        %8810 = vst.msk [vmem:[%s569 + $0x30] sm:$0xff] %vm947, %v6912
        %8811 = vst.msk [vmem:[%s569 + $0x38] sm:$0xff] %vm947, %v7899
        %8812 = vst.msk [vmem:[%s547] sm:$0xff] %vm859, %v1409
        %8813 = vst.msk [vmem:[%s547 + $0x8] sm:$0xff] %vm859, %v1411
        %8814 = vst.msk [vmem:[%s547 + $0x10] sm:$0xff] %vm859, %v2404
        %8815 = vst.msk [vmem:[%s547 + $0x18] sm:$0xff] %vm859, %v2406
        %8816 = vst.msk [vmem:[%s547 + $0x20] sm:$0xff] %vm859, %v3391
        %8817 = vst.msk [vmem:[%s547 + $0x28] sm:$0xff] %vm859, %v3393
        %8818 = vst.msk [vmem:[%s547 + $0x30] sm:$0xff] %vm859, %v4378
        %8819 = vst.msk [vmem:[%s547 + $0x38] sm:$0xff] %vm859, %v4380
        %8820 = vst.msk [vmem:[%s547 + $0x40] sm:$0xff] %vm859, %v5365
        %8821 = vst.msk [vmem:[%s547 + $0x48] sm:$0xff] %vm859, %v5367
        %8822 = vst.msk [vmem:[%s547 + $0x50] sm:$0xff] %vm859, %v6352
        %8823 = vst.msk [vmem:[%s547 + $0x58] sm:$0xff] %vm859, %v6354
        %8824 = vst.msk [vmem:[%s547 + $0x60] sm:$0xff] %vm859, %v7339
        %8825 = vst.msk [vmem:[%s547 + $0x68] sm:$0xff] %vm859, %v7341
        %8826 = vst.msk [vmem:[%s547 + $0x70] sm:$0xff] %vm859, %v8326
        %8827 = vst.msk [vmem:[%s547 + $0x78] sm:$0xff] %vm859, %v8328
        %p8828 = scmp.lt.s32.totalorder %s31, 1
        %s8829 = scalar_select %p8828, %s31, 1
        %s8830 = smul.addr %s8829, 8
        %s8831 = scalar_lea.vmem %s14, %s8830
        %s8832 = smul.u32 8, %s31
        %p8833 = scmp.lt.s32.totalorder %s8832, 15
        %s8834 = scalar_select %p8833, %s8832, 15
        %s8835 = smul.addr %s8834, 8
        %s8836 = scalar_lea.vmem %s15, %s8835
        %s8837 = sand.u32 %s395, 1
        %s8838 = scalar_lea.sflag [#allocation3], %s8837
        %s8839 = sand.u32 %s395, 1
        %s8840 = smul.addr %s8839, 128
        %s8841 = scalar_lea.vmem [#allocation2], %s8840
        // Predicated region
        $region77: #{tpu_custom_call.1} parent=75 // pred_check
          %p8842 = pneg %p353
        $region78: #{tpu_custom_call.1} parent=75 // pred_check_branch
          %8844 = sbr.rel (%p8842) target = $region80
        $region79: #{tpu_custom_call.1} parent=75 // pred_region
          _
        $region80: #{tpu_custom_call.1} parent=75 // pred_fallthru
          _
        // Predicated region
        $region81: #{tpu_custom_call.1} parent=75 // pred_check
          %p8845 = pneg %p379
        $region82: #{tpu_custom_call.1} parent=75 // pred_check_branch
          %8847 = sbr.rel (%p8845) target = $region84
        $region83: #{tpu_custom_call.1} parent=75 // pred_region
          %s8848 = smul.u32 8, %s31
        $region84: #{tpu_custom_call.1} parent=75 // pred_fallthru
          _
        // Predicated region
        $region85: #{tpu_custom_call.1} parent=75 // pred_check
          %p8849 = pneg %p405
        $region86: #{tpu_custom_call.1} parent=75 // pred_check_branch
          %8851 = sbr.rel (%p8849) target = $region88
        $region87: #{tpu_custom_call.1} parent=75 // pred_region
          %s8852 = smul.u32 8, %s31
          %s8854 = ssub.s32 2048, 2048
          %8855 = vsyncadd %s8838, %s8854
          %s8856 = smul.addr %s8852, 2
          %s8857 = smul.addr %s8856, 128
          %s8858 = scalar_lea.hbm %s16, %s8857
          %s8859 = sshll.u32 %s8841, 4
          %s8860 = int_to_ptr.vmem [resolvable:$true] %s8859
          %8865 = dma.vmem_to_hbm [thread:$0]  %s8860, 2048, %s8858, %s8838, 128, 128, 8
        $region88: #{tpu_custom_call.1} parent=75 // pred_fallthru
          _
      $region76: #{tpu_custom_call.1} parent=5 // pred_fallthru
        _
      %p8866 = scmp.le.s32.totalorder 2, %s26
      // Predicated region
      $region89: #{tpu_custom_call.1} parent=5 // pred_check
        %p8867 = pneg %p8866
      $region90: #{tpu_custom_call.1} parent=5 // pred_check_branch
        %8869 = sbr.rel (%p8867) target = $region92
      $region91: #{tpu_custom_call.1} parent=5 // pred_region
        %s8870 = ssub.s32 %s26, 2
        // Predicated region
        $region93: #{tpu_custom_call.1} parent=91 // pred_check
          %p8871 = pneg %p359
        $region94: #{tpu_custom_call.1} parent=91 // pred_check_branch
          %8873 = sbr.rel (%p8871) target = $region96
        $region95: #{tpu_custom_call.1} parent=91 // pred_region
          %p8874 = scmp.lt.s32.totalorder %s32, 1
          %s8875 = scalar_select %p8874, %s32, 1
          %s8876 = smul.addr %s8875, 8
          %s8877 = scalar_lea.vmem %s14, %s8876
        $region96: #{tpu_custom_call.1} parent=91 // pred_fallthru
          _
        // Predicated region
        $region97: #{tpu_custom_call.1} parent=91 // pred_check
          %p8878 = pneg %p385
        $region98: #{tpu_custom_call.1} parent=91 // pred_check_branch
          %8880 = sbr.rel (%p8878) target = $region100
        $region99: #{tpu_custom_call.1} parent=91 // pred_region
          %s8881 = smul.u32 8, %s32
          %p8882 = scmp.lt.s32.totalorder %s8881, 15
          %s8883 = scalar_select %p8882, %s8881, 15
          %s8884 = smul.addr %s8883, 8
          %s8885 = scalar_lea.vmem %s15, %s8884
        $region100: #{tpu_custom_call.1} parent=91 // pred_fallthru
          _
        // Predicated region
        $region101: #{tpu_custom_call.1} parent=91 // pred_check
          %p8886 = pneg %p411
        $region102: #{tpu_custom_call.1} parent=91 // pred_check_branch
          %8888 = sbr.rel (%p8886) target = $region104
        $region103: #{tpu_custom_call.1} parent=91 // pred_region
          %s8889 = sand.u32 %s396, 1
          %s8890 = scalar_lea.sflag [#allocation3], %s8889
          %s8891 = sand.u32 %s396, 1
          %s8892 = smul.addr %s8891, 128
          %s8893 = scalar_lea.vmem [#allocation2], %s8892
          %8894 = dma.done %s8890, 2048
        $region104: #{tpu_custom_call.1} parent=91 // pred_fallthru
          _
      $region92: #{tpu_custom_call.1} parent=5 // pred_fallthru
        _
    $region6: #{tpu_custom_call.1} parent=1 // loop_footer
      %s30 = sadd.s32 1, %s26
    $region7: #{tpu_custom_call.1} parent=1 // loop_footer_branch
      %25 = sbr.rel target = $region3
    $region8: #{tpu_custom_call.1} parent=1 // loop_exit
      _
    %8895 = vsyncpa [#allocation3], 1
    %s8896 = scalar_lea.sflag [#allocation3], 1
    %8897 = vsyncpa %s8896, 1

</llo_original>
